<compile_context>
chip_gen: v5e
topology: v5e:2x2
jax: 0.10.0
libtpu: 0.0.40
codegen_flags: <defaults>
</compile_context>

<pallas_src>
import jax
import jax.numpy as jnp
from jax.experimental import pallas as pl
from jax.experimental.pallas import tpu as pltpu


def linear_kernel(x_ref, w_ref, b_ref, o_ref):
    # x_ref: [M, K] f32 (full array; constant block index so it is fetched once
    #        and stays resident across grid steps)
    # w_ref: [K, tn] bf16 (pre-transposed, native MXU RHS layout)
    # b_ref: [1, tn] f32
    # o_ref: [M, tn] f32
    x_bf = x_ref[...].astype(jnp.bfloat16)
    acc = jax.lax.dot_general(
        x_bf,
        w_ref[...],
        dimension_numbers=(((1,), (0,)), ((), ())),  # canonical [M,K]x[K,N]
        preferred_element_type=jnp.float32,          # f32 accumulation on MXU
    )
    o_ref[...] = (acc + b_ref[...]).astype(o_ref.dtype)


def pallas_linear(x, weight_kn, bias, *, tn=1536):
    """Linear layer y = x @ W_kn + b applied to the last dim of x.

    x:         [..., K] float32
    weight_kn: [K, Nout] — pre-transposed (one-time prep), ideally bf16
    bias:      [Nout]
    Returns [..., Nout] in x.dtype.
    """
    orig_shape = x.shape
    K = orig_shape[-1]
    Kw, Nout = weight_kn.shape
    assert Kw == K
    assert Nout % tn == 0 and tn % 128 == 0  # lane-dense output tiles

    x2d = x.reshape(-1, K)                        # [M, K]
    M = x2d.shape[0]
    b2d = bias.reshape(1, Nout).astype(jnp.float32)

    grid = (Nout // tn,)

    bytes_accessed = (
        x2d.size * x2d.dtype.itemsize                    # x stream (~602 KB)
        + weight_kn.size * weight_kn.dtype.itemsize      # W stream (bf16 ~4.7 MB)
        + b2d.size * b2d.dtype.itemsize                  # bias
        + M * Nout * x.dtype.itemsize                    # output writeback
    )

    out2d = pl.pallas_call(
        linear_kernel,
        out_shape=jax.ShapeDtypeStruct((M, Nout), x.dtype),
        grid_spec=pltpu.PrefetchScalarGridSpec(
            num_scalar_prefetch=0,
            grid=grid,
            in_specs=[
                pl.BlockSpec((M, K), lambda j: (0, 0)),    # full x, resident
                pl.BlockSpec((K, tn), lambda j: (0, j)),   # Nout-tile of [K,N] W
                pl.BlockSpec((1, tn), lambda j: (0, j)),   # Nout-tile of bias
            ],
            out_specs=pl.BlockSpec((M, tn), lambda j: (0, j)),
        ),
        compiler_params=pltpu.CompilerParams(
            dimension_semantics=("parallel",),   # megacore / dual-TC sharding
        ),
        cost_estimate=pl.CostEstimate(
            flops=2 * M * K * Nout,
            bytes_accessed=bytes_accessed,
            transcendentals=0,
        ),
    )(x2d, weight_kn, b2d)

    return out2d.reshape(*orig_shape[:-1], Nout)


if __name__ == "__main__":
    key = jax.random.PRNGKey(0)
    kx, kw, kb = jax.random.split(key, 3)

    # Shapes implied by the module's forward.
    N, H, W, K, NOUT = 1, 14, 14, 768, 3072

    x = jax.random.normal(kx, (N, H, W, K), dtype=jnp.float32)
    # PyTorch Linear weight layout is [out, in]; synthesize deterministically.
    weight_f32 = jax.random.normal(kw, (NOUT, K), dtype=jnp.float32) * 0.02
    bias = jax.random.normal(kb, (NOUT,), dtype=jnp.float32) * 0.02

    # One-time param prep (outside the hot path): transpose to [K, Nout] for the
    # canonical MXU RHS feed and store as bf16 to halve the dominant HBM stream.
    weight_kn = weight_f32.T.astype(jnp.bfloat16)

    y = pallas_linear(x, weight_kn, bias)
    y = jax.block_until_ready(y)

    # Sanity check against plain-JAX f32 reference (PyTorch Linear semantics).
    # bf16 weight storage / bf16 MXU inputs need a looser tolerance than pure f32.
    y_ref = jnp.einsum(
        "nhwk,ok->nhwo", x, weight_f32, precision=jax.lax.Precision.HIGHEST
    ) + bias
    assert y.shape == (N, H, W, NOUT)
    max_err = float(jnp.max(jnp.abs(y - y_ref)))
    assert jnp.allclose(y, y_ref, atol=5e-2, rtol=5e-2), max_err

    print("KERNEL_OK")
</pallas_src>

<mosaic_0001>
module attributes {stable_mosaic.version = 11 : i64} {
  func.func @linear_kernel(%arg0: i32, %arg1: memref<196x768xf32, #tpu.memory_space<vmem>>, %arg2: memref<768x1536xbf16, #tpu.memory_space<vmem>>, %arg3: memref<1x1536xf32, #tpu.memory_space<vmem>>, %arg4: memref<196x1536xf32, #tpu.memory_space<vmem>>) attributes {dimension_semantics = [#tpu.dimension_semantics<parallel>], iteration_bounds = array<i64: 2>, scalar_prefetch = 0 : i64, scratch_operands = 0 : i64, tpu.core_type = #tpu.core_type<tc>, window_params = [{pipeline_mode = #tpu.pipeline_mode<synchronous>, transform_indices = @transform_0, window_bounds = array<i64: 196, 768>}, {transform_indices = @transform_1, window_bounds = array<i64: 768, 1536>}, {transform_indices = @transform_2, window_bounds = array<i64: 1, 1536>}, {transform_indices = @transform_3, window_bounds = array<i64: 196, 1536>}]} {
    %c0 = arith.constant 0 : index
    %c0_0 = arith.constant 0 : index
    %0 = vector.load %arg1[%c0, %c0_0] : memref<196x768xf32, #tpu.memory_space<vmem>>, vector<196x768xf32>
    %1 = arith.truncf %0 : vector<196x768xf32> to vector<196x768xbf16>
    %c0_1 = arith.constant 0 : index
    %c0_2 = arith.constant 0 : index
    %2 = vector.load %arg2[%c0_1, %c0_2] : memref<768x1536xbf16, #tpu.memory_space<vmem>>, vector<768x1536xbf16>
    %cst = arith.constant dense<0.000000e+00> : vector<196x1536xf32>
    %3 = tpu.matmul %1, %2, %cst {dimension_numbers = #tpu.dot_dimension_numbers<[1], [0], [0], [1], [0, 0, 1, 1], [], []>} : vector<196x768xbf16>, vector<768x1536xbf16>, vector<196x1536xf32> -> vector<196x1536xf32>
    %c0_3 = arith.constant 0 : index
    %c0_4 = arith.constant 0 : index
    %4 = vector.load %arg3[%c0_3, %c0_4] : memref<1x1536xf32, #tpu.memory_space<vmem>>, vector<1x1536xf32>
    %5 = vector.broadcast %4 : vector<1x1536xf32> to vector<196x1536xf32>
    %6 = arith.addf %3, %5 : vector<196x1536xf32>
    %c0_5 = arith.constant 0 : index
    %c0_6 = arith.constant 0 : index
    %7 = vector.load %arg4[%c0_5, %c0_6] : memref<196x1536xf32, #tpu.memory_space<vmem>>, vector<196x1536xf32>
    tpu.vector_store %arg4[%c0_5, %c0_6], %6 {strides = array<i32>} : memref<196x1536xf32, #tpu.memory_space<vmem>>, vector<196x1536xf32>,
    return
  }
  func.func @transform_0(%arg0: i32) -> (i32, i32) {
    %c0_i32 = arith.constant 0 : i32
    %c0_i32_0 = arith.constant 0 : i32
    %c0_i32_1 = arith.constant 0 : i32
    return %c0_i32, %c0_i32_0 : i32, i32
  }
  func.func @transform_1(%arg0: i32) -> (i32, i32) {
    %c0_i32 = arith.constant 0 : i32
    %c0_i32_0 = arith.constant 0 : i32
    return %c0_i32, %arg0 : i32, i32
  }
  func.func @transform_2(%arg0: i32) -> (i32, i32) {
    %c0_i32 = arith.constant 0 : i32
    %c0_i32_0 = arith.constant 0 : i32
    return %c0_i32, %arg0 : i32, i32
  }
  func.func @transform_3(%arg0: i32) -> (i32, i32) {
    %c0_i32 = arith.constant 0 : i32
    %c0_i32_0 = arith.constant 0 : i32
    return %c0_i32, %arg0 : i32, i32
  }
}

</mosaic_0001>

<llo_original>
// kernel: tpu_custom_call.1
$region0: #{tpu_custom_call.1}
  #allocation0 [shape = 'u32[]', space=smem, size = 0x4, offset = 0x4, fixed_abs, tag = 'smem constant byte address 0x4 - core index']
  #allocation1 [shape = 'u32[72,128]{1,0:T(1,128)}', space=vmem, size = 0x9000, scoped, tag = 'internal scratch']
  %s0 = inlined_call_operand.hbm [shape: f32[196,768], index: 0, kind: input, shape index: {}]
  %s1 = inlined_call_operand.hbm [shape: bf16[768,3072], index: 1, kind: input, shape index: {}]
  %s2 = inlined_call_operand.hbm [shape: f32[1,3072], index: 2, kind: input, shape index: {}]
  %s3 = inlined_call_operand.hbm [shape: f32[196,3072], index: 3, kind: output, shape index: {}]
  %s4 = sld [smem:[#allocation0]]
  $region57: #{tpu_custom_call.1} parent=0
    _
  %s6 = ssub.s32 1, %s4
  %s7 = scalar_select 0, %s6, %s4
  $region1: #{tpu_custom_call.1} parent=0
    #allocation2 [shape = 'u8[614400]{0}', space=vmem, size = 0x96000, scoped, tag = 'input window, operand 0, single buffered']
    #allocation3 [shape = 's32[2]{0}', space=sflag, size = 0x8, scoped, tag = 'scoped memory for tpu_custom_call.1']
    #allocation4 [shape = 's32[2]{0}', space=sflag, size = 0x8, scoped, tag = 'scoped memory for tpu_custom_call.1']
    #allocation5 [shape = 'u8[4718592]{0}', space=vmem, size = 0x480000, scoped, tag = 'input window, operand 1']
    #allocation6 [shape = 's32[2]{0}', space=sflag, size = 0x8, scoped, tag = 'scoped memory for tpu_custom_call.1']
    #allocation7 [shape = 'u8[12288]{0}', space=vmem, size = 0x3000, scoped, tag = 'input window, operand 2']
    #allocation8 [shape = 'u8[2457600]{0}', space=vmem, size = 0x258000, scoped, tag = 'output window, operand 0']
    %8 = vsyncpa [#allocation3], 0
    %9 = vsyncpa [#allocation6], 0
    %s10 = scalar_lea.sflag [#allocation6], 1
    %11 = vsyncpa %s10, 0
    %12 = vsyncpa [#allocation4], 0
    %s13 = scalar_lea.sflag [#allocation4], 1
    %14 = vsyncpa %s13, 0
    loop: start=0, step=1, limit=4
    $region2: #{tpu_custom_call.1} parent=1 // loop_pre_header
      _
    $region3: #{tpu_custom_call.1} parent=1 // loop_header
      %s16 = sphi 0, %s20
      %p17 = scmp.ge.s32.totalorder %s16, 4
      %s24 = sphi 0, %s24
      %s26 = sphi 0, %s24
      %s27 = sphi 0, %s26
      %s41 = sphi 0, %s27
      %s47 = sphi 0, %s49
      %s50 = sphi 0, %s47
      %s51 = sphi 0, %s50
      %s67 = sphi 0, %s51
      %s73 = sphi 0, %s75
      %s76 = sphi 0, %s73
      %s77 = sphi 0, %s76
      %s93 = sphi 0, %s77
      %s99 = sphi 0, %s101
      %s102 = sphi 0, %s99
      %s103 = sphi 0, %s102
      %s119 = sphi 0, %s103
    $region4: #{tpu_custom_call.1} parent=1 // loop_header_branch
      %19 = sbr.rel (%p17) target = $region8
    $region5: #{tpu_custom_call.1} parent=1 // loop_body
      %s21 = ssub.s32 %s16, 1
      %s22 = ssub.s32 %s16, 2
      %s23 = sadd.s32 %s16, 1
      %s25 = sadd.s32 %s24, 1
      %p28 = scmp.eq.s32.totalorder %s16, 1
      %p29 = scmp.ne.s32.totalorder %s24, %s26
      %p30 = scmp.eq.s32.totalorder %s16, 0
      %p31 = por %p29, %p30
      %p32 = scmp.ne.s32.totalorder %s24, %s26
      %p33 = scmp.eq.s32.totalorder %s21, 1
      %p34 = por %p32, %p33
      %p35 = scmp.ne.s32.totalorder %s26, %s27
      %p36 = scmp.eq.s32.totalorder %s21, 0
      %p37 = por %p35, %p36
      %p38 = scmp.ne.s32.totalorder %s26, %s27
      %p39 = scmp.eq.s32.totalorder %s22, 1
      %p40 = por %p38, %p39
      %p42 = scmp.ne.s32.totalorder %s27, %s41
      %p43 = scmp.eq.s32.totalorder %s22, 0
      %p44 = por %p42, %p43
      %s45 = ssub.s32 %s16, %s23
      %p46 = scmp.eq.s32.totalorder %s45, 0
      %s48 = sadd.s32 %s47, 1
      %s49 = scalar_select %p46, %s47, %s48
      %p52 = pneg %p46
      %p53 = scmp.eq.s32.totalorder %s16, 1
      %p54 = por %p52, %p53
      %p55 = scmp.ne.s32.totalorder %s47, %s50
      %p56 = scmp.eq.s32.totalorder %s16, 0
      %p57 = por %p55, %p56
      %p58 = scmp.ne.s32.totalorder %s47, %s50
      %p59 = scmp.eq.s32.totalorder %s21, 1
      %p60 = por %p58, %p59
      %p61 = scmp.ne.s32.totalorder %s50, %s51
      %p62 = scmp.eq.s32.totalorder %s21, 0
      %p63 = por %p61, %p62
      %p64 = scmp.ne.s32.totalorder %s50, %s51
      %p65 = scmp.eq.s32.totalorder %s22, 1
      %p66 = por %p64, %p65
      %p68 = scmp.ne.s32.totalorder %s51, %s67
      %p69 = scmp.eq.s32.totalorder %s22, 0
      %p70 = por %p68, %p69
      %s71 = ssub.s32 %s16, %s23
      %p72 = scmp.eq.s32.totalorder %s71, 0
      %s74 = sadd.s32 %s73, 1
      %s75 = scalar_select %p72, %s73, %s74
      %p78 = pneg %p72
      %p79 = scmp.eq.s32.totalorder %s16, 1
      %p80 = por %p78, %p79
      %p81 = scmp.ne.s32.totalorder %s73, %s76
      %p82 = scmp.eq.s32.totalorder %s16, 0
      %p83 = por %p81, %p82
      %p84 = scmp.ne.s32.totalorder %s73, %s76
      %p85 = scmp.eq.s32.totalorder %s21, 1
      %p86 = por %p84, %p85
      %p87 = scmp.ne.s32.totalorder %s76, %s77
      %p88 = scmp.eq.s32.totalorder %s21, 0
      %p89 = por %p87, %p88
      %p90 = scmp.ne.s32.totalorder %s76, %s77
      %p91 = scmp.eq.s32.totalorder %s22, 1
      %p92 = por %p90, %p91
      %p94 = scmp.ne.s32.totalorder %s77, %s93
      %p95 = scmp.eq.s32.totalorder %s22, 0
      %p96 = por %p94, %p95
      %s97 = ssub.s32 %s16, %s23
      %p98 = scmp.eq.s32.totalorder %s97, 0
      %s100 = sadd.s32 %s99, 1
      %s101 = scalar_select %p98, %s99, %s100
      %p104 = pneg %p98
      %p105 = scmp.eq.s32.totalorder %s16, 1
      %p106 = por %p104, %p105
      %p107 = scmp.ne.s32.totalorder %s99, %s102
      %p108 = scmp.eq.s32.totalorder %s16, 0
      %p109 = por %p107, %p108
      %p110 = scmp.ne.s32.totalorder %s99, %s102
      %p111 = scmp.eq.s32.totalorder %s21, 1
      %p112 = por %p110, %p111
      %p113 = scmp.ne.s32.totalorder %s102, %s103
      %p114 = scmp.eq.s32.totalorder %s21, 0
      %p115 = por %p113, %p114
      %p116 = scmp.ne.s32.totalorder %s102, %s103
      %p117 = scmp.eq.s32.totalorder %s22, 1
      %p118 = por %p116, %p117
      %p120 = scmp.ne.s32.totalorder %s103, %s119
      %p121 = scmp.eq.s32.totalorder %s22, 0
      %p122 = por %p120, %p121
      %p123 = scmp.le.s32.totalorder 1, %s16
      %p124 = scmp.lt.s32.totalorder %s16, 3
      %p125 = pnand %p123, %p124
      %p126 = pneg %p125
      // Predicated region
      $region9: #{tpu_custom_call.1} parent=5 // pred_check
        _
      $region10: #{tpu_custom_call.1} parent=5 // pred_check_branch
        %128 = sbr.rel (%p125) target = $region12
      $region11: #{tpu_custom_call.1} parent=5 // pred_region
        %s129 = ssub.s32 %s16, 1
        // Predicated region
        $region13: #{tpu_custom_call.1} parent=11 // pred_check
          %p130 = pneg %p37
        $region14: #{tpu_custom_call.1} parent=11 // pred_check_branch
          %132 = sbr.rel (%p130) target = $region16
        $region15: #{tpu_custom_call.1} parent=11 // pred_region
          %134 = vsyncadd [#allocation3], 0
          %s135 = sshll.u32 %s0, 4
          %s136 = int_to_ptr.hbm [resolvable:$true] %s135
          %s137 = sshll.u32 [#allocation2], 4
          %s138 = int_to_ptr.vmem [resolvable:$true] %s137
          %143 = dma.hbm_to_vmem [thread:$0]  %s136, 19200, %s138, [#allocation3], 768, 768, 48
        $region16: #{tpu_custom_call.1} parent=11 // pred_fallthru
          _
      $region12: #{tpu_custom_call.1} parent=5 // pred_fallthru
        _
      %p144 = scmp.lt.s32.totalorder %s16, 2
      // Predicated region
      $region17: #{tpu_custom_call.1} parent=5 // pred_check
        %p145 = pneg %p144
      $region18: #{tpu_custom_call.1} parent=5 // pred_check_branch
        %147 = sbr.rel (%p145) target = $region20
      $region19: #{tpu_custom_call.1} parent=5 // pred_region
        // Predicated region
        $region21: #{tpu_custom_call.1} parent=19 // pred_check
          %p148 = pneg %p57
        $region22: #{tpu_custom_call.1} parent=19 // pred_check_branch
          %150 = sbr.rel (%p148) target = $region24
        $region23: #{tpu_custom_call.1} parent=19 // pred_region
          %s151 = sand.u32 %s16, 1
          %s152 = scalar_lea.sflag [#allocation6], %s151
          %s153 = sand.u32 %s47, 1
          %s154 = smul.addr %s153, 4608
          %s155 = scalar_lea.vmem [#allocation5], %s154
          %s156 = smul.u32 12, %s16
          %158 = vsyncadd %s152, 0
          %s159 = smul.addr %s156, 4
          %s160 = scalar_lea.hbm %s1, %s159
          %s161 = sshll.u32 %s160, 4
          %s162 = int_to_ptr.hbm [resolvable:$true] %s161
          %s163 = sshll.u32 %s155, 4
          %s164 = int_to_ptr.vmem [resolvable:$true] %s163
          %169 = dma.hbm_to_vmem [thread:$0]  %s162, 73728, %s164, %s152, 1536, 768, 48
        $region24: #{tpu_custom_call.1} parent=19 // pred_fallthru
          _
        // Predicated region
        $region25: #{tpu_custom_call.1} parent=19 // pred_check
          %p170 = pneg %p83
        $region26: #{tpu_custom_call.1} parent=19 // pred_check_branch
          %172 = sbr.rel (%p170) target = $region28
        $region27: #{tpu_custom_call.1} parent=19 // pred_region
          %s173 = sand.u32 %s16, 1
          %s174 = scalar_lea.sflag [#allocation6], %s173
          %s175 = sand.u32 %s73, 1
          %s176 = smul.addr %s175, 12
          %s177 = scalar_lea.vmem [#allocation7], %s176
          %s178 = smul.u32 12, %s16
          %180 = vsyncadd %s174, 0
          %s181 = scalar_lea.hbm %s2, %s178
          %s183 = sshll.u32 %s181, 4
          %s184 = int_to_ptr.hbm [resolvable:$true] %s183
          %s185 = sshll.u32 %s177, 4
          %s186 = int_to_ptr.vmem [resolvable:$true] %s185
          %188 = dma.hbm_to_vmem [thread:$0]  %s184, 192, %s186, %s174
        $region28: #{tpu_custom_call.1} parent=19 // pred_fallthru
          _
      $region20: #{tpu_custom_call.1} parent=5 // pred_fallthru
        _
      %p189 = scmp.le.s32.totalorder 1, %s16
      %p190 = scmp.lt.s32.totalorder %s16, 3
      %p191 = pnand %p189, %p190
      %p192 = pneg %p191
      // Predicated region
      $region29: #{tpu_custom_call.1} parent=5 // pred_check
        _
      $region30: #{tpu_custom_call.1} parent=5 // pred_check_branch
        %194 = sbr.rel (%p191) target = $region32
      $region31: #{tpu_custom_call.1} parent=5 // pred_region
        %s195 = ssub.s32 %s16, 1
        // Predicated region
        $region33: #{tpu_custom_call.1} parent=31 // pred_check
          %p196 = pneg %p37
        $region34: #{tpu_custom_call.1} parent=31 // pred_check_branch
          %198 = sbr.rel (%p196) target = $region36
        $region35: #{tpu_custom_call.1} parent=31 // pred_region
          %200 = dma.done [#allocation3], 19200
        $region36: #{tpu_custom_call.1} parent=31 // pred_fallthru
          _
        %s201 = sand.u32 %s21, 1
        %s202 = scalar_lea.sflag [#allocation6], %s201
        %s203 = sand.u32 %s50, 1
        %s204 = smul.addr %s203, 4608
        %s205 = scalar_lea.vmem [#allocation5], %s204
        // Predicated region
        $region37: #{tpu_custom_call.1} parent=31 // pred_check
          %p206 = pneg %p63
        $region38: #{tpu_custom_call.1} parent=31 // pred_check_branch
          %208 = sbr.rel (%p206) target = $region40
        $region39: #{tpu_custom_call.1} parent=31 // pred_region
          %210 = dma.done %s202, 73728
        $region40: #{tpu_custom_call.1} parent=31 // pred_fallthru
          _
        %s211 = sand.u32 %s21, 1
        %s212 = scalar_lea.sflag [#allocation6], %s211
        %s213 = sand.u32 %s76, 1
        %s214 = smul.addr %s213, 12
        %s215 = scalar_lea.vmem [#allocation7], %s214
        // Predicated region
        $region41: #{tpu_custom_call.1} parent=31 // pred_check
          %p216 = pneg %p89
        $region42: #{tpu_custom_call.1} parent=31 // pred_check_branch
          %218 = sbr.rel (%p216) target = $region44
        $region43: #{tpu_custom_call.1} parent=31 // pred_region
          %220 = dma.done %s212, 192
        $region44: #{tpu_custom_call.1} parent=31 // pred_fallthru
          _
        %p221 = pneg %p37
        %p222 = pneg %p34
        %s223 = sand.u32 %s21, 1
        %s224 = scalar_lea.sflag [#allocation6], %s223
        %s225 = sand.u32 %s50, 1
        %s226 = smul.addr %s225, 4608
        %s227 = scalar_lea.vmem [#allocation5], %s226
        %p228 = pneg %p63
        %p229 = pneg %p60
        %s230 = sand.u32 %s21, 1
        %s231 = scalar_lea.sflag [#allocation6], %s230
        %s232 = sand.u32 %s76, 1
        %s233 = smul.addr %s232, 12
        %s234 = scalar_lea.vmem [#allocation7], %s233
        %p235 = pneg %p89
        %p236 = pneg %p86
        %p237 = pneg %p115
        %p238 = pneg %p112
        %s239 = sand.u32 %s102, 1
        %s240 = scalar_lea.sflag [#allocation4], %s239
        %s241 = sand.u32 %s102, 1
        %s242 = smul.addr %s241, 2400
        %s243 = scalar_lea.vmem [#allocation8], %s242
        %s244 = smul.u32 12, %s21
        %s245 = smul.u32 12, %s21
        %s246 = smul.u32 12, %s21
        %v247 = vld [vmem:[#allocation2] sm:$0xff]
        %v248 = vld [vmem:[#allocation2 + $0x8] sm:$0xff]
        %v249 = vld [vmem:[#allocation2 + $0x10] sm:$0xff]
        %v250 = vld [vmem:[#allocation2 + $0x18] sm:$0xff]
        %v251 = vld [vmem:[#allocation2 + $0x20] sm:$0xff]
        %v252 = vld [vmem:[#allocation2 + $0x28] sm:$0xff]
        %v253 = vld [vmem:[#allocation2 + $0x30] sm:$0xff]
        %v254 = vld [vmem:[#allocation2 + $0x38] sm:$0xff]
        %v255 = vld [vmem:[#allocation2 + $0x40] sm:$0xff]
        %v256 = vld [vmem:[#allocation2 + $0x48] sm:$0xff]
        %v257 = vld [vmem:[#allocation2 + $0x50] sm:$0xff]
        %v258 = vld [vmem:[#allocation2 + $0x58] sm:$0xff]
        %v259 = vld [vmem:[#allocation2 + $0x60] sm:$0xff]
        %v260 = vld [vmem:[#allocation2 + $0x68] sm:$0xff]
        %v261 = vld [vmem:[#allocation2 + $0x70] sm:$0xff]
        %v262 = vld [vmem:[#allocation2 + $0x78] sm:$0xff]
        %v263 = vld [vmem:[#allocation2 + $0x80] sm:$0xff]
        %v264 = vld [vmem:[#allocation2 + $0x88] sm:$0xff]
        %v265 = vld [vmem:[#allocation2 + $0x90] sm:$0xff]
        %v266 = vld [vmem:[#allocation2 + $0x98] sm:$0xff]
        %v267 = vld [vmem:[#allocation2 + $0xa0] sm:$0xff]
        %v268 = vld [vmem:[#allocation2 + $0xa8] sm:$0xff]
        %v269 = vld [vmem:[#allocation2 + $0xb0] sm:$0xff]
        %v270 = vld [vmem:[#allocation2 + $0xb8] sm:$0xff]
        %v271 = vld [vmem:[#allocation2 + $0xc0] sm:$0xff]
        %v272 = vld [vmem:[#allocation2 + $0xc8] sm:$0xff]
        %v273 = vld [vmem:[#allocation2 + $0xd0] sm:$0xff]
        %v274 = vld [vmem:[#allocation2 + $0xd8] sm:$0xff]
        %v275 = vld [vmem:[#allocation2 + $0xe0] sm:$0xff]
        %v276 = vld [vmem:[#allocation2 + $0xe8] sm:$0xff]
        %v277 = vld [vmem:[#allocation2 + $0xf0] sm:$0xff]
        %v278 = vld [vmem:[#allocation2 + $0xf8] sm:$0xff]
        %v279 = vld [vmem:[#allocation2 + $0x100] sm:$0xff]
        %v280 = vld [vmem:[#allocation2 + $0x108] sm:$0xff]
        %v281 = vld [vmem:[#allocation2 + $0x110] sm:$0xff]
        %v282 = vld [vmem:[#allocation2 + $0x118] sm:$0xff]
        %v283 = vld [vmem:[#allocation2 + $0x120] sm:$0xff]
        %v284 = vld [vmem:[#allocation2 + $0x128] sm:$0xff]
        %v285 = vld [vmem:[#allocation2 + $0x130] sm:$0xff]
        %v286 = vld [vmem:[#allocation2 + $0x138] sm:$0xff]
        %v287 = vld [vmem:[#allocation2 + $0x140] sm:$0xff]
        %v288 = vld [vmem:[#allocation2 + $0x148] sm:$0xff]
        %v289 = vld [vmem:[#allocation2 + $0x150] sm:$0xff]
        %v290 = vld [vmem:[#allocation2 + $0x158] sm:$0xff]
        %v291 = vld [vmem:[#allocation2 + $0x160] sm:$0xff]
        %v292 = vld [vmem:[#allocation2 + $0x168] sm:$0xff]
        %v293 = vld [vmem:[#allocation2 + $0x170] sm:$0xff]
        %v294 = vld [vmem:[#allocation2 + $0x178] sm:$0xff]
        %v295 = vld [vmem:[#allocation2 + $0x180] sm:$0xff]
        %v296 = vld [vmem:[#allocation2 + $0x188] sm:$0xff]
        %v297 = vld [vmem:[#allocation2 + $0x190] sm:$0xff]
        %v298 = vld [vmem:[#allocation2 + $0x198] sm:$0xff]
        %v299 = vld [vmem:[#allocation2 + $0x1a0] sm:$0xff]
        %v300 = vld [vmem:[#allocation2 + $0x1a8] sm:$0xff]
        %v301 = vld [vmem:[#allocation2 + $0x1b0] sm:$0xff]
        %v302 = vld [vmem:[#allocation2 + $0x1b8] sm:$0xff]
        %v303 = vld [vmem:[#allocation2 + $0x1c0] sm:$0xff]
        %v304 = vld [vmem:[#allocation2 + $0x1c8] sm:$0xff]
        %v305 = vld [vmem:[#allocation2 + $0x1d0] sm:$0xff]
        %v306 = vld [vmem:[#allocation2 + $0x1d8] sm:$0xff]
        %v307 = vld [vmem:[#allocation2 + $0x1e0] sm:$0xff]
        %v308 = vld [vmem:[#allocation2 + $0x1e8] sm:$0xff]
        %v309 = vld [vmem:[#allocation2 + $0x1f0] sm:$0xff]
        %v310 = vld [vmem:[#allocation2 + $0x1f8] sm:$0xff]
        %v311 = vld [vmem:[#allocation2 + $0x200] sm:$0xff]
        %v312 = vld [vmem:[#allocation2 + $0x208] sm:$0xff]
        %v313 = vld [vmem:[#allocation2 + $0x210] sm:$0xff]
        %v314 = vld [vmem:[#allocation2 + $0x218] sm:$0xff]
        %v315 = vld [vmem:[#allocation2 + $0x220] sm:$0xff]
        %v316 = vld [vmem:[#allocation2 + $0x228] sm:$0xff]
        %v317 = vld [vmem:[#allocation2 + $0x230] sm:$0xff]
        %v318 = vld [vmem:[#allocation2 + $0x238] sm:$0xff]
        %v319 = vld [vmem:[#allocation2 + $0x240] sm:$0xff]
        %v320 = vld [vmem:[#allocation2 + $0x248] sm:$0xff]
        %v321 = vld [vmem:[#allocation2 + $0x250] sm:$0xff]
        %v322 = vld [vmem:[#allocation2 + $0x258] sm:$0xff]
        %v323 = vld [vmem:[#allocation2 + $0x260] sm:$0xff]
        %v324 = vld [vmem:[#allocation2 + $0x268] sm:$0xff]
        %v325 = vld [vmem:[#allocation2 + $0x270] sm:$0xff]
        %v326 = vld [vmem:[#allocation2 + $0x278] sm:$0xff]
        %v327 = vld [vmem:[#allocation2 + $0x280] sm:$0xff]
        %v328 = vld [vmem:[#allocation2 + $0x288] sm:$0xff]
        %v329 = vld [vmem:[#allocation2 + $0x290] sm:$0xff]
        %v330 = vld [vmem:[#allocation2 + $0x298] sm:$0xff]
        %v331 = vld [vmem:[#allocation2 + $0x2a0] sm:$0xff]
        %v332 = vld [vmem:[#allocation2 + $0x2a8] sm:$0xff]
        %v333 = vld [vmem:[#allocation2 + $0x2b0] sm:$0xff]
        %v334 = vld [vmem:[#allocation2 + $0x2b8] sm:$0xff]
        %v335 = vld [vmem:[#allocation2 + $0x2c0] sm:$0xff]
        %v336 = vld [vmem:[#allocation2 + $0x2c8] sm:$0xff]
        %v337 = vld [vmem:[#allocation2 + $0x2d0] sm:$0xff]
        %v338 = vld [vmem:[#allocation2 + $0x2d8] sm:$0xff]
        %v339 = vld [vmem:[#allocation2 + $0x2e0] sm:$0xff]
        %v340 = vld [vmem:[#allocation2 + $0x2e8] sm:$0xff]
        %v341 = vld [vmem:[#allocation2 + $0x2f0] sm:$0xff]
        %v342 = vld [vmem:[#allocation2 + $0x2f8] sm:$0xff]
        %v343 = vld [vmem:[#allocation2 + $0x300] sm:$0xff]
        %v344 = vld [vmem:[#allocation2 + $0x308] sm:$0xff]
        %v345 = vld [vmem:[#allocation2 + $0x310] sm:$0xff]
        %v346 = vld [vmem:[#allocation2 + $0x318] sm:$0xff]
        %v347 = vld [vmem:[#allocation2 + $0x320] sm:$0xff]
        %v348 = vld [vmem:[#allocation2 + $0x328] sm:$0xff]
        %v349 = vld [vmem:[#allocation2 + $0x330] sm:$0xff]
        %v350 = vld [vmem:[#allocation2 + $0x338] sm:$0xff]
        %v351 = vld [vmem:[#allocation2 + $0x340] sm:$0xff]
        %v352 = vld [vmem:[#allocation2 + $0x348] sm:$0xff]
        %v353 = vld [vmem:[#allocation2 + $0x350] sm:$0xff]
        %v354 = vld [vmem:[#allocation2 + $0x358] sm:$0xff]
        %v355 = vld [vmem:[#allocation2 + $0x360] sm:$0xff]
        %v356 = vld [vmem:[#allocation2 + $0x368] sm:$0xff]
        %v357 = vld [vmem:[#allocation2 + $0x370] sm:$0xff]
        %v358 = vld [vmem:[#allocation2 + $0x378] sm:$0xff]
        %v359 = vld [vmem:[#allocation2 + $0x380] sm:$0xff]
        %v360 = vld [vmem:[#allocation2 + $0x388] sm:$0xff]
        %v361 = vld [vmem:[#allocation2 + $0x390] sm:$0xff]
        %v362 = vld [vmem:[#allocation2 + $0x398] sm:$0xff]
        %v363 = vld [vmem:[#allocation2 + $0x3a0] sm:$0xff]
        %v364 = vld [vmem:[#allocation2 + $0x3a8] sm:$0xff]
        %v365 = vld [vmem:[#allocation2 + $0x3b0] sm:$0xff]
        %v366 = vld [vmem:[#allocation2 + $0x3b8] sm:$0xff]
        %v367 = vld [vmem:[#allocation2 + $0x3c0] sm:$0xff]
        %v368 = vld [vmem:[#allocation2 + $0x3c8] sm:$0xff]
        %v369 = vld [vmem:[#allocation2 + $0x3d0] sm:$0xff]
        %v370 = vld [vmem:[#allocation2 + $0x3d8] sm:$0xff]
        %v371 = vld [vmem:[#allocation2 + $0x3e0] sm:$0xff]
        %v372 = vld [vmem:[#allocation2 + $0x3e8] sm:$0xff]
        %v373 = vld [vmem:[#allocation2 + $0x3f0] sm:$0xff]
        %v374 = vld [vmem:[#allocation2 + $0x3f8] sm:$0xff]
        %v375 = vld [vmem:[#allocation2 + $0x400] sm:$0xff]
        %v376 = vld [vmem:[#allocation2 + $0x408] sm:$0xff]
        %v377 = vld [vmem:[#allocation2 + $0x410] sm:$0xff]
        %v378 = vld [vmem:[#allocation2 + $0x418] sm:$0xff]
        %v379 = vld [vmem:[#allocation2 + $0x420] sm:$0xff]
        %v380 = vld [vmem:[#allocation2 + $0x428] sm:$0xff]
        %v381 = vld [vmem:[#allocation2 + $0x430] sm:$0xff]
        %v382 = vld [vmem:[#allocation2 + $0x438] sm:$0xff]
        %v383 = vld [vmem:[#allocation2 + $0x440] sm:$0xff]
        %v384 = vld [vmem:[#allocation2 + $0x448] sm:$0xff]
        %v385 = vld [vmem:[#allocation2 + $0x450] sm:$0xff]
        %v386 = vld [vmem:[#allocation2 + $0x458] sm:$0xff]
        %v387 = vld [vmem:[#allocation2 + $0x460] sm:$0xff]
        %v388 = vld [vmem:[#allocation2 + $0x468] sm:$0xff]
        %v389 = vld [vmem:[#allocation2 + $0x470] sm:$0xff]
        %v390 = vld [vmem:[#allocation2 + $0x478] sm:$0xff]
        %v391 = vld [vmem:[#allocation2 + $0x480] sm:$0xf]
        %v392 = vld [vmem:[#allocation2 + $0x488] sm:$0xf]
        %v393 = vld [vmem:[#allocation2 + $0x490] sm:$0xf]
        %v394 = vld [vmem:[#allocation2 + $0x498] sm:$0xf]
        %v395 = vld [vmem:[#allocation2 + $0x4a0] sm:$0xf]
        %v396 = vld [vmem:[#allocation2 + $0x4a8] sm:$0xf]
        %v397 = vpack.c.bf16 %v253, %v247
        %v398 = vpack.c.bf16 %v254, %v248
        %v399 = vpack.c.bf16 %v255, %v249
        %v400 = vpack.c.bf16 %v256, %v250
        %v401 = vpack.c.bf16 %v257, %v251
        %v402 = vpack.c.bf16 %v258, %v252
        %v403 = vpack.c.bf16 %v265, %v259
        %v404 = vpack.c.bf16 %v266, %v260
        %v405 = vpack.c.bf16 %v267, %v261
        %v406 = vpack.c.bf16 %v268, %v262
        %v407 = vpack.c.bf16 %v269, %v263
        %v408 = vpack.c.bf16 %v270, %v264
        %v409 = vpack.c.bf16 %v277, %v271
        %v410 = vpack.c.bf16 %v278, %v272
        %v411 = vpack.c.bf16 %v279, %v273
        %v412 = vpack.c.bf16 %v280, %v274
        %v413 = vpack.c.bf16 %v281, %v275
        %v414 = vpack.c.bf16 %v282, %v276
        %v415 = vpack.c.bf16 %v289, %v283
        %v416 = vpack.c.bf16 %v290, %v284
        %v417 = vpack.c.bf16 %v291, %v285
        %v418 = vpack.c.bf16 %v292, %v286
        %v419 = vpack.c.bf16 %v293, %v287
        %v420 = vpack.c.bf16 %v294, %v288
        %v421 = vpack.c.bf16 %v301, %v295
        %v422 = vpack.c.bf16 %v302, %v296
        %v423 = vpack.c.bf16 %v303, %v297
        %v424 = vpack.c.bf16 %v304, %v298
        %v425 = vpack.c.bf16 %v305, %v299
        %v426 = vpack.c.bf16 %v306, %v300
        %v427 = vpack.c.bf16 %v313, %v307
        %v428 = vpack.c.bf16 %v314, %v308
        %v429 = vpack.c.bf16 %v315, %v309
        %v430 = vpack.c.bf16 %v316, %v310
        %v431 = vpack.c.bf16 %v317, %v311
        %v432 = vpack.c.bf16 %v318, %v312
        %v433 = vpack.c.bf16 %v325, %v319
        %v434 = vpack.c.bf16 %v326, %v320
        %v435 = vpack.c.bf16 %v327, %v321
        %v436 = vpack.c.bf16 %v328, %v322
        %v437 = vpack.c.bf16 %v329, %v323
        %v438 = vpack.c.bf16 %v330, %v324
        %v439 = vpack.c.bf16 %v337, %v331
        %v440 = vpack.c.bf16 %v338, %v332
        %v441 = vpack.c.bf16 %v339, %v333
        %v442 = vpack.c.bf16 %v340, %v334
        %v443 = vpack.c.bf16 %v341, %v335
        %v444 = vpack.c.bf16 %v342, %v336
        %v445 = vpack.c.bf16 %v349, %v343
        %v446 = vpack.c.bf16 %v350, %v344
        %v447 = vpack.c.bf16 %v351, %v345
        %v448 = vpack.c.bf16 %v352, %v346
        %v449 = vpack.c.bf16 %v353, %v347
        %v450 = vpack.c.bf16 %v354, %v348
        %v451 = vpack.c.bf16 %v361, %v355
        %v452 = vpack.c.bf16 %v362, %v356
        %v453 = vpack.c.bf16 %v363, %v357
        %v454 = vpack.c.bf16 %v364, %v358
        %v455 = vpack.c.bf16 %v365, %v359
        %v456 = vpack.c.bf16 %v366, %v360
        %v457 = vpack.c.bf16 %v373, %v367
        %v458 = vpack.c.bf16 %v374, %v368
        %v459 = vpack.c.bf16 %v375, %v369
        %v460 = vpack.c.bf16 %v376, %v370
        %v461 = vpack.c.bf16 %v377, %v371
        %v462 = vpack.c.bf16 %v378, %v372
        %v463 = vpack.c.bf16 %v385, %v379
        %v464 = vpack.c.bf16 %v386, %v380
        %v465 = vpack.c.bf16 %v387, %v381
        %v466 = vpack.c.bf16 %v388, %v382
        %v467 = vpack.c.bf16 %v389, %v383
        %v468 = vpack.c.bf16 %v390, %v384
        %v469 = vpack.c.bf16 %v391, %v391
        %v470 = vpack.c.bf16 %v392, %v392
        %v471 = vpack.c.bf16 %v393, %v393
        %v472 = vpack.c.bf16 %v394, %v394
        %v473 = vpack.c.bf16 %v395, %v395
        %v474 = vpack.c.bf16 %v396, %v396
        %v475 = vld [vmem:[%s205] sm:$0xff]
        %v476 = vld [vmem:[%s205 + $0x8] sm:$0xff]
        %v477 = vld [vmem:[%s205 + $0x10] sm:$0xff]
        %v478 = vld [vmem:[%s205 + $0x18] sm:$0xff]
        %v479 = vld [vmem:[%s205 + $0x20] sm:$0xff]
        %v480 = vld [vmem:[%s205 + $0x28] sm:$0xff]
        %v481 = vld [vmem:[%s205 + $0x30] sm:$0xff]
        %v482 = vld [vmem:[%s205 + $0x38] sm:$0xff]
        %v483 = vld [vmem:[%s205 + $0x40] sm:$0xff]
        %v484 = vld [vmem:[%s205 + $0x48] sm:$0xff]
        %v485 = vld [vmem:[%s205 + $0x50] sm:$0xff]
        %v486 = vld [vmem:[%s205 + $0x58] sm:$0xff]
        %v487 = vld [vmem:[%s205 + $0x60] sm:$0xff]
        %v488 = vld [vmem:[%s205 + $0x68] sm:$0xff]
        %v489 = vld [vmem:[%s205 + $0x70] sm:$0xff]
        %v490 = vld [vmem:[%s205 + $0x78] sm:$0xff]
        %v491 = vld [vmem:[%s205 + $0x80] sm:$0xff]
        %v492 = vld [vmem:[%s205 + $0x88] sm:$0xff]
        %v493 = vld [vmem:[%s205 + $0x90] sm:$0xff]
        %v494 = vld [vmem:[%s205 + $0x98] sm:$0xff]
        %v495 = vld [vmem:[%s205 + $0xa0] sm:$0xff]
        %v496 = vld [vmem:[%s205 + $0xa8] sm:$0xff]
        %v497 = vld [vmem:[%s205 + $0xb0] sm:$0xff]
        %v498 = vld [vmem:[%s205 + $0xb8] sm:$0xff]
        %v499 = vld [vmem:[%s205 + $0xc0] sm:$0xff]
        %v500 = vld [vmem:[%s205 + $0xc8] sm:$0xff]
        %v501 = vld [vmem:[%s205 + $0xd0] sm:$0xff]
        %v502 = vld [vmem:[%s205 + $0xd8] sm:$0xff]
        %v503 = vld [vmem:[%s205 + $0xe0] sm:$0xff]
        %v504 = vld [vmem:[%s205 + $0xe8] sm:$0xff]
        %v505 = vld [vmem:[%s205 + $0xf0] sm:$0xff]
        %v506 = vld [vmem:[%s205 + $0xf8] sm:$0xff]
        %v507 = vld [vmem:[%s205 + $0x100] sm:$0xff]
        %v508 = vld [vmem:[%s205 + $0x108] sm:$0xff]
        %v509 = vld [vmem:[%s205 + $0x110] sm:$0xff]
        %v510 = vld [vmem:[%s205 + $0x118] sm:$0xff]
        %v511 = vld [vmem:[%s205 + $0x120] sm:$0xff]
        %v512 = vld [vmem:[%s205 + $0x128] sm:$0xff]
        %v513 = vld [vmem:[%s205 + $0x130] sm:$0xff]
        %v514 = vld [vmem:[%s205 + $0x138] sm:$0xff]
        %v515 = vld [vmem:[%s205 + $0x140] sm:$0xff]
        %v516 = vld [vmem:[%s205 + $0x148] sm:$0xff]
        %v517 = vld [vmem:[%s205 + $0x150] sm:$0xff]
        %v518 = vld [vmem:[%s205 + $0x158] sm:$0xff]
        %v519 = vld [vmem:[%s205 + $0x160] sm:$0xff]
        %v520 = vld [vmem:[%s205 + $0x168] sm:$0xff]
        %v521 = vld [vmem:[%s205 + $0x170] sm:$0xff]
        %v522 = vld [vmem:[%s205 + $0x178] sm:$0xff]
        %v523 = vld [vmem:[%s205 + $0x180] sm:$0xff]
        %v524 = vld [vmem:[%s205 + $0x188] sm:$0xff]
        %v525 = vld [vmem:[%s205 + $0x190] sm:$0xff]
        %v526 = vld [vmem:[%s205 + $0x198] sm:$0xff]
        %v527 = vld [vmem:[%s205 + $0x1a0] sm:$0xff]
        %v528 = vld [vmem:[%s205 + $0x1a8] sm:$0xff]
        %v529 = vld [vmem:[%s205 + $0x1b0] sm:$0xff]
        %v530 = vld [vmem:[%s205 + $0x1b8] sm:$0xff]
        %v531 = vld [vmem:[%s205 + $0x1c0] sm:$0xff]
        %v532 = vld [vmem:[%s205 + $0x1c8] sm:$0xff]
        %v533 = vld [vmem:[%s205 + $0x1d0] sm:$0xff]
        %v534 = vld [vmem:[%s205 + $0x1d8] sm:$0xff]
        %v535 = vld [vmem:[%s205 + $0x1e0] sm:$0xff]
        %v536 = vld [vmem:[%s205 + $0x1e8] sm:$0xff]
        %v537 = vld [vmem:[%s205 + $0x1f0] sm:$0xff]
        %v538 = vld [vmem:[%s205 + $0x1f8] sm:$0xff]
        %v539 = vld [vmem:[%s205 + $0x200] sm:$0xff]
        %v540 = vld [vmem:[%s205 + $0x208] sm:$0xff]
        %v541 = vld [vmem:[%s205 + $0x210] sm:$0xff]
        %v542 = vld [vmem:[%s205 + $0x218] sm:$0xff]
        %v543 = vld [vmem:[%s205 + $0x220] sm:$0xff]
        %v544 = vld [vmem:[%s205 + $0x228] sm:$0xff]
        %v545 = vld [vmem:[%s205 + $0x230] sm:$0xff]
        %v546 = vld [vmem:[%s205 + $0x238] sm:$0xff]
        %v547 = vld [vmem:[%s205 + $0x240] sm:$0xff]
        %v548 = vld [vmem:[%s205 + $0x248] sm:$0xff]
        %v549 = vld [vmem:[%s205 + $0x250] sm:$0xff]
        %v550 = vld [vmem:[%s205 + $0x258] sm:$0xff]
        %v551 = vld [vmem:[%s205 + $0x260] sm:$0xff]
        %v552 = vld [vmem:[%s205 + $0x268] sm:$0xff]
        %v553 = vld [vmem:[%s205 + $0x270] sm:$0xff]
        %v554 = vld [vmem:[%s205 + $0x278] sm:$0xff]
        %v555 = vld [vmem:[%s205 + $0x280] sm:$0xff]
        %v556 = vld [vmem:[%s205 + $0x288] sm:$0xff]
        %v557 = vld [vmem:[%s205 + $0x290] sm:$0xff]
        %v558 = vld [vmem:[%s205 + $0x298] sm:$0xff]
        %v559 = vld [vmem:[%s205 + $0x2a0] sm:$0xff]
        %v560 = vld [vmem:[%s205 + $0x2a8] sm:$0xff]
        %v561 = vld [vmem:[%s205 + $0x2b0] sm:$0xff]
        %v562 = vld [vmem:[%s205 + $0x2b8] sm:$0xff]
        %v563 = vld [vmem:[%s205 + $0x2c0] sm:$0xff]
        %v564 = vld [vmem:[%s205 + $0x2c8] sm:$0xff]
        %v565 = vld [vmem:[%s205 + $0x2d0] sm:$0xff]
        %v566 = vld [vmem:[%s205 + $0x2d8] sm:$0xff]
        %v567 = vld [vmem:[%s205 + $0x2e0] sm:$0xff]
        %v568 = vld [vmem:[%s205 + $0x2e8] sm:$0xff]
        %v569 = vld [vmem:[%s205 + $0x2f0] sm:$0xff]
        %v570 = vld [vmem:[%s205 + $0x2f8] sm:$0xff]
        %v571 = vld [vmem:[%s205 + $0x300] sm:$0xff]
        %v572 = vld [vmem:[%s205 + $0x308] sm:$0xff]
        %v573 = vld [vmem:[%s205 + $0x310] sm:$0xff]
        %v574 = vld [vmem:[%s205 + $0x318] sm:$0xff]
        %v575 = vld [vmem:[%s205 + $0x320] sm:$0xff]
        %v576 = vld [vmem:[%s205 + $0x328] sm:$0xff]
        %v577 = vld [vmem:[%s205 + $0x330] sm:$0xff]
        %v578 = vld [vmem:[%s205 + $0x338] sm:$0xff]
        %v579 = vld [vmem:[%s205 + $0x340] sm:$0xff]
        %v580 = vld [vmem:[%s205 + $0x348] sm:$0xff]
        %v581 = vld [vmem:[%s205 + $0x350] sm:$0xff]
        %v582 = vld [vmem:[%s205 + $0x358] sm:$0xff]
        %v583 = vld [vmem:[%s205 + $0x360] sm:$0xff]
        %v584 = vld [vmem:[%s205 + $0x368] sm:$0xff]
        %v585 = vld [vmem:[%s205 + $0x370] sm:$0xff]
        %v586 = vld [vmem:[%s205 + $0x378] sm:$0xff]
        %v587 = vld [vmem:[%s205 + $0x380] sm:$0xff]
        %v588 = vld [vmem:[%s205 + $0x388] sm:$0xff]
        %v589 = vld [vmem:[%s205 + $0x390] sm:$0xff]
        %v590 = vld [vmem:[%s205 + $0x398] sm:$0xff]
        %v591 = vld [vmem:[%s205 + $0x3a0] sm:$0xff]
        %v592 = vld [vmem:[%s205 + $0x3a8] sm:$0xff]
        %v593 = vld [vmem:[%s205 + $0x3b0] sm:$0xff]
        %v594 = vld [vmem:[%s205 + $0x3b8] sm:$0xff]
        %v595 = vld [vmem:[%s205 + $0x3c0] sm:$0xff]
        %v596 = vld [vmem:[%s205 + $0x3c8] sm:$0xff]
        %v597 = vld [vmem:[%s205 + $0x3d0] sm:$0xff]
        %v598 = vld [vmem:[%s205 + $0x3d8] sm:$0xff]
        %v599 = vld [vmem:[%s205 + $0x3e0] sm:$0xff]
        %v600 = vld [vmem:[%s205 + $0x3e8] sm:$0xff]
        %v601 = vld [vmem:[%s205 + $0x3f0] sm:$0xff]
        %v602 = vld [vmem:[%s205 + $0x3f8] sm:$0xff]
        %v603 = vld [vmem:[%s205 + $0x400] sm:$0xff]
        %v604 = vld [vmem:[%s205 + $0x408] sm:$0xff]
        %v605 = vld [vmem:[%s205 + $0x410] sm:$0xff]
        %v606 = vld [vmem:[%s205 + $0x418] sm:$0xff]
        %v607 = vld [vmem:[%s205 + $0x420] sm:$0xff]
        %v608 = vld [vmem:[%s205 + $0x428] sm:$0xff]
        %v609 = vld [vmem:[%s205 + $0x430] sm:$0xff]
        %v610 = vld [vmem:[%s205 + $0x438] sm:$0xff]
        %v611 = vld [vmem:[%s205 + $0x440] sm:$0xff]
        %v612 = vld [vmem:[%s205 + $0x448] sm:$0xff]
        %v613 = vld [vmem:[%s205 + $0x450] sm:$0xff]
        %v614 = vld [vmem:[%s205 + $0x458] sm:$0xff]
        %v615 = vld [vmem:[%s205 + $0x460] sm:$0xff]
        %v616 = vld [vmem:[%s205 + $0x468] sm:$0xff]
        %v617 = vld [vmem:[%s205 + $0x470] sm:$0xff]
        %v618 = vld [vmem:[%s205 + $0x478] sm:$0xff]
        %v619 = vld [vmem:[%s205 + $0x480] sm:$0xff]
        %v620 = vld [vmem:[%s205 + $0x488] sm:$0xff]
        %v621 = vld [vmem:[%s205 + $0x490] sm:$0xff]
        %v622 = vld [vmem:[%s205 + $0x498] sm:$0xff]
        %v623 = vld [vmem:[%s205 + $0x4a0] sm:$0xff]
        %v624 = vld [vmem:[%s205 + $0x4a8] sm:$0xff]
        %v625 = vld [vmem:[%s205 + $0x4b0] sm:$0xff]
        %v626 = vld [vmem:[%s205 + $0x4b8] sm:$0xff]
        %v627 = vld [vmem:[%s205 + $0x4c0] sm:$0xff]
        %v628 = vld [vmem:[%s205 + $0x4c8] sm:$0xff]
        %v629 = vld [vmem:[%s205 + $0x4d0] sm:$0xff]
        %v630 = vld [vmem:[%s205 + $0x4d8] sm:$0xff]
        %v631 = vld [vmem:[%s205 + $0x4e0] sm:$0xff]
        %v632 = vld [vmem:[%s205 + $0x4e8] sm:$0xff]
        %v633 = vld [vmem:[%s205 + $0x4f0] sm:$0xff]
        %v634 = vld [vmem:[%s205 + $0x4f8] sm:$0xff]
        %v635 = vld [vmem:[%s205 + $0x500] sm:$0xff]
        %v636 = vld [vmem:[%s205 + $0x508] sm:$0xff]
        %v637 = vld [vmem:[%s205 + $0x510] sm:$0xff]
        %v638 = vld [vmem:[%s205 + $0x518] sm:$0xff]
        %v639 = vld [vmem:[%s205 + $0x520] sm:$0xff]
        %v640 = vld [vmem:[%s205 + $0x528] sm:$0xff]
        %v641 = vld [vmem:[%s205 + $0x530] sm:$0xff]
        %v642 = vld [vmem:[%s205 + $0x538] sm:$0xff]
        %v643 = vld [vmem:[%s205 + $0x540] sm:$0xff]
        %v644 = vld [vmem:[%s205 + $0x548] sm:$0xff]
        %v645 = vld [vmem:[%s205 + $0x550] sm:$0xff]
        %v646 = vld [vmem:[%s205 + $0x558] sm:$0xff]
        %v647 = vld [vmem:[%s205 + $0x560] sm:$0xff]
        %v648 = vld [vmem:[%s205 + $0x568] sm:$0xff]
        %v649 = vld [vmem:[%s205 + $0x570] sm:$0xff]
        %v650 = vld [vmem:[%s205 + $0x578] sm:$0xff]
        %v651 = vld [vmem:[%s205 + $0x580] sm:$0xff]
        %v652 = vld [vmem:[%s205 + $0x588] sm:$0xff]
        %v653 = vld [vmem:[%s205 + $0x590] sm:$0xff]
        %v654 = vld [vmem:[%s205 + $0x598] sm:$0xff]
        %v655 = vld [vmem:[%s205 + $0x5a0] sm:$0xff]
        %v656 = vld [vmem:[%s205 + $0x5a8] sm:$0xff]
        %v657 = vld [vmem:[%s205 + $0x5b0] sm:$0xff]
        %v658 = vld [vmem:[%s205 + $0x5b8] sm:$0xff]
        %v659 = vld [vmem:[%s205 + $0x5c0] sm:$0xff]
        %v660 = vld [vmem:[%s205 + $0x5c8] sm:$0xff]
        %v661 = vld [vmem:[%s205 + $0x5d0] sm:$0xff]
        %v662 = vld [vmem:[%s205 + $0x5d8] sm:$0xff]
        %v663 = vld [vmem:[%s205 + $0x5e0] sm:$0xff]
        %v664 = vld [vmem:[%s205 + $0x5e8] sm:$0xff]
        %v665 = vld [vmem:[%s205 + $0x5f0] sm:$0xff]
        %v666 = vld [vmem:[%s205 + $0x5f8] sm:$0xff]
        %v667 = vld [vmem:[%s205 + $0x600] sm:$0xff]
        %v668 = vld [vmem:[%s205 + $0x608] sm:$0xff]
        %v669 = vld [vmem:[%s205 + $0x610] sm:$0xff]
        %v670 = vld [vmem:[%s205 + $0x618] sm:$0xff]
        %v671 = vld [vmem:[%s205 + $0x620] sm:$0xff]
        %v672 = vld [vmem:[%s205 + $0x628] sm:$0xff]
        %v673 = vld [vmem:[%s205 + $0x630] sm:$0xff]
        %v674 = vld [vmem:[%s205 + $0x638] sm:$0xff]
        %v675 = vld [vmem:[%s205 + $0x640] sm:$0xff]
        %v676 = vld [vmem:[%s205 + $0x648] sm:$0xff]
        %v677 = vld [vmem:[%s205 + $0x650] sm:$0xff]
        %v678 = vld [vmem:[%s205 + $0x658] sm:$0xff]
        %v679 = vld [vmem:[%s205 + $0x660] sm:$0xff]
        %v680 = vld [vmem:[%s205 + $0x668] sm:$0xff]
        %v681 = vld [vmem:[%s205 + $0x670] sm:$0xff]
        %v682 = vld [vmem:[%s205 + $0x678] sm:$0xff]
        %v683 = vld [vmem:[%s205 + $0x680] sm:$0xff]
        %v684 = vld [vmem:[%s205 + $0x688] sm:$0xff]
        %v685 = vld [vmem:[%s205 + $0x690] sm:$0xff]
        %v686 = vld [vmem:[%s205 + $0x698] sm:$0xff]
        %v687 = vld [vmem:[%s205 + $0x6a0] sm:$0xff]
        %v688 = vld [vmem:[%s205 + $0x6a8] sm:$0xff]
        %v689 = vld [vmem:[%s205 + $0x6b0] sm:$0xff]
        %v690 = vld [vmem:[%s205 + $0x6b8] sm:$0xff]
        %v691 = vld [vmem:[%s205 + $0x6c0] sm:$0xff]
        %v692 = vld [vmem:[%s205 + $0x6c8] sm:$0xff]
        %v693 = vld [vmem:[%s205 + $0x6d0] sm:$0xff]
        %v694 = vld [vmem:[%s205 + $0x6d8] sm:$0xff]
        %v695 = vld [vmem:[%s205 + $0x6e0] sm:$0xff]
        %v696 = vld [vmem:[%s205 + $0x6e8] sm:$0xff]
        %v697 = vld [vmem:[%s205 + $0x6f0] sm:$0xff]
        %v698 = vld [vmem:[%s205 + $0x6f8] sm:$0xff]
        %v699 = vld [vmem:[%s205 + $0x700] sm:$0xff]
        %v700 = vld [vmem:[%s205 + $0x708] sm:$0xff]
        %v701 = vld [vmem:[%s205 + $0x710] sm:$0xff]
        %v702 = vld [vmem:[%s205 + $0x718] sm:$0xff]
        %v703 = vld [vmem:[%s205 + $0x720] sm:$0xff]
        %v704 = vld [vmem:[%s205 + $0x728] sm:$0xff]
        %v705 = vld [vmem:[%s205 + $0x730] sm:$0xff]
        %v706 = vld [vmem:[%s205 + $0x738] sm:$0xff]
        %v707 = vld [vmem:[%s205 + $0x740] sm:$0xff]
        %v708 = vld [vmem:[%s205 + $0x748] sm:$0xff]
        %v709 = vld [vmem:[%s205 + $0x750] sm:$0xff]
        %v710 = vld [vmem:[%s205 + $0x758] sm:$0xff]
        %v711 = vld [vmem:[%s205 + $0x760] sm:$0xff]
        %v712 = vld [vmem:[%s205 + $0x768] sm:$0xff]
        %v713 = vld [vmem:[%s205 + $0x770] sm:$0xff]
        %v714 = vld [vmem:[%s205 + $0x778] sm:$0xff]
        %v715 = vld [vmem:[%s205 + $0x780] sm:$0xff]
        %v716 = vld [vmem:[%s205 + $0x788] sm:$0xff]
        %v717 = vld [vmem:[%s205 + $0x790] sm:$0xff]
        %v718 = vld [vmem:[%s205 + $0x798] sm:$0xff]
        %v719 = vld [vmem:[%s205 + $0x7a0] sm:$0xff]
        %v720 = vld [vmem:[%s205 + $0x7a8] sm:$0xff]
        %v721 = vld [vmem:[%s205 + $0x7b0] sm:$0xff]
        %v722 = vld [vmem:[%s205 + $0x7b8] sm:$0xff]
        %v723 = vld [vmem:[%s205 + $0x7c0] sm:$0xff]
        %v724 = vld [vmem:[%s205 + $0x7c8] sm:$0xff]
        %v725 = vld [vmem:[%s205 + $0x7d0] sm:$0xff]
        %v726 = vld [vmem:[%s205 + $0x7d8] sm:$0xff]
        %v727 = vld [vmem:[%s205 + $0x7e0] sm:$0xff]
        %v728 = vld [vmem:[%s205 + $0x7e8] sm:$0xff]
        %v729 = vld [vmem:[%s205 + $0x7f0] sm:$0xff]
        %v730 = vld [vmem:[%s205 + $0x7f8] sm:$0xff]
        %v731 = vld [vmem:[%s205 + $0x800] sm:$0xff]
        %v732 = vld [vmem:[%s205 + $0x808] sm:$0xff]
        %v733 = vld [vmem:[%s205 + $0x810] sm:$0xff]
        %v734 = vld [vmem:[%s205 + $0x818] sm:$0xff]
        %v735 = vld [vmem:[%s205 + $0x820] sm:$0xff]
        %v736 = vld [vmem:[%s205 + $0x828] sm:$0xff]
        %v737 = vld [vmem:[%s205 + $0x830] sm:$0xff]
        %v738 = vld [vmem:[%s205 + $0x838] sm:$0xff]
        %v739 = vld [vmem:[%s205 + $0x840] sm:$0xff]
        %v740 = vld [vmem:[%s205 + $0x848] sm:$0xff]
        %v741 = vld [vmem:[%s205 + $0x850] sm:$0xff]
        %v742 = vld [vmem:[%s205 + $0x858] sm:$0xff]
        %v743 = vld [vmem:[%s205 + $0x860] sm:$0xff]
        %v744 = vld [vmem:[%s205 + $0x868] sm:$0xff]
        %v745 = vld [vmem:[%s205 + $0x870] sm:$0xff]
        %v746 = vld [vmem:[%s205 + $0x878] sm:$0xff]
        %v747 = vld [vmem:[%s205 + $0x880] sm:$0xff]
        %v748 = vld [vmem:[%s205 + $0x888] sm:$0xff]
        %v749 = vld [vmem:[%s205 + $0x890] sm:$0xff]
        %v750 = vld [vmem:[%s205 + $0x898] sm:$0xff]
        %v751 = vld [vmem:[%s205 + $0x8a0] sm:$0xff]
        %v752 = vld [vmem:[%s205 + $0x8a8] sm:$0xff]
        %v753 = vld [vmem:[%s205 + $0x8b0] sm:$0xff]
        %v754 = vld [vmem:[%s205 + $0x8b8] sm:$0xff]
        %v755 = vld [vmem:[%s205 + $0x8c0] sm:$0xff]
        %v756 = vld [vmem:[%s205 + $0x8c8] sm:$0xff]
        %v757 = vld [vmem:[%s205 + $0x8d0] sm:$0xff]
        %v758 = vld [vmem:[%s205 + $0x8d8] sm:$0xff]
        %v759 = vld [vmem:[%s205 + $0x8e0] sm:$0xff]
        %v760 = vld [vmem:[%s205 + $0x8e8] sm:$0xff]
        %v761 = vld [vmem:[%s205 + $0x8f0] sm:$0xff]
        %v762 = vld [vmem:[%s205 + $0x8f8] sm:$0xff]
        %v763 = vld [vmem:[%s205 + $0x900] sm:$0xff]
        %v764 = vld [vmem:[%s205 + $0x908] sm:$0xff]
        %v765 = vld [vmem:[%s205 + $0x910] sm:$0xff]
        %v766 = vld [vmem:[%s205 + $0x918] sm:$0xff]
        %v767 = vld [vmem:[%s205 + $0x920] sm:$0xff]
        %v768 = vld [vmem:[%s205 + $0x928] sm:$0xff]
        %v769 = vld [vmem:[%s205 + $0x930] sm:$0xff]
        %v770 = vld [vmem:[%s205 + $0x938] sm:$0xff]
        %v771 = vld [vmem:[%s205 + $0x940] sm:$0xff]
        %v772 = vld [vmem:[%s205 + $0x948] sm:$0xff]
        %v773 = vld [vmem:[%s205 + $0x950] sm:$0xff]
        %v774 = vld [vmem:[%s205 + $0x958] sm:$0xff]
        %v775 = vld [vmem:[%s205 + $0x960] sm:$0xff]
        %v776 = vld [vmem:[%s205 + $0x968] sm:$0xff]
        %v777 = vld [vmem:[%s205 + $0x970] sm:$0xff]
        %v778 = vld [vmem:[%s205 + $0x978] sm:$0xff]
        %v779 = vld [vmem:[%s205 + $0x980] sm:$0xff]
        %v780 = vld [vmem:[%s205 + $0x988] sm:$0xff]
        %v781 = vld [vmem:[%s205 + $0x990] sm:$0xff]
        %v782 = vld [vmem:[%s205 + $0x998] sm:$0xff]
        %v783 = vld [vmem:[%s205 + $0x9a0] sm:$0xff]
        %v784 = vld [vmem:[%s205 + $0x9a8] sm:$0xff]
        %v785 = vld [vmem:[%s205 + $0x9b0] sm:$0xff]
        %v786 = vld [vmem:[%s205 + $0x9b8] sm:$0xff]
        %v787 = vld [vmem:[%s205 + $0x9c0] sm:$0xff]
        %v788 = vld [vmem:[%s205 + $0x9c8] sm:$0xff]
        %v789 = vld [vmem:[%s205 + $0x9d0] sm:$0xff]
        %v790 = vld [vmem:[%s205 + $0x9d8] sm:$0xff]
        %v791 = vld [vmem:[%s205 + $0x9e0] sm:$0xff]
        %v792 = vld [vmem:[%s205 + $0x9e8] sm:$0xff]
        %v793 = vld [vmem:[%s205 + $0x9f0] sm:$0xff]
        %v794 = vld [vmem:[%s205 + $0x9f8] sm:$0xff]
        %v795 = vld [vmem:[%s205 + $0xa00] sm:$0xff]
        %v796 = vld [vmem:[%s205 + $0xa08] sm:$0xff]
        %v797 = vld [vmem:[%s205 + $0xa10] sm:$0xff]
        %v798 = vld [vmem:[%s205 + $0xa18] sm:$0xff]
        %v799 = vld [vmem:[%s205 + $0xa20] sm:$0xff]
        %v800 = vld [vmem:[%s205 + $0xa28] sm:$0xff]
        %v801 = vld [vmem:[%s205 + $0xa30] sm:$0xff]
        %v802 = vld [vmem:[%s205 + $0xa38] sm:$0xff]
        %v803 = vld [vmem:[%s205 + $0xa40] sm:$0xff]
        %v804 = vld [vmem:[%s205 + $0xa48] sm:$0xff]
        %v805 = vld [vmem:[%s205 + $0xa50] sm:$0xff]
        %v806 = vld [vmem:[%s205 + $0xa58] sm:$0xff]
        %v807 = vld [vmem:[%s205 + $0xa60] sm:$0xff]
        %v808 = vld [vmem:[%s205 + $0xa68] sm:$0xff]
        %v809 = vld [vmem:[%s205 + $0xa70] sm:$0xff]
        %v810 = vld [vmem:[%s205 + $0xa78] sm:$0xff]
        %v811 = vld [vmem:[%s205 + $0xa80] sm:$0xff]
        %v812 = vld [vmem:[%s205 + $0xa88] sm:$0xff]
        %v813 = vld [vmem:[%s205 + $0xa90] sm:$0xff]
        %v814 = vld [vmem:[%s205 + $0xa98] sm:$0xff]
        %v815 = vld [vmem:[%s205 + $0xaa0] sm:$0xff]
        %v816 = vld [vmem:[%s205 + $0xaa8] sm:$0xff]
        %v817 = vld [vmem:[%s205 + $0xab0] sm:$0xff]
        %v818 = vld [vmem:[%s205 + $0xab8] sm:$0xff]
        %v819 = vld [vmem:[%s205 + $0xac0] sm:$0xff]
        %v820 = vld [vmem:[%s205 + $0xac8] sm:$0xff]
        %v821 = vld [vmem:[%s205 + $0xad0] sm:$0xff]
        %v822 = vld [vmem:[%s205 + $0xad8] sm:$0xff]
        %v823 = vld [vmem:[%s205 + $0xae0] sm:$0xff]
        %v824 = vld [vmem:[%s205 + $0xae8] sm:$0xff]
        %v825 = vld [vmem:[%s205 + $0xaf0] sm:$0xff]
        %v826 = vld [vmem:[%s205 + $0xaf8] sm:$0xff]
        %v827 = vld [vmem:[%s205 + $0xb00] sm:$0xff]
        %v828 = vld [vmem:[%s205 + $0xb08] sm:$0xff]
        %v829 = vld [vmem:[%s205 + $0xb10] sm:$0xff]
        %v830 = vld [vmem:[%s205 + $0xb18] sm:$0xff]
        %v831 = vld [vmem:[%s205 + $0xb20] sm:$0xff]
        %v832 = vld [vmem:[%s205 + $0xb28] sm:$0xff]
        %v833 = vld [vmem:[%s205 + $0xb30] sm:$0xff]
        %v834 = vld [vmem:[%s205 + $0xb38] sm:$0xff]
        %v835 = vld [vmem:[%s205 + $0xb40] sm:$0xff]
        %v836 = vld [vmem:[%s205 + $0xb48] sm:$0xff]
        %v837 = vld [vmem:[%s205 + $0xb50] sm:$0xff]
        %v838 = vld [vmem:[%s205 + $0xb58] sm:$0xff]
        %v839 = vld [vmem:[%s205 + $0xb60] sm:$0xff]
        %v840 = vld [vmem:[%s205 + $0xb68] sm:$0xff]
        %v841 = vld [vmem:[%s205 + $0xb70] sm:$0xff]
        %v842 = vld [vmem:[%s205 + $0xb78] sm:$0xff]
        %v843 = vld [vmem:[%s205 + $0xb80] sm:$0xff]
        %v844 = vld [vmem:[%s205 + $0xb88] sm:$0xff]
        %v845 = vld [vmem:[%s205 + $0xb90] sm:$0xff]
        %v846 = vld [vmem:[%s205 + $0xb98] sm:$0xff]
        %v847 = vld [vmem:[%s205 + $0xba0] sm:$0xff]
        %v848 = vld [vmem:[%s205 + $0xba8] sm:$0xff]
        %v849 = vld [vmem:[%s205 + $0xbb0] sm:$0xff]
        %v850 = vld [vmem:[%s205 + $0xbb8] sm:$0xff]
        %v851 = vld [vmem:[%s205 + $0xbc0] sm:$0xff]
        %v852 = vld [vmem:[%s205 + $0xbc8] sm:$0xff]
        %v853 = vld [vmem:[%s205 + $0xbd0] sm:$0xff]
        %v854 = vld [vmem:[%s205 + $0xbd8] sm:$0xff]
        %v855 = vld [vmem:[%s205 + $0xbe0] sm:$0xff]
        %v856 = vld [vmem:[%s205 + $0xbe8] sm:$0xff]
        %v857 = vld [vmem:[%s205 + $0xbf0] sm:$0xff]
        %v858 = vld [vmem:[%s205 + $0xbf8] sm:$0xff]
        %v859 = vld [vmem:[%s205 + $0xc00] sm:$0xff]
        %v860 = vld [vmem:[%s205 + $0xc08] sm:$0xff]
        %v861 = vld [vmem:[%s205 + $0xc10] sm:$0xff]
        %v862 = vld [vmem:[%s205 + $0xc18] sm:$0xff]
        %v863 = vld [vmem:[%s205 + $0xc20] sm:$0xff]
        %v864 = vld [vmem:[%s205 + $0xc28] sm:$0xff]
        %v865 = vld [vmem:[%s205 + $0xc30] sm:$0xff]
        %v866 = vld [vmem:[%s205 + $0xc38] sm:$0xff]
        %v867 = vld [vmem:[%s205 + $0xc40] sm:$0xff]
        %v868 = vld [vmem:[%s205 + $0xc48] sm:$0xff]
        %v869 = vld [vmem:[%s205 + $0xc50] sm:$0xff]
        %v870 = vld [vmem:[%s205 + $0xc58] sm:$0xff]
        %v871 = vld [vmem:[%s205 + $0xc60] sm:$0xff]
        %v872 = vld [vmem:[%s205 + $0xc68] sm:$0xff]
        %v873 = vld [vmem:[%s205 + $0xc70] sm:$0xff]
        %v874 = vld [vmem:[%s205 + $0xc78] sm:$0xff]
        %v875 = vld [vmem:[%s205 + $0xc80] sm:$0xff]
        %v876 = vld [vmem:[%s205 + $0xc88] sm:$0xff]
        %v877 = vld [vmem:[%s205 + $0xc90] sm:$0xff]
        %v878 = vld [vmem:[%s205 + $0xc98] sm:$0xff]
        %v879 = vld [vmem:[%s205 + $0xca0] sm:$0xff]
        %v880 = vld [vmem:[%s205 + $0xca8] sm:$0xff]
        %v881 = vld [vmem:[%s205 + $0xcb0] sm:$0xff]
        %v882 = vld [vmem:[%s205 + $0xcb8] sm:$0xff]
        %v883 = vld [vmem:[%s205 + $0xcc0] sm:$0xff]
        %v884 = vld [vmem:[%s205 + $0xcc8] sm:$0xff]
        %v885 = vld [vmem:[%s205 + $0xcd0] sm:$0xff]
        %v886 = vld [vmem:[%s205 + $0xcd8] sm:$0xff]
        %v887 = vld [vmem:[%s205 + $0xce0] sm:$0xff]
        %v888 = vld [vmem:[%s205 + $0xce8] sm:$0xff]
        %v889 = vld [vmem:[%s205 + $0xcf0] sm:$0xff]
        %v890 = vld [vmem:[%s205 + $0xcf8] sm:$0xff]
        %v891 = vld [vmem:[%s205 + $0xd00] sm:$0xff]
        %v892 = vld [vmem:[%s205 + $0xd08] sm:$0xff]
        %v893 = vld [vmem:[%s205 + $0xd10] sm:$0xff]
        %v894 = vld [vmem:[%s205 + $0xd18] sm:$0xff]
        %v895 = vld [vmem:[%s205 + $0xd20] sm:$0xff]
        %v896 = vld [vmem:[%s205 + $0xd28] sm:$0xff]
        %v897 = vld [vmem:[%s205 + $0xd30] sm:$0xff]
        %v898 = vld [vmem:[%s205 + $0xd38] sm:$0xff]
        %v899 = vld [vmem:[%s205 + $0xd40] sm:$0xff]
        %v900 = vld [vmem:[%s205 + $0xd48] sm:$0xff]
        %v901 = vld [vmem:[%s205 + $0xd50] sm:$0xff]
        %v902 = vld [vmem:[%s205 + $0xd58] sm:$0xff]
        %v903 = vld [vmem:[%s205 + $0xd60] sm:$0xff]
        %v904 = vld [vmem:[%s205 + $0xd68] sm:$0xff]
        %v905 = vld [vmem:[%s205 + $0xd70] sm:$0xff]
        %v906 = vld [vmem:[%s205 + $0xd78] sm:$0xff]
        %v907 = vld [vmem:[%s205 + $0xd80] sm:$0xff]
        %v908 = vld [vmem:[%s205 + $0xd88] sm:$0xff]
        %v909 = vld [vmem:[%s205 + $0xd90] sm:$0xff]
        %v910 = vld [vmem:[%s205 + $0xd98] sm:$0xff]
        %v911 = vld [vmem:[%s205 + $0xda0] sm:$0xff]
        %v912 = vld [vmem:[%s205 + $0xda8] sm:$0xff]
        %v913 = vld [vmem:[%s205 + $0xdb0] sm:$0xff]
        %v914 = vld [vmem:[%s205 + $0xdb8] sm:$0xff]
        %v915 = vld [vmem:[%s205 + $0xdc0] sm:$0xff]
        %v916 = vld [vmem:[%s205 + $0xdc8] sm:$0xff]
        %v917 = vld [vmem:[%s205 + $0xdd0] sm:$0xff]
        %v918 = vld [vmem:[%s205 + $0xdd8] sm:$0xff]
        %v919 = vld [vmem:[%s205 + $0xde0] sm:$0xff]
        %v920 = vld [vmem:[%s205 + $0xde8] sm:$0xff]
        %v921 = vld [vmem:[%s205 + $0xdf0] sm:$0xff]
        %v922 = vld [vmem:[%s205 + $0xdf8] sm:$0xff]
        %v923 = vld [vmem:[%s205 + $0xe00] sm:$0xff]
        %v924 = vld [vmem:[%s205 + $0xe08] sm:$0xff]
        %v925 = vld [vmem:[%s205 + $0xe10] sm:$0xff]
        %v926 = vld [vmem:[%s205 + $0xe18] sm:$0xff]
        %v927 = vld [vmem:[%s205 + $0xe20] sm:$0xff]
        %v928 = vld [vmem:[%s205 + $0xe28] sm:$0xff]
        %v929 = vld [vmem:[%s205 + $0xe30] sm:$0xff]
        %v930 = vld [vmem:[%s205 + $0xe38] sm:$0xff]
        %v931 = vld [vmem:[%s205 + $0xe40] sm:$0xff]
        %v932 = vld [vmem:[%s205 + $0xe48] sm:$0xff]
        %v933 = vld [vmem:[%s205 + $0xe50] sm:$0xff]
        %v934 = vld [vmem:[%s205 + $0xe58] sm:$0xff]
        %v935 = vld [vmem:[%s205 + $0xe60] sm:$0xff]
        %v936 = vld [vmem:[%s205 + $0xe68] sm:$0xff]
        %v937 = vld [vmem:[%s205 + $0xe70] sm:$0xff]
        %v938 = vld [vmem:[%s205 + $0xe78] sm:$0xff]
        %v939 = vld [vmem:[%s205 + $0xe80] sm:$0xff]
        %v940 = vld [vmem:[%s205 + $0xe88] sm:$0xff]
        %v941 = vld [vmem:[%s205 + $0xe90] sm:$0xff]
        %v942 = vld [vmem:[%s205 + $0xe98] sm:$0xff]
        %v943 = vld [vmem:[%s205 + $0xea0] sm:$0xff]
        %v944 = vld [vmem:[%s205 + $0xea8] sm:$0xff]
        %v945 = vld [vmem:[%s205 + $0xeb0] sm:$0xff]
        %v946 = vld [vmem:[%s205 + $0xeb8] sm:$0xff]
        %v947 = vld [vmem:[%s205 + $0xec0] sm:$0xff]
        %v948 = vld [vmem:[%s205 + $0xec8] sm:$0xff]
        %v949 = vld [vmem:[%s205 + $0xed0] sm:$0xff]
        %v950 = vld [vmem:[%s205 + $0xed8] sm:$0xff]
        %v951 = vld [vmem:[%s205 + $0xee0] sm:$0xff]
        %v952 = vld [vmem:[%s205 + $0xee8] sm:$0xff]
        %v953 = vld [vmem:[%s205 + $0xef0] sm:$0xff]
        %v954 = vld [vmem:[%s205 + $0xef8] sm:$0xff]
        %v955 = vld [vmem:[%s205 + $0xf00] sm:$0xff]
        %v956 = vld [vmem:[%s205 + $0xf08] sm:$0xff]
        %v957 = vld [vmem:[%s205 + $0xf10] sm:$0xff]
        %v958 = vld [vmem:[%s205 + $0xf18] sm:$0xff]
        %v959 = vld [vmem:[%s205 + $0xf20] sm:$0xff]
        %v960 = vld [vmem:[%s205 + $0xf28] sm:$0xff]
        %v961 = vld [vmem:[%s205 + $0xf30] sm:$0xff]
        %v962 = vld [vmem:[%s205 + $0xf38] sm:$0xff]
        %v963 = vld [vmem:[%s205 + $0xf40] sm:$0xff]
        %v964 = vld [vmem:[%s205 + $0xf48] sm:$0xff]
        %v965 = vld [vmem:[%s205 + $0xf50] sm:$0xff]
        %v966 = vld [vmem:[%s205 + $0xf58] sm:$0xff]
        %v967 = vld [vmem:[%s205 + $0xf60] sm:$0xff]
        %v968 = vld [vmem:[%s205 + $0xf68] sm:$0xff]
        %v969 = vld [vmem:[%s205 + $0xf70] sm:$0xff]
        %v970 = vld [vmem:[%s205 + $0xf78] sm:$0xff]
        %v971 = vld [vmem:[%s205 + $0xf80] sm:$0xff]
        %v972 = vld [vmem:[%s205 + $0xf88] sm:$0xff]
        %v973 = vld [vmem:[%s205 + $0xf90] sm:$0xff]
        %v974 = vld [vmem:[%s205 + $0xf98] sm:$0xff]
        %v975 = vld [vmem:[%s205 + $0xfa0] sm:$0xff]
        %v976 = vld [vmem:[%s205 + $0xfa8] sm:$0xff]
        %v977 = vld [vmem:[%s205 + $0xfb0] sm:$0xff]
        %v978 = vld [vmem:[%s205 + $0xfb8] sm:$0xff]
        %v979 = vld [vmem:[%s205 + $0xfc0] sm:$0xff]
        %v980 = vld [vmem:[%s205 + $0xfc8] sm:$0xff]
        %v981 = vld [vmem:[%s205 + $0xfd0] sm:$0xff]
        %v982 = vld [vmem:[%s205 + $0xfd8] sm:$0xff]
        %v983 = vld [vmem:[%s205 + $0xfe0] sm:$0xff]
        %v984 = vld [vmem:[%s205 + $0xfe8] sm:$0xff]
        %v985 = vld [vmem:[%s205 + $0xff0] sm:$0xff]
        %v986 = vld [vmem:[%s205 + $0xff8] sm:$0xff]
        %v987 = vld [vmem:[%s205 + $0x1000] sm:$0xff]
        %v988 = vld [vmem:[%s205 + $0x1008] sm:$0xff]
        %v989 = vld [vmem:[%s205 + $0x1010] sm:$0xff]
        %v990 = vld [vmem:[%s205 + $0x1018] sm:$0xff]
        %v991 = vld [vmem:[%s205 + $0x1020] sm:$0xff]
        %v992 = vld [vmem:[%s205 + $0x1028] sm:$0xff]
        %v993 = vld [vmem:[%s205 + $0x1030] sm:$0xff]
        %v994 = vld [vmem:[%s205 + $0x1038] sm:$0xff]
        %v995 = vld [vmem:[%s205 + $0x1040] sm:$0xff]
        %v996 = vld [vmem:[%s205 + $0x1048] sm:$0xff]
        %v997 = vld [vmem:[%s205 + $0x1050] sm:$0xff]
        %v998 = vld [vmem:[%s205 + $0x1058] sm:$0xff]
        %v999 = vld [vmem:[%s205 + $0x1060] sm:$0xff]
        %v1000 = vld [vmem:[%s205 + $0x1068] sm:$0xff]
        %v1001 = vld [vmem:[%s205 + $0x1070] sm:$0xff]
        %v1002 = vld [vmem:[%s205 + $0x1078] sm:$0xff]
        %v1003 = vld [vmem:[%s205 + $0x1080] sm:$0xff]
        %v1004 = vld [vmem:[%s205 + $0x1088] sm:$0xff]
        %v1005 = vld [vmem:[%s205 + $0x1090] sm:$0xff]
        %v1006 = vld [vmem:[%s205 + $0x1098] sm:$0xff]
        %v1007 = vld [vmem:[%s205 + $0x10a0] sm:$0xff]
        %v1008 = vld [vmem:[%s205 + $0x10a8] sm:$0xff]
        %v1009 = vld [vmem:[%s205 + $0x10b0] sm:$0xff]
        %v1010 = vld [vmem:[%s205 + $0x10b8] sm:$0xff]
        %v1011 = vld [vmem:[%s205 + $0x10c0] sm:$0xff]
        %v1012 = vld [vmem:[%s205 + $0x10c8] sm:$0xff]
        %v1013 = vld [vmem:[%s205 + $0x10d0] sm:$0xff]
        %v1014 = vld [vmem:[%s205 + $0x10d8] sm:$0xff]
        %v1015 = vld [vmem:[%s205 + $0x10e0] sm:$0xff]
        %v1016 = vld [vmem:[%s205 + $0x10e8] sm:$0xff]
        %v1017 = vld [vmem:[%s205 + $0x10f0] sm:$0xff]
        %v1018 = vld [vmem:[%s205 + $0x10f8] sm:$0xff]
        %v1019 = vld [vmem:[%s205 + $0x1100] sm:$0xff]
        %v1020 = vld [vmem:[%s205 + $0x1108] sm:$0xff]
        %v1021 = vld [vmem:[%s205 + $0x1110] sm:$0xff]
        %v1022 = vld [vmem:[%s205 + $0x1118] sm:$0xff]
        %v1023 = vld [vmem:[%s205 + $0x1120] sm:$0xff]
        %v1024 = vld [vmem:[%s205 + $0x1128] sm:$0xff]
        %v1025 = vld [vmem:[%s205 + $0x1130] sm:$0xff]
        %v1026 = vld [vmem:[%s205 + $0x1138] sm:$0xff]
        %v1027 = vld [vmem:[%s205 + $0x1140] sm:$0xff]
        %v1028 = vld [vmem:[%s205 + $0x1148] sm:$0xff]
        %v1029 = vld [vmem:[%s205 + $0x1150] sm:$0xff]
        %v1030 = vld [vmem:[%s205 + $0x1158] sm:$0xff]
        %v1031 = vld [vmem:[%s205 + $0x1160] sm:$0xff]
        %v1032 = vld [vmem:[%s205 + $0x1168] sm:$0xff]
        %v1033 = vld [vmem:[%s205 + $0x1170] sm:$0xff]
        %v1034 = vld [vmem:[%s205 + $0x1178] sm:$0xff]
        %v1035 = vld [vmem:[%s205 + $0x1180] sm:$0xff]
        %v1036 = vld [vmem:[%s205 + $0x1188] sm:$0xff]
        %v1037 = vld [vmem:[%s205 + $0x1190] sm:$0xff]
        %v1038 = vld [vmem:[%s205 + $0x1198] sm:$0xff]
        %v1039 = vld [vmem:[%s205 + $0x11a0] sm:$0xff]
        %v1040 = vld [vmem:[%s205 + $0x11a8] sm:$0xff]
        %v1041 = vld [vmem:[%s205 + $0x11b0] sm:$0xff]
        %v1042 = vld [vmem:[%s205 + $0x11b8] sm:$0xff]
        %v1043 = vld [vmem:[%s205 + $0x11c0] sm:$0xff]
        %v1044 = vld [vmem:[%s205 + $0x11c8] sm:$0xff]
        %v1045 = vld [vmem:[%s205 + $0x11d0] sm:$0xff]
        %v1046 = vld [vmem:[%s205 + $0x11d8] sm:$0xff]
        %v1047 = vld [vmem:[%s205 + $0x11e0] sm:$0xff]
        %v1048 = vld [vmem:[%s205 + $0x11e8] sm:$0xff]
        %v1049 = vld [vmem:[%s205 + $0x11f0] sm:$0xff]
        %v1050 = vld [vmem:[%s205 + $0x11f8] sm:$0xff]
        %v1051 = vld [vmem:[%s215] sm:$0xff]
        %v1052 = vld [vmem:[%s215 + $0x8] sm:$0xf]
        %v1055 = vperm.slane %v1051, 0
        %v1056 = vperm.slane %v1051, 1
        %v1057 = vperm.slane %v1051, 2
        %v1058 = vperm.slane %v1051, 3
        %v1059 = vperm.slane %v1051, 4
        %v1060 = vperm.slane %v1051, 5
        %v1061 = vperm.slane %v1051, 6
        %v1062 = vperm.slane %v1051, 7
        %v1063 = vperm.slane %v1052, 0
        %v1064 = vperm.slane %v1052, 1
        %v1065 = vperm.slane %v1052, 2
        %v1066 = vperm.slane %v1052, 3
        %v1655 = vunpack.c.l.b16 %v475
        %v1656 = vunpack.c.h.b16 %v475
        %v1657 = vunpack.c.l.b16 %v476
        %v1658 = vunpack.c.h.b16 %v476
        %v1659 = vunpack.c.l.b16 %v477
        %v1660 = vunpack.c.h.b16 %v477
        %v1661 = vunpack.c.l.b16 %v478
        %v1662 = vunpack.c.h.b16 %v478
        %v1663 = vunpack.c.l.b16 %v479
        %v1664 = vunpack.c.h.b16 %v479
        %v1665 = vunpack.c.l.b16 %v480
        %v1666 = vunpack.c.h.b16 %v480
        %v1667 = vunpack.c.l.b16 %v481
        %v1668 = vunpack.c.h.b16 %v481
        %v1669 = vunpack.c.l.b16 %v482
        %v1670 = vunpack.c.h.b16 %v482
        %v1671 = vunpack.c.l.b16 %v483
        %v1672 = vunpack.c.h.b16 %v483
        %v1673 = vunpack.c.l.b16 %v484
        %v1674 = vunpack.c.h.b16 %v484
        %v1675 = vunpack.c.l.b16 %v485
        %v1676 = vunpack.c.h.b16 %v485
        %v1677 = vunpack.c.l.b16 %v486
        %v1678 = vunpack.c.h.b16 %v486
        %v1679 = vunpack.c.l.b16 %v487
        %v1680 = vunpack.c.h.b16 %v487
        %v1681 = vunpack.c.l.b16 %v488
        %v1682 = vunpack.c.h.b16 %v488
        %v1683 = vunpack.c.l.b16 %v489
        %v1684 = vunpack.c.h.b16 %v489
        %v1685 = vunpack.c.l.b16 %v490
        %v1686 = vunpack.c.h.b16 %v490
        %v1687 = vunpack.c.l.b16 %v491
        %v1688 = vunpack.c.h.b16 %v491
        %v1689 = vunpack.c.l.b16 %v492
        %v1690 = vunpack.c.h.b16 %v492
        %v1691 = vunpack.c.l.b16 %v493
        %v1692 = vunpack.c.h.b16 %v493
        %v1693 = vunpack.c.l.b16 %v494
        %v1694 = vunpack.c.h.b16 %v494
        %v1695 = vunpack.c.l.b16 %v495
        %v1696 = vunpack.c.h.b16 %v495
        %v1697 = vunpack.c.l.b16 %v496
        %v1698 = vunpack.c.h.b16 %v496
        %v1699 = vunpack.c.l.b16 %v497
        %v1700 = vunpack.c.h.b16 %v497
        %v1701 = vunpack.c.l.b16 %v498
        %v1702 = vunpack.c.h.b16 %v498
        %v1703 = vunpack.c.l.b16 %v499
        %v1704 = vunpack.c.h.b16 %v499
        %v1705 = vunpack.c.l.b16 %v500
        %v1706 = vunpack.c.h.b16 %v500
        %v1707 = vunpack.c.l.b16 %v501
        %v1708 = vunpack.c.h.b16 %v501
        %v1709 = vunpack.c.l.b16 %v502
        %v1710 = vunpack.c.h.b16 %v502
        %v1711 = vunpack.c.l.b16 %v503
        %v1712 = vunpack.c.h.b16 %v503
        %v1713 = vunpack.c.l.b16 %v504
        %v1714 = vunpack.c.h.b16 %v504
        %v1715 = vunpack.c.l.b16 %v505
        %v1716 = vunpack.c.h.b16 %v505
        %v1717 = vunpack.c.l.b16 %v506
        %v1718 = vunpack.c.h.b16 %v506
        %v1719 = vunpack.c.l.b16 %v507
        %v1720 = vunpack.c.h.b16 %v507
        %v1721 = vunpack.c.l.b16 %v508
        %v1722 = vunpack.c.h.b16 %v508
        %v1723 = vunpack.c.l.b16 %v509
        %v1724 = vunpack.c.h.b16 %v509
        %v1725 = vunpack.c.l.b16 %v510
        %v1726 = vunpack.c.h.b16 %v510
        %v1727 = vunpack.c.l.b16 %v511
        %v1728 = vunpack.c.h.b16 %v511
        %v1729 = vunpack.c.l.b16 %v512
        %v1730 = vunpack.c.h.b16 %v512
        %v1731 = vunpack.c.l.b16 %v513
        %v1732 = vunpack.c.h.b16 %v513
        %v1733 = vunpack.c.l.b16 %v514
        %v1734 = vunpack.c.h.b16 %v514
        %v1735 = vunpack.c.l.b16 %v515
        %v1736 = vunpack.c.h.b16 %v515
        %v1737 = vunpack.c.l.b16 %v516
        %v1738 = vunpack.c.h.b16 %v516
        %v1739 = vunpack.c.l.b16 %v517
        %v1740 = vunpack.c.h.b16 %v517
        %v1741 = vunpack.c.l.b16 %v518
        %v1742 = vunpack.c.h.b16 %v518
        %v1743 = vunpack.c.l.b16 %v519
        %v1744 = vunpack.c.h.b16 %v519
        %v1745 = vunpack.c.l.b16 %v520
        %v1746 = vunpack.c.h.b16 %v520
        %v1747 = vunpack.c.l.b16 %v521
        %v1748 = vunpack.c.h.b16 %v521
        %v1749 = vunpack.c.l.b16 %v522
        %v1750 = vunpack.c.h.b16 %v522
        %v1751 = vunpack.c.l.b16 %v523
        %v1752 = vunpack.c.h.b16 %v523
        %v1753 = vunpack.c.l.b16 %v524
        %v1754 = vunpack.c.h.b16 %v524
        %v1755 = vunpack.c.l.b16 %v525
        %v1756 = vunpack.c.h.b16 %v525
        %v1757 = vunpack.c.l.b16 %v526
        %v1758 = vunpack.c.h.b16 %v526
        %v1759 = vunpack.c.l.b16 %v527
        %v1760 = vunpack.c.h.b16 %v527
        %v1761 = vunpack.c.l.b16 %v528
        %v1762 = vunpack.c.h.b16 %v528
        %v1763 = vunpack.c.l.b16 %v529
        %v1764 = vunpack.c.h.b16 %v529
        %v1765 = vunpack.c.l.b16 %v530
        %v1766 = vunpack.c.h.b16 %v530
        %v1767 = vunpack.c.l.b16 %v531
        %v1768 = vunpack.c.h.b16 %v531
        %v1769 = vunpack.c.l.b16 %v532
        %v1770 = vunpack.c.h.b16 %v532
        %v1771 = vunpack.c.l.b16 %v533
        %v1772 = vunpack.c.h.b16 %v533
        %v1773 = vunpack.c.l.b16 %v534
        %v1774 = vunpack.c.h.b16 %v534
        %v1775 = vunpack.c.l.b16 %v535
        %v1776 = vunpack.c.h.b16 %v535
        %v1777 = vunpack.c.l.b16 %v536
        %v1778 = vunpack.c.h.b16 %v536
        %v1779 = vunpack.c.l.b16 %v537
        %v1780 = vunpack.c.h.b16 %v537
        %v1781 = vunpack.c.l.b16 %v538
        %v1782 = vunpack.c.h.b16 %v538
        %v1783 = vunpack.c.l.b16 %v539
        %v1784 = vunpack.c.h.b16 %v539
        %v1785 = vunpack.c.l.b16 %v540
        %v1786 = vunpack.c.h.b16 %v540
        %v1787 = vunpack.c.l.b16 %v541
        %v1788 = vunpack.c.h.b16 %v541
        %v1789 = vunpack.c.l.b16 %v542
        %v1790 = vunpack.c.h.b16 %v542
        %v1791 = vunpack.c.l.b16 %v543
        %v1792 = vunpack.c.h.b16 %v543
        %v1793 = vunpack.c.l.b16 %v544
        %v1794 = vunpack.c.h.b16 %v544
        %v1795 = vunpack.c.l.b16 %v545
        %v1796 = vunpack.c.h.b16 %v545
        %v1797 = vunpack.c.l.b16 %v546
        %v1798 = vunpack.c.h.b16 %v546
        %v1799 = vunpack.c.l.b16 %v547
        %v1800 = vunpack.c.h.b16 %v547
        %v1801 = vunpack.c.l.b16 %v548
        %v1802 = vunpack.c.h.b16 %v548
        %v1803 = vunpack.c.l.b16 %v549
        %v1804 = vunpack.c.h.b16 %v549
        %v1805 = vunpack.c.l.b16 %v550
        %v1806 = vunpack.c.h.b16 %v550
        %v1807 = vunpack.c.l.b16 %v551
        %v1808 = vunpack.c.h.b16 %v551
        %v1809 = vunpack.c.l.b16 %v552
        %v1810 = vunpack.c.h.b16 %v552
        %v1811 = vunpack.c.l.b16 %v553
        %v1812 = vunpack.c.h.b16 %v553
        %v1813 = vunpack.c.l.b16 %v554
        %v1814 = vunpack.c.h.b16 %v554
        %v1815 = vunpack.c.l.b16 %v555
        %v1816 = vunpack.c.h.b16 %v555
        %v1817 = vunpack.c.l.b16 %v556
        %v1818 = vunpack.c.h.b16 %v556
        %v1819 = vunpack.c.l.b16 %v557
        %v1820 = vunpack.c.h.b16 %v557
        %v1821 = vunpack.c.l.b16 %v558
        %v1822 = vunpack.c.h.b16 %v558
        %v1823 = vunpack.c.l.b16 %v559
        %v1824 = vunpack.c.h.b16 %v559
        %v1825 = vunpack.c.l.b16 %v560
        %v1826 = vunpack.c.h.b16 %v560
        %v1827 = vunpack.c.l.b16 %v561
        %v1828 = vunpack.c.h.b16 %v561
        %v1829 = vunpack.c.l.b16 %v562
        %v1830 = vunpack.c.h.b16 %v562
        %v1831 = vunpack.c.l.b16 %v563
        %v1832 = vunpack.c.h.b16 %v563
        %v1833 = vunpack.c.l.b16 %v564
        %v1834 = vunpack.c.h.b16 %v564
        %v1835 = vunpack.c.l.b16 %v565
        %v1836 = vunpack.c.h.b16 %v565
        %v1837 = vunpack.c.l.b16 %v566
        %v1838 = vunpack.c.h.b16 %v566
        %v1839 = vunpack.c.l.b16 %v567
        %v1840 = vunpack.c.h.b16 %v567
        %v1841 = vunpack.c.l.b16 %v568
        %v1842 = vunpack.c.h.b16 %v568
        %v1843 = vunpack.c.l.b16 %v569
        %v1844 = vunpack.c.h.b16 %v569
        %v1845 = vunpack.c.l.b16 %v570
        %v1846 = vunpack.c.h.b16 %v570
        %v1847 = vunpack.c.l.b16 %v571
        %v1848 = vunpack.c.h.b16 %v571
        %v1849 = vunpack.c.l.b16 %v572
        %v1850 = vunpack.c.h.b16 %v572
        %v1851 = vunpack.c.l.b16 %v573
        %v1852 = vunpack.c.h.b16 %v573
        %v1853 = vunpack.c.l.b16 %v574
        %v1854 = vunpack.c.h.b16 %v574
        %v1855 = vunpack.c.l.b16 %v575
        %v1856 = vunpack.c.h.b16 %v575
        %v1857 = vunpack.c.l.b16 %v576
        %v1858 = vunpack.c.h.b16 %v576
        %v1859 = vunpack.c.l.b16 %v577
        %v1860 = vunpack.c.h.b16 %v577
        %v1861 = vunpack.c.l.b16 %v578
        %v1862 = vunpack.c.h.b16 %v578
        %v1863 = vunpack.c.l.b16 %v579
        %v1864 = vunpack.c.h.b16 %v579
        %v1865 = vunpack.c.l.b16 %v580
        %v1866 = vunpack.c.h.b16 %v580
        %v1867 = vunpack.c.l.b16 %v581
        %v1868 = vunpack.c.h.b16 %v581
        %v1869 = vunpack.c.l.b16 %v582
        %v1870 = vunpack.c.h.b16 %v582
        %v1871 = vunpack.c.l.b16 %v583
        %v1872 = vunpack.c.h.b16 %v583
        %v1873 = vunpack.c.l.b16 %v584
        %v1874 = vunpack.c.h.b16 %v584
        %v1875 = vunpack.c.l.b16 %v585
        %v1876 = vunpack.c.h.b16 %v585
        %v1877 = vunpack.c.l.b16 %v586
        %v1878 = vunpack.c.h.b16 %v586
        %v1879 = vunpack.c.l.b16 %v587
        %v1880 = vunpack.c.h.b16 %v587
        %v1881 = vunpack.c.l.b16 %v588
        %v1882 = vunpack.c.h.b16 %v588
        %v1883 = vunpack.c.l.b16 %v589
        %v1884 = vunpack.c.h.b16 %v589
        %v1885 = vunpack.c.l.b16 %v590
        %v1886 = vunpack.c.h.b16 %v590
        %v1887 = vunpack.c.l.b16 %v591
        %v1888 = vunpack.c.h.b16 %v591
        %v1889 = vunpack.c.l.b16 %v592
        %v1890 = vunpack.c.h.b16 %v592
        %v1891 = vunpack.c.l.b16 %v593
        %v1892 = vunpack.c.h.b16 %v593
        %v1893 = vunpack.c.l.b16 %v594
        %v1894 = vunpack.c.h.b16 %v594
        %v1895 = vunpack.c.l.b16 %v595
        %v1896 = vunpack.c.h.b16 %v595
        %v1897 = vunpack.c.l.b16 %v596
        %v1898 = vunpack.c.h.b16 %v596
        %v1899 = vunpack.c.l.b16 %v597
        %v1900 = vunpack.c.h.b16 %v597
        %v1901 = vunpack.c.l.b16 %v598
        %v1902 = vunpack.c.h.b16 %v598
        %v1903 = vunpack.c.l.b16 %v599
        %v1904 = vunpack.c.h.b16 %v599
        %v1905 = vunpack.c.l.b16 %v600
        %v1906 = vunpack.c.h.b16 %v600
        %v1907 = vunpack.c.l.b16 %v601
        %v1908 = vunpack.c.h.b16 %v601
        %v1909 = vunpack.c.l.b16 %v602
        %v1910 = vunpack.c.h.b16 %v602
        %v1911 = vunpack.c.l.b16 %v603
        %v1912 = vunpack.c.h.b16 %v603
        %v1913 = vunpack.c.l.b16 %v604
        %v1914 = vunpack.c.h.b16 %v604
        %v1915 = vunpack.c.l.b16 %v605
        %v1916 = vunpack.c.h.b16 %v605
        %v1917 = vunpack.c.l.b16 %v606
        %v1918 = vunpack.c.h.b16 %v606
        %v1919 = vunpack.c.l.b16 %v607
        %v1920 = vunpack.c.h.b16 %v607
        %v1921 = vunpack.c.l.b16 %v608
        %v1922 = vunpack.c.h.b16 %v608
        %v1923 = vunpack.c.l.b16 %v609
        %v1924 = vunpack.c.h.b16 %v609
        %v1925 = vunpack.c.l.b16 %v610
        %v1926 = vunpack.c.h.b16 %v610
        %v1927 = vunpack.c.l.b16 %v611
        %v1928 = vunpack.c.h.b16 %v611
        %v1929 = vunpack.c.l.b16 %v612
        %v1930 = vunpack.c.h.b16 %v612
        %v1931 = vunpack.c.l.b16 %v613
        %v1932 = vunpack.c.h.b16 %v613
        %v1933 = vunpack.c.l.b16 %v614
        %v1934 = vunpack.c.h.b16 %v614
        %v1935 = vunpack.c.l.b16 %v615
        %v1936 = vunpack.c.h.b16 %v615
        %v1937 = vunpack.c.l.b16 %v616
        %v1938 = vunpack.c.h.b16 %v616
        %v1939 = vunpack.c.l.b16 %v617
        %v1940 = vunpack.c.h.b16 %v617
        %v1941 = vunpack.c.l.b16 %v618
        %v1942 = vunpack.c.h.b16 %v618
        %v1943 = vunpack.c.l.b16 %v619
        %v1944 = vunpack.c.h.b16 %v619
        %v1945 = vunpack.c.l.b16 %v620
        %v1946 = vunpack.c.h.b16 %v620
        %v1947 = vunpack.c.l.b16 %v621
        %v1948 = vunpack.c.h.b16 %v621
        %v1949 = vunpack.c.l.b16 %v622
        %v1950 = vunpack.c.h.b16 %v622
        %v1951 = vunpack.c.l.b16 %v623
        %v1952 = vunpack.c.h.b16 %v623
        %v1953 = vunpack.c.l.b16 %v624
        %v1954 = vunpack.c.h.b16 %v624
        %v1955 = vunpack.c.l.b16 %v625
        %v1956 = vunpack.c.h.b16 %v625
        %v1957 = vunpack.c.l.b16 %v626
        %v1958 = vunpack.c.h.b16 %v626
        %v1959 = vunpack.c.l.b16 %v627
        %v1960 = vunpack.c.h.b16 %v627
        %v1961 = vunpack.c.l.b16 %v628
        %v1962 = vunpack.c.h.b16 %v628
        %v1963 = vunpack.c.l.b16 %v629
        %v1964 = vunpack.c.h.b16 %v629
        %v1965 = vunpack.c.l.b16 %v630
        %v1966 = vunpack.c.h.b16 %v630
        %v1967 = vunpack.c.l.b16 %v631
        %v1968 = vunpack.c.h.b16 %v631
        %v1969 = vunpack.c.l.b16 %v632
        %v1970 = vunpack.c.h.b16 %v632
        %v1971 = vunpack.c.l.b16 %v633
        %v1972 = vunpack.c.h.b16 %v633
        %v1973 = vunpack.c.l.b16 %v634
        %v1974 = vunpack.c.h.b16 %v634
        %v1975 = vunpack.c.l.b16 %v635
        %v1976 = vunpack.c.h.b16 %v635
        %v1977 = vunpack.c.l.b16 %v636
        %v1978 = vunpack.c.h.b16 %v636
        %v1979 = vunpack.c.l.b16 %v637
        %v1980 = vunpack.c.h.b16 %v637
        %v1981 = vunpack.c.l.b16 %v638
        %v1982 = vunpack.c.h.b16 %v638
        %v1983 = vunpack.c.l.b16 %v639
        %v1984 = vunpack.c.h.b16 %v639
        %v1985 = vunpack.c.l.b16 %v640
        %v1986 = vunpack.c.h.b16 %v640
        %v1987 = vunpack.c.l.b16 %v641
        %v1988 = vunpack.c.h.b16 %v641
        %v1989 = vunpack.c.l.b16 %v642
        %v1990 = vunpack.c.h.b16 %v642
        %v1991 = vunpack.c.l.b16 %v643
        %v1992 = vunpack.c.h.b16 %v643
        %v1993 = vunpack.c.l.b16 %v644
        %v1994 = vunpack.c.h.b16 %v644
        %v1995 = vunpack.c.l.b16 %v645
        %v1996 = vunpack.c.h.b16 %v645
        %v1997 = vunpack.c.l.b16 %v646
        %v1998 = vunpack.c.h.b16 %v646
        %v1999 = vunpack.c.l.b16 %v647
        %v2000 = vunpack.c.h.b16 %v647
        %v2001 = vunpack.c.l.b16 %v648
        %v2002 = vunpack.c.h.b16 %v648
        %v2003 = vunpack.c.l.b16 %v649
        %v2004 = vunpack.c.h.b16 %v649
        %v2005 = vunpack.c.l.b16 %v650
        %v2006 = vunpack.c.h.b16 %v650
        %v2007 = vunpack.c.l.b16 %v651
        %v2008 = vunpack.c.h.b16 %v651
        %v2009 = vunpack.c.l.b16 %v652
        %v2010 = vunpack.c.h.b16 %v652
        %v2011 = vunpack.c.l.b16 %v653
        %v2012 = vunpack.c.h.b16 %v653
        %v2013 = vunpack.c.l.b16 %v654
        %v2014 = vunpack.c.h.b16 %v654
        %v2015 = vunpack.c.l.b16 %v655
        %v2016 = vunpack.c.h.b16 %v655
        %v2017 = vunpack.c.l.b16 %v656
        %v2018 = vunpack.c.h.b16 %v656
        %v2019 = vunpack.c.l.b16 %v657
        %v2020 = vunpack.c.h.b16 %v657
        %v2021 = vunpack.c.l.b16 %v658
        %v2022 = vunpack.c.h.b16 %v658
        %v2023 = vunpack.c.l.b16 %v659
        %v2024 = vunpack.c.h.b16 %v659
        %v2025 = vunpack.c.l.b16 %v660
        %v2026 = vunpack.c.h.b16 %v660
        %v2027 = vunpack.c.l.b16 %v661
        %v2028 = vunpack.c.h.b16 %v661
        %v2029 = vunpack.c.l.b16 %v662
        %v2030 = vunpack.c.h.b16 %v662
        %v2031 = vunpack.c.l.b16 %v663
        %v2032 = vunpack.c.h.b16 %v663
        %v2033 = vunpack.c.l.b16 %v664
        %v2034 = vunpack.c.h.b16 %v664
        %v2035 = vunpack.c.l.b16 %v665
        %v2036 = vunpack.c.h.b16 %v665
        %v2037 = vunpack.c.l.b16 %v666
        %v2038 = vunpack.c.h.b16 %v666
        %v2039 = vunpack.c.l.b16 %v667
        %v2040 = vunpack.c.h.b16 %v667
        %v2041 = vunpack.c.l.b16 %v668
        %v2042 = vunpack.c.h.b16 %v668
        %v2043 = vunpack.c.l.b16 %v669
        %v2044 = vunpack.c.h.b16 %v669
        %v2045 = vunpack.c.l.b16 %v670
        %v2046 = vunpack.c.h.b16 %v670
        %v2047 = vunpack.c.l.b16 %v671
        %v2048 = vunpack.c.h.b16 %v671
        %v2049 = vunpack.c.l.b16 %v672
        %v2050 = vunpack.c.h.b16 %v672
        %v2051 = vunpack.c.l.b16 %v673
        %v2052 = vunpack.c.h.b16 %v673
        %v2053 = vunpack.c.l.b16 %v674
        %v2054 = vunpack.c.h.b16 %v674
        %v2055 = vunpack.c.l.b16 %v675
        %v2056 = vunpack.c.h.b16 %v675
        %v2057 = vunpack.c.l.b16 %v676
        %v2058 = vunpack.c.h.b16 %v676
        %v2059 = vunpack.c.l.b16 %v677
        %v2060 = vunpack.c.h.b16 %v677
        %v2061 = vunpack.c.l.b16 %v678
        %v2062 = vunpack.c.h.b16 %v678
        %v2063 = vunpack.c.l.b16 %v679
        %v2064 = vunpack.c.h.b16 %v679
        %v2065 = vunpack.c.l.b16 %v680
        %v2066 = vunpack.c.h.b16 %v680
        %v2067 = vunpack.c.l.b16 %v681
        %v2068 = vunpack.c.h.b16 %v681
        %v2069 = vunpack.c.l.b16 %v682
        %v2070 = vunpack.c.h.b16 %v682
        %v2071 = vunpack.c.l.b16 %v683
        %v2072 = vunpack.c.h.b16 %v683
        %v2073 = vunpack.c.l.b16 %v684
        %v2074 = vunpack.c.h.b16 %v684
        %v2075 = vunpack.c.l.b16 %v685
        %v2076 = vunpack.c.h.b16 %v685
        %v2077 = vunpack.c.l.b16 %v686
        %v2078 = vunpack.c.h.b16 %v686
        %v2079 = vunpack.c.l.b16 %v687
        %v2080 = vunpack.c.h.b16 %v687
        %v2081 = vunpack.c.l.b16 %v688
        %v2082 = vunpack.c.h.b16 %v688
        %v2083 = vunpack.c.l.b16 %v689
        %v2084 = vunpack.c.h.b16 %v689
        %v2085 = vunpack.c.l.b16 %v690
        %v2086 = vunpack.c.h.b16 %v690
        %v2087 = vunpack.c.l.b16 %v691
        %v2088 = vunpack.c.h.b16 %v691
        %v2089 = vunpack.c.l.b16 %v692
        %v2090 = vunpack.c.h.b16 %v692
        %v2091 = vunpack.c.l.b16 %v693
        %v2092 = vunpack.c.h.b16 %v693
        %v2093 = vunpack.c.l.b16 %v694
        %v2094 = vunpack.c.h.b16 %v694
        %v2095 = vunpack.c.l.b16 %v695
        %v2096 = vunpack.c.h.b16 %v695
        %v2097 = vunpack.c.l.b16 %v696
        %v2098 = vunpack.c.h.b16 %v696
        %v2099 = vunpack.c.l.b16 %v697
        %v2100 = vunpack.c.h.b16 %v697
        %v2101 = vunpack.c.l.b16 %v698
        %v2102 = vunpack.c.h.b16 %v698
        %v2103 = vunpack.c.l.b16 %v699
        %v2104 = vunpack.c.h.b16 %v699
        %v2105 = vunpack.c.l.b16 %v700
        %v2106 = vunpack.c.h.b16 %v700
        %v2107 = vunpack.c.l.b16 %v701
        %v2108 = vunpack.c.h.b16 %v701
        %v2109 = vunpack.c.l.b16 %v702
        %v2110 = vunpack.c.h.b16 %v702
        %v2111 = vunpack.c.l.b16 %v703
        %v2112 = vunpack.c.h.b16 %v703
        %v2113 = vunpack.c.l.b16 %v704
        %v2114 = vunpack.c.h.b16 %v704
        %v2115 = vunpack.c.l.b16 %v705
        %v2116 = vunpack.c.h.b16 %v705
        %v2117 = vunpack.c.l.b16 %v706
        %v2118 = vunpack.c.h.b16 %v706
        %v2119 = vunpack.c.l.b16 %v707
        %v2120 = vunpack.c.h.b16 %v707
        %v2121 = vunpack.c.l.b16 %v708
        %v2122 = vunpack.c.h.b16 %v708
        %v2123 = vunpack.c.l.b16 %v709
        %v2124 = vunpack.c.h.b16 %v709
        %v2125 = vunpack.c.l.b16 %v710
        %v2126 = vunpack.c.h.b16 %v710
        %v2127 = vunpack.c.l.b16 %v711
        %v2128 = vunpack.c.h.b16 %v711
        %v2129 = vunpack.c.l.b16 %v712
        %v2130 = vunpack.c.h.b16 %v712
        %v2131 = vunpack.c.l.b16 %v713
        %v2132 = vunpack.c.h.b16 %v713
        %v2133 = vunpack.c.l.b16 %v714
        %v2134 = vunpack.c.h.b16 %v714
        %v2135 = vunpack.c.l.b16 %v715
        %v2136 = vunpack.c.h.b16 %v715
        %v2137 = vunpack.c.l.b16 %v716
        %v2138 = vunpack.c.h.b16 %v716
        %v2139 = vunpack.c.l.b16 %v717
        %v2140 = vunpack.c.h.b16 %v717
        %v2141 = vunpack.c.l.b16 %v718
        %v2142 = vunpack.c.h.b16 %v718
        %v2143 = vunpack.c.l.b16 %v719
        %v2144 = vunpack.c.h.b16 %v719
        %v2145 = vunpack.c.l.b16 %v720
        %v2146 = vunpack.c.h.b16 %v720
        %v2147 = vunpack.c.l.b16 %v721
        %v2148 = vunpack.c.h.b16 %v721
        %v2149 = vunpack.c.l.b16 %v722
        %v2150 = vunpack.c.h.b16 %v722
        %v2151 = vunpack.c.l.b16 %v723
        %v2152 = vunpack.c.h.b16 %v723
        %v2153 = vunpack.c.l.b16 %v724
        %v2154 = vunpack.c.h.b16 %v724
        %v2155 = vunpack.c.l.b16 %v725
        %v2156 = vunpack.c.h.b16 %v725
        %v2157 = vunpack.c.l.b16 %v726
        %v2158 = vunpack.c.h.b16 %v726
        %v2159 = vunpack.c.l.b16 %v727
        %v2160 = vunpack.c.h.b16 %v727
        %v2161 = vunpack.c.l.b16 %v728
        %v2162 = vunpack.c.h.b16 %v728
        %v2163 = vunpack.c.l.b16 %v729
        %v2164 = vunpack.c.h.b16 %v729
        %v2165 = vunpack.c.l.b16 %v730
        %v2166 = vunpack.c.h.b16 %v730
        %v2167 = vunpack.c.l.b16 %v731
        %v2168 = vunpack.c.h.b16 %v731
        %v2169 = vunpack.c.l.b16 %v732
        %v2170 = vunpack.c.h.b16 %v732
        %v2171 = vunpack.c.l.b16 %v733
        %v2172 = vunpack.c.h.b16 %v733
        %v2173 = vunpack.c.l.b16 %v734
        %v2174 = vunpack.c.h.b16 %v734
        %v2175 = vunpack.c.l.b16 %v735
        %v2176 = vunpack.c.h.b16 %v735
        %v2177 = vunpack.c.l.b16 %v736
        %v2178 = vunpack.c.h.b16 %v736
        %v2179 = vunpack.c.l.b16 %v737
        %v2180 = vunpack.c.h.b16 %v737
        %v2181 = vunpack.c.l.b16 %v738
        %v2182 = vunpack.c.h.b16 %v738
        %v2183 = vunpack.c.l.b16 %v739
        %v2184 = vunpack.c.h.b16 %v739
        %v2185 = vunpack.c.l.b16 %v740
        %v2186 = vunpack.c.h.b16 %v740
        %v2187 = vunpack.c.l.b16 %v741
        %v2188 = vunpack.c.h.b16 %v741
        %v2189 = vunpack.c.l.b16 %v742
        %v2190 = vunpack.c.h.b16 %v742
        %v2191 = vunpack.c.l.b16 %v743
        %v2192 = vunpack.c.h.b16 %v743
        %v2193 = vunpack.c.l.b16 %v744
        %v2194 = vunpack.c.h.b16 %v744
        %v2195 = vunpack.c.l.b16 %v745
        %v2196 = vunpack.c.h.b16 %v745
        %v2197 = vunpack.c.l.b16 %v746
        %v2198 = vunpack.c.h.b16 %v746
        %v2199 = vunpack.c.l.b16 %v747
        %v2200 = vunpack.c.h.b16 %v747
        %v2201 = vunpack.c.l.b16 %v748
        %v2202 = vunpack.c.h.b16 %v748
        %v2203 = vunpack.c.l.b16 %v749
        %v2204 = vunpack.c.h.b16 %v749
        %v2205 = vunpack.c.l.b16 %v750
        %v2206 = vunpack.c.h.b16 %v750
        %v2207 = vunpack.c.l.b16 %v751
        %v2208 = vunpack.c.h.b16 %v751
        %v2209 = vunpack.c.l.b16 %v752
        %v2210 = vunpack.c.h.b16 %v752
        %v2211 = vunpack.c.l.b16 %v753
        %v2212 = vunpack.c.h.b16 %v753
        %v2213 = vunpack.c.l.b16 %v754
        %v2214 = vunpack.c.h.b16 %v754
        %v2215 = vunpack.c.l.b16 %v755
        %v2216 = vunpack.c.h.b16 %v755
        %v2217 = vunpack.c.l.b16 %v756
        %v2218 = vunpack.c.h.b16 %v756
        %v2219 = vunpack.c.l.b16 %v757
        %v2220 = vunpack.c.h.b16 %v757
        %v2221 = vunpack.c.l.b16 %v758
        %v2222 = vunpack.c.h.b16 %v758
        %v2223 = vunpack.c.l.b16 %v759
        %v2224 = vunpack.c.h.b16 %v759
        %v2225 = vunpack.c.l.b16 %v760
        %v2226 = vunpack.c.h.b16 %v760
        %v2227 = vunpack.c.l.b16 %v761
        %v2228 = vunpack.c.h.b16 %v761
        %v2229 = vunpack.c.l.b16 %v762
        %v2230 = vunpack.c.h.b16 %v762
        %v2231 = vunpack.c.l.b16 %v763
        %v2232 = vunpack.c.h.b16 %v763
        %v2233 = vunpack.c.l.b16 %v764
        %v2234 = vunpack.c.h.b16 %v764
        %v2235 = vunpack.c.l.b16 %v765
        %v2236 = vunpack.c.h.b16 %v765
        %v2237 = vunpack.c.l.b16 %v766
        %v2238 = vunpack.c.h.b16 %v766
        %v2239 = vunpack.c.l.b16 %v767
        %v2240 = vunpack.c.h.b16 %v767
        %v2241 = vunpack.c.l.b16 %v768
        %v2242 = vunpack.c.h.b16 %v768
        %v2243 = vunpack.c.l.b16 %v769
        %v2244 = vunpack.c.h.b16 %v769
        %v2245 = vunpack.c.l.b16 %v770
        %v2246 = vunpack.c.h.b16 %v770
        %v2247 = vunpack.c.l.b16 %v771
        %v2248 = vunpack.c.h.b16 %v771
        %v2249 = vunpack.c.l.b16 %v772
        %v2250 = vunpack.c.h.b16 %v772
        %v2251 = vunpack.c.l.b16 %v773
        %v2252 = vunpack.c.h.b16 %v773
        %v2253 = vunpack.c.l.b16 %v774
        %v2254 = vunpack.c.h.b16 %v774
        %v2255 = vunpack.c.l.b16 %v775
        %v2256 = vunpack.c.h.b16 %v775
        %v2257 = vunpack.c.l.b16 %v776
        %v2258 = vunpack.c.h.b16 %v776
        %v2259 = vunpack.c.l.b16 %v777
        %v2260 = vunpack.c.h.b16 %v777
        %v2261 = vunpack.c.l.b16 %v778
        %v2262 = vunpack.c.h.b16 %v778
        %v2263 = vunpack.c.l.b16 %v779
        %v2264 = vunpack.c.h.b16 %v779
        %v2265 = vunpack.c.l.b16 %v780
        %v2266 = vunpack.c.h.b16 %v780
        %v2267 = vunpack.c.l.b16 %v781
        %v2268 = vunpack.c.h.b16 %v781
        %v2269 = vunpack.c.l.b16 %v782
        %v2270 = vunpack.c.h.b16 %v782
        %v2271 = vunpack.c.l.b16 %v783
        %v2272 = vunpack.c.h.b16 %v783
        %v2273 = vunpack.c.l.b16 %v784
        %v2274 = vunpack.c.h.b16 %v784
        %v2275 = vunpack.c.l.b16 %v785
        %v2276 = vunpack.c.h.b16 %v785
        %v2277 = vunpack.c.l.b16 %v786
        %v2278 = vunpack.c.h.b16 %v786
        %v2279 = vunpack.c.l.b16 %v787
        %v2280 = vunpack.c.h.b16 %v787
        %v2281 = vunpack.c.l.b16 %v788
        %v2282 = vunpack.c.h.b16 %v788
        %v2283 = vunpack.c.l.b16 %v789
        %v2284 = vunpack.c.h.b16 %v789
        %v2285 = vunpack.c.l.b16 %v790
        %v2286 = vunpack.c.h.b16 %v790
        %v2287 = vunpack.c.l.b16 %v791
        %v2288 = vunpack.c.h.b16 %v791
        %v2289 = vunpack.c.l.b16 %v792
        %v2290 = vunpack.c.h.b16 %v792
        %v2291 = vunpack.c.l.b16 %v793
        %v2292 = vunpack.c.h.b16 %v793
        %v2293 = vunpack.c.l.b16 %v794
        %v2294 = vunpack.c.h.b16 %v794
        %v2295 = vunpack.c.l.b16 %v795
        %v2296 = vunpack.c.h.b16 %v795
        %v2297 = vunpack.c.l.b16 %v796
        %v2298 = vunpack.c.h.b16 %v796
        %v2299 = vunpack.c.l.b16 %v797
        %v2300 = vunpack.c.h.b16 %v797
        %v2301 = vunpack.c.l.b16 %v798
        %v2302 = vunpack.c.h.b16 %v798
        %v2303 = vunpack.c.l.b16 %v799
        %v2304 = vunpack.c.h.b16 %v799
        %v2305 = vunpack.c.l.b16 %v800
        %v2306 = vunpack.c.h.b16 %v800
        %v2307 = vunpack.c.l.b16 %v801
        %v2308 = vunpack.c.h.b16 %v801
        %v2309 = vunpack.c.l.b16 %v802
        %v2310 = vunpack.c.h.b16 %v802
        %v2311 = vunpack.c.l.b16 %v803
        %v2312 = vunpack.c.h.b16 %v803
        %v2313 = vunpack.c.l.b16 %v804
        %v2314 = vunpack.c.h.b16 %v804
        %v2315 = vunpack.c.l.b16 %v805
        %v2316 = vunpack.c.h.b16 %v805
        %v2317 = vunpack.c.l.b16 %v806
        %v2318 = vunpack.c.h.b16 %v806
        %v2319 = vunpack.c.l.b16 %v807
        %v2320 = vunpack.c.h.b16 %v807
        %v2321 = vunpack.c.l.b16 %v808
        %v2322 = vunpack.c.h.b16 %v808
        %v2323 = vunpack.c.l.b16 %v809
        %v2324 = vunpack.c.h.b16 %v809
        %v2325 = vunpack.c.l.b16 %v810
        %v2326 = vunpack.c.h.b16 %v810
        %v2327 = vunpack.c.l.b16 %v811
        %v2328 = vunpack.c.h.b16 %v811
        %v2329 = vunpack.c.l.b16 %v812
        %v2330 = vunpack.c.h.b16 %v812
        %v2331 = vunpack.c.l.b16 %v813
        %v2332 = vunpack.c.h.b16 %v813
        %v2333 = vunpack.c.l.b16 %v814
        %v2334 = vunpack.c.h.b16 %v814
        %v2335 = vunpack.c.l.b16 %v815
        %v2336 = vunpack.c.h.b16 %v815
        %v2337 = vunpack.c.l.b16 %v816
        %v2338 = vunpack.c.h.b16 %v816
        %v2339 = vunpack.c.l.b16 %v817
        %v2340 = vunpack.c.h.b16 %v817
        %v2341 = vunpack.c.l.b16 %v818
        %v2342 = vunpack.c.h.b16 %v818
        %v2343 = vunpack.c.l.b16 %v819
        %v2344 = vunpack.c.h.b16 %v819
        %v2345 = vunpack.c.l.b16 %v820
        %v2346 = vunpack.c.h.b16 %v820
        %v2347 = vunpack.c.l.b16 %v821
        %v2348 = vunpack.c.h.b16 %v821
        %v2349 = vunpack.c.l.b16 %v822
        %v2350 = vunpack.c.h.b16 %v822
        %v2351 = vunpack.c.l.b16 %v823
        %v2352 = vunpack.c.h.b16 %v823
        %v2353 = vunpack.c.l.b16 %v824
        %v2354 = vunpack.c.h.b16 %v824
        %v2355 = vunpack.c.l.b16 %v825
        %v2356 = vunpack.c.h.b16 %v825
        %v2357 = vunpack.c.l.b16 %v826
        %v2358 = vunpack.c.h.b16 %v826
        %v2359 = vunpack.c.l.b16 %v827
        %v2360 = vunpack.c.h.b16 %v827
        %v2361 = vunpack.c.l.b16 %v828
        %v2362 = vunpack.c.h.b16 %v828
        %v2363 = vunpack.c.l.b16 %v829
        %v2364 = vunpack.c.h.b16 %v829
        %v2365 = vunpack.c.l.b16 %v830
        %v2366 = vunpack.c.h.b16 %v830
        %v2367 = vunpack.c.l.b16 %v831
        %v2368 = vunpack.c.h.b16 %v831
        %v2369 = vunpack.c.l.b16 %v832
        %v2370 = vunpack.c.h.b16 %v832
        %v2371 = vunpack.c.l.b16 %v833
        %v2372 = vunpack.c.h.b16 %v833
        %v2373 = vunpack.c.l.b16 %v834
        %v2374 = vunpack.c.h.b16 %v834
        %v2375 = vunpack.c.l.b16 %v835
        %v2376 = vunpack.c.h.b16 %v835
        %v2377 = vunpack.c.l.b16 %v836
        %v2378 = vunpack.c.h.b16 %v836
        %v2379 = vunpack.c.l.b16 %v837
        %v2380 = vunpack.c.h.b16 %v837
        %v2381 = vunpack.c.l.b16 %v838
        %v2382 = vunpack.c.h.b16 %v838
        %v2383 = vunpack.c.l.b16 %v839
        %v2384 = vunpack.c.h.b16 %v839
        %v2385 = vunpack.c.l.b16 %v840
        %v2386 = vunpack.c.h.b16 %v840
        %v2387 = vunpack.c.l.b16 %v841
        %v2388 = vunpack.c.h.b16 %v841
        %v2389 = vunpack.c.l.b16 %v842
        %v2390 = vunpack.c.h.b16 %v842
        %v2391 = vunpack.c.l.b16 %v843
        %v2392 = vunpack.c.h.b16 %v843
        %v2393 = vunpack.c.l.b16 %v844
        %v2394 = vunpack.c.h.b16 %v844
        %v2395 = vunpack.c.l.b16 %v845
        %v2396 = vunpack.c.h.b16 %v845
        %v2397 = vunpack.c.l.b16 %v846
        %v2398 = vunpack.c.h.b16 %v846
        %v2399 = vunpack.c.l.b16 %v847
        %v2400 = vunpack.c.h.b16 %v847
        %v2401 = vunpack.c.l.b16 %v848
        %v2402 = vunpack.c.h.b16 %v848
        %v2403 = vunpack.c.l.b16 %v849
        %v2404 = vunpack.c.h.b16 %v849
        %v2405 = vunpack.c.l.b16 %v850
        %v2406 = vunpack.c.h.b16 %v850
        %v2407 = vunpack.c.l.b16 %v851
        %v2408 = vunpack.c.h.b16 %v851
        %v2409 = vunpack.c.l.b16 %v852
        %v2410 = vunpack.c.h.b16 %v852
        %v2411 = vunpack.c.l.b16 %v853
        %v2412 = vunpack.c.h.b16 %v853
        %v2413 = vunpack.c.l.b16 %v854
        %v2414 = vunpack.c.h.b16 %v854
        %v2415 = vunpack.c.l.b16 %v855
        %v2416 = vunpack.c.h.b16 %v855
        %v2417 = vunpack.c.l.b16 %v856
        %v2418 = vunpack.c.h.b16 %v856
        %v2419 = vunpack.c.l.b16 %v857
        %v2420 = vunpack.c.h.b16 %v857
        %v2421 = vunpack.c.l.b16 %v858
        %v2422 = vunpack.c.h.b16 %v858
        %v2423 = vunpack.c.l.b16 %v859
        %v2424 = vunpack.c.h.b16 %v859
        %v2425 = vunpack.c.l.b16 %v860
        %v2426 = vunpack.c.h.b16 %v860
        %v2427 = vunpack.c.l.b16 %v861
        %v2428 = vunpack.c.h.b16 %v861
        %v2429 = vunpack.c.l.b16 %v862
        %v2430 = vunpack.c.h.b16 %v862
        %v2431 = vunpack.c.l.b16 %v863
        %v2432 = vunpack.c.h.b16 %v863
        %v2433 = vunpack.c.l.b16 %v864
        %v2434 = vunpack.c.h.b16 %v864
        %v2435 = vunpack.c.l.b16 %v865
        %v2436 = vunpack.c.h.b16 %v865
        %v2437 = vunpack.c.l.b16 %v866
        %v2438 = vunpack.c.h.b16 %v866
        %v2439 = vunpack.c.l.b16 %v867
        %v2440 = vunpack.c.h.b16 %v867
        %v2441 = vunpack.c.l.b16 %v868
        %v2442 = vunpack.c.h.b16 %v868
        %v2443 = vunpack.c.l.b16 %v869
        %v2444 = vunpack.c.h.b16 %v869
        %v2445 = vunpack.c.l.b16 %v870
        %v2446 = vunpack.c.h.b16 %v870
        %v2447 = vunpack.c.l.b16 %v871
        %v2448 = vunpack.c.h.b16 %v871
        %v2449 = vunpack.c.l.b16 %v872
        %v2450 = vunpack.c.h.b16 %v872
        %v2451 = vunpack.c.l.b16 %v873
        %v2452 = vunpack.c.h.b16 %v873
        %v2453 = vunpack.c.l.b16 %v874
        %v2454 = vunpack.c.h.b16 %v874
        %v2455 = vunpack.c.l.b16 %v875
        %v2456 = vunpack.c.h.b16 %v875
        %v2457 = vunpack.c.l.b16 %v876
        %v2458 = vunpack.c.h.b16 %v876
        %v2459 = vunpack.c.l.b16 %v877
        %v2460 = vunpack.c.h.b16 %v877
        %v2461 = vunpack.c.l.b16 %v878
        %v2462 = vunpack.c.h.b16 %v878
        %v2463 = vunpack.c.l.b16 %v879
        %v2464 = vunpack.c.h.b16 %v879
        %v2465 = vunpack.c.l.b16 %v880
        %v2466 = vunpack.c.h.b16 %v880
        %v2467 = vunpack.c.l.b16 %v881
        %v2468 = vunpack.c.h.b16 %v881
        %v2469 = vunpack.c.l.b16 %v882
        %v2470 = vunpack.c.h.b16 %v882
        %v2471 = vunpack.c.l.b16 %v883
        %v2472 = vunpack.c.h.b16 %v883
        %v2473 = vunpack.c.l.b16 %v884
        %v2474 = vunpack.c.h.b16 %v884
        %v2475 = vunpack.c.l.b16 %v885
        %v2476 = vunpack.c.h.b16 %v885
        %v2477 = vunpack.c.l.b16 %v886
        %v2478 = vunpack.c.h.b16 %v886
        %v2479 = vunpack.c.l.b16 %v887
        %v2480 = vunpack.c.h.b16 %v887
        %v2481 = vunpack.c.l.b16 %v888
        %v2482 = vunpack.c.h.b16 %v888
        %v2483 = vunpack.c.l.b16 %v889
        %v2484 = vunpack.c.h.b16 %v889
        %v2485 = vunpack.c.l.b16 %v890
        %v2486 = vunpack.c.h.b16 %v890
        %v2487 = vunpack.c.l.b16 %v891
        %v2488 = vunpack.c.h.b16 %v891
        %v2489 = vunpack.c.l.b16 %v892
        %v2490 = vunpack.c.h.b16 %v892
        %v2491 = vunpack.c.l.b16 %v893
        %v2492 = vunpack.c.h.b16 %v893
        %v2493 = vunpack.c.l.b16 %v894
        %v2494 = vunpack.c.h.b16 %v894
        %v2495 = vunpack.c.l.b16 %v895
        %v2496 = vunpack.c.h.b16 %v895
        %v2497 = vunpack.c.l.b16 %v896
        %v2498 = vunpack.c.h.b16 %v896
        %v2499 = vunpack.c.l.b16 %v897
        %v2500 = vunpack.c.h.b16 %v897
        %v2501 = vunpack.c.l.b16 %v898
        %v2502 = vunpack.c.h.b16 %v898
        %v2503 = vunpack.c.l.b16 %v899
        %v2504 = vunpack.c.h.b16 %v899
        %v2505 = vunpack.c.l.b16 %v900
        %v2506 = vunpack.c.h.b16 %v900
        %v2507 = vunpack.c.l.b16 %v901
        %v2508 = vunpack.c.h.b16 %v901
        %v2509 = vunpack.c.l.b16 %v902
        %v2510 = vunpack.c.h.b16 %v902
        %v2511 = vunpack.c.l.b16 %v903
        %v2512 = vunpack.c.h.b16 %v903
        %v2513 = vunpack.c.l.b16 %v904
        %v2514 = vunpack.c.h.b16 %v904
        %v2515 = vunpack.c.l.b16 %v905
        %v2516 = vunpack.c.h.b16 %v905
        %v2517 = vunpack.c.l.b16 %v906
        %v2518 = vunpack.c.h.b16 %v906
        %v2519 = vunpack.c.l.b16 %v907
        %v2520 = vunpack.c.h.b16 %v907
        %v2521 = vunpack.c.l.b16 %v908
        %v2522 = vunpack.c.h.b16 %v908
        %v2523 = vunpack.c.l.b16 %v909
        %v2524 = vunpack.c.h.b16 %v909
        %v2525 = vunpack.c.l.b16 %v910
        %v2526 = vunpack.c.h.b16 %v910
        %v2527 = vunpack.c.l.b16 %v911
        %v2528 = vunpack.c.h.b16 %v911
        %v2529 = vunpack.c.l.b16 %v912
        %v2530 = vunpack.c.h.b16 %v912
        %v2531 = vunpack.c.l.b16 %v913
        %v2532 = vunpack.c.h.b16 %v913
        %v2533 = vunpack.c.l.b16 %v914
        %v2534 = vunpack.c.h.b16 %v914
        %v2535 = vunpack.c.l.b16 %v915
        %v2536 = vunpack.c.h.b16 %v915
        %v2537 = vunpack.c.l.b16 %v916
        %v2538 = vunpack.c.h.b16 %v916
        %v2539 = vunpack.c.l.b16 %v917
        %v2540 = vunpack.c.h.b16 %v917
        %v2541 = vunpack.c.l.b16 %v918
        %v2542 = vunpack.c.h.b16 %v918
        %v2543 = vunpack.c.l.b16 %v919
        %v2544 = vunpack.c.h.b16 %v919
        %v2545 = vunpack.c.l.b16 %v920
        %v2546 = vunpack.c.h.b16 %v920
        %v2547 = vunpack.c.l.b16 %v921
        %v2548 = vunpack.c.h.b16 %v921
        %v2549 = vunpack.c.l.b16 %v922
        %v2550 = vunpack.c.h.b16 %v922
        %v2551 = vunpack.c.l.b16 %v923
        %v2552 = vunpack.c.h.b16 %v923
        %v2553 = vunpack.c.l.b16 %v924
        %v2554 = vunpack.c.h.b16 %v924
        %v2555 = vunpack.c.l.b16 %v925
        %v2556 = vunpack.c.h.b16 %v925
        %v2557 = vunpack.c.l.b16 %v926
        %v2558 = vunpack.c.h.b16 %v926
        %v2559 = vunpack.c.l.b16 %v927
        %v2560 = vunpack.c.h.b16 %v927
        %v2561 = vunpack.c.l.b16 %v928
        %v2562 = vunpack.c.h.b16 %v928
        %v2563 = vunpack.c.l.b16 %v929
        %v2564 = vunpack.c.h.b16 %v929
        %v2565 = vunpack.c.l.b16 %v930
        %v2566 = vunpack.c.h.b16 %v930
        %v2567 = vunpack.c.l.b16 %v931
        %v2568 = vunpack.c.h.b16 %v931
        %v2569 = vunpack.c.l.b16 %v932
        %v2570 = vunpack.c.h.b16 %v932
        %v2571 = vunpack.c.l.b16 %v933
        %v2572 = vunpack.c.h.b16 %v933
        %v2573 = vunpack.c.l.b16 %v934
        %v2574 = vunpack.c.h.b16 %v934
        %v2575 = vunpack.c.l.b16 %v935
        %v2576 = vunpack.c.h.b16 %v935
        %v2577 = vunpack.c.l.b16 %v936
        %v2578 = vunpack.c.h.b16 %v936
        %v2579 = vunpack.c.l.b16 %v937
        %v2580 = vunpack.c.h.b16 %v937
        %v2581 = vunpack.c.l.b16 %v938
        %v2582 = vunpack.c.h.b16 %v938
        %v2583 = vunpack.c.l.b16 %v939
        %v2584 = vunpack.c.h.b16 %v939
        %v2585 = vunpack.c.l.b16 %v940
        %v2586 = vunpack.c.h.b16 %v940
        %v2587 = vunpack.c.l.b16 %v941
        %v2588 = vunpack.c.h.b16 %v941
        %v2589 = vunpack.c.l.b16 %v942
        %v2590 = vunpack.c.h.b16 %v942
        %v2591 = vunpack.c.l.b16 %v943
        %v2592 = vunpack.c.h.b16 %v943
        %v2593 = vunpack.c.l.b16 %v944
        %v2594 = vunpack.c.h.b16 %v944
        %v2595 = vunpack.c.l.b16 %v945
        %v2596 = vunpack.c.h.b16 %v945
        %v2597 = vunpack.c.l.b16 %v946
        %v2598 = vunpack.c.h.b16 %v946
        %v2599 = vunpack.c.l.b16 %v947
        %v2600 = vunpack.c.h.b16 %v947
        %v2601 = vunpack.c.l.b16 %v948
        %v2602 = vunpack.c.h.b16 %v948
        %v2603 = vunpack.c.l.b16 %v949
        %v2604 = vunpack.c.h.b16 %v949
        %v2605 = vunpack.c.l.b16 %v950
        %v2606 = vunpack.c.h.b16 %v950
        %v2607 = vunpack.c.l.b16 %v951
        %v2608 = vunpack.c.h.b16 %v951
        %v2609 = vunpack.c.l.b16 %v952
        %v2610 = vunpack.c.h.b16 %v952
        %v2611 = vunpack.c.l.b16 %v953
        %v2612 = vunpack.c.h.b16 %v953
        %v2613 = vunpack.c.l.b16 %v954
        %v2614 = vunpack.c.h.b16 %v954
        %v2615 = vunpack.c.l.b16 %v955
        %v2616 = vunpack.c.h.b16 %v955
        %v2617 = vunpack.c.l.b16 %v956
        %v2618 = vunpack.c.h.b16 %v956
        %v2619 = vunpack.c.l.b16 %v957
        %v2620 = vunpack.c.h.b16 %v957
        %v2621 = vunpack.c.l.b16 %v958
        %v2622 = vunpack.c.h.b16 %v958
        %v2623 = vunpack.c.l.b16 %v959
        %v2624 = vunpack.c.h.b16 %v959
        %v2625 = vunpack.c.l.b16 %v960
        %v2626 = vunpack.c.h.b16 %v960
        %v2627 = vunpack.c.l.b16 %v961
        %v2628 = vunpack.c.h.b16 %v961
        %v2629 = vunpack.c.l.b16 %v962
        %v2630 = vunpack.c.h.b16 %v962
        %v2631 = vunpack.c.l.b16 %v963
        %v2632 = vunpack.c.h.b16 %v963
        %v2633 = vunpack.c.l.b16 %v964
        %v2634 = vunpack.c.h.b16 %v964
        %v2635 = vunpack.c.l.b16 %v965
        %v2636 = vunpack.c.h.b16 %v965
        %v2637 = vunpack.c.l.b16 %v966
        %v2638 = vunpack.c.h.b16 %v966
        %v2639 = vunpack.c.l.b16 %v967
        %v2640 = vunpack.c.h.b16 %v967
        %v2641 = vunpack.c.l.b16 %v968
        %v2642 = vunpack.c.h.b16 %v968
        %v2643 = vunpack.c.l.b16 %v969
        %v2644 = vunpack.c.h.b16 %v969
        %v2645 = vunpack.c.l.b16 %v970
        %v2646 = vunpack.c.h.b16 %v970
        %v2647 = vunpack.c.l.b16 %v971
        %v2648 = vunpack.c.h.b16 %v971
        %v2649 = vunpack.c.l.b16 %v972
        %v2650 = vunpack.c.h.b16 %v972
        %v2651 = vunpack.c.l.b16 %v973
        %v2652 = vunpack.c.h.b16 %v973
        %v2653 = vunpack.c.l.b16 %v974
        %v2654 = vunpack.c.h.b16 %v974
        %v2655 = vunpack.c.l.b16 %v975
        %v2656 = vunpack.c.h.b16 %v975
        %v2657 = vunpack.c.l.b16 %v976
        %v2658 = vunpack.c.h.b16 %v976
        %v2659 = vunpack.c.l.b16 %v977
        %v2660 = vunpack.c.h.b16 %v977
        %v2661 = vunpack.c.l.b16 %v978
        %v2662 = vunpack.c.h.b16 %v978
        %v2663 = vunpack.c.l.b16 %v979
        %v2664 = vunpack.c.h.b16 %v979
        %v2665 = vunpack.c.l.b16 %v980
        %v2666 = vunpack.c.h.b16 %v980
        %v2667 = vunpack.c.l.b16 %v981
        %v2668 = vunpack.c.h.b16 %v981
        %v2669 = vunpack.c.l.b16 %v982
        %v2670 = vunpack.c.h.b16 %v982
        %v2671 = vunpack.c.l.b16 %v983
        %v2672 = vunpack.c.h.b16 %v983
        %v2673 = vunpack.c.l.b16 %v984
        %v2674 = vunpack.c.h.b16 %v984
        %v2675 = vunpack.c.l.b16 %v985
        %v2676 = vunpack.c.h.b16 %v985
        %v2677 = vunpack.c.l.b16 %v986
        %v2678 = vunpack.c.h.b16 %v986
        %v2679 = vunpack.c.l.b16 %v987
        %v2680 = vunpack.c.h.b16 %v987
        %v2681 = vunpack.c.l.b16 %v988
        %v2682 = vunpack.c.h.b16 %v988
        %v2683 = vunpack.c.l.b16 %v989
        %v2684 = vunpack.c.h.b16 %v989
        %v2685 = vunpack.c.l.b16 %v990
        %v2686 = vunpack.c.h.b16 %v990
        %v2687 = vunpack.c.l.b16 %v991
        %v2688 = vunpack.c.h.b16 %v991
        %v2689 = vunpack.c.l.b16 %v992
        %v2690 = vunpack.c.h.b16 %v992
        %v2691 = vunpack.c.l.b16 %v993
        %v2692 = vunpack.c.h.b16 %v993
        %v2693 = vunpack.c.l.b16 %v994
        %v2694 = vunpack.c.h.b16 %v994
        %v2695 = vunpack.c.l.b16 %v995
        %v2696 = vunpack.c.h.b16 %v995
        %v2697 = vunpack.c.l.b16 %v996
        %v2698 = vunpack.c.h.b16 %v996
        %v2699 = vunpack.c.l.b16 %v997
        %v2700 = vunpack.c.h.b16 %v997
        %v2701 = vunpack.c.l.b16 %v998
        %v2702 = vunpack.c.h.b16 %v998
        %v2703 = vunpack.c.l.b16 %v999
        %v2704 = vunpack.c.h.b16 %v999
        %v2705 = vunpack.c.l.b16 %v1000
        %v2706 = vunpack.c.h.b16 %v1000
        %v2707 = vunpack.c.l.b16 %v1001
        %v2708 = vunpack.c.h.b16 %v1001
        %v2709 = vunpack.c.l.b16 %v1002
        %v2710 = vunpack.c.h.b16 %v1002
        %v2711 = vunpack.c.l.b16 %v1003
        %v2712 = vunpack.c.h.b16 %v1003
        %v2713 = vunpack.c.l.b16 %v1004
        %v2714 = vunpack.c.h.b16 %v1004
        %v2715 = vunpack.c.l.b16 %v1005
        %v2716 = vunpack.c.h.b16 %v1005
        %v2717 = vunpack.c.l.b16 %v1006
        %v2718 = vunpack.c.h.b16 %v1006
        %v2719 = vunpack.c.l.b16 %v1007
        %v2720 = vunpack.c.h.b16 %v1007
        %v2721 = vunpack.c.l.b16 %v1008
        %v2722 = vunpack.c.h.b16 %v1008
        %v2723 = vunpack.c.l.b16 %v1009
        %v2724 = vunpack.c.h.b16 %v1009
        %v2725 = vunpack.c.l.b16 %v1010
        %v2726 = vunpack.c.h.b16 %v1010
        %v2727 = vunpack.c.l.b16 %v1011
        %v2728 = vunpack.c.h.b16 %v1011
        %v2729 = vunpack.c.l.b16 %v1012
        %v2730 = vunpack.c.h.b16 %v1012
        %v2731 = vunpack.c.l.b16 %v1013
        %v2732 = vunpack.c.h.b16 %v1013
        %v2733 = vunpack.c.l.b16 %v1014
        %v2734 = vunpack.c.h.b16 %v1014
        %v2735 = vunpack.c.l.b16 %v1015
        %v2736 = vunpack.c.h.b16 %v1015
        %v2737 = vunpack.c.l.b16 %v1016
        %v2738 = vunpack.c.h.b16 %v1016
        %v2739 = vunpack.c.l.b16 %v1017
        %v2740 = vunpack.c.h.b16 %v1017
        %v2741 = vunpack.c.l.b16 %v1018
        %v2742 = vunpack.c.h.b16 %v1018
        %v2743 = vunpack.c.l.b16 %v1019
        %v2744 = vunpack.c.h.b16 %v1019
        %v2745 = vunpack.c.l.b16 %v1020
        %v2746 = vunpack.c.h.b16 %v1020
        %v2747 = vunpack.c.l.b16 %v1021
        %v2748 = vunpack.c.h.b16 %v1021
        %v2749 = vunpack.c.l.b16 %v1022
        %v2750 = vunpack.c.h.b16 %v1022
        %v2751 = vunpack.c.l.b16 %v1023
        %v2752 = vunpack.c.h.b16 %v1023
        %v2753 = vunpack.c.l.b16 %v1024
        %v2754 = vunpack.c.h.b16 %v1024
        %v2755 = vunpack.c.l.b16 %v1025
        %v2756 = vunpack.c.h.b16 %v1025
        %v2757 = vunpack.c.l.b16 %v1026
        %v2758 = vunpack.c.h.b16 %v1026
        %v2759 = vunpack.c.l.b16 %v1027
        %v2760 = vunpack.c.h.b16 %v1027
        %v2761 = vunpack.c.l.b16 %v1028
        %v2762 = vunpack.c.h.b16 %v1028
        %v2763 = vunpack.c.l.b16 %v1029
        %v2764 = vunpack.c.h.b16 %v1029
        %v2765 = vunpack.c.l.b16 %v1030
        %v2766 = vunpack.c.h.b16 %v1030
        %v2767 = vunpack.c.l.b16 %v1031
        %v2768 = vunpack.c.h.b16 %v1031
        %v2769 = vunpack.c.l.b16 %v1032
        %v2770 = vunpack.c.h.b16 %v1032
        %v2771 = vunpack.c.l.b16 %v1033
        %v2772 = vunpack.c.h.b16 %v1033
        %v2773 = vunpack.c.l.b16 %v1034
        %v2774 = vunpack.c.h.b16 %v1034
        %v2775 = vunpack.c.l.b16 %v1035
        %v2776 = vunpack.c.h.b16 %v1035
        %v2777 = vunpack.c.l.b16 %v1036
        %v2778 = vunpack.c.h.b16 %v1036
        %v2779 = vunpack.c.l.b16 %v1037
        %v2780 = vunpack.c.h.b16 %v1037
        %v2781 = vunpack.c.l.b16 %v1038
        %v2782 = vunpack.c.h.b16 %v1038
        %v2783 = vunpack.c.l.b16 %v1039
        %v2784 = vunpack.c.h.b16 %v1039
        %v2785 = vunpack.c.l.b16 %v1040
        %v2786 = vunpack.c.h.b16 %v1040
        %v2787 = vunpack.c.l.b16 %v1041
        %v2788 = vunpack.c.h.b16 %v1041
        %v2789 = vunpack.c.l.b16 %v1042
        %v2790 = vunpack.c.h.b16 %v1042
        %v2791 = vunpack.c.l.b16 %v1043
        %v2792 = vunpack.c.h.b16 %v1043
        %v2793 = vunpack.c.l.b16 %v1044
        %v2794 = vunpack.c.h.b16 %v1044
        %v2795 = vunpack.c.l.b16 %v1045
        %v2796 = vunpack.c.h.b16 %v1045
        %v2797 = vunpack.c.l.b16 %v1046
        %v2798 = vunpack.c.h.b16 %v1046
        %v2799 = vunpack.c.l.b16 %v1047
        %v2800 = vunpack.c.h.b16 %v1047
        %v2801 = vunpack.c.l.b16 %v1048
        %v2802 = vunpack.c.h.b16 %v1048
        %v2803 = vunpack.c.l.b16 %v1049
        %v2804 = vunpack.c.h.b16 %v1049
        %v2805 = vunpack.c.l.b16 %v1050
        %v2806 = vunpack.c.h.b16 %v1050
        %v2807 = vpack.c.b16 %v1667, %v1655
        %v2808 = vpack.c.b16 %v1668, %v1656
        %v2809 = vpack.c.b16 %v1669, %v1657
        %v2810 = vpack.c.b16 %v1670, %v1658
        %v2811 = vpack.c.b16 %v1671, %v1659
        %v2812 = vpack.c.b16 %v1672, %v1660
        %v2813 = vpack.c.b16 %v1673, %v1661
        %v2814 = vpack.c.b16 %v1674, %v1662
        %v2815 = vpack.c.b16 %v1675, %v1663
        %v2816 = vpack.c.b16 %v1676, %v1664
        %v2817 = vpack.c.b16 %v1677, %v1665
        %v2818 = vpack.c.b16 %v1678, %v1666
        %v2819 = vpack.c.b16 %v1691, %v1679
        %v2820 = vpack.c.b16 %v1692, %v1680
        %v2821 = vpack.c.b16 %v1693, %v1681
        %v2822 = vpack.c.b16 %v1694, %v1682
        %v2823 = vpack.c.b16 %v1695, %v1683
        %v2824 = vpack.c.b16 %v1696, %v1684
        %v2825 = vpack.c.b16 %v1697, %v1685
        %v2826 = vpack.c.b16 %v1698, %v1686
        %v2827 = vpack.c.b16 %v1699, %v1687
        %v2828 = vpack.c.b16 %v1700, %v1688
        %v2829 = vpack.c.b16 %v1701, %v1689
        %v2830 = vpack.c.b16 %v1702, %v1690
        %v2831 = vpack.c.b16 %v1715, %v1703
        %v2832 = vpack.c.b16 %v1716, %v1704
        %v2833 = vpack.c.b16 %v1717, %v1705
        %v2834 = vpack.c.b16 %v1718, %v1706
        %v2835 = vpack.c.b16 %v1719, %v1707
        %v2836 = vpack.c.b16 %v1720, %v1708
        %v2837 = vpack.c.b16 %v1721, %v1709
        %v2838 = vpack.c.b16 %v1722, %v1710
        %v2839 = vpack.c.b16 %v1723, %v1711
        %v2840 = vpack.c.b16 %v1724, %v1712
        %v2841 = vpack.c.b16 %v1725, %v1713
        %v2842 = vpack.c.b16 %v1726, %v1714
        %v2843 = vpack.c.b16 %v1739, %v1727
        %v2844 = vpack.c.b16 %v1740, %v1728
        %v2845 = vpack.c.b16 %v1741, %v1729
        %v2846 = vpack.c.b16 %v1742, %v1730
        %v2847 = vpack.c.b16 %v1743, %v1731
        %v2848 = vpack.c.b16 %v1744, %v1732
        %v2849 = vpack.c.b16 %v1745, %v1733
        %v2850 = vpack.c.b16 %v1746, %v1734
        %v2851 = vpack.c.b16 %v1747, %v1735
        %v2852 = vpack.c.b16 %v1748, %v1736
        %v2853 = vpack.c.b16 %v1749, %v1737
        %v2854 = vpack.c.b16 %v1750, %v1738
        %v2855 = vpack.c.b16 %v1763, %v1751
        %v2856 = vpack.c.b16 %v1764, %v1752
        %v2857 = vpack.c.b16 %v1765, %v1753
        %v2858 = vpack.c.b16 %v1766, %v1754
        %v2859 = vpack.c.b16 %v1767, %v1755
        %v2860 = vpack.c.b16 %v1768, %v1756
        %v2861 = vpack.c.b16 %v1769, %v1757
        %v2862 = vpack.c.b16 %v1770, %v1758
        %v2863 = vpack.c.b16 %v1771, %v1759
        %v2864 = vpack.c.b16 %v1772, %v1760
        %v2865 = vpack.c.b16 %v1773, %v1761
        %v2866 = vpack.c.b16 %v1774, %v1762
        %v2867 = vpack.c.b16 %v1787, %v1775
        %v2868 = vpack.c.b16 %v1788, %v1776
        %v2869 = vpack.c.b16 %v1789, %v1777
        %v2870 = vpack.c.b16 %v1790, %v1778
        %v2871 = vpack.c.b16 %v1791, %v1779
        %v2872 = vpack.c.b16 %v1792, %v1780
        %v2873 = vpack.c.b16 %v1793, %v1781
        %v2874 = vpack.c.b16 %v1794, %v1782
        %v2875 = vpack.c.b16 %v1795, %v1783
        %v2876 = vpack.c.b16 %v1796, %v1784
        %v2877 = vpack.c.b16 %v1797, %v1785
        %v2878 = vpack.c.b16 %v1798, %v1786
        %v2879 = vpack.c.b16 %v1811, %v1799
        %v2880 = vpack.c.b16 %v1812, %v1800
        %v2881 = vpack.c.b16 %v1813, %v1801
        %v2882 = vpack.c.b16 %v1814, %v1802
        %v2883 = vpack.c.b16 %v1815, %v1803
        %v2884 = vpack.c.b16 %v1816, %v1804
        %v2885 = vpack.c.b16 %v1817, %v1805
        %v2886 = vpack.c.b16 %v1818, %v1806
        %v2887 = vpack.c.b16 %v1819, %v1807
        %v2888 = vpack.c.b16 %v1820, %v1808
        %v2889 = vpack.c.b16 %v1821, %v1809
        %v2890 = vpack.c.b16 %v1822, %v1810
        %v2891 = vpack.c.b16 %v1835, %v1823
        %v2892 = vpack.c.b16 %v1836, %v1824
        %v2893 = vpack.c.b16 %v1837, %v1825
        %v2894 = vpack.c.b16 %v1838, %v1826
        %v2895 = vpack.c.b16 %v1839, %v1827
        %v2896 = vpack.c.b16 %v1840, %v1828
        %v2897 = vpack.c.b16 %v1841, %v1829
        %v2898 = vpack.c.b16 %v1842, %v1830
        %v2899 = vpack.c.b16 %v1843, %v1831
        %v2900 = vpack.c.b16 %v1844, %v1832
        %v2901 = vpack.c.b16 %v1845, %v1833
        %v2902 = vpack.c.b16 %v1846, %v1834
        %v2903 = vpack.c.b16 %v1859, %v1847
        %v2904 = vpack.c.b16 %v1860, %v1848
        %v2905 = vpack.c.b16 %v1861, %v1849
        %v2906 = vpack.c.b16 %v1862, %v1850
        %v2907 = vpack.c.b16 %v1863, %v1851
        %v2908 = vpack.c.b16 %v1864, %v1852
        %v2909 = vpack.c.b16 %v1865, %v1853
        %v2910 = vpack.c.b16 %v1866, %v1854
        %v2911 = vpack.c.b16 %v1867, %v1855
        %v2912 = vpack.c.b16 %v1868, %v1856
        %v2913 = vpack.c.b16 %v1869, %v1857
        %v2914 = vpack.c.b16 %v1870, %v1858
        %v2915 = vpack.c.b16 %v1883, %v1871
        %v2916 = vpack.c.b16 %v1884, %v1872
        %v2917 = vpack.c.b16 %v1885, %v1873
        %v2918 = vpack.c.b16 %v1886, %v1874
        %v2919 = vpack.c.b16 %v1887, %v1875
        %v2920 = vpack.c.b16 %v1888, %v1876
        %v2921 = vpack.c.b16 %v1889, %v1877
        %v2922 = vpack.c.b16 %v1890, %v1878
        %v2923 = vpack.c.b16 %v1891, %v1879
        %v2924 = vpack.c.b16 %v1892, %v1880
        %v2925 = vpack.c.b16 %v1893, %v1881
        %v2926 = vpack.c.b16 %v1894, %v1882
        %v2927 = vpack.c.b16 %v1907, %v1895
        %v2928 = vpack.c.b16 %v1908, %v1896
        %v2929 = vpack.c.b16 %v1909, %v1897
        %v2930 = vpack.c.b16 %v1910, %v1898
        %v2931 = vpack.c.b16 %v1911, %v1899
        %v2932 = vpack.c.b16 %v1912, %v1900
        %v2933 = vpack.c.b16 %v1913, %v1901
        %v2934 = vpack.c.b16 %v1914, %v1902
        %v2935 = vpack.c.b16 %v1915, %v1903
        %v2936 = vpack.c.b16 %v1916, %v1904
        %v2937 = vpack.c.b16 %v1917, %v1905
        %v2938 = vpack.c.b16 %v1918, %v1906
        %v2939 = vpack.c.b16 %v1931, %v1919
        %v2940 = vpack.c.b16 %v1932, %v1920
        %v2941 = vpack.c.b16 %v1933, %v1921
        %v2942 = vpack.c.b16 %v1934, %v1922
        %v2943 = vpack.c.b16 %v1935, %v1923
        %v2944 = vpack.c.b16 %v1936, %v1924
        %v2945 = vpack.c.b16 %v1937, %v1925
        %v2946 = vpack.c.b16 %v1938, %v1926
        %v2947 = vpack.c.b16 %v1939, %v1927
        %v2948 = vpack.c.b16 %v1940, %v1928
        %v2949 = vpack.c.b16 %v1941, %v1929
        %v2950 = vpack.c.b16 %v1942, %v1930
        %v2951 = vpack.c.b16 %v1955, %v1943
        %v2952 = vpack.c.b16 %v1956, %v1944
        %v2953 = vpack.c.b16 %v1957, %v1945
        %v2954 = vpack.c.b16 %v1958, %v1946
        %v2955 = vpack.c.b16 %v1959, %v1947
        %v2956 = vpack.c.b16 %v1960, %v1948
        %v2957 = vpack.c.b16 %v1961, %v1949
        %v2958 = vpack.c.b16 %v1962, %v1950
        %v2959 = vpack.c.b16 %v1963, %v1951
        %v2960 = vpack.c.b16 %v1964, %v1952
        %v2961 = vpack.c.b16 %v1965, %v1953
        %v2962 = vpack.c.b16 %v1966, %v1954
        %v2963 = vpack.c.b16 %v1979, %v1967
        %v2964 = vpack.c.b16 %v1980, %v1968
        %v2965 = vpack.c.b16 %v1981, %v1969
        %v2966 = vpack.c.b16 %v1982, %v1970
        %v2967 = vpack.c.b16 %v1983, %v1971
        %v2968 = vpack.c.b16 %v1984, %v1972
        %v2969 = vpack.c.b16 %v1985, %v1973
        %v2970 = vpack.c.b16 %v1986, %v1974
        %v2971 = vpack.c.b16 %v1987, %v1975
        %v2972 = vpack.c.b16 %v1988, %v1976
        %v2973 = vpack.c.b16 %v1989, %v1977
        %v2974 = vpack.c.b16 %v1990, %v1978
        %v2975 = vpack.c.b16 %v2003, %v1991
        %v2976 = vpack.c.b16 %v2004, %v1992
        %v2977 = vpack.c.b16 %v2005, %v1993
        %v2978 = vpack.c.b16 %v2006, %v1994
        %v2979 = vpack.c.b16 %v2007, %v1995
        %v2980 = vpack.c.b16 %v2008, %v1996
        %v2981 = vpack.c.b16 %v2009, %v1997
        %v2982 = vpack.c.b16 %v2010, %v1998
        %v2983 = vpack.c.b16 %v2011, %v1999
        %v2984 = vpack.c.b16 %v2012, %v2000
        %v2985 = vpack.c.b16 %v2013, %v2001
        %v2986 = vpack.c.b16 %v2014, %v2002
        %v2987 = vpack.c.b16 %v2027, %v2015
        %v2988 = vpack.c.b16 %v2028, %v2016
        %v2989 = vpack.c.b16 %v2029, %v2017
        %v2990 = vpack.c.b16 %v2030, %v2018
        %v2991 = vpack.c.b16 %v2031, %v2019
        %v2992 = vpack.c.b16 %v2032, %v2020
        %v2993 = vpack.c.b16 %v2033, %v2021
        %v2994 = vpack.c.b16 %v2034, %v2022
        %v2995 = vpack.c.b16 %v2035, %v2023
        %v2996 = vpack.c.b16 %v2036, %v2024
        %v2997 = vpack.c.b16 %v2037, %v2025
        %v2998 = vpack.c.b16 %v2038, %v2026
        %v2999 = vpack.c.b16 %v2051, %v2039
        %v3000 = vpack.c.b16 %v2052, %v2040
        %v3001 = vpack.c.b16 %v2053, %v2041
        %v3002 = vpack.c.b16 %v2054, %v2042
        %v3003 = vpack.c.b16 %v2055, %v2043
        %v3004 = vpack.c.b16 %v2056, %v2044
        %v3005 = vpack.c.b16 %v2057, %v2045
        %v3006 = vpack.c.b16 %v2058, %v2046
        %v3007 = vpack.c.b16 %v2059, %v2047
        %v3008 = vpack.c.b16 %v2060, %v2048
        %v3009 = vpack.c.b16 %v2061, %v2049
        %v3010 = vpack.c.b16 %v2062, %v2050
        %v3011 = vpack.c.b16 %v2075, %v2063
        %v3012 = vpack.c.b16 %v2076, %v2064
        %v3013 = vpack.c.b16 %v2077, %v2065
        %v3014 = vpack.c.b16 %v2078, %v2066
        %v3015 = vpack.c.b16 %v2079, %v2067
        %v3016 = vpack.c.b16 %v2080, %v2068
        %v3017 = vpack.c.b16 %v2081, %v2069
        %v3018 = vpack.c.b16 %v2082, %v2070
        %v3019 = vpack.c.b16 %v2083, %v2071
        %v3020 = vpack.c.b16 %v2084, %v2072
        %v3021 = vpack.c.b16 %v2085, %v2073
        %v3022 = vpack.c.b16 %v2086, %v2074
        %v3023 = vpack.c.b16 %v2099, %v2087
        %v3024 = vpack.c.b16 %v2100, %v2088
        %v3025 = vpack.c.b16 %v2101, %v2089
        %v3026 = vpack.c.b16 %v2102, %v2090
        %v3027 = vpack.c.b16 %v2103, %v2091
        %v3028 = vpack.c.b16 %v2104, %v2092
        %v3029 = vpack.c.b16 %v2105, %v2093
        %v3030 = vpack.c.b16 %v2106, %v2094
        %v3031 = vpack.c.b16 %v2107, %v2095
        %v3032 = vpack.c.b16 %v2108, %v2096
        %v3033 = vpack.c.b16 %v2109, %v2097
        %v3034 = vpack.c.b16 %v2110, %v2098
        %v3035 = vpack.c.b16 %v2123, %v2111
        %v3036 = vpack.c.b16 %v2124, %v2112
        %v3037 = vpack.c.b16 %v2125, %v2113
        %v3038 = vpack.c.b16 %v2126, %v2114
        %v3039 = vpack.c.b16 %v2127, %v2115
        %v3040 = vpack.c.b16 %v2128, %v2116
        %v3041 = vpack.c.b16 %v2129, %v2117
        %v3042 = vpack.c.b16 %v2130, %v2118
        %v3043 = vpack.c.b16 %v2131, %v2119
        %v3044 = vpack.c.b16 %v2132, %v2120
        %v3045 = vpack.c.b16 %v2133, %v2121
        %v3046 = vpack.c.b16 %v2134, %v2122
        %v3047 = vpack.c.b16 %v2147, %v2135
        %v3048 = vpack.c.b16 %v2148, %v2136
        %v3049 = vpack.c.b16 %v2149, %v2137
        %v3050 = vpack.c.b16 %v2150, %v2138
        %v3051 = vpack.c.b16 %v2151, %v2139
        %v3052 = vpack.c.b16 %v2152, %v2140
        %v3053 = vpack.c.b16 %v2153, %v2141
        %v3054 = vpack.c.b16 %v2154, %v2142
        %v3055 = vpack.c.b16 %v2155, %v2143
        %v3056 = vpack.c.b16 %v2156, %v2144
        %v3057 = vpack.c.b16 %v2157, %v2145
        %v3058 = vpack.c.b16 %v2158, %v2146
        %v3059 = vpack.c.b16 %v2171, %v2159
        %v3060 = vpack.c.b16 %v2172, %v2160
        %v3061 = vpack.c.b16 %v2173, %v2161
        %v3062 = vpack.c.b16 %v2174, %v2162
        %v3063 = vpack.c.b16 %v2175, %v2163
        %v3064 = vpack.c.b16 %v2176, %v2164
        %v3065 = vpack.c.b16 %v2177, %v2165
        %v3066 = vpack.c.b16 %v2178, %v2166
        %v3067 = vpack.c.b16 %v2179, %v2167
        %v3068 = vpack.c.b16 %v2180, %v2168
        %v3069 = vpack.c.b16 %v2181, %v2169
        %v3070 = vpack.c.b16 %v2182, %v2170
        %v3071 = vpack.c.b16 %v2195, %v2183
        %v3072 = vpack.c.b16 %v2196, %v2184
        %v3073 = vpack.c.b16 %v2197, %v2185
        %v3074 = vpack.c.b16 %v2198, %v2186
        %v3075 = vpack.c.b16 %v2199, %v2187
        %v3076 = vpack.c.b16 %v2200, %v2188
        %v3077 = vpack.c.b16 %v2201, %v2189
        %v3078 = vpack.c.b16 %v2202, %v2190
        %v3079 = vpack.c.b16 %v2203, %v2191
        %v3080 = vpack.c.b16 %v2204, %v2192
        %v3081 = vpack.c.b16 %v2205, %v2193
        %v3082 = vpack.c.b16 %v2206, %v2194
        %v3083 = vpack.c.b16 %v2219, %v2207
        %v3084 = vpack.c.b16 %v2220, %v2208
        %v3085 = vpack.c.b16 %v2221, %v2209
        %v3086 = vpack.c.b16 %v2222, %v2210
        %v3087 = vpack.c.b16 %v2223, %v2211
        %v3088 = vpack.c.b16 %v2224, %v2212
        %v3089 = vpack.c.b16 %v2225, %v2213
        %v3090 = vpack.c.b16 %v2226, %v2214
        %v3091 = vpack.c.b16 %v2227, %v2215
        %v3092 = vpack.c.b16 %v2228, %v2216
        %v3093 = vpack.c.b16 %v2229, %v2217
        %v3094 = vpack.c.b16 %v2230, %v2218
        %v3095 = vpack.c.b16 %v2243, %v2231
        %v3096 = vpack.c.b16 %v2244, %v2232
        %v3097 = vpack.c.b16 %v2245, %v2233
        %v3098 = vpack.c.b16 %v2246, %v2234
        %v3099 = vpack.c.b16 %v2247, %v2235
        %v3100 = vpack.c.b16 %v2248, %v2236
        %v3101 = vpack.c.b16 %v2249, %v2237
        %v3102 = vpack.c.b16 %v2250, %v2238
        %v3103 = vpack.c.b16 %v2251, %v2239
        %v3104 = vpack.c.b16 %v2252, %v2240
        %v3105 = vpack.c.b16 %v2253, %v2241
        %v3106 = vpack.c.b16 %v2254, %v2242
        %v3107 = vpack.c.b16 %v2267, %v2255
        %v3108 = vpack.c.b16 %v2268, %v2256
        %v3109 = vpack.c.b16 %v2269, %v2257
        %v3110 = vpack.c.b16 %v2270, %v2258
        %v3111 = vpack.c.b16 %v2271, %v2259
        %v3112 = vpack.c.b16 %v2272, %v2260
        %v3113 = vpack.c.b16 %v2273, %v2261
        %v3114 = vpack.c.b16 %v2274, %v2262
        %v3115 = vpack.c.b16 %v2275, %v2263
        %v3116 = vpack.c.b16 %v2276, %v2264
        %v3117 = vpack.c.b16 %v2277, %v2265
        %v3118 = vpack.c.b16 %v2278, %v2266
        %v3119 = vpack.c.b16 %v2291, %v2279
        %v3120 = vpack.c.b16 %v2292, %v2280
        %v3121 = vpack.c.b16 %v2293, %v2281
        %v3122 = vpack.c.b16 %v2294, %v2282
        %v3123 = vpack.c.b16 %v2295, %v2283
        %v3124 = vpack.c.b16 %v2296, %v2284
        %v3125 = vpack.c.b16 %v2297, %v2285
        %v3126 = vpack.c.b16 %v2298, %v2286
        %v3127 = vpack.c.b16 %v2299, %v2287
        %v3128 = vpack.c.b16 %v2300, %v2288
        %v3129 = vpack.c.b16 %v2301, %v2289
        %v3130 = vpack.c.b16 %v2302, %v2290
        %v3131 = vpack.c.b16 %v2315, %v2303
        %v3132 = vpack.c.b16 %v2316, %v2304
        %v3133 = vpack.c.b16 %v2317, %v2305
        %v3134 = vpack.c.b16 %v2318, %v2306
        %v3135 = vpack.c.b16 %v2319, %v2307
        %v3136 = vpack.c.b16 %v2320, %v2308
        %v3137 = vpack.c.b16 %v2321, %v2309
        %v3138 = vpack.c.b16 %v2322, %v2310
        %v3139 = vpack.c.b16 %v2323, %v2311
        %v3140 = vpack.c.b16 %v2324, %v2312
        %v3141 = vpack.c.b16 %v2325, %v2313
        %v3142 = vpack.c.b16 %v2326, %v2314
        %v3143 = vpack.c.b16 %v2339, %v2327
        %v3144 = vpack.c.b16 %v2340, %v2328
        %v3145 = vpack.c.b16 %v2341, %v2329
        %v3146 = vpack.c.b16 %v2342, %v2330
        %v3147 = vpack.c.b16 %v2343, %v2331
        %v3148 = vpack.c.b16 %v2344, %v2332
        %v3149 = vpack.c.b16 %v2345, %v2333
        %v3150 = vpack.c.b16 %v2346, %v2334
        %v3151 = vpack.c.b16 %v2347, %v2335
        %v3152 = vpack.c.b16 %v2348, %v2336
        %v3153 = vpack.c.b16 %v2349, %v2337
        %v3154 = vpack.c.b16 %v2350, %v2338
        %v3155 = vpack.c.b16 %v2363, %v2351
        %v3156 = vpack.c.b16 %v2364, %v2352
        %v3157 = vpack.c.b16 %v2365, %v2353
        %v3158 = vpack.c.b16 %v2366, %v2354
        %v3159 = vpack.c.b16 %v2367, %v2355
        %v3160 = vpack.c.b16 %v2368, %v2356
        %v3161 = vpack.c.b16 %v2369, %v2357
        %v3162 = vpack.c.b16 %v2370, %v2358
        %v3163 = vpack.c.b16 %v2371, %v2359
        %v3164 = vpack.c.b16 %v2372, %v2360
        %v3165 = vpack.c.b16 %v2373, %v2361
        %v3166 = vpack.c.b16 %v2374, %v2362
        %v3167 = vpack.c.b16 %v2387, %v2375
        %v3168 = vpack.c.b16 %v2388, %v2376
        %v3169 = vpack.c.b16 %v2389, %v2377
        %v3170 = vpack.c.b16 %v2390, %v2378
        %v3171 = vpack.c.b16 %v2391, %v2379
        %v3172 = vpack.c.b16 %v2392, %v2380
        %v3173 = vpack.c.b16 %v2393, %v2381
        %v3174 = vpack.c.b16 %v2394, %v2382
        %v3175 = vpack.c.b16 %v2395, %v2383
        %v3176 = vpack.c.b16 %v2396, %v2384
        %v3177 = vpack.c.b16 %v2397, %v2385
        %v3178 = vpack.c.b16 %v2398, %v2386
        %v3179 = vpack.c.b16 %v2411, %v2399
        %v3180 = vpack.c.b16 %v2412, %v2400
        %v3181 = vpack.c.b16 %v2413, %v2401
        %v3182 = vpack.c.b16 %v2414, %v2402
        %v3183 = vpack.c.b16 %v2415, %v2403
        %v3184 = vpack.c.b16 %v2416, %v2404
        %v3185 = vpack.c.b16 %v2417, %v2405
        %v3186 = vpack.c.b16 %v2418, %v2406
        %v3187 = vpack.c.b16 %v2419, %v2407
        %v3188 = vpack.c.b16 %v2420, %v2408
        %v3189 = vpack.c.b16 %v2421, %v2409
        %v3190 = vpack.c.b16 %v2422, %v2410
        %v3191 = vpack.c.b16 %v2435, %v2423
        %v3192 = vpack.c.b16 %v2436, %v2424
        %v3193 = vpack.c.b16 %v2437, %v2425
        %v3194 = vpack.c.b16 %v2438, %v2426
        %v3195 = vpack.c.b16 %v2439, %v2427
        %v3196 = vpack.c.b16 %v2440, %v2428
        %v3197 = vpack.c.b16 %v2441, %v2429
        %v3198 = vpack.c.b16 %v2442, %v2430
        %v3199 = vpack.c.b16 %v2443, %v2431
        %v3200 = vpack.c.b16 %v2444, %v2432
        %v3201 = vpack.c.b16 %v2445, %v2433
        %v3202 = vpack.c.b16 %v2446, %v2434
        %v3203 = vpack.c.b16 %v2459, %v2447
        %v3204 = vpack.c.b16 %v2460, %v2448
        %v3205 = vpack.c.b16 %v2461, %v2449
        %v3206 = vpack.c.b16 %v2462, %v2450
        %v3207 = vpack.c.b16 %v2463, %v2451
        %v3208 = vpack.c.b16 %v2464, %v2452
        %v3209 = vpack.c.b16 %v2465, %v2453
        %v3210 = vpack.c.b16 %v2466, %v2454
        %v3211 = vpack.c.b16 %v2467, %v2455
        %v3212 = vpack.c.b16 %v2468, %v2456
        %v3213 = vpack.c.b16 %v2469, %v2457
        %v3214 = vpack.c.b16 %v2470, %v2458
        %v3215 = vpack.c.b16 %v2483, %v2471
        %v3216 = vpack.c.b16 %v2484, %v2472
        %v3217 = vpack.c.b16 %v2485, %v2473
        %v3218 = vpack.c.b16 %v2486, %v2474
        %v3219 = vpack.c.b16 %v2487, %v2475
        %v3220 = vpack.c.b16 %v2488, %v2476
        %v3221 = vpack.c.b16 %v2489, %v2477
        %v3222 = vpack.c.b16 %v2490, %v2478
        %v3223 = vpack.c.b16 %v2491, %v2479
        %v3224 = vpack.c.b16 %v2492, %v2480
        %v3225 = vpack.c.b16 %v2493, %v2481
        %v3226 = vpack.c.b16 %v2494, %v2482
        %v3227 = vpack.c.b16 %v2507, %v2495
        %v3228 = vpack.c.b16 %v2508, %v2496
        %v3229 = vpack.c.b16 %v2509, %v2497
        %v3230 = vpack.c.b16 %v2510, %v2498
        %v3231 = vpack.c.b16 %v2511, %v2499
        %v3232 = vpack.c.b16 %v2512, %v2500
        %v3233 = vpack.c.b16 %v2513, %v2501
        %v3234 = vpack.c.b16 %v2514, %v2502
        %v3235 = vpack.c.b16 %v2515, %v2503
        %v3236 = vpack.c.b16 %v2516, %v2504
        %v3237 = vpack.c.b16 %v2517, %v2505
        %v3238 = vpack.c.b16 %v2518, %v2506
        %v3239 = vpack.c.b16 %v2531, %v2519
        %v3240 = vpack.c.b16 %v2532, %v2520
        %v3241 = vpack.c.b16 %v2533, %v2521
        %v3242 = vpack.c.b16 %v2534, %v2522
        %v3243 = vpack.c.b16 %v2535, %v2523
        %v3244 = vpack.c.b16 %v2536, %v2524
        %v3245 = vpack.c.b16 %v2537, %v2525
        %v3246 = vpack.c.b16 %v2538, %v2526
        %v3247 = vpack.c.b16 %v2539, %v2527
        %v3248 = vpack.c.b16 %v2540, %v2528
        %v3249 = vpack.c.b16 %v2541, %v2529
        %v3250 = vpack.c.b16 %v2542, %v2530
        %v3251 = vpack.c.b16 %v2555, %v2543
        %v3252 = vpack.c.b16 %v2556, %v2544
        %v3253 = vpack.c.b16 %v2557, %v2545
        %v3254 = vpack.c.b16 %v2558, %v2546
        %v3255 = vpack.c.b16 %v2559, %v2547
        %v3256 = vpack.c.b16 %v2560, %v2548
        %v3257 = vpack.c.b16 %v2561, %v2549
        %v3258 = vpack.c.b16 %v2562, %v2550
        %v3259 = vpack.c.b16 %v2563, %v2551
        %v3260 = vpack.c.b16 %v2564, %v2552
        %v3261 = vpack.c.b16 %v2565, %v2553
        %v3262 = vpack.c.b16 %v2566, %v2554
        %v3263 = vpack.c.b16 %v2579, %v2567
        %v3264 = vpack.c.b16 %v2580, %v2568
        %v3265 = vpack.c.b16 %v2581, %v2569
        %v3266 = vpack.c.b16 %v2582, %v2570
        %v3267 = vpack.c.b16 %v2583, %v2571
        %v3268 = vpack.c.b16 %v2584, %v2572
        %v3269 = vpack.c.b16 %v2585, %v2573
        %v3270 = vpack.c.b16 %v2586, %v2574
        %v3271 = vpack.c.b16 %v2587, %v2575
        %v3272 = vpack.c.b16 %v2588, %v2576
        %v3273 = vpack.c.b16 %v2589, %v2577
        %v3274 = vpack.c.b16 %v2590, %v2578
        %v3275 = vpack.c.b16 %v2603, %v2591
        %v3276 = vpack.c.b16 %v2604, %v2592
        %v3277 = vpack.c.b16 %v2605, %v2593
        %v3278 = vpack.c.b16 %v2606, %v2594
        %v3279 = vpack.c.b16 %v2607, %v2595
        %v3280 = vpack.c.b16 %v2608, %v2596
        %v3281 = vpack.c.b16 %v2609, %v2597
        %v3282 = vpack.c.b16 %v2610, %v2598
        %v3283 = vpack.c.b16 %v2611, %v2599
        %v3284 = vpack.c.b16 %v2612, %v2600
        %v3285 = vpack.c.b16 %v2613, %v2601
        %v3286 = vpack.c.b16 %v2614, %v2602
        %v3287 = vpack.c.b16 %v2627, %v2615
        %v3288 = vpack.c.b16 %v2628, %v2616
        %v3289 = vpack.c.b16 %v2629, %v2617
        %v3290 = vpack.c.b16 %v2630, %v2618
        %v3291 = vpack.c.b16 %v2631, %v2619
        %v3292 = vpack.c.b16 %v2632, %v2620
        %v3293 = vpack.c.b16 %v2633, %v2621
        %v3294 = vpack.c.b16 %v2634, %v2622
        %v3295 = vpack.c.b16 %v2635, %v2623
        %v3296 = vpack.c.b16 %v2636, %v2624
        %v3297 = vpack.c.b16 %v2637, %v2625
        %v3298 = vpack.c.b16 %v2638, %v2626
        %v3299 = vpack.c.b16 %v2651, %v2639
        %v3300 = vpack.c.b16 %v2652, %v2640
        %v3301 = vpack.c.b16 %v2653, %v2641
        %v3302 = vpack.c.b16 %v2654, %v2642
        %v3303 = vpack.c.b16 %v2655, %v2643
        %v3304 = vpack.c.b16 %v2656, %v2644
        %v3305 = vpack.c.b16 %v2657, %v2645
        %v3306 = vpack.c.b16 %v2658, %v2646
        %v3307 = vpack.c.b16 %v2659, %v2647
        %v3308 = vpack.c.b16 %v2660, %v2648
        %v3309 = vpack.c.b16 %v2661, %v2649
        %v3310 = vpack.c.b16 %v2662, %v2650
        %v3311 = vpack.c.b16 %v2675, %v2663
        %v3312 = vpack.c.b16 %v2676, %v2664
        %v3313 = vpack.c.b16 %v2677, %v2665
        %v3314 = vpack.c.b16 %v2678, %v2666
        %v3315 = vpack.c.b16 %v2679, %v2667
        %v3316 = vpack.c.b16 %v2680, %v2668
        %v3317 = vpack.c.b16 %v2681, %v2669
        %v3318 = vpack.c.b16 %v2682, %v2670
        %v3319 = vpack.c.b16 %v2683, %v2671
        %v3320 = vpack.c.b16 %v2684, %v2672
        %v3321 = vpack.c.b16 %v2685, %v2673
        %v3322 = vpack.c.b16 %v2686, %v2674
        %v3323 = vpack.c.b16 %v2699, %v2687
        %v3324 = vpack.c.b16 %v2700, %v2688
        %v3325 = vpack.c.b16 %v2701, %v2689
        %v3326 = vpack.c.b16 %v2702, %v2690
        %v3327 = vpack.c.b16 %v2703, %v2691
        %v3328 = vpack.c.b16 %v2704, %v2692
        %v3329 = vpack.c.b16 %v2705, %v2693
        %v3330 = vpack.c.b16 %v2706, %v2694
        %v3331 = vpack.c.b16 %v2707, %v2695
        %v3332 = vpack.c.b16 %v2708, %v2696
        %v3333 = vpack.c.b16 %v2709, %v2697
        %v3334 = vpack.c.b16 %v2710, %v2698
        %v3335 = vpack.c.b16 %v2723, %v2711
        %v3336 = vpack.c.b16 %v2724, %v2712
        %v3337 = vpack.c.b16 %v2725, %v2713
        %v3338 = vpack.c.b16 %v2726, %v2714
        %v3339 = vpack.c.b16 %v2727, %v2715
        %v3340 = vpack.c.b16 %v2728, %v2716
        %v3341 = vpack.c.b16 %v2729, %v2717
        %v3342 = vpack.c.b16 %v2730, %v2718
        %v3343 = vpack.c.b16 %v2731, %v2719
        %v3344 = vpack.c.b16 %v2732, %v2720
        %v3345 = vpack.c.b16 %v2733, %v2721
        %v3346 = vpack.c.b16 %v2734, %v2722
        %v3347 = vpack.c.b16 %v2747, %v2735
        %v3348 = vpack.c.b16 %v2748, %v2736
        %v3349 = vpack.c.b16 %v2749, %v2737
        %v3350 = vpack.c.b16 %v2750, %v2738
        %v3351 = vpack.c.b16 %v2751, %v2739
        %v3352 = vpack.c.b16 %v2752, %v2740
        %v3353 = vpack.c.b16 %v2753, %v2741
        %v3354 = vpack.c.b16 %v2754, %v2742
        %v3355 = vpack.c.b16 %v2755, %v2743
        %v3356 = vpack.c.b16 %v2756, %v2744
        %v3357 = vpack.c.b16 %v2757, %v2745
        %v3358 = vpack.c.b16 %v2758, %v2746
        %v3359 = vpack.c.b16 %v2771, %v2759
        %v3360 = vpack.c.b16 %v2772, %v2760
        %v3361 = vpack.c.b16 %v2773, %v2761
        %v3362 = vpack.c.b16 %v2774, %v2762
        %v3363 = vpack.c.b16 %v2775, %v2763
        %v3364 = vpack.c.b16 %v2776, %v2764
        %v3365 = vpack.c.b16 %v2777, %v2765
        %v3366 = vpack.c.b16 %v2778, %v2766
        %v3367 = vpack.c.b16 %v2779, %v2767
        %v3368 = vpack.c.b16 %v2780, %v2768
        %v3369 = vpack.c.b16 %v2781, %v2769
        %v3370 = vpack.c.b16 %v2782, %v2770
        %v3371 = vpack.c.b16 %v2795, %v2783
        %v3372 = vpack.c.b16 %v2796, %v2784
        %v3373 = vpack.c.b16 %v2797, %v2785
        %v3374 = vpack.c.b16 %v2798, %v2786
        %v3375 = vpack.c.b16 %v2799, %v2787
        %v3376 = vpack.c.b16 %v2800, %v2788
        %v3377 = vpack.c.b16 %v2801, %v2789
        %v3378 = vpack.c.b16 %v2802, %v2790
        %v3379 = vpack.c.b16 %v2803, %v2791
        %v3380 = vpack.c.b16 %v2804, %v2792
        %v3381 = vpack.c.b16 %v2805, %v2793
        %v3382 = vpack.c.b16 %v2806, %v2794
        %3959 = vmatpush.bf16.msra.mxu0 %v2891
        %3960 = vmatpush.bf16.msra.mxu0 %v2879
        %3961 = vmatpush.bf16.msra.mxu0 %v2867
        %3962 = vmatpush.bf16.msra.mxu0 %v2855
        %3963 = vmatpush.bf16.msra.mxu0 %v2843
        %3964 = vmatpush.bf16.msra.mxu0 %v2831
        %3965 = vmatpush.bf16.msra.mxu0 %v2819
        %3966 = vmatpush.bf16.msra.mxu0 %v2807
        %3967 = vmatmul.bf16.gmra.mxu0 %v397
        %v3968 = vpop.f32.mrf.mxu0
        %v3969 = vadd.f32 %v1055, %v3968
        %v3970 = vpop.f32.mrf.mxu0
        %v3971 = vadd.f32 %v1055, %v3970
        %3972 = vmatmul.bf16.gmra.mxu0 %v403
        %v3973 = vpop.f32.mrf.mxu0
        %v3974 = vadd.f32 %v1055, %v3973
        %v3975 = vpop.f32.mrf.mxu0
        %v3976 = vadd.f32 %v1055, %v3975
        %3977 = vmatmul.bf16.gmra.mxu0 %v409
        %v3978 = vpop.f32.mrf.mxu0
        %v3979 = vadd.f32 %v1055, %v3978
        %v3980 = vpop.f32.mrf.mxu0
        %v3981 = vadd.f32 %v1055, %v3980
        %3982 = vmatmul.bf16.gmra.mxu0 %v415
        %v3983 = vpop.f32.mrf.mxu0
        %v3984 = vadd.f32 %v1055, %v3983
        %v3985 = vpop.f32.mrf.mxu0
        %v3986 = vadd.f32 %v1055, %v3985
        %3987 = vmatmul.bf16.gmra.mxu0 %v421
        %v3988 = vpop.f32.mrf.mxu0
        %v3989 = vadd.f32 %v1055, %v3988
        %v3990 = vpop.f32.mrf.mxu0
        %v3991 = vadd.f32 %v1055, %v3990
        %3992 = vmatmul.bf16.gmra.mxu0 %v427
        %v3993 = vpop.f32.mrf.mxu0
        %v3994 = vadd.f32 %v1055, %v3993
        %v3995 = vpop.f32.mrf.mxu0
        %v3996 = vadd.f32 %v1055, %v3995
        %3997 = vmatmul.bf16.gmra.mxu0 %v433
        %v3998 = vpop.f32.mrf.mxu0
        %v3999 = vadd.f32 %v1055, %v3998
        %v4000 = vpop.f32.mrf.mxu0
        %v4001 = vadd.f32 %v1055, %v4000
        %4002 = vmatmul.bf16.gmra.mxu0 %v439
        %v4003 = vpop.f32.mrf.mxu0
        %v4004 = vadd.f32 %v1055, %v4003
        %v4005 = vpop.f32.mrf.mxu0
        %v4006 = vadd.f32 %v1055, %v4005
        %4007 = vmatmul.bf16.gmra.mxu0 %v445
        %v4008 = vpop.f32.mrf.mxu0
        %v4009 = vadd.f32 %v1055, %v4008
        %v4010 = vpop.f32.mrf.mxu0
        %v4011 = vadd.f32 %v1055, %v4010
        %4012 = vmatmul.bf16.gmra.mxu0 %v451
        %v4013 = vpop.f32.mrf.mxu0
        %v4014 = vadd.f32 %v1055, %v4013
        %v4015 = vpop.f32.mrf.mxu0
        %v4016 = vadd.f32 %v1055, %v4015
        %4017 = vmatmul.bf16.gmra.mxu0 %v457
        %v4018 = vpop.f32.mrf.mxu0
        %v4019 = vadd.f32 %v1055, %v4018
        %v4020 = vpop.f32.mrf.mxu0
        %v4021 = vadd.f32 %v1055, %v4020
        %4022 = vmatmul.bf16.gmra.mxu0 %v463
        %v4023 = vpop.f32.mrf.mxu0
        %v4024 = vadd.f32 %v1055, %v4023
        %v4025 = vpop.f32.mrf.mxu0
        %v4026 = vadd.f32 %v1055, %v4025
        %4027 = vmatmul.bf16.gmra.mxu0 %v469
        %v4028 = vpop.f32.mrf.mxu0
        %v4029 = vadd.f32 %v1055, %v4028
        %v4030 = vpop.f32.mrf.mxu0
        %4031 = vdwg.mxu0
        %4032 = vmatpush.bf16.msra.mxu0 %v2987
        %4033 = vmatpush.bf16.msra.mxu0 %v2975
        %4034 = vmatpush.bf16.msra.mxu0 %v2963
        %4035 = vmatpush.bf16.msra.mxu0 %v2951
        %4036 = vmatpush.bf16.msra.mxu0 %v2939
        %4037 = vmatpush.bf16.msra.mxu0 %v2927
        %4038 = vmatpush.bf16.msra.mxu0 %v2915
        %4039 = vmatpush.bf16.msra.mxu0 %v2903
        %4040 = vmatmul.bf16.gmra.mxu0 %v398
        %v4041 = vpop.f32.mrf.mxu0
        %v4042 = vadd.f32 %v3969, %v4041
        %v4043 = vpop.f32.mrf.mxu0
        %v4044 = vadd.f32 %v3971, %v4043
        %4045 = vmatmul.bf16.gmra.mxu0 %v404
        %v4046 = vpop.f32.mrf.mxu0
        %v4047 = vadd.f32 %v3974, %v4046
        %v4048 = vpop.f32.mrf.mxu0
        %v4049 = vadd.f32 %v3976, %v4048
        %4050 = vmatmul.bf16.gmra.mxu0 %v410
        %v4051 = vpop.f32.mrf.mxu0
        %v4052 = vadd.f32 %v3979, %v4051
        %v4053 = vpop.f32.mrf.mxu0
        %v4054 = vadd.f32 %v3981, %v4053
        %4055 = vmatmul.bf16.gmra.mxu0 %v416
        %v4056 = vpop.f32.mrf.mxu0
        %v4057 = vadd.f32 %v3984, %v4056
        %v4058 = vpop.f32.mrf.mxu0
        %v4059 = vadd.f32 %v3986, %v4058
        %4060 = vmatmul.bf16.gmra.mxu0 %v422
        %v4061 = vpop.f32.mrf.mxu0
        %v4062 = vadd.f32 %v3989, %v4061
        %v4063 = vpop.f32.mrf.mxu0
        %v4064 = vadd.f32 %v3991, %v4063
        %4065 = vmatmul.bf16.gmra.mxu0 %v428
        %v4066 = vpop.f32.mrf.mxu0
        %v4067 = vadd.f32 %v3994, %v4066
        %v4068 = vpop.f32.mrf.mxu0
        %v4069 = vadd.f32 %v3996, %v4068
        %4070 = vmatmul.bf16.gmra.mxu0 %v434
        %v4071 = vpop.f32.mrf.mxu0
        %v4072 = vadd.f32 %v3999, %v4071
        %v4073 = vpop.f32.mrf.mxu0
        %v4074 = vadd.f32 %v4001, %v4073
        %4075 = vmatmul.bf16.gmra.mxu0 %v440
        %v4076 = vpop.f32.mrf.mxu0
        %v4077 = vadd.f32 %v4004, %v4076
        %v4078 = vpop.f32.mrf.mxu0
        %v4079 = vadd.f32 %v4006, %v4078
        %4080 = vmatmul.bf16.gmra.mxu0 %v446
        %v4081 = vpop.f32.mrf.mxu0
        %v4082 = vadd.f32 %v4009, %v4081
        %v4083 = vpop.f32.mrf.mxu0
        %v4084 = vadd.f32 %v4011, %v4083
        %4085 = vmatmul.bf16.gmra.mxu0 %v452
        %v4086 = vpop.f32.mrf.mxu0
        %v4087 = vadd.f32 %v4014, %v4086
        %v4088 = vpop.f32.mrf.mxu0
        %v4089 = vadd.f32 %v4016, %v4088
        %4090 = vmatmul.bf16.gmra.mxu0 %v458
        %v4091 = vpop.f32.mrf.mxu0
        %v4092 = vadd.f32 %v4019, %v4091
        %v4093 = vpop.f32.mrf.mxu0
        %v4094 = vadd.f32 %v4021, %v4093
        %4095 = vmatmul.bf16.gmra.mxu0 %v464
        %v4096 = vpop.f32.mrf.mxu0
        %v4097 = vadd.f32 %v4024, %v4096
        %v4098 = vpop.f32.mrf.mxu0
        %v4099 = vadd.f32 %v4026, %v4098
        %4100 = vmatmul.bf16.gmra.mxu0 %v470
        %v4101 = vpop.f32.mrf.mxu0
        %v4102 = vadd.f32 %v4029, %v4101
        %v4103 = vpop.f32.mrf.mxu0
        %4104 = vdwg.mxu0
        %4105 = vmatpush.bf16.msra.mxu0 %v3083
        %4106 = vmatpush.bf16.msra.mxu0 %v3071
        %4107 = vmatpush.bf16.msra.mxu0 %v3059
        %4108 = vmatpush.bf16.msra.mxu0 %v3047
        %4109 = vmatpush.bf16.msra.mxu0 %v3035
        %4110 = vmatpush.bf16.msra.mxu0 %v3023
        %4111 = vmatpush.bf16.msra.mxu0 %v3011
        %4112 = vmatpush.bf16.msra.mxu0 %v2999
        %4113 = vmatmul.bf16.gmra.mxu0 %v399
        %v4114 = vpop.f32.mrf.mxu0
        %v4115 = vadd.f32 %v4042, %v4114
        %v4116 = vpop.f32.mrf.mxu0
        %v4117 = vadd.f32 %v4044, %v4116
        %4118 = vmatmul.bf16.gmra.mxu0 %v405
        %v4119 = vpop.f32.mrf.mxu0
        %v4120 = vadd.f32 %v4047, %v4119
        %v4121 = vpop.f32.mrf.mxu0
        %v4122 = vadd.f32 %v4049, %v4121
        %4123 = vmatmul.bf16.gmra.mxu0 %v411
        %v4124 = vpop.f32.mrf.mxu0
        %v4125 = vadd.f32 %v4052, %v4124
        %v4126 = vpop.f32.mrf.mxu0
        %v4127 = vadd.f32 %v4054, %v4126
        %4128 = vmatmul.bf16.gmra.mxu0 %v417
        %v4129 = vpop.f32.mrf.mxu0
        %v4130 = vadd.f32 %v4057, %v4129
        %v4131 = vpop.f32.mrf.mxu0
        %v4132 = vadd.f32 %v4059, %v4131
        %4133 = vmatmul.bf16.gmra.mxu0 %v423
        %v4134 = vpop.f32.mrf.mxu0
        %v4135 = vadd.f32 %v4062, %v4134
        %v4136 = vpop.f32.mrf.mxu0
        %v4137 = vadd.f32 %v4064, %v4136
        %4138 = vmatmul.bf16.gmra.mxu0 %v429
        %v4139 = vpop.f32.mrf.mxu0
        %v4140 = vadd.f32 %v4067, %v4139
        %v4141 = vpop.f32.mrf.mxu0
        %v4142 = vadd.f32 %v4069, %v4141
        %4143 = vmatmul.bf16.gmra.mxu0 %v435
        %v4144 = vpop.f32.mrf.mxu0
        %v4145 = vadd.f32 %v4072, %v4144
        %v4146 = vpop.f32.mrf.mxu0
        %v4147 = vadd.f32 %v4074, %v4146
        %4148 = vmatmul.bf16.gmra.mxu0 %v441
        %v4149 = vpop.f32.mrf.mxu0
        %v4150 = vadd.f32 %v4077, %v4149
        %v4151 = vpop.f32.mrf.mxu0
        %v4152 = vadd.f32 %v4079, %v4151
        %4153 = vmatmul.bf16.gmra.mxu0 %v447
        %v4154 = vpop.f32.mrf.mxu0
        %v4155 = vadd.f32 %v4082, %v4154
        %v4156 = vpop.f32.mrf.mxu0
        %v4157 = vadd.f32 %v4084, %v4156
        %4158 = vmatmul.bf16.gmra.mxu0 %v453
        %v4159 = vpop.f32.mrf.mxu0
        %v4160 = vadd.f32 %v4087, %v4159
        %v4161 = vpop.f32.mrf.mxu0
        %v4162 = vadd.f32 %v4089, %v4161
        %4163 = vmatmul.bf16.gmra.mxu0 %v459
        %v4164 = vpop.f32.mrf.mxu0
        %v4165 = vadd.f32 %v4092, %v4164
        %v4166 = vpop.f32.mrf.mxu0
        %v4167 = vadd.f32 %v4094, %v4166
        %4168 = vmatmul.bf16.gmra.mxu0 %v465
        %v4169 = vpop.f32.mrf.mxu0
        %v4170 = vadd.f32 %v4097, %v4169
        %v4171 = vpop.f32.mrf.mxu0
        %v4172 = vadd.f32 %v4099, %v4171
        %4173 = vmatmul.bf16.gmra.mxu0 %v471
        %v4174 = vpop.f32.mrf.mxu0
        %v4175 = vadd.f32 %v4102, %v4174
        %v4176 = vpop.f32.mrf.mxu0
        %4177 = vdwg.mxu0
        %4178 = vmatpush.bf16.msra.mxu0 %v3179
        %4179 = vmatpush.bf16.msra.mxu0 %v3167
        %4180 = vmatpush.bf16.msra.mxu0 %v3155
        %4181 = vmatpush.bf16.msra.mxu0 %v3143
        %4182 = vmatpush.bf16.msra.mxu0 %v3131
        %4183 = vmatpush.bf16.msra.mxu0 %v3119
        %4184 = vmatpush.bf16.msra.mxu0 %v3107
        %4185 = vmatpush.bf16.msra.mxu0 %v3095
        %4186 = vmatmul.bf16.gmra.mxu0 %v400
        %v4187 = vpop.f32.mrf.mxu0
        %v4188 = vadd.f32 %v4115, %v4187
        %v4189 = vpop.f32.mrf.mxu0
        %v4190 = vadd.f32 %v4117, %v4189
        %4191 = vmatmul.bf16.gmra.mxu0 %v406
        %v4192 = vpop.f32.mrf.mxu0
        %v4193 = vadd.f32 %v4120, %v4192
        %v4194 = vpop.f32.mrf.mxu0
        %v4195 = vadd.f32 %v4122, %v4194
        %4196 = vmatmul.bf16.gmra.mxu0 %v412
        %v4197 = vpop.f32.mrf.mxu0
        %v4198 = vadd.f32 %v4125, %v4197
        %v4199 = vpop.f32.mrf.mxu0
        %v4200 = vadd.f32 %v4127, %v4199
        %4201 = vmatmul.bf16.gmra.mxu0 %v418
        %v4202 = vpop.f32.mrf.mxu0
        %v4203 = vadd.f32 %v4130, %v4202
        %v4204 = vpop.f32.mrf.mxu0
        %v4205 = vadd.f32 %v4132, %v4204
        %4206 = vmatmul.bf16.gmra.mxu0 %v424
        %v4207 = vpop.f32.mrf.mxu0
        %v4208 = vadd.f32 %v4135, %v4207
        %v4209 = vpop.f32.mrf.mxu0
        %v4210 = vadd.f32 %v4137, %v4209
        %4211 = vmatmul.bf16.gmra.mxu0 %v430
        %v4212 = vpop.f32.mrf.mxu0
        %v4213 = vadd.f32 %v4140, %v4212
        %v4214 = vpop.f32.mrf.mxu0
        %v4215 = vadd.f32 %v4142, %v4214
        %4216 = vmatmul.bf16.gmra.mxu0 %v436
        %v4217 = vpop.f32.mrf.mxu0
        %v4218 = vadd.f32 %v4145, %v4217
        %v4219 = vpop.f32.mrf.mxu0
        %v4220 = vadd.f32 %v4147, %v4219
        %4221 = vmatmul.bf16.gmra.mxu0 %v442
        %v4222 = vpop.f32.mrf.mxu0
        %v4223 = vadd.f32 %v4150, %v4222
        %v4224 = vpop.f32.mrf.mxu0
        %v4225 = vadd.f32 %v4152, %v4224
        %4226 = vmatmul.bf16.gmra.mxu0 %v448
        %v4227 = vpop.f32.mrf.mxu0
        %v4228 = vadd.f32 %v4155, %v4227
        %v4229 = vpop.f32.mrf.mxu0
        %v4230 = vadd.f32 %v4157, %v4229
        %4231 = vmatmul.bf16.gmra.mxu0 %v454
        %v4232 = vpop.f32.mrf.mxu0
        %v4233 = vadd.f32 %v4160, %v4232
        %v4234 = vpop.f32.mrf.mxu0
        %v4235 = vadd.f32 %v4162, %v4234
        %4236 = vmatmul.bf16.gmra.mxu0 %v460
        %v4237 = vpop.f32.mrf.mxu0
        %v4238 = vadd.f32 %v4165, %v4237
        %v4239 = vpop.f32.mrf.mxu0
        %v4240 = vadd.f32 %v4167, %v4239
        %4241 = vmatmul.bf16.gmra.mxu0 %v466
        %v4242 = vpop.f32.mrf.mxu0
        %v4243 = vadd.f32 %v4170, %v4242
        %v4244 = vpop.f32.mrf.mxu0
        %v4245 = vadd.f32 %v4172, %v4244
        %4246 = vmatmul.bf16.gmra.mxu0 %v472
        %v4247 = vpop.f32.mrf.mxu0
        %v4248 = vadd.f32 %v4175, %v4247
        %v4249 = vpop.f32.mrf.mxu0
        %4250 = vdwg.mxu0
        %4251 = vmatpush.bf16.msra.mxu0 %v3275
        %4252 = vmatpush.bf16.msra.mxu0 %v3263
        %4253 = vmatpush.bf16.msra.mxu0 %v3251
        %4254 = vmatpush.bf16.msra.mxu0 %v3239
        %4255 = vmatpush.bf16.msra.mxu0 %v3227
        %4256 = vmatpush.bf16.msra.mxu0 %v3215
        %4257 = vmatpush.bf16.msra.mxu0 %v3203
        %4258 = vmatpush.bf16.msra.mxu0 %v3191
        %4259 = vmatmul.bf16.gmra.mxu0 %v401
        %v4260 = vpop.f32.mrf.mxu0
        %v4261 = vadd.f32 %v4188, %v4260
        %v4262 = vpop.f32.mrf.mxu0
        %v4263 = vadd.f32 %v4190, %v4262
        %4264 = vmatmul.bf16.gmra.mxu0 %v407
        %v4265 = vpop.f32.mrf.mxu0
        %v4266 = vadd.f32 %v4193, %v4265
        %v4267 = vpop.f32.mrf.mxu0
        %v4268 = vadd.f32 %v4195, %v4267
        %4269 = vmatmul.bf16.gmra.mxu0 %v413
        %v4270 = vpop.f32.mrf.mxu0
        %v4271 = vadd.f32 %v4198, %v4270
        %v4272 = vpop.f32.mrf.mxu0
        %v4273 = vadd.f32 %v4200, %v4272
        %4274 = vmatmul.bf16.gmra.mxu0 %v419
        %v4275 = vpop.f32.mrf.mxu0
        %v4276 = vadd.f32 %v4203, %v4275
        %v4277 = vpop.f32.mrf.mxu0
        %v4278 = vadd.f32 %v4205, %v4277
        %4279 = vmatmul.bf16.gmra.mxu0 %v425
        %v4280 = vpop.f32.mrf.mxu0
        %v4281 = vadd.f32 %v4208, %v4280
        %v4282 = vpop.f32.mrf.mxu0
        %v4283 = vadd.f32 %v4210, %v4282
        %4284 = vmatmul.bf16.gmra.mxu0 %v431
        %v4285 = vpop.f32.mrf.mxu0
        %v4286 = vadd.f32 %v4213, %v4285
        %v4287 = vpop.f32.mrf.mxu0
        %v4288 = vadd.f32 %v4215, %v4287
        %4289 = vmatmul.bf16.gmra.mxu0 %v437
        %v4290 = vpop.f32.mrf.mxu0
        %v4291 = vadd.f32 %v4218, %v4290
        %v4292 = vpop.f32.mrf.mxu0
        %v4293 = vadd.f32 %v4220, %v4292
        %4294 = vmatmul.bf16.gmra.mxu0 %v443
        %v4295 = vpop.f32.mrf.mxu0
        %v4296 = vadd.f32 %v4223, %v4295
        %v4297 = vpop.f32.mrf.mxu0
        %v4298 = vadd.f32 %v4225, %v4297
        %4299 = vmatmul.bf16.gmra.mxu0 %v449
        %v4300 = vpop.f32.mrf.mxu0
        %v4301 = vadd.f32 %v4228, %v4300
        %v4302 = vpop.f32.mrf.mxu0
        %v4303 = vadd.f32 %v4230, %v4302
        %4304 = vmatmul.bf16.gmra.mxu0 %v455
        %v4305 = vpop.f32.mrf.mxu0
        %v4306 = vadd.f32 %v4233, %v4305
        %v4307 = vpop.f32.mrf.mxu0
        %v4308 = vadd.f32 %v4235, %v4307
        %4309 = vmatmul.bf16.gmra.mxu0 %v461
        %v4310 = vpop.f32.mrf.mxu0
        %v4311 = vadd.f32 %v4238, %v4310
        %v4312 = vpop.f32.mrf.mxu0
        %v4313 = vadd.f32 %v4240, %v4312
        %4314 = vmatmul.bf16.gmra.mxu0 %v467
        %v4315 = vpop.f32.mrf.mxu0
        %v4316 = vadd.f32 %v4243, %v4315
        %v4317 = vpop.f32.mrf.mxu0
        %v4318 = vadd.f32 %v4245, %v4317
        %4319 = vmatmul.bf16.gmra.mxu0 %v473
        %v4320 = vpop.f32.mrf.mxu0
        %v4321 = vadd.f32 %v4248, %v4320
        %v4322 = vpop.f32.mrf.mxu0
        %4323 = vdwg.mxu0
        %4324 = vmatpush.bf16.msra.mxu0 %v3371
        %4325 = vmatpush.bf16.msra.mxu0 %v3359
        %4326 = vmatpush.bf16.msra.mxu0 %v3347
        %4327 = vmatpush.bf16.msra.mxu0 %v3335
        %4328 = vmatpush.bf16.msra.mxu0 %v3323
        %4329 = vmatpush.bf16.msra.mxu0 %v3311
        %4330 = vmatpush.bf16.msra.mxu0 %v3299
        %4331 = vmatpush.bf16.msra.mxu0 %v3287
        %4332 = vmatmul.bf16.gmra.mxu0 %v402
        %v4333 = vpop.f32.mrf.mxu0
        %v4334 = vadd.f32 %v4261, %v4333
        %v4335 = vpop.f32.mrf.mxu0
        %v4336 = vadd.f32 %v4263, %v4335
        %4337 = vmatmul.bf16.gmra.mxu0 %v408
        %v4338 = vpop.f32.mrf.mxu0
        %v4339 = vadd.f32 %v4266, %v4338
        %v4340 = vpop.f32.mrf.mxu0
        %v4341 = vadd.f32 %v4268, %v4340
        %4342 = vmatmul.bf16.gmra.mxu0 %v414
        %v4343 = vpop.f32.mrf.mxu0
        %v4344 = vadd.f32 %v4271, %v4343
        %v4345 = vpop.f32.mrf.mxu0
        %v4346 = vadd.f32 %v4273, %v4345
        %4347 = vmatmul.bf16.gmra.mxu0 %v420
        %v4348 = vpop.f32.mrf.mxu0
        %v4349 = vadd.f32 %v4276, %v4348
        %v4350 = vpop.f32.mrf.mxu0
        %v4351 = vadd.f32 %v4278, %v4350
        %4352 = vmatmul.bf16.gmra.mxu0 %v426
        %v4353 = vpop.f32.mrf.mxu0
        %v4354 = vadd.f32 %v4281, %v4353
        %v4355 = vpop.f32.mrf.mxu0
        %v4356 = vadd.f32 %v4283, %v4355
        %4357 = vmatmul.bf16.gmra.mxu0 %v432
        %v4358 = vpop.f32.mrf.mxu0
        %v4359 = vadd.f32 %v4286, %v4358
        %v4360 = vpop.f32.mrf.mxu0
        %v4361 = vadd.f32 %v4288, %v4360
        %4362 = vmatmul.bf16.gmra.mxu0 %v438
        %v4363 = vpop.f32.mrf.mxu0
        %v4364 = vadd.f32 %v4291, %v4363
        %v4365 = vpop.f32.mrf.mxu0
        %v4366 = vadd.f32 %v4293, %v4365
        %4367 = vmatmul.bf16.gmra.mxu0 %v444
        %v4368 = vpop.f32.mrf.mxu0
        %v4369 = vadd.f32 %v4296, %v4368
        %v4370 = vpop.f32.mrf.mxu0
        %v4371 = vadd.f32 %v4298, %v4370
        %4372 = vmatmul.bf16.gmra.mxu0 %v450
        %v4373 = vpop.f32.mrf.mxu0
        %v4374 = vadd.f32 %v4301, %v4373
        %v4375 = vpop.f32.mrf.mxu0
        %v4376 = vadd.f32 %v4303, %v4375
        %4377 = vmatmul.bf16.gmra.mxu0 %v456
        %v4378 = vpop.f32.mrf.mxu0
        %v4379 = vadd.f32 %v4306, %v4378
        %v4380 = vpop.f32.mrf.mxu0
        %v4381 = vadd.f32 %v4308, %v4380
        %4382 = vmatmul.bf16.gmra.mxu0 %v462
        %v4383 = vpop.f32.mrf.mxu0
        %v4384 = vadd.f32 %v4311, %v4383
        %v4385 = vpop.f32.mrf.mxu0
        %v4386 = vadd.f32 %v4313, %v4385
        %4387 = vmatmul.bf16.gmra.mxu0 %v468
        %v4388 = vpop.f32.mrf.mxu0
        %v4389 = vadd.f32 %v4316, %v4388
        %v4390 = vpop.f32.mrf.mxu0
        %v4391 = vadd.f32 %v4318, %v4390
        %4392 = vmatmul.bf16.gmra.mxu0 %v474
        %v4393 = vpop.f32.mrf.mxu0
        %v4394 = vadd.f32 %v4321, %v4393
        %v4395 = vpop.f32.mrf.mxu0
        %4396 = vdwg.mxu0
        %4397 = vmatpush.bf16.msra.mxu0 %v2892
        %4398 = vmatpush.bf16.msra.mxu0 %v2880
        %4399 = vmatpush.bf16.msra.mxu0 %v2868
        %4400 = vmatpush.bf16.msra.mxu0 %v2856
        %4401 = vmatpush.bf16.msra.mxu0 %v2844
        %4402 = vmatpush.bf16.msra.mxu0 %v2832
        %4403 = vmatpush.bf16.msra.mxu0 %v2820
        %4404 = vmatpush.bf16.msra.mxu0 %v2808
        %4405 = vmatmul.bf16.gmra.mxu0 %v397
        %v4406 = vpop.f32.mrf.mxu0
        %v4407 = vadd.f32 %v1056, %v4406
        %v4408 = vpop.f32.mrf.mxu0
        %v4409 = vadd.f32 %v1056, %v4408
        %4410 = vmatmul.bf16.gmra.mxu0 %v403
        %v4411 = vpop.f32.mrf.mxu0
        %v4412 = vadd.f32 %v1056, %v4411
        %v4413 = vpop.f32.mrf.mxu0
        %v4414 = vadd.f32 %v1056, %v4413
        %4415 = vmatmul.bf16.gmra.mxu0 %v409
        %v4416 = vpop.f32.mrf.mxu0
        %v4417 = vadd.f32 %v1056, %v4416
        %v4418 = vpop.f32.mrf.mxu0
        %v4419 = vadd.f32 %v1056, %v4418
        %4420 = vmatmul.bf16.gmra.mxu0 %v415
        %v4421 = vpop.f32.mrf.mxu0
        %v4422 = vadd.f32 %v1056, %v4421
        %v4423 = vpop.f32.mrf.mxu0
        %v4424 = vadd.f32 %v1056, %v4423
        %4425 = vmatmul.bf16.gmra.mxu0 %v421
        %v4426 = vpop.f32.mrf.mxu0
        %v4427 = vadd.f32 %v1056, %v4426
        %v4428 = vpop.f32.mrf.mxu0
        %v4429 = vadd.f32 %v1056, %v4428
        %4430 = vmatmul.bf16.gmra.mxu0 %v427
        %v4431 = vpop.f32.mrf.mxu0
        %v4432 = vadd.f32 %v1056, %v4431
        %v4433 = vpop.f32.mrf.mxu0
        %v4434 = vadd.f32 %v1056, %v4433
        %4435 = vmatmul.bf16.gmra.mxu0 %v433
        %v4436 = vpop.f32.mrf.mxu0
        %v4437 = vadd.f32 %v1056, %v4436
        %v4438 = vpop.f32.mrf.mxu0
        %v4439 = vadd.f32 %v1056, %v4438
        %4440 = vmatmul.bf16.gmra.mxu0 %v439
        %v4441 = vpop.f32.mrf.mxu0
        %v4442 = vadd.f32 %v1056, %v4441
        %v4443 = vpop.f32.mrf.mxu0
        %v4444 = vadd.f32 %v1056, %v4443
        %4445 = vmatmul.bf16.gmra.mxu0 %v445
        %v4446 = vpop.f32.mrf.mxu0
        %v4447 = vadd.f32 %v1056, %v4446
        %v4448 = vpop.f32.mrf.mxu0
        %v4449 = vadd.f32 %v1056, %v4448
        %4450 = vmatmul.bf16.gmra.mxu0 %v451
        %v4451 = vpop.f32.mrf.mxu0
        %v4452 = vadd.f32 %v1056, %v4451
        %v4453 = vpop.f32.mrf.mxu0
        %v4454 = vadd.f32 %v1056, %v4453
        %4455 = vmatmul.bf16.gmra.mxu0 %v457
        %v4456 = vpop.f32.mrf.mxu0
        %v4457 = vadd.f32 %v1056, %v4456
        %v4458 = vpop.f32.mrf.mxu0
        %v4459 = vadd.f32 %v1056, %v4458
        %4460 = vmatmul.bf16.gmra.mxu0 %v463
        %v4461 = vpop.f32.mrf.mxu0
        %v4462 = vadd.f32 %v1056, %v4461
        %v4463 = vpop.f32.mrf.mxu0
        %v4464 = vadd.f32 %v1056, %v4463
        %4465 = vmatmul.bf16.gmra.mxu0 %v469
        %v4466 = vpop.f32.mrf.mxu0
        %v4467 = vadd.f32 %v1056, %v4466
        %v4468 = vpop.f32.mrf.mxu0
        %4469 = vdwg.mxu0
        %4470 = vmatpush.bf16.msra.mxu0 %v2988
        %4471 = vmatpush.bf16.msra.mxu0 %v2976
        %4472 = vmatpush.bf16.msra.mxu0 %v2964
        %4473 = vmatpush.bf16.msra.mxu0 %v2952
        %4474 = vmatpush.bf16.msra.mxu0 %v2940
        %4475 = vmatpush.bf16.msra.mxu0 %v2928
        %4476 = vmatpush.bf16.msra.mxu0 %v2916
        %4477 = vmatpush.bf16.msra.mxu0 %v2904
        %4478 = vmatmul.bf16.gmra.mxu0 %v398
        %v4479 = vpop.f32.mrf.mxu0
        %v4480 = vadd.f32 %v4407, %v4479
        %v4481 = vpop.f32.mrf.mxu0
        %v4482 = vadd.f32 %v4409, %v4481
        %4483 = vmatmul.bf16.gmra.mxu0 %v404
        %v4484 = vpop.f32.mrf.mxu0
        %v4485 = vadd.f32 %v4412, %v4484
        %v4486 = vpop.f32.mrf.mxu0
        %v4487 = vadd.f32 %v4414, %v4486
        %4488 = vmatmul.bf16.gmra.mxu0 %v410
        %v4489 = vpop.f32.mrf.mxu0
        %v4490 = vadd.f32 %v4417, %v4489
        %v4491 = vpop.f32.mrf.mxu0
        %v4492 = vadd.f32 %v4419, %v4491
        %4493 = vmatmul.bf16.gmra.mxu0 %v416
        %v4494 = vpop.f32.mrf.mxu0
        %v4495 = vadd.f32 %v4422, %v4494
        %v4496 = vpop.f32.mrf.mxu0
        %v4497 = vadd.f32 %v4424, %v4496
        %4498 = vmatmul.bf16.gmra.mxu0 %v422
        %v4499 = vpop.f32.mrf.mxu0
        %v4500 = vadd.f32 %v4427, %v4499
        %v4501 = vpop.f32.mrf.mxu0
        %v4502 = vadd.f32 %v4429, %v4501
        %4503 = vmatmul.bf16.gmra.mxu0 %v428
        %v4504 = vpop.f32.mrf.mxu0
        %v4505 = vadd.f32 %v4432, %v4504
        %v4506 = vpop.f32.mrf.mxu0
        %v4507 = vadd.f32 %v4434, %v4506
        %4508 = vmatmul.bf16.gmra.mxu0 %v434
        %v4509 = vpop.f32.mrf.mxu0
        %v4510 = vadd.f32 %v4437, %v4509
        %v4511 = vpop.f32.mrf.mxu0
        %v4512 = vadd.f32 %v4439, %v4511
        %4513 = vmatmul.bf16.gmra.mxu0 %v440
        %v4514 = vpop.f32.mrf.mxu0
        %v4515 = vadd.f32 %v4442, %v4514
        %v4516 = vpop.f32.mrf.mxu0
        %v4517 = vadd.f32 %v4444, %v4516
        %4518 = vmatmul.bf16.gmra.mxu0 %v446
        %v4519 = vpop.f32.mrf.mxu0
        %v4520 = vadd.f32 %v4447, %v4519
        %v4521 = vpop.f32.mrf.mxu0
        %v4522 = vadd.f32 %v4449, %v4521
        %4523 = vmatmul.bf16.gmra.mxu0 %v452
        %v4524 = vpop.f32.mrf.mxu0
        %v4525 = vadd.f32 %v4452, %v4524
        %v4526 = vpop.f32.mrf.mxu0
        %v4527 = vadd.f32 %v4454, %v4526
        %4528 = vmatmul.bf16.gmra.mxu0 %v458
        %v4529 = vpop.f32.mrf.mxu0
        %v4530 = vadd.f32 %v4457, %v4529
        %v4531 = vpop.f32.mrf.mxu0
        %v4532 = vadd.f32 %v4459, %v4531
        %4533 = vmatmul.bf16.gmra.mxu0 %v464
        %v4534 = vpop.f32.mrf.mxu0
        %v4535 = vadd.f32 %v4462, %v4534
        %v4536 = vpop.f32.mrf.mxu0
        %v4537 = vadd.f32 %v4464, %v4536
        %4538 = vmatmul.bf16.gmra.mxu0 %v470
        %v4539 = vpop.f32.mrf.mxu0
        %v4540 = vadd.f32 %v4467, %v4539
        %v4541 = vpop.f32.mrf.mxu0
        %4542 = vdwg.mxu0
        %4543 = vmatpush.bf16.msra.mxu0 %v3084
        %4544 = vmatpush.bf16.msra.mxu0 %v3072
        %4545 = vmatpush.bf16.msra.mxu0 %v3060
        %4546 = vmatpush.bf16.msra.mxu0 %v3048
        %4547 = vmatpush.bf16.msra.mxu0 %v3036
        %4548 = vmatpush.bf16.msra.mxu0 %v3024
        %4549 = vmatpush.bf16.msra.mxu0 %v3012
        %4550 = vmatpush.bf16.msra.mxu0 %v3000
        %4551 = vmatmul.bf16.gmra.mxu0 %v399
        %v4552 = vpop.f32.mrf.mxu0
        %v4553 = vadd.f32 %v4480, %v4552
        %v4554 = vpop.f32.mrf.mxu0
        %v4555 = vadd.f32 %v4482, %v4554
        %4556 = vmatmul.bf16.gmra.mxu0 %v405
        %v4557 = vpop.f32.mrf.mxu0
        %v4558 = vadd.f32 %v4485, %v4557
        %v4559 = vpop.f32.mrf.mxu0
        %v4560 = vadd.f32 %v4487, %v4559
        %4561 = vmatmul.bf16.gmra.mxu0 %v411
        %v4562 = vpop.f32.mrf.mxu0
        %v4563 = vadd.f32 %v4490, %v4562
        %v4564 = vpop.f32.mrf.mxu0
        %v4565 = vadd.f32 %v4492, %v4564
        %4566 = vmatmul.bf16.gmra.mxu0 %v417
        %v4567 = vpop.f32.mrf.mxu0
        %v4568 = vadd.f32 %v4495, %v4567
        %v4569 = vpop.f32.mrf.mxu0
        %v4570 = vadd.f32 %v4497, %v4569
        %4571 = vmatmul.bf16.gmra.mxu0 %v423
        %v4572 = vpop.f32.mrf.mxu0
        %v4573 = vadd.f32 %v4500, %v4572
        %v4574 = vpop.f32.mrf.mxu0
        %v4575 = vadd.f32 %v4502, %v4574
        %4576 = vmatmul.bf16.gmra.mxu0 %v429
        %v4577 = vpop.f32.mrf.mxu0
        %v4578 = vadd.f32 %v4505, %v4577
        %v4579 = vpop.f32.mrf.mxu0
        %v4580 = vadd.f32 %v4507, %v4579
        %4581 = vmatmul.bf16.gmra.mxu0 %v435
        %v4582 = vpop.f32.mrf.mxu0
        %v4583 = vadd.f32 %v4510, %v4582
        %v4584 = vpop.f32.mrf.mxu0
        %v4585 = vadd.f32 %v4512, %v4584
        %4586 = vmatmul.bf16.gmra.mxu0 %v441
        %v4587 = vpop.f32.mrf.mxu0
        %v4588 = vadd.f32 %v4515, %v4587
        %v4589 = vpop.f32.mrf.mxu0
        %v4590 = vadd.f32 %v4517, %v4589
        %4591 = vmatmul.bf16.gmra.mxu0 %v447
        %v4592 = vpop.f32.mrf.mxu0
        %v4593 = vadd.f32 %v4520, %v4592
        %v4594 = vpop.f32.mrf.mxu0
        %v4595 = vadd.f32 %v4522, %v4594
        %4596 = vmatmul.bf16.gmra.mxu0 %v453
        %v4597 = vpop.f32.mrf.mxu0
        %v4598 = vadd.f32 %v4525, %v4597
        %v4599 = vpop.f32.mrf.mxu0
        %v4600 = vadd.f32 %v4527, %v4599
        %4601 = vmatmul.bf16.gmra.mxu0 %v459
        %v4602 = vpop.f32.mrf.mxu0
        %v4603 = vadd.f32 %v4530, %v4602
        %v4604 = vpop.f32.mrf.mxu0
        %v4605 = vadd.f32 %v4532, %v4604
        %4606 = vmatmul.bf16.gmra.mxu0 %v465
        %v4607 = vpop.f32.mrf.mxu0
        %v4608 = vadd.f32 %v4535, %v4607
        %v4609 = vpop.f32.mrf.mxu0
        %v4610 = vadd.f32 %v4537, %v4609
        %4611 = vmatmul.bf16.gmra.mxu0 %v471
        %v4612 = vpop.f32.mrf.mxu0
        %v4613 = vadd.f32 %v4540, %v4612
        %v4614 = vpop.f32.mrf.mxu0
        %4615 = vdwg.mxu0
        %4616 = vmatpush.bf16.msra.mxu0 %v3180
        %4617 = vmatpush.bf16.msra.mxu0 %v3168
        %4618 = vmatpush.bf16.msra.mxu0 %v3156
        %4619 = vmatpush.bf16.msra.mxu0 %v3144
        %4620 = vmatpush.bf16.msra.mxu0 %v3132
        %4621 = vmatpush.bf16.msra.mxu0 %v3120
        %4622 = vmatpush.bf16.msra.mxu0 %v3108
        %4623 = vmatpush.bf16.msra.mxu0 %v3096
        %4624 = vmatmul.bf16.gmra.mxu0 %v400
        %v4625 = vpop.f32.mrf.mxu0
        %v4626 = vadd.f32 %v4553, %v4625
        %v4627 = vpop.f32.mrf.mxu0
        %v4628 = vadd.f32 %v4555, %v4627
        %4629 = vmatmul.bf16.gmra.mxu0 %v406
        %v4630 = vpop.f32.mrf.mxu0
        %v4631 = vadd.f32 %v4558, %v4630
        %v4632 = vpop.f32.mrf.mxu0
        %v4633 = vadd.f32 %v4560, %v4632
        %4634 = vmatmul.bf16.gmra.mxu0 %v412
        %v4635 = vpop.f32.mrf.mxu0
        %v4636 = vadd.f32 %v4563, %v4635
        %v4637 = vpop.f32.mrf.mxu0
        %v4638 = vadd.f32 %v4565, %v4637
        %4639 = vmatmul.bf16.gmra.mxu0 %v418
        %v4640 = vpop.f32.mrf.mxu0
        %v4641 = vadd.f32 %v4568, %v4640
        %v4642 = vpop.f32.mrf.mxu0
        %v4643 = vadd.f32 %v4570, %v4642
        %4644 = vmatmul.bf16.gmra.mxu0 %v424
        %v4645 = vpop.f32.mrf.mxu0
        %v4646 = vadd.f32 %v4573, %v4645
        %v4647 = vpop.f32.mrf.mxu0
        %v4648 = vadd.f32 %v4575, %v4647
        %4649 = vmatmul.bf16.gmra.mxu0 %v430
        %v4650 = vpop.f32.mrf.mxu0
        %v4651 = vadd.f32 %v4578, %v4650
        %v4652 = vpop.f32.mrf.mxu0
        %v4653 = vadd.f32 %v4580, %v4652
        %4654 = vmatmul.bf16.gmra.mxu0 %v436
        %v4655 = vpop.f32.mrf.mxu0
        %v4656 = vadd.f32 %v4583, %v4655
        %v4657 = vpop.f32.mrf.mxu0
        %v4658 = vadd.f32 %v4585, %v4657
        %4659 = vmatmul.bf16.gmra.mxu0 %v442
        %v4660 = vpop.f32.mrf.mxu0
        %v4661 = vadd.f32 %v4588, %v4660
        %v4662 = vpop.f32.mrf.mxu0
        %v4663 = vadd.f32 %v4590, %v4662
        %4664 = vmatmul.bf16.gmra.mxu0 %v448
        %v4665 = vpop.f32.mrf.mxu0
        %v4666 = vadd.f32 %v4593, %v4665
        %v4667 = vpop.f32.mrf.mxu0
        %v4668 = vadd.f32 %v4595, %v4667
        %4669 = vmatmul.bf16.gmra.mxu0 %v454
        %v4670 = vpop.f32.mrf.mxu0
        %v4671 = vadd.f32 %v4598, %v4670
        %v4672 = vpop.f32.mrf.mxu0
        %v4673 = vadd.f32 %v4600, %v4672
        %4674 = vmatmul.bf16.gmra.mxu0 %v460
        %v4675 = vpop.f32.mrf.mxu0
        %v4676 = vadd.f32 %v4603, %v4675
        %v4677 = vpop.f32.mrf.mxu0
        %v4678 = vadd.f32 %v4605, %v4677
        %4679 = vmatmul.bf16.gmra.mxu0 %v466
        %v4680 = vpop.f32.mrf.mxu0
        %v4681 = vadd.f32 %v4608, %v4680
        %v4682 = vpop.f32.mrf.mxu0
        %v4683 = vadd.f32 %v4610, %v4682
        %4684 = vmatmul.bf16.gmra.mxu0 %v472
        %v4685 = vpop.f32.mrf.mxu0
        %v4686 = vadd.f32 %v4613, %v4685
        %v4687 = vpop.f32.mrf.mxu0
        %4688 = vdwg.mxu0
        %4689 = vmatpush.bf16.msra.mxu0 %v3276
        %4690 = vmatpush.bf16.msra.mxu0 %v3264
        %4691 = vmatpush.bf16.msra.mxu0 %v3252
        %4692 = vmatpush.bf16.msra.mxu0 %v3240
        %4693 = vmatpush.bf16.msra.mxu0 %v3228
        %4694 = vmatpush.bf16.msra.mxu0 %v3216
        %4695 = vmatpush.bf16.msra.mxu0 %v3204
        %4696 = vmatpush.bf16.msra.mxu0 %v3192
        %4697 = vmatmul.bf16.gmra.mxu0 %v401
        %v4698 = vpop.f32.mrf.mxu0
        %v4699 = vadd.f32 %v4626, %v4698
        %v4700 = vpop.f32.mrf.mxu0
        %v4701 = vadd.f32 %v4628, %v4700
        %4702 = vmatmul.bf16.gmra.mxu0 %v407
        %v4703 = vpop.f32.mrf.mxu0
        %v4704 = vadd.f32 %v4631, %v4703
        %v4705 = vpop.f32.mrf.mxu0
        %v4706 = vadd.f32 %v4633, %v4705
        %4707 = vmatmul.bf16.gmra.mxu0 %v413
        %v4708 = vpop.f32.mrf.mxu0
        %v4709 = vadd.f32 %v4636, %v4708
        %v4710 = vpop.f32.mrf.mxu0
        %v4711 = vadd.f32 %v4638, %v4710
        %4712 = vmatmul.bf16.gmra.mxu0 %v419
        %v4713 = vpop.f32.mrf.mxu0
        %v4714 = vadd.f32 %v4641, %v4713
        %v4715 = vpop.f32.mrf.mxu0
        %v4716 = vadd.f32 %v4643, %v4715
        %4717 = vmatmul.bf16.gmra.mxu0 %v425
        %v4718 = vpop.f32.mrf.mxu0
        %v4719 = vadd.f32 %v4646, %v4718
        %v4720 = vpop.f32.mrf.mxu0
        %v4721 = vadd.f32 %v4648, %v4720
        %4722 = vmatmul.bf16.gmra.mxu0 %v431
        %v4723 = vpop.f32.mrf.mxu0
        %v4724 = vadd.f32 %v4651, %v4723
        %v4725 = vpop.f32.mrf.mxu0
        %v4726 = vadd.f32 %v4653, %v4725
        %4727 = vmatmul.bf16.gmra.mxu0 %v437
        %v4728 = vpop.f32.mrf.mxu0
        %v4729 = vadd.f32 %v4656, %v4728
        %v4730 = vpop.f32.mrf.mxu0
        %v4731 = vadd.f32 %v4658, %v4730
        %4732 = vmatmul.bf16.gmra.mxu0 %v443
        %v4733 = vpop.f32.mrf.mxu0
        %v4734 = vadd.f32 %v4661, %v4733
        %v4735 = vpop.f32.mrf.mxu0
        %v4736 = vadd.f32 %v4663, %v4735
        %4737 = vmatmul.bf16.gmra.mxu0 %v449
        %v4738 = vpop.f32.mrf.mxu0
        %v4739 = vadd.f32 %v4666, %v4738
        %v4740 = vpop.f32.mrf.mxu0
        %v4741 = vadd.f32 %v4668, %v4740
        %4742 = vmatmul.bf16.gmra.mxu0 %v455
        %v4743 = vpop.f32.mrf.mxu0
        %v4744 = vadd.f32 %v4671, %v4743
        %v4745 = vpop.f32.mrf.mxu0
        %v4746 = vadd.f32 %v4673, %v4745
        %4747 = vmatmul.bf16.gmra.mxu0 %v461
        %v4748 = vpop.f32.mrf.mxu0
        %v4749 = vadd.f32 %v4676, %v4748
        %v4750 = vpop.f32.mrf.mxu0
        %v4751 = vadd.f32 %v4678, %v4750
        %4752 = vmatmul.bf16.gmra.mxu0 %v467
        %v4753 = vpop.f32.mrf.mxu0
        %v4754 = vadd.f32 %v4681, %v4753
        %v4755 = vpop.f32.mrf.mxu0
        %v4756 = vadd.f32 %v4683, %v4755
        %4757 = vmatmul.bf16.gmra.mxu0 %v473
        %v4758 = vpop.f32.mrf.mxu0
        %v4759 = vadd.f32 %v4686, %v4758
        %v4760 = vpop.f32.mrf.mxu0
        %4761 = vdwg.mxu0
        %4762 = vmatpush.bf16.msra.mxu0 %v3372
        %4763 = vmatpush.bf16.msra.mxu0 %v3360
        %4764 = vmatpush.bf16.msra.mxu0 %v3348
        %4765 = vmatpush.bf16.msra.mxu0 %v3336
        %4766 = vmatpush.bf16.msra.mxu0 %v3324
        %4767 = vmatpush.bf16.msra.mxu0 %v3312
        %4768 = vmatpush.bf16.msra.mxu0 %v3300
        %4769 = vmatpush.bf16.msra.mxu0 %v3288
        %4770 = vmatmul.bf16.gmra.mxu0 %v402
        %v4771 = vpop.f32.mrf.mxu0
        %v4772 = vadd.f32 %v4699, %v4771
        %v4773 = vpop.f32.mrf.mxu0
        %v4774 = vadd.f32 %v4701, %v4773
        %4775 = vmatmul.bf16.gmra.mxu0 %v408
        %v4776 = vpop.f32.mrf.mxu0
        %v4777 = vadd.f32 %v4704, %v4776
        %v4778 = vpop.f32.mrf.mxu0
        %v4779 = vadd.f32 %v4706, %v4778
        %4780 = vmatmul.bf16.gmra.mxu0 %v414
        %v4781 = vpop.f32.mrf.mxu0
        %v4782 = vadd.f32 %v4709, %v4781
        %v4783 = vpop.f32.mrf.mxu0
        %v4784 = vadd.f32 %v4711, %v4783
        %4785 = vmatmul.bf16.gmra.mxu0 %v420
        %v4786 = vpop.f32.mrf.mxu0
        %v4787 = vadd.f32 %v4714, %v4786
        %v4788 = vpop.f32.mrf.mxu0
        %v4789 = vadd.f32 %v4716, %v4788
        %4790 = vmatmul.bf16.gmra.mxu0 %v426
        %v4791 = vpop.f32.mrf.mxu0
        %v4792 = vadd.f32 %v4719, %v4791
        %v4793 = vpop.f32.mrf.mxu0
        %v4794 = vadd.f32 %v4721, %v4793
        %4795 = vmatmul.bf16.gmra.mxu0 %v432
        %v4796 = vpop.f32.mrf.mxu0
        %v4797 = vadd.f32 %v4724, %v4796
        %v4798 = vpop.f32.mrf.mxu0
        %v4799 = vadd.f32 %v4726, %v4798
        %4800 = vmatmul.bf16.gmra.mxu0 %v438
        %v4801 = vpop.f32.mrf.mxu0
        %v4802 = vadd.f32 %v4729, %v4801
        %v4803 = vpop.f32.mrf.mxu0
        %v4804 = vadd.f32 %v4731, %v4803
        %4805 = vmatmul.bf16.gmra.mxu0 %v444
        %v4806 = vpop.f32.mrf.mxu0
        %v4807 = vadd.f32 %v4734, %v4806
        %v4808 = vpop.f32.mrf.mxu0
        %v4809 = vadd.f32 %v4736, %v4808
        %4810 = vmatmul.bf16.gmra.mxu0 %v450
        %v4811 = vpop.f32.mrf.mxu0
        %v4812 = vadd.f32 %v4739, %v4811
        %v4813 = vpop.f32.mrf.mxu0
        %v4814 = vadd.f32 %v4741, %v4813
        %4815 = vmatmul.bf16.gmra.mxu0 %v456
        %v4816 = vpop.f32.mrf.mxu0
        %v4817 = vadd.f32 %v4744, %v4816
        %v4818 = vpop.f32.mrf.mxu0
        %v4819 = vadd.f32 %v4746, %v4818
        %4820 = vmatmul.bf16.gmra.mxu0 %v462
        %v4821 = vpop.f32.mrf.mxu0
        %v4822 = vadd.f32 %v4749, %v4821
        %v4823 = vpop.f32.mrf.mxu0
        %v4824 = vadd.f32 %v4751, %v4823
        %4825 = vmatmul.bf16.gmra.mxu0 %v468
        %v4826 = vpop.f32.mrf.mxu0
        %v4827 = vadd.f32 %v4754, %v4826
        %v4828 = vpop.f32.mrf.mxu0
        %v4829 = vadd.f32 %v4756, %v4828
        %4830 = vmatmul.bf16.gmra.mxu0 %v474
        %v4831 = vpop.f32.mrf.mxu0
        %v4832 = vadd.f32 %v4759, %v4831
        %v4833 = vpop.f32.mrf.mxu0
        %4834 = vdwg.mxu0
        %4835 = vmatpush.bf16.msra.mxu0 %v2893
        %4836 = vmatpush.bf16.msra.mxu0 %v2881
        %4837 = vmatpush.bf16.msra.mxu0 %v2869
        %4838 = vmatpush.bf16.msra.mxu0 %v2857
        %4839 = vmatpush.bf16.msra.mxu0 %v2845
        %4840 = vmatpush.bf16.msra.mxu0 %v2833
        %4841 = vmatpush.bf16.msra.mxu0 %v2821
        %4842 = vmatpush.bf16.msra.mxu0 %v2809
        %4843 = vmatmul.bf16.gmra.mxu0 %v397
        %v4844 = vpop.f32.mrf.mxu0
        %v4845 = vadd.f32 %v1057, %v4844
        %v4846 = vpop.f32.mrf.mxu0
        %v4847 = vadd.f32 %v1057, %v4846
        %4848 = vmatmul.bf16.gmra.mxu0 %v403
        %v4849 = vpop.f32.mrf.mxu0
        %v4850 = vadd.f32 %v1057, %v4849
        %v4851 = vpop.f32.mrf.mxu0
        %v4852 = vadd.f32 %v1057, %v4851
        %4853 = vmatmul.bf16.gmra.mxu0 %v409
        %v4854 = vpop.f32.mrf.mxu0
        %v4855 = vadd.f32 %v1057, %v4854
        %v4856 = vpop.f32.mrf.mxu0
        %v4857 = vadd.f32 %v1057, %v4856
        %4858 = vmatmul.bf16.gmra.mxu0 %v415
        %v4859 = vpop.f32.mrf.mxu0
        %v4860 = vadd.f32 %v1057, %v4859
        %v4861 = vpop.f32.mrf.mxu0
        %v4862 = vadd.f32 %v1057, %v4861
        %4863 = vmatmul.bf16.gmra.mxu0 %v421
        %v4864 = vpop.f32.mrf.mxu0
        %v4865 = vadd.f32 %v1057, %v4864
        %v4866 = vpop.f32.mrf.mxu0
        %v4867 = vadd.f32 %v1057, %v4866
        %4868 = vmatmul.bf16.gmra.mxu0 %v427
        %v4869 = vpop.f32.mrf.mxu0
        %v4870 = vadd.f32 %v1057, %v4869
        %v4871 = vpop.f32.mrf.mxu0
        %v4872 = vadd.f32 %v1057, %v4871
        %4873 = vmatmul.bf16.gmra.mxu0 %v433
        %v4874 = vpop.f32.mrf.mxu0
        %v4875 = vadd.f32 %v1057, %v4874
        %v4876 = vpop.f32.mrf.mxu0
        %v4877 = vadd.f32 %v1057, %v4876
        %4878 = vmatmul.bf16.gmra.mxu0 %v439
        %v4879 = vpop.f32.mrf.mxu0
        %v4880 = vadd.f32 %v1057, %v4879
        %v4881 = vpop.f32.mrf.mxu0
        %v4882 = vadd.f32 %v1057, %v4881
        %4883 = vmatmul.bf16.gmra.mxu0 %v445
        %v4884 = vpop.f32.mrf.mxu0
        %v4885 = vadd.f32 %v1057, %v4884
        %v4886 = vpop.f32.mrf.mxu0
        %v4887 = vadd.f32 %v1057, %v4886
        %4888 = vmatmul.bf16.gmra.mxu0 %v451
        %v4889 = vpop.f32.mrf.mxu0
        %v4890 = vadd.f32 %v1057, %v4889
        %v4891 = vpop.f32.mrf.mxu0
        %v4892 = vadd.f32 %v1057, %v4891
        %4893 = vmatmul.bf16.gmra.mxu0 %v457
        %v4894 = vpop.f32.mrf.mxu0
        %v4895 = vadd.f32 %v1057, %v4894
        %v4896 = vpop.f32.mrf.mxu0
        %v4897 = vadd.f32 %v1057, %v4896
        %4898 = vmatmul.bf16.gmra.mxu0 %v463
        %v4899 = vpop.f32.mrf.mxu0
        %v4900 = vadd.f32 %v1057, %v4899
        %v4901 = vpop.f32.mrf.mxu0
        %v4902 = vadd.f32 %v1057, %v4901
        %4903 = vmatmul.bf16.gmra.mxu0 %v469
        %v4904 = vpop.f32.mrf.mxu0
        %v4905 = vadd.f32 %v1057, %v4904
        %v4906 = vpop.f32.mrf.mxu0
        %4907 = vdwg.mxu0
        %4908 = vmatpush.bf16.msra.mxu0 %v2989
        %4909 = vmatpush.bf16.msra.mxu0 %v2977
        %4910 = vmatpush.bf16.msra.mxu0 %v2965
        %4911 = vmatpush.bf16.msra.mxu0 %v2953
        %4912 = vmatpush.bf16.msra.mxu0 %v2941
        %4913 = vmatpush.bf16.msra.mxu0 %v2929
        %4914 = vmatpush.bf16.msra.mxu0 %v2917
        %4915 = vmatpush.bf16.msra.mxu0 %v2905
        %4916 = vmatmul.bf16.gmra.mxu0 %v398
        %v4917 = vpop.f32.mrf.mxu0
        %v4918 = vadd.f32 %v4845, %v4917
        %v4919 = vpop.f32.mrf.mxu0
        %v4920 = vadd.f32 %v4847, %v4919
        %4921 = vmatmul.bf16.gmra.mxu0 %v404
        %v4922 = vpop.f32.mrf.mxu0
        %v4923 = vadd.f32 %v4850, %v4922
        %v4924 = vpop.f32.mrf.mxu0
        %v4925 = vadd.f32 %v4852, %v4924
        %4926 = vmatmul.bf16.gmra.mxu0 %v410
        %v4927 = vpop.f32.mrf.mxu0
        %v4928 = vadd.f32 %v4855, %v4927
        %v4929 = vpop.f32.mrf.mxu0
        %v4930 = vadd.f32 %v4857, %v4929
        %4931 = vmatmul.bf16.gmra.mxu0 %v416
        %v4932 = vpop.f32.mrf.mxu0
        %v4933 = vadd.f32 %v4860, %v4932
        %v4934 = vpop.f32.mrf.mxu0
        %v4935 = vadd.f32 %v4862, %v4934
        %4936 = vmatmul.bf16.gmra.mxu0 %v422
        %v4937 = vpop.f32.mrf.mxu0
        %v4938 = vadd.f32 %v4865, %v4937
        %v4939 = vpop.f32.mrf.mxu0
        %v4940 = vadd.f32 %v4867, %v4939
        %4941 = vmatmul.bf16.gmra.mxu0 %v428
        %v4942 = vpop.f32.mrf.mxu0
        %v4943 = vadd.f32 %v4870, %v4942
        %v4944 = vpop.f32.mrf.mxu0
        %v4945 = vadd.f32 %v4872, %v4944
        %4946 = vmatmul.bf16.gmra.mxu0 %v434
        %v4947 = vpop.f32.mrf.mxu0
        %v4948 = vadd.f32 %v4875, %v4947
        %v4949 = vpop.f32.mrf.mxu0
        %v4950 = vadd.f32 %v4877, %v4949
        %4951 = vmatmul.bf16.gmra.mxu0 %v440
        %v4952 = vpop.f32.mrf.mxu0
        %v4953 = vadd.f32 %v4880, %v4952
        %v4954 = vpop.f32.mrf.mxu0
        %v4955 = vadd.f32 %v4882, %v4954
        %4956 = vmatmul.bf16.gmra.mxu0 %v446
        %v4957 = vpop.f32.mrf.mxu0
        %v4958 = vadd.f32 %v4885, %v4957
        %v4959 = vpop.f32.mrf.mxu0
        %v4960 = vadd.f32 %v4887, %v4959
        %4961 = vmatmul.bf16.gmra.mxu0 %v452
        %v4962 = vpop.f32.mrf.mxu0
        %v4963 = vadd.f32 %v4890, %v4962
        %v4964 = vpop.f32.mrf.mxu0
        %v4965 = vadd.f32 %v4892, %v4964
        %4966 = vmatmul.bf16.gmra.mxu0 %v458
        %v4967 = vpop.f32.mrf.mxu0
        %v4968 = vadd.f32 %v4895, %v4967
        %v4969 = vpop.f32.mrf.mxu0
        %v4970 = vadd.f32 %v4897, %v4969
        %4971 = vmatmul.bf16.gmra.mxu0 %v464
        %v4972 = vpop.f32.mrf.mxu0
        %v4973 = vadd.f32 %v4900, %v4972
        %v4974 = vpop.f32.mrf.mxu0
        %v4975 = vadd.f32 %v4902, %v4974
        %4976 = vmatmul.bf16.gmra.mxu0 %v470
        %v4977 = vpop.f32.mrf.mxu0
        %v4978 = vadd.f32 %v4905, %v4977
        %v4979 = vpop.f32.mrf.mxu0
        %4980 = vdwg.mxu0
        %4981 = vmatpush.bf16.msra.mxu0 %v3085
        %4982 = vmatpush.bf16.msra.mxu0 %v3073
        %4983 = vmatpush.bf16.msra.mxu0 %v3061
        %4984 = vmatpush.bf16.msra.mxu0 %v3049
        %4985 = vmatpush.bf16.msra.mxu0 %v3037
        %4986 = vmatpush.bf16.msra.mxu0 %v3025
        %4987 = vmatpush.bf16.msra.mxu0 %v3013
        %4988 = vmatpush.bf16.msra.mxu0 %v3001
        %4989 = vmatmul.bf16.gmra.mxu0 %v399
        %v4990 = vpop.f32.mrf.mxu0
        %v4991 = vadd.f32 %v4918, %v4990
        %v4992 = vpop.f32.mrf.mxu0
        %v4993 = vadd.f32 %v4920, %v4992
        %4994 = vmatmul.bf16.gmra.mxu0 %v405
        %v4995 = vpop.f32.mrf.mxu0
        %v4996 = vadd.f32 %v4923, %v4995
        %v4997 = vpop.f32.mrf.mxu0
        %v4998 = vadd.f32 %v4925, %v4997
        %4999 = vmatmul.bf16.gmra.mxu0 %v411
        %v5000 = vpop.f32.mrf.mxu0
        %v5001 = vadd.f32 %v4928, %v5000
        %v5002 = vpop.f32.mrf.mxu0
        %v5003 = vadd.f32 %v4930, %v5002
        %5004 = vmatmul.bf16.gmra.mxu0 %v417
        %v5005 = vpop.f32.mrf.mxu0
        %v5006 = vadd.f32 %v4933, %v5005
        %v5007 = vpop.f32.mrf.mxu0
        %v5008 = vadd.f32 %v4935, %v5007
        %5009 = vmatmul.bf16.gmra.mxu0 %v423
        %v5010 = vpop.f32.mrf.mxu0
        %v5011 = vadd.f32 %v4938, %v5010
        %v5012 = vpop.f32.mrf.mxu0
        %v5013 = vadd.f32 %v4940, %v5012
        %5014 = vmatmul.bf16.gmra.mxu0 %v429
        %v5015 = vpop.f32.mrf.mxu0
        %v5016 = vadd.f32 %v4943, %v5015
        %v5017 = vpop.f32.mrf.mxu0
        %v5018 = vadd.f32 %v4945, %v5017
        %5019 = vmatmul.bf16.gmra.mxu0 %v435
        %v5020 = vpop.f32.mrf.mxu0
        %v5021 = vadd.f32 %v4948, %v5020
        %v5022 = vpop.f32.mrf.mxu0
        %v5023 = vadd.f32 %v4950, %v5022
        %5024 = vmatmul.bf16.gmra.mxu0 %v441
        %v5025 = vpop.f32.mrf.mxu0
        %v5026 = vadd.f32 %v4953, %v5025
        %v5027 = vpop.f32.mrf.mxu0
        %v5028 = vadd.f32 %v4955, %v5027
        %5029 = vmatmul.bf16.gmra.mxu0 %v447
        %v5030 = vpop.f32.mrf.mxu0
        %v5031 = vadd.f32 %v4958, %v5030
        %v5032 = vpop.f32.mrf.mxu0
        %v5033 = vadd.f32 %v4960, %v5032
        %5034 = vmatmul.bf16.gmra.mxu0 %v453
        %v5035 = vpop.f32.mrf.mxu0
        %v5036 = vadd.f32 %v4963, %v5035
        %v5037 = vpop.f32.mrf.mxu0
        %v5038 = vadd.f32 %v4965, %v5037
        %5039 = vmatmul.bf16.gmra.mxu0 %v459
        %v5040 = vpop.f32.mrf.mxu0
        %v5041 = vadd.f32 %v4968, %v5040
        %v5042 = vpop.f32.mrf.mxu0
        %v5043 = vadd.f32 %v4970, %v5042
        %5044 = vmatmul.bf16.gmra.mxu0 %v465
        %v5045 = vpop.f32.mrf.mxu0
        %v5046 = vadd.f32 %v4973, %v5045
        %v5047 = vpop.f32.mrf.mxu0
        %v5048 = vadd.f32 %v4975, %v5047
        %5049 = vmatmul.bf16.gmra.mxu0 %v471
        %v5050 = vpop.f32.mrf.mxu0
        %v5051 = vadd.f32 %v4978, %v5050
        %v5052 = vpop.f32.mrf.mxu0
        %5053 = vdwg.mxu0
        %5054 = vmatpush.bf16.msra.mxu0 %v3181
        %5055 = vmatpush.bf16.msra.mxu0 %v3169
        %5056 = vmatpush.bf16.msra.mxu0 %v3157
        %5057 = vmatpush.bf16.msra.mxu0 %v3145
        %5058 = vmatpush.bf16.msra.mxu0 %v3133
        %5059 = vmatpush.bf16.msra.mxu0 %v3121
        %5060 = vmatpush.bf16.msra.mxu0 %v3109
        %5061 = vmatpush.bf16.msra.mxu0 %v3097
        %5062 = vmatmul.bf16.gmra.mxu0 %v400
        %v5063 = vpop.f32.mrf.mxu0
        %v5064 = vadd.f32 %v4991, %v5063
        %v5065 = vpop.f32.mrf.mxu0
        %v5066 = vadd.f32 %v4993, %v5065
        %5067 = vmatmul.bf16.gmra.mxu0 %v406
        %v5068 = vpop.f32.mrf.mxu0
        %v5069 = vadd.f32 %v4996, %v5068
        %v5070 = vpop.f32.mrf.mxu0
        %v5071 = vadd.f32 %v4998, %v5070
        %5072 = vmatmul.bf16.gmra.mxu0 %v412
        %v5073 = vpop.f32.mrf.mxu0
        %v5074 = vadd.f32 %v5001, %v5073
        %v5075 = vpop.f32.mrf.mxu0
        %v5076 = vadd.f32 %v5003, %v5075
        %5077 = vmatmul.bf16.gmra.mxu0 %v418
        %v5078 = vpop.f32.mrf.mxu0
        %v5079 = vadd.f32 %v5006, %v5078
        %v5080 = vpop.f32.mrf.mxu0
        %v5081 = vadd.f32 %v5008, %v5080
        %5082 = vmatmul.bf16.gmra.mxu0 %v424
        %v5083 = vpop.f32.mrf.mxu0
        %v5084 = vadd.f32 %v5011, %v5083
        %v5085 = vpop.f32.mrf.mxu0
        %v5086 = vadd.f32 %v5013, %v5085
        %5087 = vmatmul.bf16.gmra.mxu0 %v430
        %v5088 = vpop.f32.mrf.mxu0
        %v5089 = vadd.f32 %v5016, %v5088
        %v5090 = vpop.f32.mrf.mxu0
        %v5091 = vadd.f32 %v5018, %v5090
        %5092 = vmatmul.bf16.gmra.mxu0 %v436
        %v5093 = vpop.f32.mrf.mxu0
        %v5094 = vadd.f32 %v5021, %v5093
        %v5095 = vpop.f32.mrf.mxu0
        %v5096 = vadd.f32 %v5023, %v5095
        %5097 = vmatmul.bf16.gmra.mxu0 %v442
        %v5098 = vpop.f32.mrf.mxu0
        %v5099 = vadd.f32 %v5026, %v5098
        %v5100 = vpop.f32.mrf.mxu0
        %v5101 = vadd.f32 %v5028, %v5100
        %5102 = vmatmul.bf16.gmra.mxu0 %v448
        %v5103 = vpop.f32.mrf.mxu0
        %v5104 = vadd.f32 %v5031, %v5103
        %v5105 = vpop.f32.mrf.mxu0
        %v5106 = vadd.f32 %v5033, %v5105
        %5107 = vmatmul.bf16.gmra.mxu0 %v454
        %v5108 = vpop.f32.mrf.mxu0
        %v5109 = vadd.f32 %v5036, %v5108
        %v5110 = vpop.f32.mrf.mxu0
        %v5111 = vadd.f32 %v5038, %v5110
        %5112 = vmatmul.bf16.gmra.mxu0 %v460
        %v5113 = vpop.f32.mrf.mxu0
        %v5114 = vadd.f32 %v5041, %v5113
        %v5115 = vpop.f32.mrf.mxu0
        %v5116 = vadd.f32 %v5043, %v5115
        %5117 = vmatmul.bf16.gmra.mxu0 %v466
        %v5118 = vpop.f32.mrf.mxu0
        %v5119 = vadd.f32 %v5046, %v5118
        %v5120 = vpop.f32.mrf.mxu0
        %v5121 = vadd.f32 %v5048, %v5120
        %5122 = vmatmul.bf16.gmra.mxu0 %v472
        %v5123 = vpop.f32.mrf.mxu0
        %v5124 = vadd.f32 %v5051, %v5123
        %v5125 = vpop.f32.mrf.mxu0
        %5126 = vdwg.mxu0
        %5127 = vmatpush.bf16.msra.mxu0 %v3277
        %5128 = vmatpush.bf16.msra.mxu0 %v3265
        %5129 = vmatpush.bf16.msra.mxu0 %v3253
        %5130 = vmatpush.bf16.msra.mxu0 %v3241
        %5131 = vmatpush.bf16.msra.mxu0 %v3229
        %5132 = vmatpush.bf16.msra.mxu0 %v3217
        %5133 = vmatpush.bf16.msra.mxu0 %v3205
        %5134 = vmatpush.bf16.msra.mxu0 %v3193
        %5135 = vmatmul.bf16.gmra.mxu0 %v401
        %v5136 = vpop.f32.mrf.mxu0
        %v5137 = vadd.f32 %v5064, %v5136
        %v5138 = vpop.f32.mrf.mxu0
        %v5139 = vadd.f32 %v5066, %v5138
        %5140 = vmatmul.bf16.gmra.mxu0 %v407
        %v5141 = vpop.f32.mrf.mxu0
        %v5142 = vadd.f32 %v5069, %v5141
        %v5143 = vpop.f32.mrf.mxu0
        %v5144 = vadd.f32 %v5071, %v5143
        %5145 = vmatmul.bf16.gmra.mxu0 %v413
        %v5146 = vpop.f32.mrf.mxu0
        %v5147 = vadd.f32 %v5074, %v5146
        %v5148 = vpop.f32.mrf.mxu0
        %v5149 = vadd.f32 %v5076, %v5148
        %5150 = vmatmul.bf16.gmra.mxu0 %v419
        %v5151 = vpop.f32.mrf.mxu0
        %v5152 = vadd.f32 %v5079, %v5151
        %v5153 = vpop.f32.mrf.mxu0
        %v5154 = vadd.f32 %v5081, %v5153
        %5155 = vmatmul.bf16.gmra.mxu0 %v425
        %v5156 = vpop.f32.mrf.mxu0
        %v5157 = vadd.f32 %v5084, %v5156
        %v5158 = vpop.f32.mrf.mxu0
        %v5159 = vadd.f32 %v5086, %v5158
        %5160 = vmatmul.bf16.gmra.mxu0 %v431
        %v5161 = vpop.f32.mrf.mxu0
        %v5162 = vadd.f32 %v5089, %v5161
        %v5163 = vpop.f32.mrf.mxu0
        %v5164 = vadd.f32 %v5091, %v5163
        %5165 = vmatmul.bf16.gmra.mxu0 %v437
        %v5166 = vpop.f32.mrf.mxu0
        %v5167 = vadd.f32 %v5094, %v5166
        %v5168 = vpop.f32.mrf.mxu0
        %v5169 = vadd.f32 %v5096, %v5168
        %5170 = vmatmul.bf16.gmra.mxu0 %v443
        %v5171 = vpop.f32.mrf.mxu0
        %v5172 = vadd.f32 %v5099, %v5171
        %v5173 = vpop.f32.mrf.mxu0
        %v5174 = vadd.f32 %v5101, %v5173
        %5175 = vmatmul.bf16.gmra.mxu0 %v449
        %v5176 = vpop.f32.mrf.mxu0
        %v5177 = vadd.f32 %v5104, %v5176
        %v5178 = vpop.f32.mrf.mxu0
        %v5179 = vadd.f32 %v5106, %v5178
        %5180 = vmatmul.bf16.gmra.mxu0 %v455
        %v5181 = vpop.f32.mrf.mxu0
        %v5182 = vadd.f32 %v5109, %v5181
        %v5183 = vpop.f32.mrf.mxu0
        %v5184 = vadd.f32 %v5111, %v5183
        %5185 = vmatmul.bf16.gmra.mxu0 %v461
        %v5186 = vpop.f32.mrf.mxu0
        %v5187 = vadd.f32 %v5114, %v5186
        %v5188 = vpop.f32.mrf.mxu0
        %v5189 = vadd.f32 %v5116, %v5188
        %5190 = vmatmul.bf16.gmra.mxu0 %v467
        %v5191 = vpop.f32.mrf.mxu0
        %v5192 = vadd.f32 %v5119, %v5191
        %v5193 = vpop.f32.mrf.mxu0
        %v5194 = vadd.f32 %v5121, %v5193
        %5195 = vmatmul.bf16.gmra.mxu0 %v473
        %v5196 = vpop.f32.mrf.mxu0
        %v5197 = vadd.f32 %v5124, %v5196
        %v5198 = vpop.f32.mrf.mxu0
        %5199 = vdwg.mxu0
        %5200 = vmatpush.bf16.msra.mxu0 %v3373
        %5201 = vmatpush.bf16.msra.mxu0 %v3361
        %5202 = vmatpush.bf16.msra.mxu0 %v3349
        %5203 = vmatpush.bf16.msra.mxu0 %v3337
        %5204 = vmatpush.bf16.msra.mxu0 %v3325
        %5205 = vmatpush.bf16.msra.mxu0 %v3313
        %5206 = vmatpush.bf16.msra.mxu0 %v3301
        %5207 = vmatpush.bf16.msra.mxu0 %v3289
        %5208 = vmatmul.bf16.gmra.mxu0 %v402
        %v5209 = vpop.f32.mrf.mxu0
        %v5210 = vadd.f32 %v5137, %v5209
        %v5211 = vpop.f32.mrf.mxu0
        %v5212 = vadd.f32 %v5139, %v5211
        %5213 = vmatmul.bf16.gmra.mxu0 %v408
        %v5214 = vpop.f32.mrf.mxu0
        %v5215 = vadd.f32 %v5142, %v5214
        %v5216 = vpop.f32.mrf.mxu0
        %v5217 = vadd.f32 %v5144, %v5216
        %5218 = vmatmul.bf16.gmra.mxu0 %v414
        %v5219 = vpop.f32.mrf.mxu0
        %v5220 = vadd.f32 %v5147, %v5219
        %v5221 = vpop.f32.mrf.mxu0
        %v5222 = vadd.f32 %v5149, %v5221
        %5223 = vmatmul.bf16.gmra.mxu0 %v420
        %v5224 = vpop.f32.mrf.mxu0
        %v5225 = vadd.f32 %v5152, %v5224
        %v5226 = vpop.f32.mrf.mxu0
        %v5227 = vadd.f32 %v5154, %v5226
        %5228 = vmatmul.bf16.gmra.mxu0 %v426
        %v5229 = vpop.f32.mrf.mxu0
        %v5230 = vadd.f32 %v5157, %v5229
        %v5231 = vpop.f32.mrf.mxu0
        %v5232 = vadd.f32 %v5159, %v5231
        %5233 = vmatmul.bf16.gmra.mxu0 %v432
        %v5234 = vpop.f32.mrf.mxu0
        %v5235 = vadd.f32 %v5162, %v5234
        %v5236 = vpop.f32.mrf.mxu0
        %v5237 = vadd.f32 %v5164, %v5236
        %5238 = vmatmul.bf16.gmra.mxu0 %v438
        %v5239 = vpop.f32.mrf.mxu0
        %v5240 = vadd.f32 %v5167, %v5239
        %v5241 = vpop.f32.mrf.mxu0
        %v5242 = vadd.f32 %v5169, %v5241
        %5243 = vmatmul.bf16.gmra.mxu0 %v444
        %v5244 = vpop.f32.mrf.mxu0
        %v5245 = vadd.f32 %v5172, %v5244
        %v5246 = vpop.f32.mrf.mxu0
        %v5247 = vadd.f32 %v5174, %v5246
        %5248 = vmatmul.bf16.gmra.mxu0 %v450
        %v5249 = vpop.f32.mrf.mxu0
        %v5250 = vadd.f32 %v5177, %v5249
        %v5251 = vpop.f32.mrf.mxu0
        %v5252 = vadd.f32 %v5179, %v5251
        %5253 = vmatmul.bf16.gmra.mxu0 %v456
        %v5254 = vpop.f32.mrf.mxu0
        %v5255 = vadd.f32 %v5182, %v5254
        %v5256 = vpop.f32.mrf.mxu0
        %v5257 = vadd.f32 %v5184, %v5256
        %5258 = vmatmul.bf16.gmra.mxu0 %v462
        %v5259 = vpop.f32.mrf.mxu0
        %v5260 = vadd.f32 %v5187, %v5259
        %v5261 = vpop.f32.mrf.mxu0
        %v5262 = vadd.f32 %v5189, %v5261
        %5263 = vmatmul.bf16.gmra.mxu0 %v468
        %v5264 = vpop.f32.mrf.mxu0
        %v5265 = vadd.f32 %v5192, %v5264
        %v5266 = vpop.f32.mrf.mxu0
        %v5267 = vadd.f32 %v5194, %v5266
        %5268 = vmatmul.bf16.gmra.mxu0 %v474
        %v5269 = vpop.f32.mrf.mxu0
        %v5270 = vadd.f32 %v5197, %v5269
        %v5271 = vpop.f32.mrf.mxu0
        %5272 = vdwg.mxu0
        %5273 = vmatpush.bf16.msra.mxu0 %v2894
        %5274 = vmatpush.bf16.msra.mxu0 %v2882
        %5275 = vmatpush.bf16.msra.mxu0 %v2870
        %5276 = vmatpush.bf16.msra.mxu0 %v2858
        %5277 = vmatpush.bf16.msra.mxu0 %v2846
        %5278 = vmatpush.bf16.msra.mxu0 %v2834
        %5279 = vmatpush.bf16.msra.mxu0 %v2822
        %5280 = vmatpush.bf16.msra.mxu0 %v2810
        %5281 = vmatmul.bf16.gmra.mxu0 %v397
        %v5282 = vpop.f32.mrf.mxu0
        %v5283 = vadd.f32 %v1058, %v5282
        %v5284 = vpop.f32.mrf.mxu0
        %v5285 = vadd.f32 %v1058, %v5284
        %5286 = vmatmul.bf16.gmra.mxu0 %v403
        %v5287 = vpop.f32.mrf.mxu0
        %v5288 = vadd.f32 %v1058, %v5287
        %v5289 = vpop.f32.mrf.mxu0
        %v5290 = vadd.f32 %v1058, %v5289
        %5291 = vmatmul.bf16.gmra.mxu0 %v409
        %v5292 = vpop.f32.mrf.mxu0
        %v5293 = vadd.f32 %v1058, %v5292
        %v5294 = vpop.f32.mrf.mxu0
        %v5295 = vadd.f32 %v1058, %v5294
        %5296 = vmatmul.bf16.gmra.mxu0 %v415
        %v5297 = vpop.f32.mrf.mxu0
        %v5298 = vadd.f32 %v1058, %v5297
        %v5299 = vpop.f32.mrf.mxu0
        %v5300 = vadd.f32 %v1058, %v5299
        %5301 = vmatmul.bf16.gmra.mxu0 %v421
        %v5302 = vpop.f32.mrf.mxu0
        %v5303 = vadd.f32 %v1058, %v5302
        %v5304 = vpop.f32.mrf.mxu0
        %v5305 = vadd.f32 %v1058, %v5304
        %5306 = vmatmul.bf16.gmra.mxu0 %v427
        %v5307 = vpop.f32.mrf.mxu0
        %v5308 = vadd.f32 %v1058, %v5307
        %v5309 = vpop.f32.mrf.mxu0
        %v5310 = vadd.f32 %v1058, %v5309
        %5311 = vmatmul.bf16.gmra.mxu0 %v433
        %v5312 = vpop.f32.mrf.mxu0
        %v5313 = vadd.f32 %v1058, %v5312
        %v5314 = vpop.f32.mrf.mxu0
        %v5315 = vadd.f32 %v1058, %v5314
        %5316 = vmatmul.bf16.gmra.mxu0 %v439
        %v5317 = vpop.f32.mrf.mxu0
        %v5318 = vadd.f32 %v1058, %v5317
        %v5319 = vpop.f32.mrf.mxu0
        %v5320 = vadd.f32 %v1058, %v5319
        %5321 = vmatmul.bf16.gmra.mxu0 %v445
        %v5322 = vpop.f32.mrf.mxu0
        %v5323 = vadd.f32 %v1058, %v5322
        %v5324 = vpop.f32.mrf.mxu0
        %v5325 = vadd.f32 %v1058, %v5324
        %5326 = vmatmul.bf16.gmra.mxu0 %v451
        %v5327 = vpop.f32.mrf.mxu0
        %v5328 = vadd.f32 %v1058, %v5327
        %v5329 = vpop.f32.mrf.mxu0
        %v5330 = vadd.f32 %v1058, %v5329
        %5331 = vmatmul.bf16.gmra.mxu0 %v457
        %v5332 = vpop.f32.mrf.mxu0
        %v5333 = vadd.f32 %v1058, %v5332
        %v5334 = vpop.f32.mrf.mxu0
        %v5335 = vadd.f32 %v1058, %v5334
        %5336 = vmatmul.bf16.gmra.mxu0 %v463
        %v5337 = vpop.f32.mrf.mxu0
        %v5338 = vadd.f32 %v1058, %v5337
        %v5339 = vpop.f32.mrf.mxu0
        %v5340 = vadd.f32 %v1058, %v5339
        %5341 = vmatmul.bf16.gmra.mxu0 %v469
        %v5342 = vpop.f32.mrf.mxu0
        %v5343 = vadd.f32 %v1058, %v5342
        %v5344 = vpop.f32.mrf.mxu0
        %5345 = vdwg.mxu0
        %5346 = vmatpush.bf16.msra.mxu0 %v2990
        %5347 = vmatpush.bf16.msra.mxu0 %v2978
        %5348 = vmatpush.bf16.msra.mxu0 %v2966
        %5349 = vmatpush.bf16.msra.mxu0 %v2954
        %5350 = vmatpush.bf16.msra.mxu0 %v2942
        %5351 = vmatpush.bf16.msra.mxu0 %v2930
        %5352 = vmatpush.bf16.msra.mxu0 %v2918
        %5353 = vmatpush.bf16.msra.mxu0 %v2906
        %5354 = vmatmul.bf16.gmra.mxu0 %v398
        %v5355 = vpop.f32.mrf.mxu0
        %v5356 = vadd.f32 %v5283, %v5355
        %v5357 = vpop.f32.mrf.mxu0
        %v5358 = vadd.f32 %v5285, %v5357
        %5359 = vmatmul.bf16.gmra.mxu0 %v404
        %v5360 = vpop.f32.mrf.mxu0
        %v5361 = vadd.f32 %v5288, %v5360
        %v5362 = vpop.f32.mrf.mxu0
        %v5363 = vadd.f32 %v5290, %v5362
        %5364 = vmatmul.bf16.gmra.mxu0 %v410
        %v5365 = vpop.f32.mrf.mxu0
        %v5366 = vadd.f32 %v5293, %v5365
        %v5367 = vpop.f32.mrf.mxu0
        %v5368 = vadd.f32 %v5295, %v5367
        %5369 = vmatmul.bf16.gmra.mxu0 %v416
        %v5370 = vpop.f32.mrf.mxu0
        %v5371 = vadd.f32 %v5298, %v5370
        %v5372 = vpop.f32.mrf.mxu0
        %v5373 = vadd.f32 %v5300, %v5372
        %5374 = vmatmul.bf16.gmra.mxu0 %v422
        %v5375 = vpop.f32.mrf.mxu0
        %v5376 = vadd.f32 %v5303, %v5375
        %v5377 = vpop.f32.mrf.mxu0
        %v5378 = vadd.f32 %v5305, %v5377
        %5379 = vmatmul.bf16.gmra.mxu0 %v428
        %v5380 = vpop.f32.mrf.mxu0
        %v5381 = vadd.f32 %v5308, %v5380
        %v5382 = vpop.f32.mrf.mxu0
        %v5383 = vadd.f32 %v5310, %v5382
        %5384 = vmatmul.bf16.gmra.mxu0 %v434
        %v5385 = vpop.f32.mrf.mxu0
        %v5386 = vadd.f32 %v5313, %v5385
        %v5387 = vpop.f32.mrf.mxu0
        %v5388 = vadd.f32 %v5315, %v5387
        %5389 = vmatmul.bf16.gmra.mxu0 %v440
        %v5390 = vpop.f32.mrf.mxu0
        %v5391 = vadd.f32 %v5318, %v5390
        %v5392 = vpop.f32.mrf.mxu0
        %v5393 = vadd.f32 %v5320, %v5392
        %5394 = vmatmul.bf16.gmra.mxu0 %v446
        %v5395 = vpop.f32.mrf.mxu0
        %v5396 = vadd.f32 %v5323, %v5395
        %v5397 = vpop.f32.mrf.mxu0
        %v5398 = vadd.f32 %v5325, %v5397
        %5399 = vmatmul.bf16.gmra.mxu0 %v452
        %v5400 = vpop.f32.mrf.mxu0
        %v5401 = vadd.f32 %v5328, %v5400
        %v5402 = vpop.f32.mrf.mxu0
        %v5403 = vadd.f32 %v5330, %v5402
        %5404 = vmatmul.bf16.gmra.mxu0 %v458
        %v5405 = vpop.f32.mrf.mxu0
        %v5406 = vadd.f32 %v5333, %v5405
        %v5407 = vpop.f32.mrf.mxu0
        %v5408 = vadd.f32 %v5335, %v5407
        %5409 = vmatmul.bf16.gmra.mxu0 %v464
        %v5410 = vpop.f32.mrf.mxu0
        %v5411 = vadd.f32 %v5338, %v5410
        %v5412 = vpop.f32.mrf.mxu0
        %v5413 = vadd.f32 %v5340, %v5412
        %5414 = vmatmul.bf16.gmra.mxu0 %v470
        %v5415 = vpop.f32.mrf.mxu0
        %v5416 = vadd.f32 %v5343, %v5415
        %v5417 = vpop.f32.mrf.mxu0
        %5418 = vdwg.mxu0
        %5419 = vmatpush.bf16.msra.mxu0 %v3086
        %5420 = vmatpush.bf16.msra.mxu0 %v3074
        %5421 = vmatpush.bf16.msra.mxu0 %v3062
        %5422 = vmatpush.bf16.msra.mxu0 %v3050
        %5423 = vmatpush.bf16.msra.mxu0 %v3038
        %5424 = vmatpush.bf16.msra.mxu0 %v3026
        %5425 = vmatpush.bf16.msra.mxu0 %v3014
        %5426 = vmatpush.bf16.msra.mxu0 %v3002
        %5427 = vmatmul.bf16.gmra.mxu0 %v399
        %v5428 = vpop.f32.mrf.mxu0
        %v5429 = vadd.f32 %v5356, %v5428
        %v5430 = vpop.f32.mrf.mxu0
        %v5431 = vadd.f32 %v5358, %v5430
        %5432 = vmatmul.bf16.gmra.mxu0 %v405
        %v5433 = vpop.f32.mrf.mxu0
        %v5434 = vadd.f32 %v5361, %v5433
        %v5435 = vpop.f32.mrf.mxu0
        %v5436 = vadd.f32 %v5363, %v5435
        %5437 = vmatmul.bf16.gmra.mxu0 %v411
        %v5438 = vpop.f32.mrf.mxu0
        %v5439 = vadd.f32 %v5366, %v5438
        %v5440 = vpop.f32.mrf.mxu0
        %v5441 = vadd.f32 %v5368, %v5440
        %5442 = vmatmul.bf16.gmra.mxu0 %v417
        %v5443 = vpop.f32.mrf.mxu0
        %v5444 = vadd.f32 %v5371, %v5443
        %v5445 = vpop.f32.mrf.mxu0
        %v5446 = vadd.f32 %v5373, %v5445
        %5447 = vmatmul.bf16.gmra.mxu0 %v423
        %v5448 = vpop.f32.mrf.mxu0
        %v5449 = vadd.f32 %v5376, %v5448
        %v5450 = vpop.f32.mrf.mxu0
        %v5451 = vadd.f32 %v5378, %v5450
        %5452 = vmatmul.bf16.gmra.mxu0 %v429
        %v5453 = vpop.f32.mrf.mxu0
        %v5454 = vadd.f32 %v5381, %v5453
        %v5455 = vpop.f32.mrf.mxu0
        %v5456 = vadd.f32 %v5383, %v5455
        %5457 = vmatmul.bf16.gmra.mxu0 %v435
        %v5458 = vpop.f32.mrf.mxu0
        %v5459 = vadd.f32 %v5386, %v5458
        %v5460 = vpop.f32.mrf.mxu0
        %v5461 = vadd.f32 %v5388, %v5460
        %5462 = vmatmul.bf16.gmra.mxu0 %v441
        %v5463 = vpop.f32.mrf.mxu0
        %v5464 = vadd.f32 %v5391, %v5463
        %v5465 = vpop.f32.mrf.mxu0
        %v5466 = vadd.f32 %v5393, %v5465
        %5467 = vmatmul.bf16.gmra.mxu0 %v447
        %v5468 = vpop.f32.mrf.mxu0
        %v5469 = vadd.f32 %v5396, %v5468
        %v5470 = vpop.f32.mrf.mxu0
        %v5471 = vadd.f32 %v5398, %v5470
        %5472 = vmatmul.bf16.gmra.mxu0 %v453
        %v5473 = vpop.f32.mrf.mxu0
        %v5474 = vadd.f32 %v5401, %v5473
        %v5475 = vpop.f32.mrf.mxu0
        %v5476 = vadd.f32 %v5403, %v5475
        %5477 = vmatmul.bf16.gmra.mxu0 %v459
        %v5478 = vpop.f32.mrf.mxu0
        %v5479 = vadd.f32 %v5406, %v5478
        %v5480 = vpop.f32.mrf.mxu0
        %v5481 = vadd.f32 %v5408, %v5480
        %5482 = vmatmul.bf16.gmra.mxu0 %v465
        %v5483 = vpop.f32.mrf.mxu0
        %v5484 = vadd.f32 %v5411, %v5483
        %v5485 = vpop.f32.mrf.mxu0
        %v5486 = vadd.f32 %v5413, %v5485
        %5487 = vmatmul.bf16.gmra.mxu0 %v471
        %v5488 = vpop.f32.mrf.mxu0
        %v5489 = vadd.f32 %v5416, %v5488
        %v5490 = vpop.f32.mrf.mxu0
        %5491 = vdwg.mxu0
        %5492 = vmatpush.bf16.msra.mxu0 %v3182
        %5493 = vmatpush.bf16.msra.mxu0 %v3170
        %5494 = vmatpush.bf16.msra.mxu0 %v3158
        %5495 = vmatpush.bf16.msra.mxu0 %v3146
        %5496 = vmatpush.bf16.msra.mxu0 %v3134
        %5497 = vmatpush.bf16.msra.mxu0 %v3122
        %5498 = vmatpush.bf16.msra.mxu0 %v3110
        %5499 = vmatpush.bf16.msra.mxu0 %v3098
        %5500 = vmatmul.bf16.gmra.mxu0 %v400
        %v5501 = vpop.f32.mrf.mxu0
        %v5502 = vadd.f32 %v5429, %v5501
        %v5503 = vpop.f32.mrf.mxu0
        %v5504 = vadd.f32 %v5431, %v5503
        %5505 = vmatmul.bf16.gmra.mxu0 %v406
        %v5506 = vpop.f32.mrf.mxu0
        %v5507 = vadd.f32 %v5434, %v5506
        %v5508 = vpop.f32.mrf.mxu0
        %v5509 = vadd.f32 %v5436, %v5508
        %5510 = vmatmul.bf16.gmra.mxu0 %v412
        %v5511 = vpop.f32.mrf.mxu0
        %v5512 = vadd.f32 %v5439, %v5511
        %v5513 = vpop.f32.mrf.mxu0
        %v5514 = vadd.f32 %v5441, %v5513
        %5515 = vmatmul.bf16.gmra.mxu0 %v418
        %v5516 = vpop.f32.mrf.mxu0
        %v5517 = vadd.f32 %v5444, %v5516
        %v5518 = vpop.f32.mrf.mxu0
        %v5519 = vadd.f32 %v5446, %v5518
        %5520 = vmatmul.bf16.gmra.mxu0 %v424
        %v5521 = vpop.f32.mrf.mxu0
        %v5522 = vadd.f32 %v5449, %v5521
        %v5523 = vpop.f32.mrf.mxu0
        %v5524 = vadd.f32 %v5451, %v5523
        %5525 = vmatmul.bf16.gmra.mxu0 %v430
        %v5526 = vpop.f32.mrf.mxu0
        %v5527 = vadd.f32 %v5454, %v5526
        %v5528 = vpop.f32.mrf.mxu0
        %v5529 = vadd.f32 %v5456, %v5528
        %5530 = vmatmul.bf16.gmra.mxu0 %v436
        %v5531 = vpop.f32.mrf.mxu0
        %v5532 = vadd.f32 %v5459, %v5531
        %v5533 = vpop.f32.mrf.mxu0
        %v5534 = vadd.f32 %v5461, %v5533
        %5535 = vmatmul.bf16.gmra.mxu0 %v442
        %v5536 = vpop.f32.mrf.mxu0
        %v5537 = vadd.f32 %v5464, %v5536
        %v5538 = vpop.f32.mrf.mxu0
        %v5539 = vadd.f32 %v5466, %v5538
        %5540 = vmatmul.bf16.gmra.mxu0 %v448
        %v5541 = vpop.f32.mrf.mxu0
        %v5542 = vadd.f32 %v5469, %v5541
        %v5543 = vpop.f32.mrf.mxu0
        %v5544 = vadd.f32 %v5471, %v5543
        %5545 = vmatmul.bf16.gmra.mxu0 %v454
        %v5546 = vpop.f32.mrf.mxu0
        %v5547 = vadd.f32 %v5474, %v5546
        %v5548 = vpop.f32.mrf.mxu0
        %v5549 = vadd.f32 %v5476, %v5548
        %5550 = vmatmul.bf16.gmra.mxu0 %v460
        %v5551 = vpop.f32.mrf.mxu0
        %v5552 = vadd.f32 %v5479, %v5551
        %v5553 = vpop.f32.mrf.mxu0
        %v5554 = vadd.f32 %v5481, %v5553
        %5555 = vmatmul.bf16.gmra.mxu0 %v466
        %v5556 = vpop.f32.mrf.mxu0
        %v5557 = vadd.f32 %v5484, %v5556
        %v5558 = vpop.f32.mrf.mxu0
        %v5559 = vadd.f32 %v5486, %v5558
        %5560 = vmatmul.bf16.gmra.mxu0 %v472
        %v5561 = vpop.f32.mrf.mxu0
        %v5562 = vadd.f32 %v5489, %v5561
        %v5563 = vpop.f32.mrf.mxu0
        %5564 = vdwg.mxu0
        %5565 = vmatpush.bf16.msra.mxu0 %v3278
        %5566 = vmatpush.bf16.msra.mxu0 %v3266
        %5567 = vmatpush.bf16.msra.mxu0 %v3254
        %5568 = vmatpush.bf16.msra.mxu0 %v3242
        %5569 = vmatpush.bf16.msra.mxu0 %v3230
        %5570 = vmatpush.bf16.msra.mxu0 %v3218
        %5571 = vmatpush.bf16.msra.mxu0 %v3206
        %5572 = vmatpush.bf16.msra.mxu0 %v3194
        %5573 = vmatmul.bf16.gmra.mxu0 %v401
        %v5574 = vpop.f32.mrf.mxu0
        %v5575 = vadd.f32 %v5502, %v5574
        %v5576 = vpop.f32.mrf.mxu0
        %v5577 = vadd.f32 %v5504, %v5576
        %5578 = vmatmul.bf16.gmra.mxu0 %v407
        %v5579 = vpop.f32.mrf.mxu0
        %v5580 = vadd.f32 %v5507, %v5579
        %v5581 = vpop.f32.mrf.mxu0
        %v5582 = vadd.f32 %v5509, %v5581
        %5583 = vmatmul.bf16.gmra.mxu0 %v413
        %v5584 = vpop.f32.mrf.mxu0
        %v5585 = vadd.f32 %v5512, %v5584
        %v5586 = vpop.f32.mrf.mxu0
        %v5587 = vadd.f32 %v5514, %v5586
        %5588 = vmatmul.bf16.gmra.mxu0 %v419
        %v5589 = vpop.f32.mrf.mxu0
        %v5590 = vadd.f32 %v5517, %v5589
        %v5591 = vpop.f32.mrf.mxu0
        %v5592 = vadd.f32 %v5519, %v5591
        %5593 = vmatmul.bf16.gmra.mxu0 %v425
        %v5594 = vpop.f32.mrf.mxu0
        %v5595 = vadd.f32 %v5522, %v5594
        %v5596 = vpop.f32.mrf.mxu0
        %v5597 = vadd.f32 %v5524, %v5596
        %5598 = vmatmul.bf16.gmra.mxu0 %v431
        %v5599 = vpop.f32.mrf.mxu0
        %v5600 = vadd.f32 %v5527, %v5599
        %v5601 = vpop.f32.mrf.mxu0
        %v5602 = vadd.f32 %v5529, %v5601
        %5603 = vmatmul.bf16.gmra.mxu0 %v437
        %v5604 = vpop.f32.mrf.mxu0
        %v5605 = vadd.f32 %v5532, %v5604
        %v5606 = vpop.f32.mrf.mxu0
        %v5607 = vadd.f32 %v5534, %v5606
        %5608 = vmatmul.bf16.gmra.mxu0 %v443
        %v5609 = vpop.f32.mrf.mxu0
        %v5610 = vadd.f32 %v5537, %v5609
        %v5611 = vpop.f32.mrf.mxu0
        %v5612 = vadd.f32 %v5539, %v5611
        %5613 = vmatmul.bf16.gmra.mxu0 %v449
        %v5614 = vpop.f32.mrf.mxu0
        %v5615 = vadd.f32 %v5542, %v5614
        %v5616 = vpop.f32.mrf.mxu0
        %v5617 = vadd.f32 %v5544, %v5616
        %5618 = vmatmul.bf16.gmra.mxu0 %v455
        %v5619 = vpop.f32.mrf.mxu0
        %v5620 = vadd.f32 %v5547, %v5619
        %v5621 = vpop.f32.mrf.mxu0
        %v5622 = vadd.f32 %v5549, %v5621
        %5623 = vmatmul.bf16.gmra.mxu0 %v461
        %v5624 = vpop.f32.mrf.mxu0
        %v5625 = vadd.f32 %v5552, %v5624
        %v5626 = vpop.f32.mrf.mxu0
        %v5627 = vadd.f32 %v5554, %v5626
        %5628 = vmatmul.bf16.gmra.mxu0 %v467
        %v5629 = vpop.f32.mrf.mxu0
        %v5630 = vadd.f32 %v5557, %v5629
        %v5631 = vpop.f32.mrf.mxu0
        %v5632 = vadd.f32 %v5559, %v5631
        %5633 = vmatmul.bf16.gmra.mxu0 %v473
        %v5634 = vpop.f32.mrf.mxu0
        %v5635 = vadd.f32 %v5562, %v5634
        %v5636 = vpop.f32.mrf.mxu0
        %5637 = vdwg.mxu0
        %5638 = vmatpush.bf16.msra.mxu0 %v3374
        %5639 = vmatpush.bf16.msra.mxu0 %v3362
        %5640 = vmatpush.bf16.msra.mxu0 %v3350
        %5641 = vmatpush.bf16.msra.mxu0 %v3338
        %5642 = vmatpush.bf16.msra.mxu0 %v3326
        %5643 = vmatpush.bf16.msra.mxu0 %v3314
        %5644 = vmatpush.bf16.msra.mxu0 %v3302
        %5645 = vmatpush.bf16.msra.mxu0 %v3290
        %5646 = vmatmul.bf16.gmra.mxu0 %v402
        %v5647 = vpop.f32.mrf.mxu0
        %v5648 = vadd.f32 %v5575, %v5647
        %v5649 = vpop.f32.mrf.mxu0
        %v5650 = vadd.f32 %v5577, %v5649
        %5651 = vmatmul.bf16.gmra.mxu0 %v408
        %v5652 = vpop.f32.mrf.mxu0
        %v5653 = vadd.f32 %v5580, %v5652
        %v5654 = vpop.f32.mrf.mxu0
        %v5655 = vadd.f32 %v5582, %v5654
        %5656 = vmatmul.bf16.gmra.mxu0 %v414
        %v5657 = vpop.f32.mrf.mxu0
        %v5658 = vadd.f32 %v5585, %v5657
        %v5659 = vpop.f32.mrf.mxu0
        %v5660 = vadd.f32 %v5587, %v5659
        %5661 = vmatmul.bf16.gmra.mxu0 %v420
        %v5662 = vpop.f32.mrf.mxu0
        %v5663 = vadd.f32 %v5590, %v5662
        %v5664 = vpop.f32.mrf.mxu0
        %v5665 = vadd.f32 %v5592, %v5664
        %5666 = vmatmul.bf16.gmra.mxu0 %v426
        %v5667 = vpop.f32.mrf.mxu0
        %v5668 = vadd.f32 %v5595, %v5667
        %v5669 = vpop.f32.mrf.mxu0
        %v5670 = vadd.f32 %v5597, %v5669
        %5671 = vmatmul.bf16.gmra.mxu0 %v432
        %v5672 = vpop.f32.mrf.mxu0
        %v5673 = vadd.f32 %v5600, %v5672
        %v5674 = vpop.f32.mrf.mxu0
        %v5675 = vadd.f32 %v5602, %v5674
        %5676 = vmatmul.bf16.gmra.mxu0 %v438
        %v5677 = vpop.f32.mrf.mxu0
        %v5678 = vadd.f32 %v5605, %v5677
        %v5679 = vpop.f32.mrf.mxu0
        %v5680 = vadd.f32 %v5607, %v5679
        %5681 = vmatmul.bf16.gmra.mxu0 %v444
        %v5682 = vpop.f32.mrf.mxu0
        %v5683 = vadd.f32 %v5610, %v5682
        %v5684 = vpop.f32.mrf.mxu0
        %v5685 = vadd.f32 %v5612, %v5684
        %5686 = vmatmul.bf16.gmra.mxu0 %v450
        %v5687 = vpop.f32.mrf.mxu0
        %v5688 = vadd.f32 %v5615, %v5687
        %v5689 = vpop.f32.mrf.mxu0
        %v5690 = vadd.f32 %v5617, %v5689
        %5691 = vmatmul.bf16.gmra.mxu0 %v456
        %v5692 = vpop.f32.mrf.mxu0
        %v5693 = vadd.f32 %v5620, %v5692
        %v5694 = vpop.f32.mrf.mxu0
        %v5695 = vadd.f32 %v5622, %v5694
        %5696 = vmatmul.bf16.gmra.mxu0 %v462
        %v5697 = vpop.f32.mrf.mxu0
        %v5698 = vadd.f32 %v5625, %v5697
        %v5699 = vpop.f32.mrf.mxu0
        %v5700 = vadd.f32 %v5627, %v5699
        %5701 = vmatmul.bf16.gmra.mxu0 %v468
        %v5702 = vpop.f32.mrf.mxu0
        %v5703 = vadd.f32 %v5630, %v5702
        %v5704 = vpop.f32.mrf.mxu0
        %v5705 = vadd.f32 %v5632, %v5704
        %5706 = vmatmul.bf16.gmra.mxu0 %v474
        %v5707 = vpop.f32.mrf.mxu0
        %v5708 = vadd.f32 %v5635, %v5707
        %v5709 = vpop.f32.mrf.mxu0
        %5710 = vdwg.mxu0
        %5711 = vmatpush.bf16.msra.mxu0 %v2895
        %5712 = vmatpush.bf16.msra.mxu0 %v2883
        %5713 = vmatpush.bf16.msra.mxu0 %v2871
        %5714 = vmatpush.bf16.msra.mxu0 %v2859
        %5715 = vmatpush.bf16.msra.mxu0 %v2847
        %5716 = vmatpush.bf16.msra.mxu0 %v2835
        %5717 = vmatpush.bf16.msra.mxu0 %v2823
        %5718 = vmatpush.bf16.msra.mxu0 %v2811
        %5719 = vmatmul.bf16.gmra.mxu0 %v397
        %v5720 = vpop.f32.mrf.mxu0
        %v5721 = vadd.f32 %v1059, %v5720
        %v5722 = vpop.f32.mrf.mxu0
        %v5723 = vadd.f32 %v1059, %v5722
        %5724 = vmatmul.bf16.gmra.mxu0 %v403
        %v5725 = vpop.f32.mrf.mxu0
        %v5726 = vadd.f32 %v1059, %v5725
        %v5727 = vpop.f32.mrf.mxu0
        %v5728 = vadd.f32 %v1059, %v5727
        %5729 = vmatmul.bf16.gmra.mxu0 %v409
        %v5730 = vpop.f32.mrf.mxu0
        %v5731 = vadd.f32 %v1059, %v5730
        %v5732 = vpop.f32.mrf.mxu0
        %v5733 = vadd.f32 %v1059, %v5732
        %5734 = vmatmul.bf16.gmra.mxu0 %v415
        %v5735 = vpop.f32.mrf.mxu0
        %v5736 = vadd.f32 %v1059, %v5735
        %v5737 = vpop.f32.mrf.mxu0
        %v5738 = vadd.f32 %v1059, %v5737
        %5739 = vmatmul.bf16.gmra.mxu0 %v421
        %v5740 = vpop.f32.mrf.mxu0
        %v5741 = vadd.f32 %v1059, %v5740
        %v5742 = vpop.f32.mrf.mxu0
        %v5743 = vadd.f32 %v1059, %v5742
        %5744 = vmatmul.bf16.gmra.mxu0 %v427
        %v5745 = vpop.f32.mrf.mxu0
        %v5746 = vadd.f32 %v1059, %v5745
        %v5747 = vpop.f32.mrf.mxu0
        %v5748 = vadd.f32 %v1059, %v5747
        %5749 = vmatmul.bf16.gmra.mxu0 %v433
        %v5750 = vpop.f32.mrf.mxu0
        %v5751 = vadd.f32 %v1059, %v5750
        %v5752 = vpop.f32.mrf.mxu0
        %v5753 = vadd.f32 %v1059, %v5752
        %5754 = vmatmul.bf16.gmra.mxu0 %v439
        %v5755 = vpop.f32.mrf.mxu0
        %v5756 = vadd.f32 %v1059, %v5755
        %v5757 = vpop.f32.mrf.mxu0
        %v5758 = vadd.f32 %v1059, %v5757
        %5759 = vmatmul.bf16.gmra.mxu0 %v445
        %v5760 = vpop.f32.mrf.mxu0
        %v5761 = vadd.f32 %v1059, %v5760
        %v5762 = vpop.f32.mrf.mxu0
        %v5763 = vadd.f32 %v1059, %v5762
        %5764 = vmatmul.bf16.gmra.mxu0 %v451
        %v5765 = vpop.f32.mrf.mxu0
        %v5766 = vadd.f32 %v1059, %v5765
        %v5767 = vpop.f32.mrf.mxu0
        %v5768 = vadd.f32 %v1059, %v5767
        %5769 = vmatmul.bf16.gmra.mxu0 %v457
        %v5770 = vpop.f32.mrf.mxu0
        %v5771 = vadd.f32 %v1059, %v5770
        %v5772 = vpop.f32.mrf.mxu0
        %v5773 = vadd.f32 %v1059, %v5772
        %5774 = vmatmul.bf16.gmra.mxu0 %v463
        %v5775 = vpop.f32.mrf.mxu0
        %v5776 = vadd.f32 %v1059, %v5775
        %v5777 = vpop.f32.mrf.mxu0
        %v5778 = vadd.f32 %v1059, %v5777
        %5779 = vmatmul.bf16.gmra.mxu0 %v469
        %v5780 = vpop.f32.mrf.mxu0
        %v5781 = vadd.f32 %v1059, %v5780
        %v5782 = vpop.f32.mrf.mxu0
        %5783 = vdwg.mxu0
        %5784 = vmatpush.bf16.msra.mxu0 %v2991
        %5785 = vmatpush.bf16.msra.mxu0 %v2979
        %5786 = vmatpush.bf16.msra.mxu0 %v2967
        %5787 = vmatpush.bf16.msra.mxu0 %v2955
        %5788 = vmatpush.bf16.msra.mxu0 %v2943
        %5789 = vmatpush.bf16.msra.mxu0 %v2931
        %5790 = vmatpush.bf16.msra.mxu0 %v2919
        %5791 = vmatpush.bf16.msra.mxu0 %v2907
        %5792 = vmatmul.bf16.gmra.mxu0 %v398
        %v5793 = vpop.f32.mrf.mxu0
        %v5794 = vadd.f32 %v5721, %v5793
        %v5795 = vpop.f32.mrf.mxu0
        %v5796 = vadd.f32 %v5723, %v5795
        %5797 = vmatmul.bf16.gmra.mxu0 %v404
        %v5798 = vpop.f32.mrf.mxu0
        %v5799 = vadd.f32 %v5726, %v5798
        %v5800 = vpop.f32.mrf.mxu0
        %v5801 = vadd.f32 %v5728, %v5800
        %5802 = vmatmul.bf16.gmra.mxu0 %v410
        %v5803 = vpop.f32.mrf.mxu0
        %v5804 = vadd.f32 %v5731, %v5803
        %v5805 = vpop.f32.mrf.mxu0
        %v5806 = vadd.f32 %v5733, %v5805
        %5807 = vmatmul.bf16.gmra.mxu0 %v416
        %v5808 = vpop.f32.mrf.mxu0
        %v5809 = vadd.f32 %v5736, %v5808
        %v5810 = vpop.f32.mrf.mxu0
        %v5811 = vadd.f32 %v5738, %v5810
        %5812 = vmatmul.bf16.gmra.mxu0 %v422
        %v5813 = vpop.f32.mrf.mxu0
        %v5814 = vadd.f32 %v5741, %v5813
        %v5815 = vpop.f32.mrf.mxu0
        %v5816 = vadd.f32 %v5743, %v5815
        %5817 = vmatmul.bf16.gmra.mxu0 %v428
        %v5818 = vpop.f32.mrf.mxu0
        %v5819 = vadd.f32 %v5746, %v5818
        %v5820 = vpop.f32.mrf.mxu0
        %v5821 = vadd.f32 %v5748, %v5820
        %5822 = vmatmul.bf16.gmra.mxu0 %v434
        %v5823 = vpop.f32.mrf.mxu0
        %v5824 = vadd.f32 %v5751, %v5823
        %v5825 = vpop.f32.mrf.mxu0
        %v5826 = vadd.f32 %v5753, %v5825
        %5827 = vmatmul.bf16.gmra.mxu0 %v440
        %v5828 = vpop.f32.mrf.mxu0
        %v5829 = vadd.f32 %v5756, %v5828
        %v5830 = vpop.f32.mrf.mxu0
        %v5831 = vadd.f32 %v5758, %v5830
        %5832 = vmatmul.bf16.gmra.mxu0 %v446
        %v5833 = vpop.f32.mrf.mxu0
        %v5834 = vadd.f32 %v5761, %v5833
        %v5835 = vpop.f32.mrf.mxu0
        %v5836 = vadd.f32 %v5763, %v5835
        %5837 = vmatmul.bf16.gmra.mxu0 %v452
        %v5838 = vpop.f32.mrf.mxu0
        %v5839 = vadd.f32 %v5766, %v5838
        %v5840 = vpop.f32.mrf.mxu0
        %v5841 = vadd.f32 %v5768, %v5840
        %5842 = vmatmul.bf16.gmra.mxu0 %v458
        %v5843 = vpop.f32.mrf.mxu0
        %v5844 = vadd.f32 %v5771, %v5843
        %v5845 = vpop.f32.mrf.mxu0
        %v5846 = vadd.f32 %v5773, %v5845
        %5847 = vmatmul.bf16.gmra.mxu0 %v464
        %v5848 = vpop.f32.mrf.mxu0
        %v5849 = vadd.f32 %v5776, %v5848
        %v5850 = vpop.f32.mrf.mxu0
        %v5851 = vadd.f32 %v5778, %v5850
        %5852 = vmatmul.bf16.gmra.mxu0 %v470
        %v5853 = vpop.f32.mrf.mxu0
        %v5854 = vadd.f32 %v5781, %v5853
        %v5855 = vpop.f32.mrf.mxu0
        %5856 = vdwg.mxu0
        %5857 = vmatpush.bf16.msra.mxu0 %v3087
        %5858 = vmatpush.bf16.msra.mxu0 %v3075
        %5859 = vmatpush.bf16.msra.mxu0 %v3063
        %5860 = vmatpush.bf16.msra.mxu0 %v3051
        %5861 = vmatpush.bf16.msra.mxu0 %v3039
        %5862 = vmatpush.bf16.msra.mxu0 %v3027
        %5863 = vmatpush.bf16.msra.mxu0 %v3015
        %5864 = vmatpush.bf16.msra.mxu0 %v3003
        %5865 = vmatmul.bf16.gmra.mxu0 %v399
        %v5866 = vpop.f32.mrf.mxu0
        %v5867 = vadd.f32 %v5794, %v5866
        %v5868 = vpop.f32.mrf.mxu0
        %v5869 = vadd.f32 %v5796, %v5868
        %5870 = vmatmul.bf16.gmra.mxu0 %v405
        %v5871 = vpop.f32.mrf.mxu0
        %v5872 = vadd.f32 %v5799, %v5871
        %v5873 = vpop.f32.mrf.mxu0
        %v5874 = vadd.f32 %v5801, %v5873
        %5875 = vmatmul.bf16.gmra.mxu0 %v411
        %v5876 = vpop.f32.mrf.mxu0
        %v5877 = vadd.f32 %v5804, %v5876
        %v5878 = vpop.f32.mrf.mxu0
        %v5879 = vadd.f32 %v5806, %v5878
        %5880 = vmatmul.bf16.gmra.mxu0 %v417
        %v5881 = vpop.f32.mrf.mxu0
        %v5882 = vadd.f32 %v5809, %v5881
        %v5883 = vpop.f32.mrf.mxu0
        %v5884 = vadd.f32 %v5811, %v5883
        %5885 = vmatmul.bf16.gmra.mxu0 %v423
        %v5886 = vpop.f32.mrf.mxu0
        %v5887 = vadd.f32 %v5814, %v5886
        %v5888 = vpop.f32.mrf.mxu0
        %v5889 = vadd.f32 %v5816, %v5888
        %5890 = vmatmul.bf16.gmra.mxu0 %v429
        %v5891 = vpop.f32.mrf.mxu0
        %v5892 = vadd.f32 %v5819, %v5891
        %v5893 = vpop.f32.mrf.mxu0
        %v5894 = vadd.f32 %v5821, %v5893
        %5895 = vmatmul.bf16.gmra.mxu0 %v435
        %v5896 = vpop.f32.mrf.mxu0
        %v5897 = vadd.f32 %v5824, %v5896
        %v5898 = vpop.f32.mrf.mxu0
        %v5899 = vadd.f32 %v5826, %v5898
        %5900 = vmatmul.bf16.gmra.mxu0 %v441
        %v5901 = vpop.f32.mrf.mxu0
        %v5902 = vadd.f32 %v5829, %v5901
        %v5903 = vpop.f32.mrf.mxu0
        %v5904 = vadd.f32 %v5831, %v5903
        %5905 = vmatmul.bf16.gmra.mxu0 %v447
        %v5906 = vpop.f32.mrf.mxu0
        %v5907 = vadd.f32 %v5834, %v5906
        %v5908 = vpop.f32.mrf.mxu0
        %v5909 = vadd.f32 %v5836, %v5908
        %5910 = vmatmul.bf16.gmra.mxu0 %v453
        %v5911 = vpop.f32.mrf.mxu0
        %v5912 = vadd.f32 %v5839, %v5911
        %v5913 = vpop.f32.mrf.mxu0
        %v5914 = vadd.f32 %v5841, %v5913
        %5915 = vmatmul.bf16.gmra.mxu0 %v459
        %v5916 = vpop.f32.mrf.mxu0
        %v5917 = vadd.f32 %v5844, %v5916
        %v5918 = vpop.f32.mrf.mxu0
        %v5919 = vadd.f32 %v5846, %v5918
        %5920 = vmatmul.bf16.gmra.mxu0 %v465
        %v5921 = vpop.f32.mrf.mxu0
        %v5922 = vadd.f32 %v5849, %v5921
        %v5923 = vpop.f32.mrf.mxu0
        %v5924 = vadd.f32 %v5851, %v5923
        %5925 = vmatmul.bf16.gmra.mxu0 %v471
        %v5926 = vpop.f32.mrf.mxu0
        %v5927 = vadd.f32 %v5854, %v5926
        %v5928 = vpop.f32.mrf.mxu0
        %5929 = vdwg.mxu0
        %5930 = vmatpush.bf16.msra.mxu0 %v3183
        %5931 = vmatpush.bf16.msra.mxu0 %v3171
        %5932 = vmatpush.bf16.msra.mxu0 %v3159
        %5933 = vmatpush.bf16.msra.mxu0 %v3147
        %5934 = vmatpush.bf16.msra.mxu0 %v3135
        %5935 = vmatpush.bf16.msra.mxu0 %v3123
        %5936 = vmatpush.bf16.msra.mxu0 %v3111
        %5937 = vmatpush.bf16.msra.mxu0 %v3099
        %5938 = vmatmul.bf16.gmra.mxu0 %v400
        %v5939 = vpop.f32.mrf.mxu0
        %v5940 = vadd.f32 %v5867, %v5939
        %v5941 = vpop.f32.mrf.mxu0
        %v5942 = vadd.f32 %v5869, %v5941
        %5943 = vmatmul.bf16.gmra.mxu0 %v406
        %v5944 = vpop.f32.mrf.mxu0
        %v5945 = vadd.f32 %v5872, %v5944
        %v5946 = vpop.f32.mrf.mxu0
        %v5947 = vadd.f32 %v5874, %v5946
        %5948 = vmatmul.bf16.gmra.mxu0 %v412
        %v5949 = vpop.f32.mrf.mxu0
        %v5950 = vadd.f32 %v5877, %v5949
        %v5951 = vpop.f32.mrf.mxu0
        %v5952 = vadd.f32 %v5879, %v5951
        %5953 = vmatmul.bf16.gmra.mxu0 %v418
        %v5954 = vpop.f32.mrf.mxu0
        %v5955 = vadd.f32 %v5882, %v5954
        %v5956 = vpop.f32.mrf.mxu0
        %v5957 = vadd.f32 %v5884, %v5956
        %5958 = vmatmul.bf16.gmra.mxu0 %v424
        %v5959 = vpop.f32.mrf.mxu0
        %v5960 = vadd.f32 %v5887, %v5959
        %v5961 = vpop.f32.mrf.mxu0
        %v5962 = vadd.f32 %v5889, %v5961
        %5963 = vmatmul.bf16.gmra.mxu0 %v430
        %v5964 = vpop.f32.mrf.mxu0
        %v5965 = vadd.f32 %v5892, %v5964
        %v5966 = vpop.f32.mrf.mxu0
        %v5967 = vadd.f32 %v5894, %v5966
        %5968 = vmatmul.bf16.gmra.mxu0 %v436
        %v5969 = vpop.f32.mrf.mxu0
        %v5970 = vadd.f32 %v5897, %v5969
        %v5971 = vpop.f32.mrf.mxu0
        %v5972 = vadd.f32 %v5899, %v5971
        %5973 = vmatmul.bf16.gmra.mxu0 %v442
        %v5974 = vpop.f32.mrf.mxu0
        %v5975 = vadd.f32 %v5902, %v5974
        %v5976 = vpop.f32.mrf.mxu0
        %v5977 = vadd.f32 %v5904, %v5976
        %5978 = vmatmul.bf16.gmra.mxu0 %v448
        %v5979 = vpop.f32.mrf.mxu0
        %v5980 = vadd.f32 %v5907, %v5979
        %v5981 = vpop.f32.mrf.mxu0
        %v5982 = vadd.f32 %v5909, %v5981
        %5983 = vmatmul.bf16.gmra.mxu0 %v454
        %v5984 = vpop.f32.mrf.mxu0
        %v5985 = vadd.f32 %v5912, %v5984
        %v5986 = vpop.f32.mrf.mxu0
        %v5987 = vadd.f32 %v5914, %v5986
        %5988 = vmatmul.bf16.gmra.mxu0 %v460
        %v5989 = vpop.f32.mrf.mxu0
        %v5990 = vadd.f32 %v5917, %v5989
        %v5991 = vpop.f32.mrf.mxu0
        %v5992 = vadd.f32 %v5919, %v5991
        %5993 = vmatmul.bf16.gmra.mxu0 %v466
        %v5994 = vpop.f32.mrf.mxu0
        %v5995 = vadd.f32 %v5922, %v5994
        %v5996 = vpop.f32.mrf.mxu0
        %v5997 = vadd.f32 %v5924, %v5996
        %5998 = vmatmul.bf16.gmra.mxu0 %v472
        %v5999 = vpop.f32.mrf.mxu0
        %v6000 = vadd.f32 %v5927, %v5999
        %v6001 = vpop.f32.mrf.mxu0
        %6002 = vdwg.mxu0
        %6003 = vmatpush.bf16.msra.mxu0 %v3279
        %6004 = vmatpush.bf16.msra.mxu0 %v3267
        %6005 = vmatpush.bf16.msra.mxu0 %v3255
        %6006 = vmatpush.bf16.msra.mxu0 %v3243
        %6007 = vmatpush.bf16.msra.mxu0 %v3231
        %6008 = vmatpush.bf16.msra.mxu0 %v3219
        %6009 = vmatpush.bf16.msra.mxu0 %v3207
        %6010 = vmatpush.bf16.msra.mxu0 %v3195
        %6011 = vmatmul.bf16.gmra.mxu0 %v401
        %v6012 = vpop.f32.mrf.mxu0
        %v6013 = vadd.f32 %v5940, %v6012
        %v6014 = vpop.f32.mrf.mxu0
        %v6015 = vadd.f32 %v5942, %v6014
        %6016 = vmatmul.bf16.gmra.mxu0 %v407
        %v6017 = vpop.f32.mrf.mxu0
        %v6018 = vadd.f32 %v5945, %v6017
        %v6019 = vpop.f32.mrf.mxu0
        %v6020 = vadd.f32 %v5947, %v6019
        %6021 = vmatmul.bf16.gmra.mxu0 %v413
        %v6022 = vpop.f32.mrf.mxu0
        %v6023 = vadd.f32 %v5950, %v6022
        %v6024 = vpop.f32.mrf.mxu0
        %v6025 = vadd.f32 %v5952, %v6024
        %6026 = vmatmul.bf16.gmra.mxu0 %v419
        %v6027 = vpop.f32.mrf.mxu0
        %v6028 = vadd.f32 %v5955, %v6027
        %v6029 = vpop.f32.mrf.mxu0
        %v6030 = vadd.f32 %v5957, %v6029
        %6031 = vmatmul.bf16.gmra.mxu0 %v425
        %v6032 = vpop.f32.mrf.mxu0
        %v6033 = vadd.f32 %v5960, %v6032
        %v6034 = vpop.f32.mrf.mxu0
        %v6035 = vadd.f32 %v5962, %v6034
        %6036 = vmatmul.bf16.gmra.mxu0 %v431
        %v6037 = vpop.f32.mrf.mxu0
        %v6038 = vadd.f32 %v5965, %v6037
        %v6039 = vpop.f32.mrf.mxu0
        %v6040 = vadd.f32 %v5967, %v6039
        %6041 = vmatmul.bf16.gmra.mxu0 %v437
        %v6042 = vpop.f32.mrf.mxu0
        %v6043 = vadd.f32 %v5970, %v6042
        %v6044 = vpop.f32.mrf.mxu0
        %v6045 = vadd.f32 %v5972, %v6044
        %6046 = vmatmul.bf16.gmra.mxu0 %v443
        %v6047 = vpop.f32.mrf.mxu0
        %v6048 = vadd.f32 %v5975, %v6047
        %v6049 = vpop.f32.mrf.mxu0
        %v6050 = vadd.f32 %v5977, %v6049
        %6051 = vmatmul.bf16.gmra.mxu0 %v449
        %v6052 = vpop.f32.mrf.mxu0
        %v6053 = vadd.f32 %v5980, %v6052
        %v6054 = vpop.f32.mrf.mxu0
        %v6055 = vadd.f32 %v5982, %v6054
        %6056 = vmatmul.bf16.gmra.mxu0 %v455
        %v6057 = vpop.f32.mrf.mxu0
        %v6058 = vadd.f32 %v5985, %v6057
        %v6059 = vpop.f32.mrf.mxu0
        %v6060 = vadd.f32 %v5987, %v6059
        %6061 = vmatmul.bf16.gmra.mxu0 %v461
        %v6062 = vpop.f32.mrf.mxu0
        %v6063 = vadd.f32 %v5990, %v6062
        %v6064 = vpop.f32.mrf.mxu0
        %v6065 = vadd.f32 %v5992, %v6064
        %6066 = vmatmul.bf16.gmra.mxu0 %v467
        %v6067 = vpop.f32.mrf.mxu0
        %v6068 = vadd.f32 %v5995, %v6067
        %v6069 = vpop.f32.mrf.mxu0
        %v6070 = vadd.f32 %v5997, %v6069
        %6071 = vmatmul.bf16.gmra.mxu0 %v473
        %v6072 = vpop.f32.mrf.mxu0
        %v6073 = vadd.f32 %v6000, %v6072
        %v6074 = vpop.f32.mrf.mxu0
        %6075 = vdwg.mxu0
        %6076 = vmatpush.bf16.msra.mxu0 %v3375
        %6077 = vmatpush.bf16.msra.mxu0 %v3363
        %6078 = vmatpush.bf16.msra.mxu0 %v3351
        %6079 = vmatpush.bf16.msra.mxu0 %v3339
        %6080 = vmatpush.bf16.msra.mxu0 %v3327
        %6081 = vmatpush.bf16.msra.mxu0 %v3315
        %6082 = vmatpush.bf16.msra.mxu0 %v3303
        %6083 = vmatpush.bf16.msra.mxu0 %v3291
        %6084 = vmatmul.bf16.gmra.mxu0 %v402
        %v6085 = vpop.f32.mrf.mxu0
        %v6086 = vadd.f32 %v6013, %v6085
        %v6087 = vpop.f32.mrf.mxu0
        %v6088 = vadd.f32 %v6015, %v6087
        %6089 = vmatmul.bf16.gmra.mxu0 %v408
        %v6090 = vpop.f32.mrf.mxu0
        %v6091 = vadd.f32 %v6018, %v6090
        %v6092 = vpop.f32.mrf.mxu0
        %v6093 = vadd.f32 %v6020, %v6092
        %6094 = vmatmul.bf16.gmra.mxu0 %v414
        %v6095 = vpop.f32.mrf.mxu0
        %v6096 = vadd.f32 %v6023, %v6095
        %v6097 = vpop.f32.mrf.mxu0
        %v6098 = vadd.f32 %v6025, %v6097
        %6099 = vmatmul.bf16.gmra.mxu0 %v420
        %v6100 = vpop.f32.mrf.mxu0
        %v6101 = vadd.f32 %v6028, %v6100
        %v6102 = vpop.f32.mrf.mxu0
        %v6103 = vadd.f32 %v6030, %v6102
        %6104 = vmatmul.bf16.gmra.mxu0 %v426
        %v6105 = vpop.f32.mrf.mxu0
        %v6106 = vadd.f32 %v6033, %v6105
        %v6107 = vpop.f32.mrf.mxu0
        %v6108 = vadd.f32 %v6035, %v6107
        %6109 = vmatmul.bf16.gmra.mxu0 %v432
        %v6110 = vpop.f32.mrf.mxu0
        %v6111 = vadd.f32 %v6038, %v6110
        %v6112 = vpop.f32.mrf.mxu0
        %v6113 = vadd.f32 %v6040, %v6112
        %6114 = vmatmul.bf16.gmra.mxu0 %v438
        %v6115 = vpop.f32.mrf.mxu0
        %v6116 = vadd.f32 %v6043, %v6115
        %v6117 = vpop.f32.mrf.mxu0
        %v6118 = vadd.f32 %v6045, %v6117
        %6119 = vmatmul.bf16.gmra.mxu0 %v444
        %v6120 = vpop.f32.mrf.mxu0
        %v6121 = vadd.f32 %v6048, %v6120
        %v6122 = vpop.f32.mrf.mxu0
        %v6123 = vadd.f32 %v6050, %v6122
        %6124 = vmatmul.bf16.gmra.mxu0 %v450
        %v6125 = vpop.f32.mrf.mxu0
        %v6126 = vadd.f32 %v6053, %v6125
        %v6127 = vpop.f32.mrf.mxu0
        %v6128 = vadd.f32 %v6055, %v6127
        %6129 = vmatmul.bf16.gmra.mxu0 %v456
        %v6130 = vpop.f32.mrf.mxu0
        %v6131 = vadd.f32 %v6058, %v6130
        %v6132 = vpop.f32.mrf.mxu0
        %v6133 = vadd.f32 %v6060, %v6132
        %6134 = vmatmul.bf16.gmra.mxu0 %v462
        %v6135 = vpop.f32.mrf.mxu0
        %v6136 = vadd.f32 %v6063, %v6135
        %v6137 = vpop.f32.mrf.mxu0
        %v6138 = vadd.f32 %v6065, %v6137
        %6139 = vmatmul.bf16.gmra.mxu0 %v468
        %v6140 = vpop.f32.mrf.mxu0
        %v6141 = vadd.f32 %v6068, %v6140
        %v6142 = vpop.f32.mrf.mxu0
        %v6143 = vadd.f32 %v6070, %v6142
        %6144 = vmatmul.bf16.gmra.mxu0 %v474
        %v6145 = vpop.f32.mrf.mxu0
        %v6146 = vadd.f32 %v6073, %v6145
        %v6147 = vpop.f32.mrf.mxu0
        %6148 = vdwg.mxu0
        %6149 = vmatpush.bf16.msra.mxu0 %v2896
        %6150 = vmatpush.bf16.msra.mxu0 %v2884
        %6151 = vmatpush.bf16.msra.mxu0 %v2872
        %6152 = vmatpush.bf16.msra.mxu0 %v2860
        %6153 = vmatpush.bf16.msra.mxu0 %v2848
        %6154 = vmatpush.bf16.msra.mxu0 %v2836
        %6155 = vmatpush.bf16.msra.mxu0 %v2824
        %6156 = vmatpush.bf16.msra.mxu0 %v2812
        %6157 = vmatmul.bf16.gmra.mxu0 %v397
        %v6158 = vpop.f32.mrf.mxu0
        %v6159 = vadd.f32 %v1060, %v6158
        %v6160 = vpop.f32.mrf.mxu0
        %v6161 = vadd.f32 %v1060, %v6160
        %6162 = vmatmul.bf16.gmra.mxu0 %v403
        %v6163 = vpop.f32.mrf.mxu0
        %v6164 = vadd.f32 %v1060, %v6163
        %v6165 = vpop.f32.mrf.mxu0
        %v6166 = vadd.f32 %v1060, %v6165
        %6167 = vmatmul.bf16.gmra.mxu0 %v409
        %v6168 = vpop.f32.mrf.mxu0
        %v6169 = vadd.f32 %v1060, %v6168
        %v6170 = vpop.f32.mrf.mxu0
        %v6171 = vadd.f32 %v1060, %v6170
        %6172 = vmatmul.bf16.gmra.mxu0 %v415
        %v6173 = vpop.f32.mrf.mxu0
        %v6174 = vadd.f32 %v1060, %v6173
        %v6175 = vpop.f32.mrf.mxu0
        %v6176 = vadd.f32 %v1060, %v6175
        %6177 = vmatmul.bf16.gmra.mxu0 %v421
        %v6178 = vpop.f32.mrf.mxu0
        %v6179 = vadd.f32 %v1060, %v6178
        %v6180 = vpop.f32.mrf.mxu0
        %v6181 = vadd.f32 %v1060, %v6180
        %6182 = vmatmul.bf16.gmra.mxu0 %v427
        %v6183 = vpop.f32.mrf.mxu0
        %v6184 = vadd.f32 %v1060, %v6183
        %v6185 = vpop.f32.mrf.mxu0
        %v6186 = vadd.f32 %v1060, %v6185
        %6187 = vmatmul.bf16.gmra.mxu0 %v433
        %v6188 = vpop.f32.mrf.mxu0
        %v6189 = vadd.f32 %v1060, %v6188
        %v6190 = vpop.f32.mrf.mxu0
        %v6191 = vadd.f32 %v1060, %v6190
        %6192 = vmatmul.bf16.gmra.mxu0 %v439
        %v6193 = vpop.f32.mrf.mxu0
        %v6194 = vadd.f32 %v1060, %v6193
        %v6195 = vpop.f32.mrf.mxu0
        %v6196 = vadd.f32 %v1060, %v6195
        %6197 = vmatmul.bf16.gmra.mxu0 %v445
        %v6198 = vpop.f32.mrf.mxu0
        %v6199 = vadd.f32 %v1060, %v6198
        %v6200 = vpop.f32.mrf.mxu0
        %v6201 = vadd.f32 %v1060, %v6200
        %6202 = vmatmul.bf16.gmra.mxu0 %v451
        %v6203 = vpop.f32.mrf.mxu0
        %v6204 = vadd.f32 %v1060, %v6203
        %v6205 = vpop.f32.mrf.mxu0
        %v6206 = vadd.f32 %v1060, %v6205
        %6207 = vmatmul.bf16.gmra.mxu0 %v457
        %v6208 = vpop.f32.mrf.mxu0
        %v6209 = vadd.f32 %v1060, %v6208
        %v6210 = vpop.f32.mrf.mxu0
        %v6211 = vadd.f32 %v1060, %v6210
        %6212 = vmatmul.bf16.gmra.mxu0 %v463
        %v6213 = vpop.f32.mrf.mxu0
        %v6214 = vadd.f32 %v1060, %v6213
        %v6215 = vpop.f32.mrf.mxu0
        %v6216 = vadd.f32 %v1060, %v6215
        %6217 = vmatmul.bf16.gmra.mxu0 %v469
        %v6218 = vpop.f32.mrf.mxu0
        %v6219 = vadd.f32 %v1060, %v6218
        %v6220 = vpop.f32.mrf.mxu0
        %6221 = vdwg.mxu0
        %6222 = vmatpush.bf16.msra.mxu0 %v2992
        %6223 = vmatpush.bf16.msra.mxu0 %v2980
        %6224 = vmatpush.bf16.msra.mxu0 %v2968
        %6225 = vmatpush.bf16.msra.mxu0 %v2956
        %6226 = vmatpush.bf16.msra.mxu0 %v2944
        %6227 = vmatpush.bf16.msra.mxu0 %v2932
        %6228 = vmatpush.bf16.msra.mxu0 %v2920
        %6229 = vmatpush.bf16.msra.mxu0 %v2908
        %6230 = vmatmul.bf16.gmra.mxu0 %v398
        %v6231 = vpop.f32.mrf.mxu0
        %v6232 = vadd.f32 %v6159, %v6231
        %v6233 = vpop.f32.mrf.mxu0
        %v6234 = vadd.f32 %v6161, %v6233
        %6235 = vmatmul.bf16.gmra.mxu0 %v404
        %v6236 = vpop.f32.mrf.mxu0
        %v6237 = vadd.f32 %v6164, %v6236
        %v6238 = vpop.f32.mrf.mxu0
        %v6239 = vadd.f32 %v6166, %v6238
        %6240 = vmatmul.bf16.gmra.mxu0 %v410
        %v6241 = vpop.f32.mrf.mxu0
        %v6242 = vadd.f32 %v6169, %v6241
        %v6243 = vpop.f32.mrf.mxu0
        %v6244 = vadd.f32 %v6171, %v6243
        %6245 = vmatmul.bf16.gmra.mxu0 %v416
        %v6246 = vpop.f32.mrf.mxu0
        %v6247 = vadd.f32 %v6174, %v6246
        %v6248 = vpop.f32.mrf.mxu0
        %v6249 = vadd.f32 %v6176, %v6248
        %6250 = vmatmul.bf16.gmra.mxu0 %v422
        %v6251 = vpop.f32.mrf.mxu0
        %v6252 = vadd.f32 %v6179, %v6251
        %v6253 = vpop.f32.mrf.mxu0
        %v6254 = vadd.f32 %v6181, %v6253
        %6255 = vmatmul.bf16.gmra.mxu0 %v428
        %v6256 = vpop.f32.mrf.mxu0
        %v6257 = vadd.f32 %v6184, %v6256
        %v6258 = vpop.f32.mrf.mxu0
        %v6259 = vadd.f32 %v6186, %v6258
        %6260 = vmatmul.bf16.gmra.mxu0 %v434
        %v6261 = vpop.f32.mrf.mxu0
        %v6262 = vadd.f32 %v6189, %v6261
        %v6263 = vpop.f32.mrf.mxu0
        %v6264 = vadd.f32 %v6191, %v6263
        %6265 = vmatmul.bf16.gmra.mxu0 %v440
        %v6266 = vpop.f32.mrf.mxu0
        %v6267 = vadd.f32 %v6194, %v6266
        %v6268 = vpop.f32.mrf.mxu0
        %v6269 = vadd.f32 %v6196, %v6268
        %6270 = vmatmul.bf16.gmra.mxu0 %v446
        %v6271 = vpop.f32.mrf.mxu0
        %v6272 = vadd.f32 %v6199, %v6271
        %v6273 = vpop.f32.mrf.mxu0
        %v6274 = vadd.f32 %v6201, %v6273
        %6275 = vmatmul.bf16.gmra.mxu0 %v452
        %v6276 = vpop.f32.mrf.mxu0
        %v6277 = vadd.f32 %v6204, %v6276
        %v6278 = vpop.f32.mrf.mxu0
        %v6279 = vadd.f32 %v6206, %v6278
        %6280 = vmatmul.bf16.gmra.mxu0 %v458
        %v6281 = vpop.f32.mrf.mxu0
        %v6282 = vadd.f32 %v6209, %v6281
        %v6283 = vpop.f32.mrf.mxu0
        %v6284 = vadd.f32 %v6211, %v6283
        %6285 = vmatmul.bf16.gmra.mxu0 %v464
        %v6286 = vpop.f32.mrf.mxu0
        %v6287 = vadd.f32 %v6214, %v6286
        %v6288 = vpop.f32.mrf.mxu0
        %v6289 = vadd.f32 %v6216, %v6288
        %6290 = vmatmul.bf16.gmra.mxu0 %v470
        %v6291 = vpop.f32.mrf.mxu0
        %v6292 = vadd.f32 %v6219, %v6291
        %v6293 = vpop.f32.mrf.mxu0
        %6294 = vdwg.mxu0
        %6295 = vmatpush.bf16.msra.mxu0 %v3088
        %6296 = vmatpush.bf16.msra.mxu0 %v3076
        %6297 = vmatpush.bf16.msra.mxu0 %v3064
        %6298 = vmatpush.bf16.msra.mxu0 %v3052
        %6299 = vmatpush.bf16.msra.mxu0 %v3040
        %6300 = vmatpush.bf16.msra.mxu0 %v3028
        %6301 = vmatpush.bf16.msra.mxu0 %v3016
        %6302 = vmatpush.bf16.msra.mxu0 %v3004
        %6303 = vmatmul.bf16.gmra.mxu0 %v399
        %v6304 = vpop.f32.mrf.mxu0
        %v6305 = vadd.f32 %v6232, %v6304
        %v6306 = vpop.f32.mrf.mxu0
        %v6307 = vadd.f32 %v6234, %v6306
        %6308 = vmatmul.bf16.gmra.mxu0 %v405
        %v6309 = vpop.f32.mrf.mxu0
        %v6310 = vadd.f32 %v6237, %v6309
        %v6311 = vpop.f32.mrf.mxu0
        %v6312 = vadd.f32 %v6239, %v6311
        %6313 = vmatmul.bf16.gmra.mxu0 %v411
        %v6314 = vpop.f32.mrf.mxu0
        %v6315 = vadd.f32 %v6242, %v6314
        %v6316 = vpop.f32.mrf.mxu0
        %v6317 = vadd.f32 %v6244, %v6316
        %6318 = vmatmul.bf16.gmra.mxu0 %v417
        %v6319 = vpop.f32.mrf.mxu0
        %v6320 = vadd.f32 %v6247, %v6319
        %v6321 = vpop.f32.mrf.mxu0
        %v6322 = vadd.f32 %v6249, %v6321
        %6323 = vmatmul.bf16.gmra.mxu0 %v423
        %v6324 = vpop.f32.mrf.mxu0
        %v6325 = vadd.f32 %v6252, %v6324
        %v6326 = vpop.f32.mrf.mxu0
        %v6327 = vadd.f32 %v6254, %v6326
        %6328 = vmatmul.bf16.gmra.mxu0 %v429
        %v6329 = vpop.f32.mrf.mxu0
        %v6330 = vadd.f32 %v6257, %v6329
        %v6331 = vpop.f32.mrf.mxu0
        %v6332 = vadd.f32 %v6259, %v6331
        %6333 = vmatmul.bf16.gmra.mxu0 %v435
        %v6334 = vpop.f32.mrf.mxu0
        %v6335 = vadd.f32 %v6262, %v6334
        %v6336 = vpop.f32.mrf.mxu0
        %v6337 = vadd.f32 %v6264, %v6336
        %6338 = vmatmul.bf16.gmra.mxu0 %v441
        %v6339 = vpop.f32.mrf.mxu0
        %v6340 = vadd.f32 %v6267, %v6339
        %v6341 = vpop.f32.mrf.mxu0
        %v6342 = vadd.f32 %v6269, %v6341
        %6343 = vmatmul.bf16.gmra.mxu0 %v447
        %v6344 = vpop.f32.mrf.mxu0
        %v6345 = vadd.f32 %v6272, %v6344
        %v6346 = vpop.f32.mrf.mxu0
        %v6347 = vadd.f32 %v6274, %v6346
        %6348 = vmatmul.bf16.gmra.mxu0 %v453
        %v6349 = vpop.f32.mrf.mxu0
        %v6350 = vadd.f32 %v6277, %v6349
        %v6351 = vpop.f32.mrf.mxu0
        %v6352 = vadd.f32 %v6279, %v6351
        %6353 = vmatmul.bf16.gmra.mxu0 %v459
        %v6354 = vpop.f32.mrf.mxu0
        %v6355 = vadd.f32 %v6282, %v6354
        %v6356 = vpop.f32.mrf.mxu0
        %v6357 = vadd.f32 %v6284, %v6356
        %6358 = vmatmul.bf16.gmra.mxu0 %v465
        %v6359 = vpop.f32.mrf.mxu0
        %v6360 = vadd.f32 %v6287, %v6359
        %v6361 = vpop.f32.mrf.mxu0
        %v6362 = vadd.f32 %v6289, %v6361
        %6363 = vmatmul.bf16.gmra.mxu0 %v471
        %v6364 = vpop.f32.mrf.mxu0
        %v6365 = vadd.f32 %v6292, %v6364
        %v6366 = vpop.f32.mrf.mxu0
        %6367 = vdwg.mxu0
        %6368 = vmatpush.bf16.msra.mxu0 %v3184
        %6369 = vmatpush.bf16.msra.mxu0 %v3172
        %6370 = vmatpush.bf16.msra.mxu0 %v3160
        %6371 = vmatpush.bf16.msra.mxu0 %v3148
        %6372 = vmatpush.bf16.msra.mxu0 %v3136
        %6373 = vmatpush.bf16.msra.mxu0 %v3124
        %6374 = vmatpush.bf16.msra.mxu0 %v3112
        %6375 = vmatpush.bf16.msra.mxu0 %v3100
        %6376 = vmatmul.bf16.gmra.mxu0 %v400
        %v6377 = vpop.f32.mrf.mxu0
        %v6378 = vadd.f32 %v6305, %v6377
        %v6379 = vpop.f32.mrf.mxu0
        %v6380 = vadd.f32 %v6307, %v6379
        %6381 = vmatmul.bf16.gmra.mxu0 %v406
        %v6382 = vpop.f32.mrf.mxu0
        %v6383 = vadd.f32 %v6310, %v6382
        %v6384 = vpop.f32.mrf.mxu0
        %v6385 = vadd.f32 %v6312, %v6384
        %6386 = vmatmul.bf16.gmra.mxu0 %v412
        %v6387 = vpop.f32.mrf.mxu0
        %v6388 = vadd.f32 %v6315, %v6387
        %v6389 = vpop.f32.mrf.mxu0
        %v6390 = vadd.f32 %v6317, %v6389
        %6391 = vmatmul.bf16.gmra.mxu0 %v418
        %v6392 = vpop.f32.mrf.mxu0
        %v6393 = vadd.f32 %v6320, %v6392
        %v6394 = vpop.f32.mrf.mxu0
        %v6395 = vadd.f32 %v6322, %v6394
        %6396 = vmatmul.bf16.gmra.mxu0 %v424
        %v6397 = vpop.f32.mrf.mxu0
        %v6398 = vadd.f32 %v6325, %v6397
        %v6399 = vpop.f32.mrf.mxu0
        %v6400 = vadd.f32 %v6327, %v6399
        %6401 = vmatmul.bf16.gmra.mxu0 %v430
        %v6402 = vpop.f32.mrf.mxu0
        %v6403 = vadd.f32 %v6330, %v6402
        %v6404 = vpop.f32.mrf.mxu0
        %v6405 = vadd.f32 %v6332, %v6404
        %6406 = vmatmul.bf16.gmra.mxu0 %v436
        %v6407 = vpop.f32.mrf.mxu0
        %v6408 = vadd.f32 %v6335, %v6407
        %v6409 = vpop.f32.mrf.mxu0
        %v6410 = vadd.f32 %v6337, %v6409
        %6411 = vmatmul.bf16.gmra.mxu0 %v442
        %v6412 = vpop.f32.mrf.mxu0
        %v6413 = vadd.f32 %v6340, %v6412
        %v6414 = vpop.f32.mrf.mxu0
        %v6415 = vadd.f32 %v6342, %v6414
        %6416 = vmatmul.bf16.gmra.mxu0 %v448
        %v6417 = vpop.f32.mrf.mxu0
        %v6418 = vadd.f32 %v6345, %v6417
        %v6419 = vpop.f32.mrf.mxu0
        %v6420 = vadd.f32 %v6347, %v6419
        %6421 = vmatmul.bf16.gmra.mxu0 %v454
        %v6422 = vpop.f32.mrf.mxu0
        %v6423 = vadd.f32 %v6350, %v6422
        %v6424 = vpop.f32.mrf.mxu0
        %v6425 = vadd.f32 %v6352, %v6424
        %6426 = vmatmul.bf16.gmra.mxu0 %v460
        %v6427 = vpop.f32.mrf.mxu0
        %v6428 = vadd.f32 %v6355, %v6427
        %v6429 = vpop.f32.mrf.mxu0
        %v6430 = vadd.f32 %v6357, %v6429
        %6431 = vmatmul.bf16.gmra.mxu0 %v466
        %v6432 = vpop.f32.mrf.mxu0
        %v6433 = vadd.f32 %v6360, %v6432
        %v6434 = vpop.f32.mrf.mxu0
        %v6435 = vadd.f32 %v6362, %v6434
        %6436 = vmatmul.bf16.gmra.mxu0 %v472
        %v6437 = vpop.f32.mrf.mxu0
        %v6438 = vadd.f32 %v6365, %v6437
        %v6439 = vpop.f32.mrf.mxu0
        %6440 = vdwg.mxu0
        %6441 = vmatpush.bf16.msra.mxu0 %v3280
        %6442 = vmatpush.bf16.msra.mxu0 %v3268
        %6443 = vmatpush.bf16.msra.mxu0 %v3256
        %6444 = vmatpush.bf16.msra.mxu0 %v3244
        %6445 = vmatpush.bf16.msra.mxu0 %v3232
        %6446 = vmatpush.bf16.msra.mxu0 %v3220
        %6447 = vmatpush.bf16.msra.mxu0 %v3208
        %6448 = vmatpush.bf16.msra.mxu0 %v3196
        %6449 = vmatmul.bf16.gmra.mxu0 %v401
        %v6450 = vpop.f32.mrf.mxu0
        %v6451 = vadd.f32 %v6378, %v6450
        %v6452 = vpop.f32.mrf.mxu0
        %v6453 = vadd.f32 %v6380, %v6452
        %6454 = vmatmul.bf16.gmra.mxu0 %v407
        %v6455 = vpop.f32.mrf.mxu0
        %v6456 = vadd.f32 %v6383, %v6455
        %v6457 = vpop.f32.mrf.mxu0
        %v6458 = vadd.f32 %v6385, %v6457
        %6459 = vmatmul.bf16.gmra.mxu0 %v413
        %v6460 = vpop.f32.mrf.mxu0
        %v6461 = vadd.f32 %v6388, %v6460
        %v6462 = vpop.f32.mrf.mxu0
        %v6463 = vadd.f32 %v6390, %v6462
        %6464 = vmatmul.bf16.gmra.mxu0 %v419
        %v6465 = vpop.f32.mrf.mxu0
        %v6466 = vadd.f32 %v6393, %v6465
        %v6467 = vpop.f32.mrf.mxu0
        %v6468 = vadd.f32 %v6395, %v6467
        %6469 = vmatmul.bf16.gmra.mxu0 %v425
        %v6470 = vpop.f32.mrf.mxu0
        %v6471 = vadd.f32 %v6398, %v6470
        %v6472 = vpop.f32.mrf.mxu0
        %v6473 = vadd.f32 %v6400, %v6472
        %6474 = vmatmul.bf16.gmra.mxu0 %v431
        %v6475 = vpop.f32.mrf.mxu0
        %v6476 = vadd.f32 %v6403, %v6475
        %v6477 = vpop.f32.mrf.mxu0
        %v6478 = vadd.f32 %v6405, %v6477
        %6479 = vmatmul.bf16.gmra.mxu0 %v437
        %v6480 = vpop.f32.mrf.mxu0
        %v6481 = vadd.f32 %v6408, %v6480
        %v6482 = vpop.f32.mrf.mxu0
        %v6483 = vadd.f32 %v6410, %v6482
        %6484 = vmatmul.bf16.gmra.mxu0 %v443
        %v6485 = vpop.f32.mrf.mxu0
        %v6486 = vadd.f32 %v6413, %v6485
        %v6487 = vpop.f32.mrf.mxu0
        %v6488 = vadd.f32 %v6415, %v6487
        %6489 = vmatmul.bf16.gmra.mxu0 %v449
        %v6490 = vpop.f32.mrf.mxu0
        %v6491 = vadd.f32 %v6418, %v6490
        %v6492 = vpop.f32.mrf.mxu0
        %v6493 = vadd.f32 %v6420, %v6492
        %6494 = vmatmul.bf16.gmra.mxu0 %v455
        %v6495 = vpop.f32.mrf.mxu0
        %v6496 = vadd.f32 %v6423, %v6495
        %v6497 = vpop.f32.mrf.mxu0
        %v6498 = vadd.f32 %v6425, %v6497
        %6499 = vmatmul.bf16.gmra.mxu0 %v461
        %v6500 = vpop.f32.mrf.mxu0
        %v6501 = vadd.f32 %v6428, %v6500
        %v6502 = vpop.f32.mrf.mxu0
        %v6503 = vadd.f32 %v6430, %v6502
        %6504 = vmatmul.bf16.gmra.mxu0 %v467
        %v6505 = vpop.f32.mrf.mxu0
        %v6506 = vadd.f32 %v6433, %v6505
        %v6507 = vpop.f32.mrf.mxu0
        %v6508 = vadd.f32 %v6435, %v6507
        %6509 = vmatmul.bf16.gmra.mxu0 %v473
        %v6510 = vpop.f32.mrf.mxu0
        %v6511 = vadd.f32 %v6438, %v6510
        %v6512 = vpop.f32.mrf.mxu0
        %6513 = vdwg.mxu0
        %6514 = vmatpush.bf16.msra.mxu0 %v3376
        %6515 = vmatpush.bf16.msra.mxu0 %v3364
        %6516 = vmatpush.bf16.msra.mxu0 %v3352
        %6517 = vmatpush.bf16.msra.mxu0 %v3340
        %6518 = vmatpush.bf16.msra.mxu0 %v3328
        %6519 = vmatpush.bf16.msra.mxu0 %v3316
        %6520 = vmatpush.bf16.msra.mxu0 %v3304
        %6521 = vmatpush.bf16.msra.mxu0 %v3292
        %6522 = vmatmul.bf16.gmra.mxu0 %v402
        %v6523 = vpop.f32.mrf.mxu0
        %v6524 = vadd.f32 %v6451, %v6523
        %v6525 = vpop.f32.mrf.mxu0
        %v6526 = vadd.f32 %v6453, %v6525
        %6527 = vmatmul.bf16.gmra.mxu0 %v408
        %v6528 = vpop.f32.mrf.mxu0
        %v6529 = vadd.f32 %v6456, %v6528
        %v6530 = vpop.f32.mrf.mxu0
        %v6531 = vadd.f32 %v6458, %v6530
        %6532 = vmatmul.bf16.gmra.mxu0 %v414
        %v6533 = vpop.f32.mrf.mxu0
        %v6534 = vadd.f32 %v6461, %v6533
        %v6535 = vpop.f32.mrf.mxu0
        %v6536 = vadd.f32 %v6463, %v6535
        %6537 = vmatmul.bf16.gmra.mxu0 %v420
        %v6538 = vpop.f32.mrf.mxu0
        %v6539 = vadd.f32 %v6466, %v6538
        %v6540 = vpop.f32.mrf.mxu0
        %v6541 = vadd.f32 %v6468, %v6540
        %6542 = vmatmul.bf16.gmra.mxu0 %v426
        %v6543 = vpop.f32.mrf.mxu0
        %v6544 = vadd.f32 %v6471, %v6543
        %v6545 = vpop.f32.mrf.mxu0
        %v6546 = vadd.f32 %v6473, %v6545
        %6547 = vmatmul.bf16.gmra.mxu0 %v432
        %v6548 = vpop.f32.mrf.mxu0
        %v6549 = vadd.f32 %v6476, %v6548
        %v6550 = vpop.f32.mrf.mxu0
        %v6551 = vadd.f32 %v6478, %v6550
        %6552 = vmatmul.bf16.gmra.mxu0 %v438
        %v6553 = vpop.f32.mrf.mxu0
        %v6554 = vadd.f32 %v6481, %v6553
        %v6555 = vpop.f32.mrf.mxu0
        %v6556 = vadd.f32 %v6483, %v6555
        %6557 = vmatmul.bf16.gmra.mxu0 %v444
        %v6558 = vpop.f32.mrf.mxu0
        %v6559 = vadd.f32 %v6486, %v6558
        %v6560 = vpop.f32.mrf.mxu0
        %v6561 = vadd.f32 %v6488, %v6560
        %6562 = vmatmul.bf16.gmra.mxu0 %v450
        %v6563 = vpop.f32.mrf.mxu0
        %v6564 = vadd.f32 %v6491, %v6563
        %v6565 = vpop.f32.mrf.mxu0
        %v6566 = vadd.f32 %v6493, %v6565
        %6567 = vmatmul.bf16.gmra.mxu0 %v456
        %v6568 = vpop.f32.mrf.mxu0
        %v6569 = vadd.f32 %v6496, %v6568
        %v6570 = vpop.f32.mrf.mxu0
        %v6571 = vadd.f32 %v6498, %v6570
        %6572 = vmatmul.bf16.gmra.mxu0 %v462
        %v6573 = vpop.f32.mrf.mxu0
        %v6574 = vadd.f32 %v6501, %v6573
        %v6575 = vpop.f32.mrf.mxu0
        %v6576 = vadd.f32 %v6503, %v6575
        %6577 = vmatmul.bf16.gmra.mxu0 %v468
        %v6578 = vpop.f32.mrf.mxu0
        %v6579 = vadd.f32 %v6506, %v6578
        %v6580 = vpop.f32.mrf.mxu0
        %v6581 = vadd.f32 %v6508, %v6580
        %6582 = vmatmul.bf16.gmra.mxu0 %v474
        %v6583 = vpop.f32.mrf.mxu0
        %v6584 = vadd.f32 %v6511, %v6583
        %v6585 = vpop.f32.mrf.mxu0
        %6586 = vdwg.mxu0
        %6587 = vmatpush.bf16.msra.mxu0 %v2897
        %6588 = vmatpush.bf16.msra.mxu0 %v2885
        %6589 = vmatpush.bf16.msra.mxu0 %v2873
        %6590 = vmatpush.bf16.msra.mxu0 %v2861
        %6591 = vmatpush.bf16.msra.mxu0 %v2849
        %6592 = vmatpush.bf16.msra.mxu0 %v2837
        %6593 = vmatpush.bf16.msra.mxu0 %v2825
        %6594 = vmatpush.bf16.msra.mxu0 %v2813
        %6595 = vmatmul.bf16.gmra.mxu0 %v397
        %v6596 = vpop.f32.mrf.mxu0
        %v6597 = vadd.f32 %v1061, %v6596
        %v6598 = vpop.f32.mrf.mxu0
        %v6599 = vadd.f32 %v1061, %v6598
        %6600 = vmatmul.bf16.gmra.mxu0 %v403
        %v6601 = vpop.f32.mrf.mxu0
        %v6602 = vadd.f32 %v1061, %v6601
        %v6603 = vpop.f32.mrf.mxu0
        %v6604 = vadd.f32 %v1061, %v6603
        %6605 = vmatmul.bf16.gmra.mxu0 %v409
        %v6606 = vpop.f32.mrf.mxu0
        %v6607 = vadd.f32 %v1061, %v6606
        %v6608 = vpop.f32.mrf.mxu0
        %v6609 = vadd.f32 %v1061, %v6608
        %6610 = vmatmul.bf16.gmra.mxu0 %v415
        %v6611 = vpop.f32.mrf.mxu0
        %v6612 = vadd.f32 %v1061, %v6611
        %v6613 = vpop.f32.mrf.mxu0
        %v6614 = vadd.f32 %v1061, %v6613
        %6615 = vmatmul.bf16.gmra.mxu0 %v421
        %v6616 = vpop.f32.mrf.mxu0
        %v6617 = vadd.f32 %v1061, %v6616
        %v6618 = vpop.f32.mrf.mxu0
        %v6619 = vadd.f32 %v1061, %v6618
        %6620 = vmatmul.bf16.gmra.mxu0 %v427
        %v6621 = vpop.f32.mrf.mxu0
        %v6622 = vadd.f32 %v1061, %v6621
        %v6623 = vpop.f32.mrf.mxu0
        %v6624 = vadd.f32 %v1061, %v6623
        %6625 = vmatmul.bf16.gmra.mxu0 %v433
        %v6626 = vpop.f32.mrf.mxu0
        %v6627 = vadd.f32 %v1061, %v6626
        %v6628 = vpop.f32.mrf.mxu0
        %v6629 = vadd.f32 %v1061, %v6628
        %6630 = vmatmul.bf16.gmra.mxu0 %v439
        %v6631 = vpop.f32.mrf.mxu0
        %v6632 = vadd.f32 %v1061, %v6631
        %v6633 = vpop.f32.mrf.mxu0
        %v6634 = vadd.f32 %v1061, %v6633
        %6635 = vmatmul.bf16.gmra.mxu0 %v445
        %v6636 = vpop.f32.mrf.mxu0
        %v6637 = vadd.f32 %v1061, %v6636
        %v6638 = vpop.f32.mrf.mxu0
        %v6639 = vadd.f32 %v1061, %v6638
        %6640 = vmatmul.bf16.gmra.mxu0 %v451
        %v6641 = vpop.f32.mrf.mxu0
        %v6642 = vadd.f32 %v1061, %v6641
        %v6643 = vpop.f32.mrf.mxu0
        %v6644 = vadd.f32 %v1061, %v6643
        %6645 = vmatmul.bf16.gmra.mxu0 %v457
        %v6646 = vpop.f32.mrf.mxu0
        %v6647 = vadd.f32 %v1061, %v6646
        %v6648 = vpop.f32.mrf.mxu0
        %v6649 = vadd.f32 %v1061, %v6648
        %6650 = vmatmul.bf16.gmra.mxu0 %v463
        %v6651 = vpop.f32.mrf.mxu0
        %v6652 = vadd.f32 %v1061, %v6651
        %v6653 = vpop.f32.mrf.mxu0
        %v6654 = vadd.f32 %v1061, %v6653
        %6655 = vmatmul.bf16.gmra.mxu0 %v469
        %v6656 = vpop.f32.mrf.mxu0
        %v6657 = vadd.f32 %v1061, %v6656
        %v6658 = vpop.f32.mrf.mxu0
        %6659 = vdwg.mxu0
        %6660 = vmatpush.bf16.msra.mxu0 %v2993
        %6661 = vmatpush.bf16.msra.mxu0 %v2981
        %6662 = vmatpush.bf16.msra.mxu0 %v2969
        %6663 = vmatpush.bf16.msra.mxu0 %v2957
        %6664 = vmatpush.bf16.msra.mxu0 %v2945
        %6665 = vmatpush.bf16.msra.mxu0 %v2933
        %6666 = vmatpush.bf16.msra.mxu0 %v2921
        %6667 = vmatpush.bf16.msra.mxu0 %v2909
        %6668 = vmatmul.bf16.gmra.mxu0 %v398
        %v6669 = vpop.f32.mrf.mxu0
        %v6670 = vadd.f32 %v6597, %v6669
        %v6671 = vpop.f32.mrf.mxu0
        %v6672 = vadd.f32 %v6599, %v6671
        %6673 = vmatmul.bf16.gmra.mxu0 %v404
        %v6674 = vpop.f32.mrf.mxu0
        %v6675 = vadd.f32 %v6602, %v6674
        %v6676 = vpop.f32.mrf.mxu0
        %v6677 = vadd.f32 %v6604, %v6676
        %6678 = vmatmul.bf16.gmra.mxu0 %v410
        %v6679 = vpop.f32.mrf.mxu0
        %v6680 = vadd.f32 %v6607, %v6679
        %v6681 = vpop.f32.mrf.mxu0
        %v6682 = vadd.f32 %v6609, %v6681
        %6683 = vmatmul.bf16.gmra.mxu0 %v416
        %v6684 = vpop.f32.mrf.mxu0
        %v6685 = vadd.f32 %v6612, %v6684
        %v6686 = vpop.f32.mrf.mxu0
        %v6687 = vadd.f32 %v6614, %v6686
        %6688 = vmatmul.bf16.gmra.mxu0 %v422
        %v6689 = vpop.f32.mrf.mxu0
        %v6690 = vadd.f32 %v6617, %v6689
        %v6691 = vpop.f32.mrf.mxu0
        %v6692 = vadd.f32 %v6619, %v6691
        %6693 = vmatmul.bf16.gmra.mxu0 %v428
        %v6694 = vpop.f32.mrf.mxu0
        %v6695 = vadd.f32 %v6622, %v6694
        %v6696 = vpop.f32.mrf.mxu0
        %v6697 = vadd.f32 %v6624, %v6696
        %6698 = vmatmul.bf16.gmra.mxu0 %v434
        %v6699 = vpop.f32.mrf.mxu0
        %v6700 = vadd.f32 %v6627, %v6699
        %v6701 = vpop.f32.mrf.mxu0
        %v6702 = vadd.f32 %v6629, %v6701
        %6703 = vmatmul.bf16.gmra.mxu0 %v440
        %v6704 = vpop.f32.mrf.mxu0
        %v6705 = vadd.f32 %v6632, %v6704
        %v6706 = vpop.f32.mrf.mxu0
        %v6707 = vadd.f32 %v6634, %v6706
        %6708 = vmatmul.bf16.gmra.mxu0 %v446
        %v6709 = vpop.f32.mrf.mxu0
        %v6710 = vadd.f32 %v6637, %v6709
        %v6711 = vpop.f32.mrf.mxu0
        %v6712 = vadd.f32 %v6639, %v6711
        %6713 = vmatmul.bf16.gmra.mxu0 %v452
        %v6714 = vpop.f32.mrf.mxu0
        %v6715 = vadd.f32 %v6642, %v6714
        %v6716 = vpop.f32.mrf.mxu0
        %v6717 = vadd.f32 %v6644, %v6716
        %6718 = vmatmul.bf16.gmra.mxu0 %v458
        %v6719 = vpop.f32.mrf.mxu0
        %v6720 = vadd.f32 %v6647, %v6719
        %v6721 = vpop.f32.mrf.mxu0
        %v6722 = vadd.f32 %v6649, %v6721
        %6723 = vmatmul.bf16.gmra.mxu0 %v464
        %v6724 = vpop.f32.mrf.mxu0
        %v6725 = vadd.f32 %v6652, %v6724
        %v6726 = vpop.f32.mrf.mxu0
        %v6727 = vadd.f32 %v6654, %v6726
        %6728 = vmatmul.bf16.gmra.mxu0 %v470
        %v6729 = vpop.f32.mrf.mxu0
        %v6730 = vadd.f32 %v6657, %v6729
        %v6731 = vpop.f32.mrf.mxu0
        %6732 = vdwg.mxu0
        %6733 = vmatpush.bf16.msra.mxu0 %v3089
        %6734 = vmatpush.bf16.msra.mxu0 %v3077
        %6735 = vmatpush.bf16.msra.mxu0 %v3065
        %6736 = vmatpush.bf16.msra.mxu0 %v3053
        %6737 = vmatpush.bf16.msra.mxu0 %v3041
        %6738 = vmatpush.bf16.msra.mxu0 %v3029
        %6739 = vmatpush.bf16.msra.mxu0 %v3017
        %6740 = vmatpush.bf16.msra.mxu0 %v3005
        %6741 = vmatmul.bf16.gmra.mxu0 %v399
        %v6742 = vpop.f32.mrf.mxu0
        %v6743 = vadd.f32 %v6670, %v6742
        %v6744 = vpop.f32.mrf.mxu0
        %v6745 = vadd.f32 %v6672, %v6744
        %6746 = vmatmul.bf16.gmra.mxu0 %v405
        %v6747 = vpop.f32.mrf.mxu0
        %v6748 = vadd.f32 %v6675, %v6747
        %v6749 = vpop.f32.mrf.mxu0
        %v6750 = vadd.f32 %v6677, %v6749
        %6751 = vmatmul.bf16.gmra.mxu0 %v411
        %v6752 = vpop.f32.mrf.mxu0
        %v6753 = vadd.f32 %v6680, %v6752
        %v6754 = vpop.f32.mrf.mxu0
        %v6755 = vadd.f32 %v6682, %v6754
        %6756 = vmatmul.bf16.gmra.mxu0 %v417
        %v6757 = vpop.f32.mrf.mxu0
        %v6758 = vadd.f32 %v6685, %v6757
        %v6759 = vpop.f32.mrf.mxu0
        %v6760 = vadd.f32 %v6687, %v6759
        %6761 = vmatmul.bf16.gmra.mxu0 %v423
        %v6762 = vpop.f32.mrf.mxu0
        %v6763 = vadd.f32 %v6690, %v6762
        %v6764 = vpop.f32.mrf.mxu0
        %v6765 = vadd.f32 %v6692, %v6764
        %6766 = vmatmul.bf16.gmra.mxu0 %v429
        %v6767 = vpop.f32.mrf.mxu0
        %v6768 = vadd.f32 %v6695, %v6767
        %v6769 = vpop.f32.mrf.mxu0
        %v6770 = vadd.f32 %v6697, %v6769
        %6771 = vmatmul.bf16.gmra.mxu0 %v435
        %v6772 = vpop.f32.mrf.mxu0
        %v6773 = vadd.f32 %v6700, %v6772
        %v6774 = vpop.f32.mrf.mxu0
        %v6775 = vadd.f32 %v6702, %v6774
        %6776 = vmatmul.bf16.gmra.mxu0 %v441
        %v6777 = vpop.f32.mrf.mxu0
        %v6778 = vadd.f32 %v6705, %v6777
        %v6779 = vpop.f32.mrf.mxu0
        %v6780 = vadd.f32 %v6707, %v6779
        %6781 = vmatmul.bf16.gmra.mxu0 %v447
        %v6782 = vpop.f32.mrf.mxu0
        %v6783 = vadd.f32 %v6710, %v6782
        %v6784 = vpop.f32.mrf.mxu0
        %v6785 = vadd.f32 %v6712, %v6784
        %6786 = vmatmul.bf16.gmra.mxu0 %v453
        %v6787 = vpop.f32.mrf.mxu0
        %v6788 = vadd.f32 %v6715, %v6787
        %v6789 = vpop.f32.mrf.mxu0
        %v6790 = vadd.f32 %v6717, %v6789
        %6791 = vmatmul.bf16.gmra.mxu0 %v459
        %v6792 = vpop.f32.mrf.mxu0
        %v6793 = vadd.f32 %v6720, %v6792
        %v6794 = vpop.f32.mrf.mxu0
        %v6795 = vadd.f32 %v6722, %v6794
        %6796 = vmatmul.bf16.gmra.mxu0 %v465
        %v6797 = vpop.f32.mrf.mxu0
        %v6798 = vadd.f32 %v6725, %v6797
        %v6799 = vpop.f32.mrf.mxu0
        %v6800 = vadd.f32 %v6727, %v6799
        %6801 = vmatmul.bf16.gmra.mxu0 %v471
        %v6802 = vpop.f32.mrf.mxu0
        %v6803 = vadd.f32 %v6730, %v6802
        %v6804 = vpop.f32.mrf.mxu0
        %6805 = vdwg.mxu0
        %6806 = vmatpush.bf16.msra.mxu0 %v3185
        %6807 = vmatpush.bf16.msra.mxu0 %v3173
        %6808 = vmatpush.bf16.msra.mxu0 %v3161
        %6809 = vmatpush.bf16.msra.mxu0 %v3149
        %6810 = vmatpush.bf16.msra.mxu0 %v3137
        %6811 = vmatpush.bf16.msra.mxu0 %v3125
        %6812 = vmatpush.bf16.msra.mxu0 %v3113
        %6813 = vmatpush.bf16.msra.mxu0 %v3101
        %6814 = vmatmul.bf16.gmra.mxu0 %v400
        %v6815 = vpop.f32.mrf.mxu0
        %v6816 = vadd.f32 %v6743, %v6815
        %v6817 = vpop.f32.mrf.mxu0
        %v6818 = vadd.f32 %v6745, %v6817
        %6819 = vmatmul.bf16.gmra.mxu0 %v406
        %v6820 = vpop.f32.mrf.mxu0
        %v6821 = vadd.f32 %v6748, %v6820
        %v6822 = vpop.f32.mrf.mxu0
        %v6823 = vadd.f32 %v6750, %v6822
        %6824 = vmatmul.bf16.gmra.mxu0 %v412
        %v6825 = vpop.f32.mrf.mxu0
        %v6826 = vadd.f32 %v6753, %v6825
        %v6827 = vpop.f32.mrf.mxu0
        %v6828 = vadd.f32 %v6755, %v6827
        %6829 = vmatmul.bf16.gmra.mxu0 %v418
        %v6830 = vpop.f32.mrf.mxu0
        %v6831 = vadd.f32 %v6758, %v6830
        %v6832 = vpop.f32.mrf.mxu0
        %v6833 = vadd.f32 %v6760, %v6832
        %6834 = vmatmul.bf16.gmra.mxu0 %v424
        %v6835 = vpop.f32.mrf.mxu0
        %v6836 = vadd.f32 %v6763, %v6835
        %v6837 = vpop.f32.mrf.mxu0
        %v6838 = vadd.f32 %v6765, %v6837
        %6839 = vmatmul.bf16.gmra.mxu0 %v430
        %v6840 = vpop.f32.mrf.mxu0
        %v6841 = vadd.f32 %v6768, %v6840
        %v6842 = vpop.f32.mrf.mxu0
        %v6843 = vadd.f32 %v6770, %v6842
        %6844 = vmatmul.bf16.gmra.mxu0 %v436
        %v6845 = vpop.f32.mrf.mxu0
        %v6846 = vadd.f32 %v6773, %v6845
        %v6847 = vpop.f32.mrf.mxu0
        %v6848 = vadd.f32 %v6775, %v6847
        %6849 = vmatmul.bf16.gmra.mxu0 %v442
        %v6850 = vpop.f32.mrf.mxu0
        %v6851 = vadd.f32 %v6778, %v6850
        %v6852 = vpop.f32.mrf.mxu0
        %v6853 = vadd.f32 %v6780, %v6852
        %6854 = vmatmul.bf16.gmra.mxu0 %v448
        %v6855 = vpop.f32.mrf.mxu0
        %v6856 = vadd.f32 %v6783, %v6855
        %v6857 = vpop.f32.mrf.mxu0
        %v6858 = vadd.f32 %v6785, %v6857
        %6859 = vmatmul.bf16.gmra.mxu0 %v454
        %v6860 = vpop.f32.mrf.mxu0
        %v6861 = vadd.f32 %v6788, %v6860
        %v6862 = vpop.f32.mrf.mxu0
        %v6863 = vadd.f32 %v6790, %v6862
        %6864 = vmatmul.bf16.gmra.mxu0 %v460
        %v6865 = vpop.f32.mrf.mxu0
        %v6866 = vadd.f32 %v6793, %v6865
        %v6867 = vpop.f32.mrf.mxu0
        %v6868 = vadd.f32 %v6795, %v6867
        %6869 = vmatmul.bf16.gmra.mxu0 %v466
        %v6870 = vpop.f32.mrf.mxu0
        %v6871 = vadd.f32 %v6798, %v6870
        %v6872 = vpop.f32.mrf.mxu0
        %v6873 = vadd.f32 %v6800, %v6872
        %6874 = vmatmul.bf16.gmra.mxu0 %v472
        %v6875 = vpop.f32.mrf.mxu0
        %v6876 = vadd.f32 %v6803, %v6875
        %v6877 = vpop.f32.mrf.mxu0
        %6878 = vdwg.mxu0
        %6879 = vmatpush.bf16.msra.mxu0 %v3281
        %6880 = vmatpush.bf16.msra.mxu0 %v3269
        %6881 = vmatpush.bf16.msra.mxu0 %v3257
        %6882 = vmatpush.bf16.msra.mxu0 %v3245
        %6883 = vmatpush.bf16.msra.mxu0 %v3233
        %6884 = vmatpush.bf16.msra.mxu0 %v3221
        %6885 = vmatpush.bf16.msra.mxu0 %v3209
        %6886 = vmatpush.bf16.msra.mxu0 %v3197
        %6887 = vmatmul.bf16.gmra.mxu0 %v401
        %v6888 = vpop.f32.mrf.mxu0
        %v6889 = vadd.f32 %v6816, %v6888
        %v6890 = vpop.f32.mrf.mxu0
        %v6891 = vadd.f32 %v6818, %v6890
        %6892 = vmatmul.bf16.gmra.mxu0 %v407
        %v6893 = vpop.f32.mrf.mxu0
        %v6894 = vadd.f32 %v6821, %v6893
        %v6895 = vpop.f32.mrf.mxu0
        %v6896 = vadd.f32 %v6823, %v6895
        %6897 = vmatmul.bf16.gmra.mxu0 %v413
        %v6898 = vpop.f32.mrf.mxu0
        %v6899 = vadd.f32 %v6826, %v6898
        %v6900 = vpop.f32.mrf.mxu0
        %v6901 = vadd.f32 %v6828, %v6900
        %6902 = vmatmul.bf16.gmra.mxu0 %v419
        %v6903 = vpop.f32.mrf.mxu0
        %v6904 = vadd.f32 %v6831, %v6903
        %v6905 = vpop.f32.mrf.mxu0
        %v6906 = vadd.f32 %v6833, %v6905
        %6907 = vmatmul.bf16.gmra.mxu0 %v425
        %v6908 = vpop.f32.mrf.mxu0
        %v6909 = vadd.f32 %v6836, %v6908
        %v6910 = vpop.f32.mrf.mxu0
        %v6911 = vadd.f32 %v6838, %v6910
        %6912 = vmatmul.bf16.gmra.mxu0 %v431
        %v6913 = vpop.f32.mrf.mxu0
        %v6914 = vadd.f32 %v6841, %v6913
        %v6915 = vpop.f32.mrf.mxu0
        %v6916 = vadd.f32 %v6843, %v6915
        %6917 = vmatmul.bf16.gmra.mxu0 %v437
        %v6918 = vpop.f32.mrf.mxu0
        %v6919 = vadd.f32 %v6846, %v6918
        %v6920 = vpop.f32.mrf.mxu0
        %v6921 = vadd.f32 %v6848, %v6920
        %6922 = vmatmul.bf16.gmra.mxu0 %v443
        %v6923 = vpop.f32.mrf.mxu0
        %v6924 = vadd.f32 %v6851, %v6923
        %v6925 = vpop.f32.mrf.mxu0
        %v6926 = vadd.f32 %v6853, %v6925
        %6927 = vmatmul.bf16.gmra.mxu0 %v449
        %v6928 = vpop.f32.mrf.mxu0
        %v6929 = vadd.f32 %v6856, %v6928
        %v6930 = vpop.f32.mrf.mxu0
        %v6931 = vadd.f32 %v6858, %v6930
        %6932 = vmatmul.bf16.gmra.mxu0 %v455
        %v6933 = vpop.f32.mrf.mxu0
        %v6934 = vadd.f32 %v6861, %v6933
        %v6935 = vpop.f32.mrf.mxu0
        %v6936 = vadd.f32 %v6863, %v6935
        %6937 = vmatmul.bf16.gmra.mxu0 %v461
        %v6938 = vpop.f32.mrf.mxu0
        %v6939 = vadd.f32 %v6866, %v6938
        %v6940 = vpop.f32.mrf.mxu0
        %v6941 = vadd.f32 %v6868, %v6940
        %6942 = vmatmul.bf16.gmra.mxu0 %v467
        %v6943 = vpop.f32.mrf.mxu0
        %v6944 = vadd.f32 %v6871, %v6943
        %v6945 = vpop.f32.mrf.mxu0
        %v6946 = vadd.f32 %v6873, %v6945
        %6947 = vmatmul.bf16.gmra.mxu0 %v473
        %v6948 = vpop.f32.mrf.mxu0
        %v6949 = vadd.f32 %v6876, %v6948
        %v6950 = vpop.f32.mrf.mxu0
        %6951 = vdwg.mxu0
        %6952 = vmatpush.bf16.msra.mxu0 %v3377
        %6953 = vmatpush.bf16.msra.mxu0 %v3365
        %6954 = vmatpush.bf16.msra.mxu0 %v3353
        %6955 = vmatpush.bf16.msra.mxu0 %v3341
        %6956 = vmatpush.bf16.msra.mxu0 %v3329
        %6957 = vmatpush.bf16.msra.mxu0 %v3317
        %6958 = vmatpush.bf16.msra.mxu0 %v3305
        %6959 = vmatpush.bf16.msra.mxu0 %v3293
        %6960 = vmatmul.bf16.gmra.mxu0 %v402
        %v6961 = vpop.f32.mrf.mxu0
        %v6962 = vadd.f32 %v6889, %v6961
        %v6963 = vpop.f32.mrf.mxu0
        %v6964 = vadd.f32 %v6891, %v6963
        %6965 = vmatmul.bf16.gmra.mxu0 %v408
        %v6966 = vpop.f32.mrf.mxu0
        %v6967 = vadd.f32 %v6894, %v6966
        %v6968 = vpop.f32.mrf.mxu0
        %v6969 = vadd.f32 %v6896, %v6968
        %6970 = vmatmul.bf16.gmra.mxu0 %v414
        %v6971 = vpop.f32.mrf.mxu0
        %v6972 = vadd.f32 %v6899, %v6971
        %v6973 = vpop.f32.mrf.mxu0
        %v6974 = vadd.f32 %v6901, %v6973
        %6975 = vmatmul.bf16.gmra.mxu0 %v420
        %v6976 = vpop.f32.mrf.mxu0
        %v6977 = vadd.f32 %v6904, %v6976
        %v6978 = vpop.f32.mrf.mxu0
        %v6979 = vadd.f32 %v6906, %v6978
        %6980 = vmatmul.bf16.gmra.mxu0 %v426
        %v6981 = vpop.f32.mrf.mxu0
        %v6982 = vadd.f32 %v6909, %v6981
        %v6983 = vpop.f32.mrf.mxu0
        %v6984 = vadd.f32 %v6911, %v6983
        %6985 = vmatmul.bf16.gmra.mxu0 %v432
        %v6986 = vpop.f32.mrf.mxu0
        %v6987 = vadd.f32 %v6914, %v6986
        %v6988 = vpop.f32.mrf.mxu0
        %v6989 = vadd.f32 %v6916, %v6988
        %6990 = vmatmul.bf16.gmra.mxu0 %v438
        %v6991 = vpop.f32.mrf.mxu0
        %v6992 = vadd.f32 %v6919, %v6991
        %v6993 = vpop.f32.mrf.mxu0
        %v6994 = vadd.f32 %v6921, %v6993
        %6995 = vmatmul.bf16.gmra.mxu0 %v444
        %v6996 = vpop.f32.mrf.mxu0
        %v6997 = vadd.f32 %v6924, %v6996
        %v6998 = vpop.f32.mrf.mxu0
        %v6999 = vadd.f32 %v6926, %v6998
        %7000 = vmatmul.bf16.gmra.mxu0 %v450
        %v7001 = vpop.f32.mrf.mxu0
        %v7002 = vadd.f32 %v6929, %v7001
        %v7003 = vpop.f32.mrf.mxu0
        %v7004 = vadd.f32 %v6931, %v7003
        %7005 = vmatmul.bf16.gmra.mxu0 %v456
        %v7006 = vpop.f32.mrf.mxu0
        %v7007 = vadd.f32 %v6934, %v7006
        %v7008 = vpop.f32.mrf.mxu0
        %v7009 = vadd.f32 %v6936, %v7008
        %7010 = vmatmul.bf16.gmra.mxu0 %v462
        %v7011 = vpop.f32.mrf.mxu0
        %v7012 = vadd.f32 %v6939, %v7011
        %v7013 = vpop.f32.mrf.mxu0
        %v7014 = vadd.f32 %v6941, %v7013
        %7015 = vmatmul.bf16.gmra.mxu0 %v468
        %v7016 = vpop.f32.mrf.mxu0
        %v7017 = vadd.f32 %v6944, %v7016
        %v7018 = vpop.f32.mrf.mxu0
        %v7019 = vadd.f32 %v6946, %v7018
        %7020 = vmatmul.bf16.gmra.mxu0 %v474
        %v7021 = vpop.f32.mrf.mxu0
        %v7022 = vadd.f32 %v6949, %v7021
        %v7023 = vpop.f32.mrf.mxu0
        %7024 = vdwg.mxu0
        %7025 = vmatpush.bf16.msra.mxu0 %v2898
        %7026 = vmatpush.bf16.msra.mxu0 %v2886
        %7027 = vmatpush.bf16.msra.mxu0 %v2874
        %7028 = vmatpush.bf16.msra.mxu0 %v2862
        %7029 = vmatpush.bf16.msra.mxu0 %v2850
        %7030 = vmatpush.bf16.msra.mxu0 %v2838
        %7031 = vmatpush.bf16.msra.mxu0 %v2826
        %7032 = vmatpush.bf16.msra.mxu0 %v2814
        %7033 = vmatmul.bf16.gmra.mxu0 %v397
        %v7034 = vpop.f32.mrf.mxu0
        %v7035 = vadd.f32 %v1062, %v7034
        %v7036 = vpop.f32.mrf.mxu0
        %v7037 = vadd.f32 %v1062, %v7036
        %7038 = vmatmul.bf16.gmra.mxu0 %v403
        %v7039 = vpop.f32.mrf.mxu0
        %v7040 = vadd.f32 %v1062, %v7039
        %v7041 = vpop.f32.mrf.mxu0
        %v7042 = vadd.f32 %v1062, %v7041
        %7043 = vmatmul.bf16.gmra.mxu0 %v409
        %v7044 = vpop.f32.mrf.mxu0
        %v7045 = vadd.f32 %v1062, %v7044
        %v7046 = vpop.f32.mrf.mxu0
        %v7047 = vadd.f32 %v1062, %v7046
        %7048 = vmatmul.bf16.gmra.mxu0 %v415
        %v7049 = vpop.f32.mrf.mxu0
        %v7050 = vadd.f32 %v1062, %v7049
        %v7051 = vpop.f32.mrf.mxu0
        %v7052 = vadd.f32 %v1062, %v7051
        %7053 = vmatmul.bf16.gmra.mxu0 %v421
        %v7054 = vpop.f32.mrf.mxu0
        %v7055 = vadd.f32 %v1062, %v7054
        %v7056 = vpop.f32.mrf.mxu0
        %v7057 = vadd.f32 %v1062, %v7056
        %7058 = vmatmul.bf16.gmra.mxu0 %v427
        %v7059 = vpop.f32.mrf.mxu0
        %v7060 = vadd.f32 %v1062, %v7059
        %v7061 = vpop.f32.mrf.mxu0
        %v7062 = vadd.f32 %v1062, %v7061
        %7063 = vmatmul.bf16.gmra.mxu0 %v433
        %v7064 = vpop.f32.mrf.mxu0
        %v7065 = vadd.f32 %v1062, %v7064
        %v7066 = vpop.f32.mrf.mxu0
        %v7067 = vadd.f32 %v1062, %v7066
        %7068 = vmatmul.bf16.gmra.mxu0 %v439
        %v7069 = vpop.f32.mrf.mxu0
        %v7070 = vadd.f32 %v1062, %v7069
        %v7071 = vpop.f32.mrf.mxu0
        %v7072 = vadd.f32 %v1062, %v7071
        %7073 = vmatmul.bf16.gmra.mxu0 %v445
        %v7074 = vpop.f32.mrf.mxu0
        %v7075 = vadd.f32 %v1062, %v7074
        %v7076 = vpop.f32.mrf.mxu0
        %v7077 = vadd.f32 %v1062, %v7076
        %7078 = vmatmul.bf16.gmra.mxu0 %v451
        %v7079 = vpop.f32.mrf.mxu0
        %v7080 = vadd.f32 %v1062, %v7079
        %v7081 = vpop.f32.mrf.mxu0
        %v7082 = vadd.f32 %v1062, %v7081
        %7083 = vmatmul.bf16.gmra.mxu0 %v457
        %v7084 = vpop.f32.mrf.mxu0
        %v7085 = vadd.f32 %v1062, %v7084
        %v7086 = vpop.f32.mrf.mxu0
        %v7087 = vadd.f32 %v1062, %v7086
        %7088 = vmatmul.bf16.gmra.mxu0 %v463
        %v7089 = vpop.f32.mrf.mxu0
        %v7090 = vadd.f32 %v1062, %v7089
        %v7091 = vpop.f32.mrf.mxu0
        %v7092 = vadd.f32 %v1062, %v7091
        %7093 = vmatmul.bf16.gmra.mxu0 %v469
        %v7094 = vpop.f32.mrf.mxu0
        %v7095 = vadd.f32 %v1062, %v7094
        %v7096 = vpop.f32.mrf.mxu0
        %7097 = vdwg.mxu0
        %7098 = vmatpush.bf16.msra.mxu0 %v2994
        %7099 = vmatpush.bf16.msra.mxu0 %v2982
        %7100 = vmatpush.bf16.msra.mxu0 %v2970
        %7101 = vmatpush.bf16.msra.mxu0 %v2958
        %7102 = vmatpush.bf16.msra.mxu0 %v2946
        %7103 = vmatpush.bf16.msra.mxu0 %v2934
        %7104 = vmatpush.bf16.msra.mxu0 %v2922
        %7105 = vmatpush.bf16.msra.mxu0 %v2910
        %7106 = vmatmul.bf16.gmra.mxu0 %v398
        %v7107 = vpop.f32.mrf.mxu0
        %v7108 = vadd.f32 %v7035, %v7107
        %v7109 = vpop.f32.mrf.mxu0
        %v7110 = vadd.f32 %v7037, %v7109
        %7111 = vmatmul.bf16.gmra.mxu0 %v404
        %v7112 = vpop.f32.mrf.mxu0
        %v7113 = vadd.f32 %v7040, %v7112
        %v7114 = vpop.f32.mrf.mxu0
        %v7115 = vadd.f32 %v7042, %v7114
        %7116 = vmatmul.bf16.gmra.mxu0 %v410
        %v7117 = vpop.f32.mrf.mxu0
        %v7118 = vadd.f32 %v7045, %v7117
        %v7119 = vpop.f32.mrf.mxu0
        %v7120 = vadd.f32 %v7047, %v7119
        %7121 = vmatmul.bf16.gmra.mxu0 %v416
        %v7122 = vpop.f32.mrf.mxu0
        %v7123 = vadd.f32 %v7050, %v7122
        %v7124 = vpop.f32.mrf.mxu0
        %v7125 = vadd.f32 %v7052, %v7124
        %7126 = vmatmul.bf16.gmra.mxu0 %v422
        %v7127 = vpop.f32.mrf.mxu0
        %v7128 = vadd.f32 %v7055, %v7127
        %v7129 = vpop.f32.mrf.mxu0
        %v7130 = vadd.f32 %v7057, %v7129
        %7131 = vmatmul.bf16.gmra.mxu0 %v428
        %v7132 = vpop.f32.mrf.mxu0
        %v7133 = vadd.f32 %v7060, %v7132
        %v7134 = vpop.f32.mrf.mxu0
        %v7135 = vadd.f32 %v7062, %v7134
        %7136 = vmatmul.bf16.gmra.mxu0 %v434
        %v7137 = vpop.f32.mrf.mxu0
        %v7138 = vadd.f32 %v7065, %v7137
        %v7139 = vpop.f32.mrf.mxu0
        %v7140 = vadd.f32 %v7067, %v7139
        %7141 = vmatmul.bf16.gmra.mxu0 %v440
        %v7142 = vpop.f32.mrf.mxu0
        %v7143 = vadd.f32 %v7070, %v7142
        %v7144 = vpop.f32.mrf.mxu0
        %v7145 = vadd.f32 %v7072, %v7144
        %7146 = vmatmul.bf16.gmra.mxu0 %v446
        %v7147 = vpop.f32.mrf.mxu0
        %v7148 = vadd.f32 %v7075, %v7147
        %v7149 = vpop.f32.mrf.mxu0
        %v7150 = vadd.f32 %v7077, %v7149
        %7151 = vmatmul.bf16.gmra.mxu0 %v452
        %v7152 = vpop.f32.mrf.mxu0
        %v7153 = vadd.f32 %v7080, %v7152
        %v7154 = vpop.f32.mrf.mxu0
        %v7155 = vadd.f32 %v7082, %v7154
        %7156 = vmatmul.bf16.gmra.mxu0 %v458
        %v7157 = vpop.f32.mrf.mxu0
        %v7158 = vadd.f32 %v7085, %v7157
        %v7159 = vpop.f32.mrf.mxu0
        %v7160 = vadd.f32 %v7087, %v7159
        %7161 = vmatmul.bf16.gmra.mxu0 %v464
        %v7162 = vpop.f32.mrf.mxu0
        %v7163 = vadd.f32 %v7090, %v7162
        %v7164 = vpop.f32.mrf.mxu0
        %v7165 = vadd.f32 %v7092, %v7164
        %7166 = vmatmul.bf16.gmra.mxu0 %v470
        %v7167 = vpop.f32.mrf.mxu0
        %v7168 = vadd.f32 %v7095, %v7167
        %v7169 = vpop.f32.mrf.mxu0
        %7170 = vdwg.mxu0
        %7171 = vmatpush.bf16.msra.mxu0 %v3090
        %7172 = vmatpush.bf16.msra.mxu0 %v3078
        %7173 = vmatpush.bf16.msra.mxu0 %v3066
        %7174 = vmatpush.bf16.msra.mxu0 %v3054
        %7175 = vmatpush.bf16.msra.mxu0 %v3042
        %7176 = vmatpush.bf16.msra.mxu0 %v3030
        %7177 = vmatpush.bf16.msra.mxu0 %v3018
        %7178 = vmatpush.bf16.msra.mxu0 %v3006
        %7179 = vmatmul.bf16.gmra.mxu0 %v399
        %v7180 = vpop.f32.mrf.mxu0
        %v7181 = vadd.f32 %v7108, %v7180
        %v7182 = vpop.f32.mrf.mxu0
        %v7183 = vadd.f32 %v7110, %v7182
        %7184 = vmatmul.bf16.gmra.mxu0 %v405
        %v7185 = vpop.f32.mrf.mxu0
        %v7186 = vadd.f32 %v7113, %v7185
        %v7187 = vpop.f32.mrf.mxu0
        %v7188 = vadd.f32 %v7115, %v7187
        %7189 = vmatmul.bf16.gmra.mxu0 %v411
        %v7190 = vpop.f32.mrf.mxu0
        %v7191 = vadd.f32 %v7118, %v7190
        %v7192 = vpop.f32.mrf.mxu0
        %v7193 = vadd.f32 %v7120, %v7192
        %7194 = vmatmul.bf16.gmra.mxu0 %v417
        %v7195 = vpop.f32.mrf.mxu0
        %v7196 = vadd.f32 %v7123, %v7195
        %v7197 = vpop.f32.mrf.mxu0
        %v7198 = vadd.f32 %v7125, %v7197
        %7199 = vmatmul.bf16.gmra.mxu0 %v423
        %v7200 = vpop.f32.mrf.mxu0
        %v7201 = vadd.f32 %v7128, %v7200
        %v7202 = vpop.f32.mrf.mxu0
        %v7203 = vadd.f32 %v7130, %v7202
        %7204 = vmatmul.bf16.gmra.mxu0 %v429
        %v7205 = vpop.f32.mrf.mxu0
        %v7206 = vadd.f32 %v7133, %v7205
        %v7207 = vpop.f32.mrf.mxu0
        %v7208 = vadd.f32 %v7135, %v7207
        %7209 = vmatmul.bf16.gmra.mxu0 %v435
        %v7210 = vpop.f32.mrf.mxu0
        %v7211 = vadd.f32 %v7138, %v7210
        %v7212 = vpop.f32.mrf.mxu0
        %v7213 = vadd.f32 %v7140, %v7212
        %7214 = vmatmul.bf16.gmra.mxu0 %v441
        %v7215 = vpop.f32.mrf.mxu0
        %v7216 = vadd.f32 %v7143, %v7215
        %v7217 = vpop.f32.mrf.mxu0
        %v7218 = vadd.f32 %v7145, %v7217
        %7219 = vmatmul.bf16.gmra.mxu0 %v447
        %v7220 = vpop.f32.mrf.mxu0
        %v7221 = vadd.f32 %v7148, %v7220
        %v7222 = vpop.f32.mrf.mxu0
        %v7223 = vadd.f32 %v7150, %v7222
        %7224 = vmatmul.bf16.gmra.mxu0 %v453
        %v7225 = vpop.f32.mrf.mxu0
        %v7226 = vadd.f32 %v7153, %v7225
        %v7227 = vpop.f32.mrf.mxu0
        %v7228 = vadd.f32 %v7155, %v7227
        %7229 = vmatmul.bf16.gmra.mxu0 %v459
        %v7230 = vpop.f32.mrf.mxu0
        %v7231 = vadd.f32 %v7158, %v7230
        %v7232 = vpop.f32.mrf.mxu0
        %v7233 = vadd.f32 %v7160, %v7232
        %7234 = vmatmul.bf16.gmra.mxu0 %v465
        %v7235 = vpop.f32.mrf.mxu0
        %v7236 = vadd.f32 %v7163, %v7235
        %v7237 = vpop.f32.mrf.mxu0
        %v7238 = vadd.f32 %v7165, %v7237
        %7239 = vmatmul.bf16.gmra.mxu0 %v471
        %v7240 = vpop.f32.mrf.mxu0
        %v7241 = vadd.f32 %v7168, %v7240
        %v7242 = vpop.f32.mrf.mxu0
        %7243 = vdwg.mxu0
        %7244 = vmatpush.bf16.msra.mxu0 %v3186
        %7245 = vmatpush.bf16.msra.mxu0 %v3174
        %7246 = vmatpush.bf16.msra.mxu0 %v3162
        %7247 = vmatpush.bf16.msra.mxu0 %v3150
        %7248 = vmatpush.bf16.msra.mxu0 %v3138
        %7249 = vmatpush.bf16.msra.mxu0 %v3126
        %7250 = vmatpush.bf16.msra.mxu0 %v3114
        %7251 = vmatpush.bf16.msra.mxu0 %v3102
        %7252 = vmatmul.bf16.gmra.mxu0 %v400
        %v7253 = vpop.f32.mrf.mxu0
        %v7254 = vadd.f32 %v7181, %v7253
        %v7255 = vpop.f32.mrf.mxu0
        %v7256 = vadd.f32 %v7183, %v7255
        %7257 = vmatmul.bf16.gmra.mxu0 %v406
        %v7258 = vpop.f32.mrf.mxu0
        %v7259 = vadd.f32 %v7186, %v7258
        %v7260 = vpop.f32.mrf.mxu0
        %v7261 = vadd.f32 %v7188, %v7260
        %7262 = vmatmul.bf16.gmra.mxu0 %v412
        %v7263 = vpop.f32.mrf.mxu0
        %v7264 = vadd.f32 %v7191, %v7263
        %v7265 = vpop.f32.mrf.mxu0
        %v7266 = vadd.f32 %v7193, %v7265
        %7267 = vmatmul.bf16.gmra.mxu0 %v418
        %v7268 = vpop.f32.mrf.mxu0
        %v7269 = vadd.f32 %v7196, %v7268
        %v7270 = vpop.f32.mrf.mxu0
        %v7271 = vadd.f32 %v7198, %v7270
        %7272 = vmatmul.bf16.gmra.mxu0 %v424
        %v7273 = vpop.f32.mrf.mxu0
        %v7274 = vadd.f32 %v7201, %v7273
        %v7275 = vpop.f32.mrf.mxu0
        %v7276 = vadd.f32 %v7203, %v7275
        %7277 = vmatmul.bf16.gmra.mxu0 %v430
        %v7278 = vpop.f32.mrf.mxu0
        %v7279 = vadd.f32 %v7206, %v7278
        %v7280 = vpop.f32.mrf.mxu0
        %v7281 = vadd.f32 %v7208, %v7280
        %7282 = vmatmul.bf16.gmra.mxu0 %v436
        %v7283 = vpop.f32.mrf.mxu0
        %v7284 = vadd.f32 %v7211, %v7283
        %v7285 = vpop.f32.mrf.mxu0
        %v7286 = vadd.f32 %v7213, %v7285
        %7287 = vmatmul.bf16.gmra.mxu0 %v442
        %v7288 = vpop.f32.mrf.mxu0
        %v7289 = vadd.f32 %v7216, %v7288
        %v7290 = vpop.f32.mrf.mxu0
        %v7291 = vadd.f32 %v7218, %v7290
        %7292 = vmatmul.bf16.gmra.mxu0 %v448
        %v7293 = vpop.f32.mrf.mxu0
        %v7294 = vadd.f32 %v7221, %v7293
        %v7295 = vpop.f32.mrf.mxu0
        %v7296 = vadd.f32 %v7223, %v7295
        %7297 = vmatmul.bf16.gmra.mxu0 %v454
        %v7298 = vpop.f32.mrf.mxu0
        %v7299 = vadd.f32 %v7226, %v7298
        %v7300 = vpop.f32.mrf.mxu0
        %v7301 = vadd.f32 %v7228, %v7300
        %7302 = vmatmul.bf16.gmra.mxu0 %v460
        %v7303 = vpop.f32.mrf.mxu0
        %v7304 = vadd.f32 %v7231, %v7303
        %v7305 = vpop.f32.mrf.mxu0
        %v7306 = vadd.f32 %v7233, %v7305
        %7307 = vmatmul.bf16.gmra.mxu0 %v466
        %v7308 = vpop.f32.mrf.mxu0
        %v7309 = vadd.f32 %v7236, %v7308
        %v7310 = vpop.f32.mrf.mxu0
        %v7311 = vadd.f32 %v7238, %v7310
        %7312 = vmatmul.bf16.gmra.mxu0 %v472
        %v7313 = vpop.f32.mrf.mxu0
        %v7314 = vadd.f32 %v7241, %v7313
        %v7315 = vpop.f32.mrf.mxu0
        %7316 = vdwg.mxu0
        %7317 = vmatpush.bf16.msra.mxu0 %v3282
        %7318 = vmatpush.bf16.msra.mxu0 %v3270
        %7319 = vmatpush.bf16.msra.mxu0 %v3258
        %7320 = vmatpush.bf16.msra.mxu0 %v3246
        %7321 = vmatpush.bf16.msra.mxu0 %v3234
        %7322 = vmatpush.bf16.msra.mxu0 %v3222
        %7323 = vmatpush.bf16.msra.mxu0 %v3210
        %7324 = vmatpush.bf16.msra.mxu0 %v3198
        %7325 = vmatmul.bf16.gmra.mxu0 %v401
        %v7326 = vpop.f32.mrf.mxu0
        %v7327 = vadd.f32 %v7254, %v7326
        %v7328 = vpop.f32.mrf.mxu0
        %v7329 = vadd.f32 %v7256, %v7328
        %7330 = vmatmul.bf16.gmra.mxu0 %v407
        %v7331 = vpop.f32.mrf.mxu0
        %v7332 = vadd.f32 %v7259, %v7331
        %v7333 = vpop.f32.mrf.mxu0
        %v7334 = vadd.f32 %v7261, %v7333
        %7335 = vmatmul.bf16.gmra.mxu0 %v413
        %v7336 = vpop.f32.mrf.mxu0
        %v7337 = vadd.f32 %v7264, %v7336
        %v7338 = vpop.f32.mrf.mxu0
        %v7339 = vadd.f32 %v7266, %v7338
        %7340 = vmatmul.bf16.gmra.mxu0 %v419
        %v7341 = vpop.f32.mrf.mxu0
        %v7342 = vadd.f32 %v7269, %v7341
        %v7343 = vpop.f32.mrf.mxu0
        %v7344 = vadd.f32 %v7271, %v7343
        %7345 = vmatmul.bf16.gmra.mxu0 %v425
        %v7346 = vpop.f32.mrf.mxu0
        %v7347 = vadd.f32 %v7274, %v7346
        %v7348 = vpop.f32.mrf.mxu0
        %v7349 = vadd.f32 %v7276, %v7348
        %7350 = vmatmul.bf16.gmra.mxu0 %v431
        %v7351 = vpop.f32.mrf.mxu0
        %v7352 = vadd.f32 %v7279, %v7351
        %v7353 = vpop.f32.mrf.mxu0
        %v7354 = vadd.f32 %v7281, %v7353
        %7355 = vmatmul.bf16.gmra.mxu0 %v437
        %v7356 = vpop.f32.mrf.mxu0
        %v7357 = vadd.f32 %v7284, %v7356
        %v7358 = vpop.f32.mrf.mxu0
        %v7359 = vadd.f32 %v7286, %v7358
        %7360 = vmatmul.bf16.gmra.mxu0 %v443
        %v7361 = vpop.f32.mrf.mxu0
        %v7362 = vadd.f32 %v7289, %v7361
        %v7363 = vpop.f32.mrf.mxu0
        %v7364 = vadd.f32 %v7291, %v7363
        %7365 = vmatmul.bf16.gmra.mxu0 %v449
        %v7366 = vpop.f32.mrf.mxu0
        %v7367 = vadd.f32 %v7294, %v7366
        %v7368 = vpop.f32.mrf.mxu0
        %v7369 = vadd.f32 %v7296, %v7368
        %7370 = vmatmul.bf16.gmra.mxu0 %v455
        %v7371 = vpop.f32.mrf.mxu0
        %v7372 = vadd.f32 %v7299, %v7371
        %v7373 = vpop.f32.mrf.mxu0
        %v7374 = vadd.f32 %v7301, %v7373
        %7375 = vmatmul.bf16.gmra.mxu0 %v461
        %v7376 = vpop.f32.mrf.mxu0
        %v7377 = vadd.f32 %v7304, %v7376
        %v7378 = vpop.f32.mrf.mxu0
        %v7379 = vadd.f32 %v7306, %v7378
        %7380 = vmatmul.bf16.gmra.mxu0 %v467
        %v7381 = vpop.f32.mrf.mxu0
        %v7382 = vadd.f32 %v7309, %v7381
        %v7383 = vpop.f32.mrf.mxu0
        %v7384 = vadd.f32 %v7311, %v7383
        %7385 = vmatmul.bf16.gmra.mxu0 %v473
        %v7386 = vpop.f32.mrf.mxu0
        %v7387 = vadd.f32 %v7314, %v7386
        %v7388 = vpop.f32.mrf.mxu0
        %7389 = vdwg.mxu0
        %7390 = vmatpush.bf16.msra.mxu0 %v3378
        %7391 = vmatpush.bf16.msra.mxu0 %v3366
        %7392 = vmatpush.bf16.msra.mxu0 %v3354
        %7393 = vmatpush.bf16.msra.mxu0 %v3342
        %7394 = vmatpush.bf16.msra.mxu0 %v3330
        %7395 = vmatpush.bf16.msra.mxu0 %v3318
        %7396 = vmatpush.bf16.msra.mxu0 %v3306
        %7397 = vmatpush.bf16.msra.mxu0 %v3294
        %7398 = vmatmul.bf16.gmra.mxu0 %v402
        %v7399 = vpop.f32.mrf.mxu0
        %v7400 = vadd.f32 %v7327, %v7399
        %v7401 = vpop.f32.mrf.mxu0
        %v7402 = vadd.f32 %v7329, %v7401
        %7403 = vmatmul.bf16.gmra.mxu0 %v408
        %v7404 = vpop.f32.mrf.mxu0
        %v7405 = vadd.f32 %v7332, %v7404
        %v7406 = vpop.f32.mrf.mxu0
        %v7407 = vadd.f32 %v7334, %v7406
        %7408 = vmatmul.bf16.gmra.mxu0 %v414
        %v7409 = vpop.f32.mrf.mxu0
        %v7410 = vadd.f32 %v7337, %v7409
        %v7411 = vpop.f32.mrf.mxu0
        %v7412 = vadd.f32 %v7339, %v7411
        %7413 = vmatmul.bf16.gmra.mxu0 %v420
        %v7414 = vpop.f32.mrf.mxu0
        %v7415 = vadd.f32 %v7342, %v7414
        %v7416 = vpop.f32.mrf.mxu0
        %v7417 = vadd.f32 %v7344, %v7416
        %7418 = vmatmul.bf16.gmra.mxu0 %v426
        %v7419 = vpop.f32.mrf.mxu0
        %v7420 = vadd.f32 %v7347, %v7419
        %v7421 = vpop.f32.mrf.mxu0
        %v7422 = vadd.f32 %v7349, %v7421
        %7423 = vmatmul.bf16.gmra.mxu0 %v432
        %v7424 = vpop.f32.mrf.mxu0
        %v7425 = vadd.f32 %v7352, %v7424
        %v7426 = vpop.f32.mrf.mxu0
        %v7427 = vadd.f32 %v7354, %v7426
        %7428 = vmatmul.bf16.gmra.mxu0 %v438
        %v7429 = vpop.f32.mrf.mxu0
        %v7430 = vadd.f32 %v7357, %v7429
        %v7431 = vpop.f32.mrf.mxu0
        %v7432 = vadd.f32 %v7359, %v7431
        %7433 = vmatmul.bf16.gmra.mxu0 %v444
        %v7434 = vpop.f32.mrf.mxu0
        %v7435 = vadd.f32 %v7362, %v7434
        %v7436 = vpop.f32.mrf.mxu0
        %v7437 = vadd.f32 %v7364, %v7436
        %7438 = vmatmul.bf16.gmra.mxu0 %v450
        %v7439 = vpop.f32.mrf.mxu0
        %v7440 = vadd.f32 %v7367, %v7439
        %v7441 = vpop.f32.mrf.mxu0
        %v7442 = vadd.f32 %v7369, %v7441
        %7443 = vmatmul.bf16.gmra.mxu0 %v456
        %v7444 = vpop.f32.mrf.mxu0
        %v7445 = vadd.f32 %v7372, %v7444
        %v7446 = vpop.f32.mrf.mxu0
        %v7447 = vadd.f32 %v7374, %v7446
        %7448 = vmatmul.bf16.gmra.mxu0 %v462
        %v7449 = vpop.f32.mrf.mxu0
        %v7450 = vadd.f32 %v7377, %v7449
        %v7451 = vpop.f32.mrf.mxu0
        %v7452 = vadd.f32 %v7379, %v7451
        %7453 = vmatmul.bf16.gmra.mxu0 %v468
        %v7454 = vpop.f32.mrf.mxu0
        %v7455 = vadd.f32 %v7382, %v7454
        %v7456 = vpop.f32.mrf.mxu0
        %v7457 = vadd.f32 %v7384, %v7456
        %7458 = vmatmul.bf16.gmra.mxu0 %v474
        %v7459 = vpop.f32.mrf.mxu0
        %v7460 = vadd.f32 %v7387, %v7459
        %v7461 = vpop.f32.mrf.mxu0
        %7462 = vdwg.mxu0
        %7463 = vmatpush.bf16.msra.mxu0 %v2899
        %7464 = vmatpush.bf16.msra.mxu0 %v2887
        %7465 = vmatpush.bf16.msra.mxu0 %v2875
        %7466 = vmatpush.bf16.msra.mxu0 %v2863
        %7467 = vmatpush.bf16.msra.mxu0 %v2851
        %7468 = vmatpush.bf16.msra.mxu0 %v2839
        %7469 = vmatpush.bf16.msra.mxu0 %v2827
        %7470 = vmatpush.bf16.msra.mxu0 %v2815
        %7471 = vmatmul.bf16.gmra.mxu0 %v397
        %v7472 = vpop.f32.mrf.mxu0
        %v7473 = vadd.f32 %v1063, %v7472
        %v7474 = vpop.f32.mrf.mxu0
        %v7475 = vadd.f32 %v1063, %v7474
        %7476 = vmatmul.bf16.gmra.mxu0 %v403
        %v7477 = vpop.f32.mrf.mxu0
        %v7478 = vadd.f32 %v1063, %v7477
        %v7479 = vpop.f32.mrf.mxu0
        %v7480 = vadd.f32 %v1063, %v7479
        %7481 = vmatmul.bf16.gmra.mxu0 %v409
        %v7482 = vpop.f32.mrf.mxu0
        %v7483 = vadd.f32 %v1063, %v7482
        %v7484 = vpop.f32.mrf.mxu0
        %v7485 = vadd.f32 %v1063, %v7484
        %7486 = vmatmul.bf16.gmra.mxu0 %v415
        %v7487 = vpop.f32.mrf.mxu0
        %v7488 = vadd.f32 %v1063, %v7487
        %v7489 = vpop.f32.mrf.mxu0
        %v7490 = vadd.f32 %v1063, %v7489
        %7491 = vmatmul.bf16.gmra.mxu0 %v421
        %v7492 = vpop.f32.mrf.mxu0
        %v7493 = vadd.f32 %v1063, %v7492
        %v7494 = vpop.f32.mrf.mxu0
        %v7495 = vadd.f32 %v1063, %v7494
        %7496 = vmatmul.bf16.gmra.mxu0 %v427
        %v7497 = vpop.f32.mrf.mxu0
        %v7498 = vadd.f32 %v1063, %v7497
        %v7499 = vpop.f32.mrf.mxu0
        %v7500 = vadd.f32 %v1063, %v7499
        %7501 = vmatmul.bf16.gmra.mxu0 %v433
        %v7502 = vpop.f32.mrf.mxu0
        %v7503 = vadd.f32 %v1063, %v7502
        %v7504 = vpop.f32.mrf.mxu0
        %v7505 = vadd.f32 %v1063, %v7504
        %7506 = vmatmul.bf16.gmra.mxu0 %v439
        %v7507 = vpop.f32.mrf.mxu0
        %v7508 = vadd.f32 %v1063, %v7507
        %v7509 = vpop.f32.mrf.mxu0
        %v7510 = vadd.f32 %v1063, %v7509
        %7511 = vmatmul.bf16.gmra.mxu0 %v445
        %v7512 = vpop.f32.mrf.mxu0
        %v7513 = vadd.f32 %v1063, %v7512
        %v7514 = vpop.f32.mrf.mxu0
        %v7515 = vadd.f32 %v1063, %v7514
        %7516 = vmatmul.bf16.gmra.mxu0 %v451
        %v7517 = vpop.f32.mrf.mxu0
        %v7518 = vadd.f32 %v1063, %v7517
        %v7519 = vpop.f32.mrf.mxu0
        %v7520 = vadd.f32 %v1063, %v7519
        %7521 = vmatmul.bf16.gmra.mxu0 %v457
        %v7522 = vpop.f32.mrf.mxu0
        %v7523 = vadd.f32 %v1063, %v7522
        %v7524 = vpop.f32.mrf.mxu0
        %v7525 = vadd.f32 %v1063, %v7524
        %7526 = vmatmul.bf16.gmra.mxu0 %v463
        %v7527 = vpop.f32.mrf.mxu0
        %v7528 = vadd.f32 %v1063, %v7527
        %v7529 = vpop.f32.mrf.mxu0
        %v7530 = vadd.f32 %v1063, %v7529
        %7531 = vmatmul.bf16.gmra.mxu0 %v469
        %v7532 = vpop.f32.mrf.mxu0
        %v7533 = vadd.f32 %v1063, %v7532
        %v7534 = vpop.f32.mrf.mxu0
        %7535 = vdwg.mxu0
        %7536 = vmatpush.bf16.msra.mxu0 %v2995
        %7537 = vmatpush.bf16.msra.mxu0 %v2983
        %7538 = vmatpush.bf16.msra.mxu0 %v2971
        %7539 = vmatpush.bf16.msra.mxu0 %v2959
        %7540 = vmatpush.bf16.msra.mxu0 %v2947
        %7541 = vmatpush.bf16.msra.mxu0 %v2935
        %7542 = vmatpush.bf16.msra.mxu0 %v2923
        %7543 = vmatpush.bf16.msra.mxu0 %v2911
        %7544 = vmatmul.bf16.gmra.mxu0 %v398
        %v7545 = vpop.f32.mrf.mxu0
        %v7546 = vadd.f32 %v7473, %v7545
        %v7547 = vpop.f32.mrf.mxu0
        %v7548 = vadd.f32 %v7475, %v7547
        %7549 = vmatmul.bf16.gmra.mxu0 %v404
        %v7550 = vpop.f32.mrf.mxu0
        %v7551 = vadd.f32 %v7478, %v7550
        %v7552 = vpop.f32.mrf.mxu0
        %v7553 = vadd.f32 %v7480, %v7552
        %7554 = vmatmul.bf16.gmra.mxu0 %v410
        %v7555 = vpop.f32.mrf.mxu0
        %v7556 = vadd.f32 %v7483, %v7555
        %v7557 = vpop.f32.mrf.mxu0
        %v7558 = vadd.f32 %v7485, %v7557
        %7559 = vmatmul.bf16.gmra.mxu0 %v416
        %v7560 = vpop.f32.mrf.mxu0
        %v7561 = vadd.f32 %v7488, %v7560
        %v7562 = vpop.f32.mrf.mxu0
        %v7563 = vadd.f32 %v7490, %v7562
        %7564 = vmatmul.bf16.gmra.mxu0 %v422
        %v7565 = vpop.f32.mrf.mxu0
        %v7566 = vadd.f32 %v7493, %v7565
        %v7567 = vpop.f32.mrf.mxu0
        %v7568 = vadd.f32 %v7495, %v7567
        %7569 = vmatmul.bf16.gmra.mxu0 %v428
        %v7570 = vpop.f32.mrf.mxu0
        %v7571 = vadd.f32 %v7498, %v7570
        %v7572 = vpop.f32.mrf.mxu0
        %v7573 = vadd.f32 %v7500, %v7572
        %7574 = vmatmul.bf16.gmra.mxu0 %v434
        %v7575 = vpop.f32.mrf.mxu0
        %v7576 = vadd.f32 %v7503, %v7575
        %v7577 = vpop.f32.mrf.mxu0
        %v7578 = vadd.f32 %v7505, %v7577
        %7579 = vmatmul.bf16.gmra.mxu0 %v440
        %v7580 = vpop.f32.mrf.mxu0
        %v7581 = vadd.f32 %v7508, %v7580
        %v7582 = vpop.f32.mrf.mxu0
        %v7583 = vadd.f32 %v7510, %v7582
        %7584 = vmatmul.bf16.gmra.mxu0 %v446
        %v7585 = vpop.f32.mrf.mxu0
        %v7586 = vadd.f32 %v7513, %v7585
        %v7587 = vpop.f32.mrf.mxu0
        %v7588 = vadd.f32 %v7515, %v7587
        %7589 = vmatmul.bf16.gmra.mxu0 %v452
        %v7590 = vpop.f32.mrf.mxu0
        %v7591 = vadd.f32 %v7518, %v7590
        %v7592 = vpop.f32.mrf.mxu0
        %v7593 = vadd.f32 %v7520, %v7592
        %7594 = vmatmul.bf16.gmra.mxu0 %v458
        %v7595 = vpop.f32.mrf.mxu0
        %v7596 = vadd.f32 %v7523, %v7595
        %v7597 = vpop.f32.mrf.mxu0
        %v7598 = vadd.f32 %v7525, %v7597
        %7599 = vmatmul.bf16.gmra.mxu0 %v464
        %v7600 = vpop.f32.mrf.mxu0
        %v7601 = vadd.f32 %v7528, %v7600
        %v7602 = vpop.f32.mrf.mxu0
        %v7603 = vadd.f32 %v7530, %v7602
        %7604 = vmatmul.bf16.gmra.mxu0 %v470
        %v7605 = vpop.f32.mrf.mxu0
        %v7606 = vadd.f32 %v7533, %v7605
        %v7607 = vpop.f32.mrf.mxu0
        %7608 = vdwg.mxu0
        %7609 = vmatpush.bf16.msra.mxu0 %v3091
        %7610 = vmatpush.bf16.msra.mxu0 %v3079
        %7611 = vmatpush.bf16.msra.mxu0 %v3067
        %7612 = vmatpush.bf16.msra.mxu0 %v3055
        %7613 = vmatpush.bf16.msra.mxu0 %v3043
        %7614 = vmatpush.bf16.msra.mxu0 %v3031
        %7615 = vmatpush.bf16.msra.mxu0 %v3019
        %7616 = vmatpush.bf16.msra.mxu0 %v3007
        %7617 = vmatmul.bf16.gmra.mxu0 %v399
        %v7618 = vpop.f32.mrf.mxu0
        %v7619 = vadd.f32 %v7546, %v7618
        %v7620 = vpop.f32.mrf.mxu0
        %v7621 = vadd.f32 %v7548, %v7620
        %7622 = vmatmul.bf16.gmra.mxu0 %v405
        %v7623 = vpop.f32.mrf.mxu0
        %v7624 = vadd.f32 %v7551, %v7623
        %v7625 = vpop.f32.mrf.mxu0
        %v7626 = vadd.f32 %v7553, %v7625
        %7627 = vmatmul.bf16.gmra.mxu0 %v411
        %v7628 = vpop.f32.mrf.mxu0
        %v7629 = vadd.f32 %v7556, %v7628
        %v7630 = vpop.f32.mrf.mxu0
        %v7631 = vadd.f32 %v7558, %v7630
        %7632 = vmatmul.bf16.gmra.mxu0 %v417
        %v7633 = vpop.f32.mrf.mxu0
        %v7634 = vadd.f32 %v7561, %v7633
        %v7635 = vpop.f32.mrf.mxu0
        %v7636 = vadd.f32 %v7563, %v7635
        %7637 = vmatmul.bf16.gmra.mxu0 %v423
        %v7638 = vpop.f32.mrf.mxu0
        %v7639 = vadd.f32 %v7566, %v7638
        %v7640 = vpop.f32.mrf.mxu0
        %v7641 = vadd.f32 %v7568, %v7640
        %7642 = vmatmul.bf16.gmra.mxu0 %v429
        %v7643 = vpop.f32.mrf.mxu0
        %v7644 = vadd.f32 %v7571, %v7643
        %v7645 = vpop.f32.mrf.mxu0
        %v7646 = vadd.f32 %v7573, %v7645
        %7647 = vmatmul.bf16.gmra.mxu0 %v435
        %v7648 = vpop.f32.mrf.mxu0
        %v7649 = vadd.f32 %v7576, %v7648
        %v7650 = vpop.f32.mrf.mxu0
        %v7651 = vadd.f32 %v7578, %v7650
        %7652 = vmatmul.bf16.gmra.mxu0 %v441
        %v7653 = vpop.f32.mrf.mxu0
        %v7654 = vadd.f32 %v7581, %v7653
        %v7655 = vpop.f32.mrf.mxu0
        %v7656 = vadd.f32 %v7583, %v7655
        %7657 = vmatmul.bf16.gmra.mxu0 %v447
        %v7658 = vpop.f32.mrf.mxu0
        %v7659 = vadd.f32 %v7586, %v7658
        %v7660 = vpop.f32.mrf.mxu0
        %v7661 = vadd.f32 %v7588, %v7660
        %7662 = vmatmul.bf16.gmra.mxu0 %v453
        %v7663 = vpop.f32.mrf.mxu0
        %v7664 = vadd.f32 %v7591, %v7663
        %v7665 = vpop.f32.mrf.mxu0
        %v7666 = vadd.f32 %v7593, %v7665
        %7667 = vmatmul.bf16.gmra.mxu0 %v459
        %v7668 = vpop.f32.mrf.mxu0
        %v7669 = vadd.f32 %v7596, %v7668
        %v7670 = vpop.f32.mrf.mxu0
        %v7671 = vadd.f32 %v7598, %v7670
        %7672 = vmatmul.bf16.gmra.mxu0 %v465
        %v7673 = vpop.f32.mrf.mxu0
        %v7674 = vadd.f32 %v7601, %v7673
        %v7675 = vpop.f32.mrf.mxu0
        %v7676 = vadd.f32 %v7603, %v7675
        %7677 = vmatmul.bf16.gmra.mxu0 %v471
        %v7678 = vpop.f32.mrf.mxu0
        %v7679 = vadd.f32 %v7606, %v7678
        %v7680 = vpop.f32.mrf.mxu0
        %7681 = vdwg.mxu0
        %7682 = vmatpush.bf16.msra.mxu0 %v3187
        %7683 = vmatpush.bf16.msra.mxu0 %v3175
        %7684 = vmatpush.bf16.msra.mxu0 %v3163
        %7685 = vmatpush.bf16.msra.mxu0 %v3151
        %7686 = vmatpush.bf16.msra.mxu0 %v3139
        %7687 = vmatpush.bf16.msra.mxu0 %v3127
        %7688 = vmatpush.bf16.msra.mxu0 %v3115
        %7689 = vmatpush.bf16.msra.mxu0 %v3103
        %7690 = vmatmul.bf16.gmra.mxu0 %v400
        %v7691 = vpop.f32.mrf.mxu0
        %v7692 = vadd.f32 %v7619, %v7691
        %v7693 = vpop.f32.mrf.mxu0
        %v7694 = vadd.f32 %v7621, %v7693
        %7695 = vmatmul.bf16.gmra.mxu0 %v406
        %v7696 = vpop.f32.mrf.mxu0
        %v7697 = vadd.f32 %v7624, %v7696
        %v7698 = vpop.f32.mrf.mxu0
        %v7699 = vadd.f32 %v7626, %v7698
        %7700 = vmatmul.bf16.gmra.mxu0 %v412
        %v7701 = vpop.f32.mrf.mxu0
        %v7702 = vadd.f32 %v7629, %v7701
        %v7703 = vpop.f32.mrf.mxu0
        %v7704 = vadd.f32 %v7631, %v7703
        %7705 = vmatmul.bf16.gmra.mxu0 %v418
        %v7706 = vpop.f32.mrf.mxu0
        %v7707 = vadd.f32 %v7634, %v7706
        %v7708 = vpop.f32.mrf.mxu0
        %v7709 = vadd.f32 %v7636, %v7708
        %7710 = vmatmul.bf16.gmra.mxu0 %v424
        %v7711 = vpop.f32.mrf.mxu0
        %v7712 = vadd.f32 %v7639, %v7711
        %v7713 = vpop.f32.mrf.mxu0
        %v7714 = vadd.f32 %v7641, %v7713
        %7715 = vmatmul.bf16.gmra.mxu0 %v430
        %v7716 = vpop.f32.mrf.mxu0
        %v7717 = vadd.f32 %v7644, %v7716
        %v7718 = vpop.f32.mrf.mxu0
        %v7719 = vadd.f32 %v7646, %v7718
        %7720 = vmatmul.bf16.gmra.mxu0 %v436
        %v7721 = vpop.f32.mrf.mxu0
        %v7722 = vadd.f32 %v7649, %v7721
        %v7723 = vpop.f32.mrf.mxu0
        %v7724 = vadd.f32 %v7651, %v7723
        %7725 = vmatmul.bf16.gmra.mxu0 %v442
        %v7726 = vpop.f32.mrf.mxu0
        %v7727 = vadd.f32 %v7654, %v7726
        %v7728 = vpop.f32.mrf.mxu0
        %v7729 = vadd.f32 %v7656, %v7728
        %7730 = vmatmul.bf16.gmra.mxu0 %v448
        %v7731 = vpop.f32.mrf.mxu0
        %v7732 = vadd.f32 %v7659, %v7731
        %v7733 = vpop.f32.mrf.mxu0
        %v7734 = vadd.f32 %v7661, %v7733
        %7735 = vmatmul.bf16.gmra.mxu0 %v454
        %v7736 = vpop.f32.mrf.mxu0
        %v7737 = vadd.f32 %v7664, %v7736
        %v7738 = vpop.f32.mrf.mxu0
        %v7739 = vadd.f32 %v7666, %v7738
        %7740 = vmatmul.bf16.gmra.mxu0 %v460
        %v7741 = vpop.f32.mrf.mxu0
        %v7742 = vadd.f32 %v7669, %v7741
        %v7743 = vpop.f32.mrf.mxu0
        %v7744 = vadd.f32 %v7671, %v7743
        %7745 = vmatmul.bf16.gmra.mxu0 %v466
        %v7746 = vpop.f32.mrf.mxu0
        %v7747 = vadd.f32 %v7674, %v7746
        %v7748 = vpop.f32.mrf.mxu0
        %v7749 = vadd.f32 %v7676, %v7748
        %7750 = vmatmul.bf16.gmra.mxu0 %v472
        %v7751 = vpop.f32.mrf.mxu0
        %v7752 = vadd.f32 %v7679, %v7751
        %v7753 = vpop.f32.mrf.mxu0
        %7754 = vdwg.mxu0
        %7755 = vmatpush.bf16.msra.mxu0 %v3283
        %7756 = vmatpush.bf16.msra.mxu0 %v3271
        %7757 = vmatpush.bf16.msra.mxu0 %v3259
        %7758 = vmatpush.bf16.msra.mxu0 %v3247
        %7759 = vmatpush.bf16.msra.mxu0 %v3235
        %7760 = vmatpush.bf16.msra.mxu0 %v3223
        %7761 = vmatpush.bf16.msra.mxu0 %v3211
        %7762 = vmatpush.bf16.msra.mxu0 %v3199
        %7763 = vmatmul.bf16.gmra.mxu0 %v401
        %v7764 = vpop.f32.mrf.mxu0
        %v7765 = vadd.f32 %v7692, %v7764
        %v7766 = vpop.f32.mrf.mxu0
        %v7767 = vadd.f32 %v7694, %v7766
        %7768 = vmatmul.bf16.gmra.mxu0 %v407
        %v7769 = vpop.f32.mrf.mxu0
        %v7770 = vadd.f32 %v7697, %v7769
        %v7771 = vpop.f32.mrf.mxu0
        %v7772 = vadd.f32 %v7699, %v7771
        %7773 = vmatmul.bf16.gmra.mxu0 %v413
        %v7774 = vpop.f32.mrf.mxu0
        %v7775 = vadd.f32 %v7702, %v7774
        %v7776 = vpop.f32.mrf.mxu0
        %v7777 = vadd.f32 %v7704, %v7776
        %7778 = vmatmul.bf16.gmra.mxu0 %v419
        %v7779 = vpop.f32.mrf.mxu0
        %v7780 = vadd.f32 %v7707, %v7779
        %v7781 = vpop.f32.mrf.mxu0
        %v7782 = vadd.f32 %v7709, %v7781
        %7783 = vmatmul.bf16.gmra.mxu0 %v425
        %v7784 = vpop.f32.mrf.mxu0
        %v7785 = vadd.f32 %v7712, %v7784
        %v7786 = vpop.f32.mrf.mxu0
        %v7787 = vadd.f32 %v7714, %v7786
        %7788 = vmatmul.bf16.gmra.mxu0 %v431
        %v7789 = vpop.f32.mrf.mxu0
        %v7790 = vadd.f32 %v7717, %v7789
        %v7791 = vpop.f32.mrf.mxu0
        %v7792 = vadd.f32 %v7719, %v7791
        %7793 = vmatmul.bf16.gmra.mxu0 %v437
        %v7794 = vpop.f32.mrf.mxu0
        %v7795 = vadd.f32 %v7722, %v7794
        %v7796 = vpop.f32.mrf.mxu0
        %v7797 = vadd.f32 %v7724, %v7796
        %7798 = vmatmul.bf16.gmra.mxu0 %v443
        %v7799 = vpop.f32.mrf.mxu0
        %v7800 = vadd.f32 %v7727, %v7799
        %v7801 = vpop.f32.mrf.mxu0
        %v7802 = vadd.f32 %v7729, %v7801
        %7803 = vmatmul.bf16.gmra.mxu0 %v449
        %v7804 = vpop.f32.mrf.mxu0
        %v7805 = vadd.f32 %v7732, %v7804
        %v7806 = vpop.f32.mrf.mxu0
        %v7807 = vadd.f32 %v7734, %v7806
        %7808 = vmatmul.bf16.gmra.mxu0 %v455
        %v7809 = vpop.f32.mrf.mxu0
        %v7810 = vadd.f32 %v7737, %v7809
        %v7811 = vpop.f32.mrf.mxu0
        %v7812 = vadd.f32 %v7739, %v7811
        %7813 = vmatmul.bf16.gmra.mxu0 %v461
        %v7814 = vpop.f32.mrf.mxu0
        %v7815 = vadd.f32 %v7742, %v7814
        %v7816 = vpop.f32.mrf.mxu0
        %v7817 = vadd.f32 %v7744, %v7816
        %7818 = vmatmul.bf16.gmra.mxu0 %v467
        %v7819 = vpop.f32.mrf.mxu0
        %v7820 = vadd.f32 %v7747, %v7819
        %v7821 = vpop.f32.mrf.mxu0
        %v7822 = vadd.f32 %v7749, %v7821
        %7823 = vmatmul.bf16.gmra.mxu0 %v473
        %v7824 = vpop.f32.mrf.mxu0
        %v7825 = vadd.f32 %v7752, %v7824
        %v7826 = vpop.f32.mrf.mxu0
        %7827 = vdwg.mxu0
        %7828 = vmatpush.bf16.msra.mxu0 %v3379
        %7829 = vmatpush.bf16.msra.mxu0 %v3367
        %7830 = vmatpush.bf16.msra.mxu0 %v3355
        %7831 = vmatpush.bf16.msra.mxu0 %v3343
        %7832 = vmatpush.bf16.msra.mxu0 %v3331
        %7833 = vmatpush.bf16.msra.mxu0 %v3319
        %7834 = vmatpush.bf16.msra.mxu0 %v3307
        %7835 = vmatpush.bf16.msra.mxu0 %v3295
        %7836 = vmatmul.bf16.gmra.mxu0 %v402
        %v7837 = vpop.f32.mrf.mxu0
        %v7838 = vadd.f32 %v7765, %v7837
        %v7839 = vpop.f32.mrf.mxu0
        %v7840 = vadd.f32 %v7767, %v7839
        %7841 = vmatmul.bf16.gmra.mxu0 %v408
        %v7842 = vpop.f32.mrf.mxu0
        %v7843 = vadd.f32 %v7770, %v7842
        %v7844 = vpop.f32.mrf.mxu0
        %v7845 = vadd.f32 %v7772, %v7844
        %7846 = vmatmul.bf16.gmra.mxu0 %v414
        %v7847 = vpop.f32.mrf.mxu0
        %v7848 = vadd.f32 %v7775, %v7847
        %v7849 = vpop.f32.mrf.mxu0
        %v7850 = vadd.f32 %v7777, %v7849
        %7851 = vmatmul.bf16.gmra.mxu0 %v420
        %v7852 = vpop.f32.mrf.mxu0
        %v7853 = vadd.f32 %v7780, %v7852
        %v7854 = vpop.f32.mrf.mxu0
        %v7855 = vadd.f32 %v7782, %v7854
        %7856 = vmatmul.bf16.gmra.mxu0 %v426
        %v7857 = vpop.f32.mrf.mxu0
        %v7858 = vadd.f32 %v7785, %v7857
        %v7859 = vpop.f32.mrf.mxu0
        %v7860 = vadd.f32 %v7787, %v7859
        %7861 = vmatmul.bf16.gmra.mxu0 %v432
        %v7862 = vpop.f32.mrf.mxu0
        %v7863 = vadd.f32 %v7790, %v7862
        %v7864 = vpop.f32.mrf.mxu0
        %v7865 = vadd.f32 %v7792, %v7864
        %7866 = vmatmul.bf16.gmra.mxu0 %v438
        %v7867 = vpop.f32.mrf.mxu0
        %v7868 = vadd.f32 %v7795, %v7867
        %v7869 = vpop.f32.mrf.mxu0
        %v7870 = vadd.f32 %v7797, %v7869
        %7871 = vmatmul.bf16.gmra.mxu0 %v444
        %v7872 = vpop.f32.mrf.mxu0
        %v7873 = vadd.f32 %v7800, %v7872
        %v7874 = vpop.f32.mrf.mxu0
        %v7875 = vadd.f32 %v7802, %v7874
        %7876 = vmatmul.bf16.gmra.mxu0 %v450
        %v7877 = vpop.f32.mrf.mxu0
        %v7878 = vadd.f32 %v7805, %v7877
        %v7879 = vpop.f32.mrf.mxu0
        %v7880 = vadd.f32 %v7807, %v7879
        %7881 = vmatmul.bf16.gmra.mxu0 %v456
        %v7882 = vpop.f32.mrf.mxu0
        %v7883 = vadd.f32 %v7810, %v7882
        %v7884 = vpop.f32.mrf.mxu0
        %v7885 = vadd.f32 %v7812, %v7884
        %7886 = vmatmul.bf16.gmra.mxu0 %v462
        %v7887 = vpop.f32.mrf.mxu0
        %v7888 = vadd.f32 %v7815, %v7887
        %v7889 = vpop.f32.mrf.mxu0
        %v7890 = vadd.f32 %v7817, %v7889
        %7891 = vmatmul.bf16.gmra.mxu0 %v468
        %v7892 = vpop.f32.mrf.mxu0
        %v7893 = vadd.f32 %v7820, %v7892
        %v7894 = vpop.f32.mrf.mxu0
        %v7895 = vadd.f32 %v7822, %v7894
        %7896 = vmatmul.bf16.gmra.mxu0 %v474
        %v7897 = vpop.f32.mrf.mxu0
        %v7898 = vadd.f32 %v7825, %v7897
        %v7899 = vpop.f32.mrf.mxu0
        %7900 = vdwg.mxu0
        %7901 = vmatpush.bf16.msra.mxu0 %v2900
        %7902 = vmatpush.bf16.msra.mxu0 %v2888
        %7903 = vmatpush.bf16.msra.mxu0 %v2876
        %7904 = vmatpush.bf16.msra.mxu0 %v2864
        %7905 = vmatpush.bf16.msra.mxu0 %v2852
        %7906 = vmatpush.bf16.msra.mxu0 %v2840
        %7907 = vmatpush.bf16.msra.mxu0 %v2828
        %7908 = vmatpush.bf16.msra.mxu0 %v2816
        %7909 = vmatmul.bf16.gmra.mxu0 %v397
        %v7910 = vpop.f32.mrf.mxu0
        %v7911 = vadd.f32 %v1064, %v7910
        %v7912 = vpop.f32.mrf.mxu0
        %v7913 = vadd.f32 %v1064, %v7912
        %7914 = vmatmul.bf16.gmra.mxu0 %v403
        %v7915 = vpop.f32.mrf.mxu0
        %v7916 = vadd.f32 %v1064, %v7915
        %v7917 = vpop.f32.mrf.mxu0
        %v7918 = vadd.f32 %v1064, %v7917
        %7919 = vmatmul.bf16.gmra.mxu0 %v409
        %v7920 = vpop.f32.mrf.mxu0
        %v7921 = vadd.f32 %v1064, %v7920
        %v7922 = vpop.f32.mrf.mxu0
        %v7923 = vadd.f32 %v1064, %v7922
        %7924 = vmatmul.bf16.gmra.mxu0 %v415
        %v7925 = vpop.f32.mrf.mxu0
        %v7926 = vadd.f32 %v1064, %v7925
        %v7927 = vpop.f32.mrf.mxu0
        %v7928 = vadd.f32 %v1064, %v7927
        %7929 = vmatmul.bf16.gmra.mxu0 %v421
        %v7930 = vpop.f32.mrf.mxu0
        %v7931 = vadd.f32 %v1064, %v7930
        %v7932 = vpop.f32.mrf.mxu0
        %v7933 = vadd.f32 %v1064, %v7932
        %7934 = vmatmul.bf16.gmra.mxu0 %v427
        %v7935 = vpop.f32.mrf.mxu0
        %v7936 = vadd.f32 %v1064, %v7935
        %v7937 = vpop.f32.mrf.mxu0
        %v7938 = vadd.f32 %v1064, %v7937
        %7939 = vmatmul.bf16.gmra.mxu0 %v433
        %v7940 = vpop.f32.mrf.mxu0
        %v7941 = vadd.f32 %v1064, %v7940
        %v7942 = vpop.f32.mrf.mxu0
        %v7943 = vadd.f32 %v1064, %v7942
        %7944 = vmatmul.bf16.gmra.mxu0 %v439
        %v7945 = vpop.f32.mrf.mxu0
        %v7946 = vadd.f32 %v1064, %v7945
        %v7947 = vpop.f32.mrf.mxu0
        %v7948 = vadd.f32 %v1064, %v7947
        %7949 = vmatmul.bf16.gmra.mxu0 %v445
        %v7950 = vpop.f32.mrf.mxu0
        %v7951 = vadd.f32 %v1064, %v7950
        %v7952 = vpop.f32.mrf.mxu0
        %v7953 = vadd.f32 %v1064, %v7952
        %7954 = vmatmul.bf16.gmra.mxu0 %v451
        %v7955 = vpop.f32.mrf.mxu0
        %v7956 = vadd.f32 %v1064, %v7955
        %v7957 = vpop.f32.mrf.mxu0
        %v7958 = vadd.f32 %v1064, %v7957
        %7959 = vmatmul.bf16.gmra.mxu0 %v457
        %v7960 = vpop.f32.mrf.mxu0
        %v7961 = vadd.f32 %v1064, %v7960
        %v7962 = vpop.f32.mrf.mxu0
        %v7963 = vadd.f32 %v1064, %v7962
        %7964 = vmatmul.bf16.gmra.mxu0 %v463
        %v7965 = vpop.f32.mrf.mxu0
        %v7966 = vadd.f32 %v1064, %v7965
        %v7967 = vpop.f32.mrf.mxu0
        %v7968 = vadd.f32 %v1064, %v7967
        %7969 = vmatmul.bf16.gmra.mxu0 %v469
        %v7970 = vpop.f32.mrf.mxu0
        %v7971 = vadd.f32 %v1064, %v7970
        %v7972 = vpop.f32.mrf.mxu0
        %7973 = vdwg.mxu0
        %7974 = vmatpush.bf16.msra.mxu0 %v2996
        %7975 = vmatpush.bf16.msra.mxu0 %v2984
        %7976 = vmatpush.bf16.msra.mxu0 %v2972
        %7977 = vmatpush.bf16.msra.mxu0 %v2960
        %7978 = vmatpush.bf16.msra.mxu0 %v2948
        %7979 = vmatpush.bf16.msra.mxu0 %v2936
        %7980 = vmatpush.bf16.msra.mxu0 %v2924
        %7981 = vmatpush.bf16.msra.mxu0 %v2912
        %7982 = vmatmul.bf16.gmra.mxu0 %v398
        %v7983 = vpop.f32.mrf.mxu0
        %v7984 = vadd.f32 %v7911, %v7983
        %v7985 = vpop.f32.mrf.mxu0
        %v7986 = vadd.f32 %v7913, %v7985
        %7987 = vmatmul.bf16.gmra.mxu0 %v404
        %v7988 = vpop.f32.mrf.mxu0
        %v7989 = vadd.f32 %v7916, %v7988
        %v7990 = vpop.f32.mrf.mxu0
        %v7991 = vadd.f32 %v7918, %v7990
        %7992 = vmatmul.bf16.gmra.mxu0 %v410
        %v7993 = vpop.f32.mrf.mxu0
        %v7994 = vadd.f32 %v7921, %v7993
        %v7995 = vpop.f32.mrf.mxu0
        %v7996 = vadd.f32 %v7923, %v7995
        %7997 = vmatmul.bf16.gmra.mxu0 %v416
        %v7998 = vpop.f32.mrf.mxu0
        %v7999 = vadd.f32 %v7926, %v7998
        %v8000 = vpop.f32.mrf.mxu0
        %v8001 = vadd.f32 %v7928, %v8000
        %8002 = vmatmul.bf16.gmra.mxu0 %v422
        %v8003 = vpop.f32.mrf.mxu0
        %v8004 = vadd.f32 %v7931, %v8003
        %v8005 = vpop.f32.mrf.mxu0
        %v8006 = vadd.f32 %v7933, %v8005
        %8007 = vmatmul.bf16.gmra.mxu0 %v428
        %v8008 = vpop.f32.mrf.mxu0
        %v8009 = vadd.f32 %v7936, %v8008
        %v8010 = vpop.f32.mrf.mxu0
        %v8011 = vadd.f32 %v7938, %v8010
        %8012 = vmatmul.bf16.gmra.mxu0 %v434
        %v8013 = vpop.f32.mrf.mxu0
        %v8014 = vadd.f32 %v7941, %v8013
        %v8015 = vpop.f32.mrf.mxu0
        %v8016 = vadd.f32 %v7943, %v8015
        %8017 = vmatmul.bf16.gmra.mxu0 %v440
        %v8018 = vpop.f32.mrf.mxu0
        %v8019 = vadd.f32 %v7946, %v8018
        %v8020 = vpop.f32.mrf.mxu0
        %v8021 = vadd.f32 %v7948, %v8020
        %8022 = vmatmul.bf16.gmra.mxu0 %v446
        %v8023 = vpop.f32.mrf.mxu0
        %v8024 = vadd.f32 %v7951, %v8023
        %v8025 = vpop.f32.mrf.mxu0
        %v8026 = vadd.f32 %v7953, %v8025
        %8027 = vmatmul.bf16.gmra.mxu0 %v452
        %v8028 = vpop.f32.mrf.mxu0
        %v8029 = vadd.f32 %v7956, %v8028
        %v8030 = vpop.f32.mrf.mxu0
        %v8031 = vadd.f32 %v7958, %v8030
        %8032 = vmatmul.bf16.gmra.mxu0 %v458
        %v8033 = vpop.f32.mrf.mxu0
        %v8034 = vadd.f32 %v7961, %v8033
        %v8035 = vpop.f32.mrf.mxu0
        %v8036 = vadd.f32 %v7963, %v8035
        %8037 = vmatmul.bf16.gmra.mxu0 %v464
        %v8038 = vpop.f32.mrf.mxu0
        %v8039 = vadd.f32 %v7966, %v8038
        %v8040 = vpop.f32.mrf.mxu0
        %v8041 = vadd.f32 %v7968, %v8040
        %8042 = vmatmul.bf16.gmra.mxu0 %v470
        %v8043 = vpop.f32.mrf.mxu0
        %v8044 = vadd.f32 %v7971, %v8043
        %v8045 = vpop.f32.mrf.mxu0
        %8046 = vdwg.mxu0
        %8047 = vmatpush.bf16.msra.mxu0 %v3092
        %8048 = vmatpush.bf16.msra.mxu0 %v3080
        %8049 = vmatpush.bf16.msra.mxu0 %v3068
        %8050 = vmatpush.bf16.msra.mxu0 %v3056
        %8051 = vmatpush.bf16.msra.mxu0 %v3044
        %8052 = vmatpush.bf16.msra.mxu0 %v3032
        %8053 = vmatpush.bf16.msra.mxu0 %v3020
        %8054 = vmatpush.bf16.msra.mxu0 %v3008
        %8055 = vmatmul.bf16.gmra.mxu0 %v399
        %v8056 = vpop.f32.mrf.mxu0
        %v8057 = vadd.f32 %v7984, %v8056
        %v8058 = vpop.f32.mrf.mxu0
        %v8059 = vadd.f32 %v7986, %v8058
        %8060 = vmatmul.bf16.gmra.mxu0 %v405
        %v8061 = vpop.f32.mrf.mxu0
        %v8062 = vadd.f32 %v7989, %v8061
        %v8063 = vpop.f32.mrf.mxu0
        %v8064 = vadd.f32 %v7991, %v8063
        %8065 = vmatmul.bf16.gmra.mxu0 %v411
        %v8066 = vpop.f32.mrf.mxu0
        %v8067 = vadd.f32 %v7994, %v8066
        %v8068 = vpop.f32.mrf.mxu0
        %v8069 = vadd.f32 %v7996, %v8068
        %8070 = vmatmul.bf16.gmra.mxu0 %v417
        %v8071 = vpop.f32.mrf.mxu0
        %v8072 = vadd.f32 %v7999, %v8071
        %v8073 = vpop.f32.mrf.mxu0
        %v8074 = vadd.f32 %v8001, %v8073
        %8075 = vmatmul.bf16.gmra.mxu0 %v423
        %v8076 = vpop.f32.mrf.mxu0
        %v8077 = vadd.f32 %v8004, %v8076
        %v8078 = vpop.f32.mrf.mxu0
        %v8079 = vadd.f32 %v8006, %v8078
        %8080 = vmatmul.bf16.gmra.mxu0 %v429
        %v8081 = vpop.f32.mrf.mxu0
        %v8082 = vadd.f32 %v8009, %v8081
        %v8083 = vpop.f32.mrf.mxu0
        %v8084 = vadd.f32 %v8011, %v8083
        %8085 = vmatmul.bf16.gmra.mxu0 %v435
        %v8086 = vpop.f32.mrf.mxu0
        %v8087 = vadd.f32 %v8014, %v8086
        %v8088 = vpop.f32.mrf.mxu0
        %v8089 = vadd.f32 %v8016, %v8088
        %8090 = vmatmul.bf16.gmra.mxu0 %v441
        %v8091 = vpop.f32.mrf.mxu0
        %v8092 = vadd.f32 %v8019, %v8091
        %v8093 = vpop.f32.mrf.mxu0
        %v8094 = vadd.f32 %v8021, %v8093
        %8095 = vmatmul.bf16.gmra.mxu0 %v447
        %v8096 = vpop.f32.mrf.mxu0
        %v8097 = vadd.f32 %v8024, %v8096
        %v8098 = vpop.f32.mrf.mxu0
        %v8099 = vadd.f32 %v8026, %v8098
        %8100 = vmatmul.bf16.gmra.mxu0 %v453
        %v8101 = vpop.f32.mrf.mxu0
        %v8102 = vadd.f32 %v8029, %v8101
        %v8103 = vpop.f32.mrf.mxu0
        %v8104 = vadd.f32 %v8031, %v8103
        %8105 = vmatmul.bf16.gmra.mxu0 %v459
        %v8106 = vpop.f32.mrf.mxu0
        %v8107 = vadd.f32 %v8034, %v8106
        %v8108 = vpop.f32.mrf.mxu0
        %v8109 = vadd.f32 %v8036, %v8108
        %8110 = vmatmul.bf16.gmra.mxu0 %v465
        %v8111 = vpop.f32.mrf.mxu0
        %v8112 = vadd.f32 %v8039, %v8111
        %v8113 = vpop.f32.mrf.mxu0
        %v8114 = vadd.f32 %v8041, %v8113
        %8115 = vmatmul.bf16.gmra.mxu0 %v471
        %v8116 = vpop.f32.mrf.mxu0
        %v8117 = vadd.f32 %v8044, %v8116
        %v8118 = vpop.f32.mrf.mxu0
        %8119 = vdwg.mxu0
        %8120 = vmatpush.bf16.msra.mxu0 %v3188
        %8121 = vmatpush.bf16.msra.mxu0 %v3176
        %8122 = vmatpush.bf16.msra.mxu0 %v3164
        %8123 = vmatpush.bf16.msra.mxu0 %v3152
        %8124 = vmatpush.bf16.msra.mxu0 %v3140
        %8125 = vmatpush.bf16.msra.mxu0 %v3128
        %8126 = vmatpush.bf16.msra.mxu0 %v3116
        %8127 = vmatpush.bf16.msra.mxu0 %v3104
        %8128 = vmatmul.bf16.gmra.mxu0 %v400
        %v8129 = vpop.f32.mrf.mxu0
        %v8130 = vadd.f32 %v8057, %v8129
        %v8131 = vpop.f32.mrf.mxu0
        %v8132 = vadd.f32 %v8059, %v8131
        %8133 = vmatmul.bf16.gmra.mxu0 %v406
        %v8134 = vpop.f32.mrf.mxu0
        %v8135 = vadd.f32 %v8062, %v8134
        %v8136 = vpop.f32.mrf.mxu0
        %v8137 = vadd.f32 %v8064, %v8136
        %8138 = vmatmul.bf16.gmra.mxu0 %v412
        %v8139 = vpop.f32.mrf.mxu0
        %v8140 = vadd.f32 %v8067, %v8139
        %v8141 = vpop.f32.mrf.mxu0
        %v8142 = vadd.f32 %v8069, %v8141
        %8143 = vmatmul.bf16.gmra.mxu0 %v418
        %v8144 = vpop.f32.mrf.mxu0
        %v8145 = vadd.f32 %v8072, %v8144
        %v8146 = vpop.f32.mrf.mxu0
        %v8147 = vadd.f32 %v8074, %v8146
        %8148 = vmatmul.bf16.gmra.mxu0 %v424
        %v8149 = vpop.f32.mrf.mxu0
        %v8150 = vadd.f32 %v8077, %v8149
        %v8151 = vpop.f32.mrf.mxu0
        %v8152 = vadd.f32 %v8079, %v8151
        %8153 = vmatmul.bf16.gmra.mxu0 %v430
        %v8154 = vpop.f32.mrf.mxu0
        %v8155 = vadd.f32 %v8082, %v8154
        %v8156 = vpop.f32.mrf.mxu0
        %v8157 = vadd.f32 %v8084, %v8156
        %8158 = vmatmul.bf16.gmra.mxu0 %v436
        %v8159 = vpop.f32.mrf.mxu0
        %v8160 = vadd.f32 %v8087, %v8159
        %v8161 = vpop.f32.mrf.mxu0
        %v8162 = vadd.f32 %v8089, %v8161
        %8163 = vmatmul.bf16.gmra.mxu0 %v442
        %v8164 = vpop.f32.mrf.mxu0
        %v8165 = vadd.f32 %v8092, %v8164
        %v8166 = vpop.f32.mrf.mxu0
        %v8167 = vadd.f32 %v8094, %v8166
        %8168 = vmatmul.bf16.gmra.mxu0 %v448
        %v8169 = vpop.f32.mrf.mxu0
        %v8170 = vadd.f32 %v8097, %v8169
        %v8171 = vpop.f32.mrf.mxu0
        %v8172 = vadd.f32 %v8099, %v8171
        %8173 = vmatmul.bf16.gmra.mxu0 %v454
        %v8174 = vpop.f32.mrf.mxu0
        %v8175 = vadd.f32 %v8102, %v8174
        %v8176 = vpop.f32.mrf.mxu0
        %v8177 = vadd.f32 %v8104, %v8176
        %8178 = vmatmul.bf16.gmra.mxu0 %v460
        %v8179 = vpop.f32.mrf.mxu0
        %v8180 = vadd.f32 %v8107, %v8179
        %v8181 = vpop.f32.mrf.mxu0
        %v8182 = vadd.f32 %v8109, %v8181
        %8183 = vmatmul.bf16.gmra.mxu0 %v466
        %v8184 = vpop.f32.mrf.mxu0
        %v8185 = vadd.f32 %v8112, %v8184
        %v8186 = vpop.f32.mrf.mxu0
        %v8187 = vadd.f32 %v8114, %v8186
        %8188 = vmatmul.bf16.gmra.mxu0 %v472
        %v8189 = vpop.f32.mrf.mxu0
        %v8190 = vadd.f32 %v8117, %v8189
        %v8191 = vpop.f32.mrf.mxu0
        %8192 = vdwg.mxu0
        %8193 = vmatpush.bf16.msra.mxu0 %v3284
        %8194 = vmatpush.bf16.msra.mxu0 %v3272
        %8195 = vmatpush.bf16.msra.mxu0 %v3260
        %8196 = vmatpush.bf16.msra.mxu0 %v3248
        %8197 = vmatpush.bf16.msra.mxu0 %v3236
        %8198 = vmatpush.bf16.msra.mxu0 %v3224
        %8199 = vmatpush.bf16.msra.mxu0 %v3212
        %8200 = vmatpush.bf16.msra.mxu0 %v3200
        %8201 = vmatmul.bf16.gmra.mxu0 %v401
        %v8202 = vpop.f32.mrf.mxu0
        %v8203 = vadd.f32 %v8130, %v8202
        %v8204 = vpop.f32.mrf.mxu0
        %v8205 = vadd.f32 %v8132, %v8204
        %8206 = vmatmul.bf16.gmra.mxu0 %v407
        %v8207 = vpop.f32.mrf.mxu0
        %v8208 = vadd.f32 %v8135, %v8207
        %v8209 = vpop.f32.mrf.mxu0
        %v8210 = vadd.f32 %v8137, %v8209
        %8211 = vmatmul.bf16.gmra.mxu0 %v413
        %v8212 = vpop.f32.mrf.mxu0
        %v8213 = vadd.f32 %v8140, %v8212
        %v8214 = vpop.f32.mrf.mxu0
        %v8215 = vadd.f32 %v8142, %v8214
        %8216 = vmatmul.bf16.gmra.mxu0 %v419
        %v8217 = vpop.f32.mrf.mxu0
        %v8218 = vadd.f32 %v8145, %v8217
        %v8219 = vpop.f32.mrf.mxu0
        %v8220 = vadd.f32 %v8147, %v8219
        %8221 = vmatmul.bf16.gmra.mxu0 %v425
        %v8222 = vpop.f32.mrf.mxu0
        %v8223 = vadd.f32 %v8150, %v8222
        %v8224 = vpop.f32.mrf.mxu0
        %v8225 = vadd.f32 %v8152, %v8224
        %8226 = vmatmul.bf16.gmra.mxu0 %v431
        %v8227 = vpop.f32.mrf.mxu0
        %v8228 = vadd.f32 %v8155, %v8227
        %v8229 = vpop.f32.mrf.mxu0
        %v8230 = vadd.f32 %v8157, %v8229
        %8231 = vmatmul.bf16.gmra.mxu0 %v437
        %v8232 = vpop.f32.mrf.mxu0
        %v8233 = vadd.f32 %v8160, %v8232
        %v8234 = vpop.f32.mrf.mxu0
        %v8235 = vadd.f32 %v8162, %v8234
        %8236 = vmatmul.bf16.gmra.mxu0 %v443
        %v8237 = vpop.f32.mrf.mxu0
        %v8238 = vadd.f32 %v8165, %v8237
        %v8239 = vpop.f32.mrf.mxu0
        %v8240 = vadd.f32 %v8167, %v8239
        %8241 = vmatmul.bf16.gmra.mxu0 %v449
        %v8242 = vpop.f32.mrf.mxu0
        %v8243 = vadd.f32 %v8170, %v8242
        %v8244 = vpop.f32.mrf.mxu0
        %v8245 = vadd.f32 %v8172, %v8244
        %8246 = vmatmul.bf16.gmra.mxu0 %v455
        %v8247 = vpop.f32.mrf.mxu0
        %v8248 = vadd.f32 %v8175, %v8247
        %v8249 = vpop.f32.mrf.mxu0
        %v8250 = vadd.f32 %v8177, %v8249
        %8251 = vmatmul.bf16.gmra.mxu0 %v461
        %v8252 = vpop.f32.mrf.mxu0
        %v8253 = vadd.f32 %v8180, %v8252
        %v8254 = vpop.f32.mrf.mxu0
        %v8255 = vadd.f32 %v8182, %v8254
        %8256 = vmatmul.bf16.gmra.mxu0 %v467
        %v8257 = vpop.f32.mrf.mxu0
        %v8258 = vadd.f32 %v8185, %v8257
        %v8259 = vpop.f32.mrf.mxu0
        %v8260 = vadd.f32 %v8187, %v8259
        %8261 = vmatmul.bf16.gmra.mxu0 %v473
        %v8262 = vpop.f32.mrf.mxu0
        %v8263 = vadd.f32 %v8190, %v8262
        %v8264 = vpop.f32.mrf.mxu0
        %8265 = vdwg.mxu0
        %8266 = vmatpush.bf16.msra.mxu0 %v3380
        %8267 = vmatpush.bf16.msra.mxu0 %v3368
        %8268 = vmatpush.bf16.msra.mxu0 %v3356
        %8269 = vmatpush.bf16.msra.mxu0 %v3344
        %8270 = vmatpush.bf16.msra.mxu0 %v3332
        %8271 = vmatpush.bf16.msra.mxu0 %v3320
        %8272 = vmatpush.bf16.msra.mxu0 %v3308
        %8273 = vmatpush.bf16.msra.mxu0 %v3296
        %8274 = vmatmul.bf16.gmra.mxu0 %v402
        %v8275 = vpop.f32.mrf.mxu0
        %v8276 = vadd.f32 %v8203, %v8275
        %v8277 = vpop.f32.mrf.mxu0
        %v8278 = vadd.f32 %v8205, %v8277
        %8279 = vmatmul.bf16.gmra.mxu0 %v408
        %v8280 = vpop.f32.mrf.mxu0
        %v8281 = vadd.f32 %v8208, %v8280
        %v8282 = vpop.f32.mrf.mxu0
        %v8283 = vadd.f32 %v8210, %v8282
        %8284 = vmatmul.bf16.gmra.mxu0 %v414
        %v8285 = vpop.f32.mrf.mxu0
        %v8286 = vadd.f32 %v8213, %v8285
        %v8287 = vpop.f32.mrf.mxu0
        %v8288 = vadd.f32 %v8215, %v8287
        %8289 = vmatmul.bf16.gmra.mxu0 %v420
        %v8290 = vpop.f32.mrf.mxu0
        %v8291 = vadd.f32 %v8218, %v8290
        %v8292 = vpop.f32.mrf.mxu0
        %v8293 = vadd.f32 %v8220, %v8292
        %8294 = vmatmul.bf16.gmra.mxu0 %v426
        %v8295 = vpop.f32.mrf.mxu0
        %v8296 = vadd.f32 %v8223, %v8295
        %v8297 = vpop.f32.mrf.mxu0
        %v8298 = vadd.f32 %v8225, %v8297
        %8299 = vmatmul.bf16.gmra.mxu0 %v432
        %v8300 = vpop.f32.mrf.mxu0
        %v8301 = vadd.f32 %v8228, %v8300
        %v8302 = vpop.f32.mrf.mxu0
        %v8303 = vadd.f32 %v8230, %v8302
        %8304 = vmatmul.bf16.gmra.mxu0 %v438
        %v8305 = vpop.f32.mrf.mxu0
        %v8306 = vadd.f32 %v8233, %v8305
        %v8307 = vpop.f32.mrf.mxu0
        %v8308 = vadd.f32 %v8235, %v8307
        %8309 = vmatmul.bf16.gmra.mxu0 %v444
        %v8310 = vpop.f32.mrf.mxu0
        %v8311 = vadd.f32 %v8238, %v8310
        %v8312 = vpop.f32.mrf.mxu0
        %v8313 = vadd.f32 %v8240, %v8312
        %8314 = vmatmul.bf16.gmra.mxu0 %v450
        %v8315 = vpop.f32.mrf.mxu0
        %v8316 = vadd.f32 %v8243, %v8315
        %v8317 = vpop.f32.mrf.mxu0
        %v8318 = vadd.f32 %v8245, %v8317
        %8319 = vmatmul.bf16.gmra.mxu0 %v456
        %v8320 = vpop.f32.mrf.mxu0
        %v8321 = vadd.f32 %v8248, %v8320
        %v8322 = vpop.f32.mrf.mxu0
        %v8323 = vadd.f32 %v8250, %v8322
        %8324 = vmatmul.bf16.gmra.mxu0 %v462
        %v8325 = vpop.f32.mrf.mxu0
        %v8326 = vadd.f32 %v8253, %v8325
        %v8327 = vpop.f32.mrf.mxu0
        %v8328 = vadd.f32 %v8255, %v8327
        %8329 = vmatmul.bf16.gmra.mxu0 %v468
        %v8330 = vpop.f32.mrf.mxu0
        %v8331 = vadd.f32 %v8258, %v8330
        %v8332 = vpop.f32.mrf.mxu0
        %v8333 = vadd.f32 %v8260, %v8332
        %8334 = vmatmul.bf16.gmra.mxu0 %v474
        %v8335 = vpop.f32.mrf.mxu0
        %v8336 = vadd.f32 %v8263, %v8335
        %v8337 = vpop.f32.mrf.mxu0
        %8338 = vdwg.mxu0
        %8339 = vmatpush.bf16.msra.mxu0 %v2901
        %8340 = vmatpush.bf16.msra.mxu0 %v2889
        %8341 = vmatpush.bf16.msra.mxu0 %v2877
        %8342 = vmatpush.bf16.msra.mxu0 %v2865
        %8343 = vmatpush.bf16.msra.mxu0 %v2853
        %8344 = vmatpush.bf16.msra.mxu0 %v2841
        %8345 = vmatpush.bf16.msra.mxu0 %v2829
        %8346 = vmatpush.bf16.msra.mxu0 %v2817
        %8347 = vmatmul.bf16.gmra.mxu0 %v397
        %v8348 = vpop.f32.mrf.mxu0
        %v8349 = vadd.f32 %v1065, %v8348
        %v8350 = vpop.f32.mrf.mxu0
        %v8351 = vadd.f32 %v1065, %v8350
        %8352 = vmatmul.bf16.gmra.mxu0 %v403
        %v8353 = vpop.f32.mrf.mxu0
        %v8354 = vadd.f32 %v1065, %v8353
        %v8355 = vpop.f32.mrf.mxu0
        %v8356 = vadd.f32 %v1065, %v8355
        %8357 = vmatmul.bf16.gmra.mxu0 %v409
        %v8358 = vpop.f32.mrf.mxu0
        %v8359 = vadd.f32 %v1065, %v8358
        %v8360 = vpop.f32.mrf.mxu0
        %v8361 = vadd.f32 %v1065, %v8360
        %8362 = vmatmul.bf16.gmra.mxu0 %v415
        %v8363 = vpop.f32.mrf.mxu0
        %v8364 = vadd.f32 %v1065, %v8363
        %v8365 = vpop.f32.mrf.mxu0
        %v8366 = vadd.f32 %v1065, %v8365
        %8367 = vmatmul.bf16.gmra.mxu0 %v421
        %v8368 = vpop.f32.mrf.mxu0
        %v8369 = vadd.f32 %v1065, %v8368
        %v8370 = vpop.f32.mrf.mxu0
        %v8371 = vadd.f32 %v1065, %v8370
        %8372 = vmatmul.bf16.gmra.mxu0 %v427
        %v8373 = vpop.f32.mrf.mxu0
        %v8374 = vadd.f32 %v1065, %v8373
        %v8375 = vpop.f32.mrf.mxu0
        %v8376 = vadd.f32 %v1065, %v8375
        %8377 = vmatmul.bf16.gmra.mxu0 %v433
        %v8378 = vpop.f32.mrf.mxu0
        %v8379 = vadd.f32 %v1065, %v8378
        %v8380 = vpop.f32.mrf.mxu0
        %v8381 = vadd.f32 %v1065, %v8380
        %8382 = vmatmul.bf16.gmra.mxu0 %v439
        %v8383 = vpop.f32.mrf.mxu0
        %v8384 = vadd.f32 %v1065, %v8383
        %v8385 = vpop.f32.mrf.mxu0
        %v8386 = vadd.f32 %v1065, %v8385
        %8387 = vmatmul.bf16.gmra.mxu0 %v445
        %v8388 = vpop.f32.mrf.mxu0
        %v8389 = vadd.f32 %v1065, %v8388
        %v8390 = vpop.f32.mrf.mxu0
        %v8391 = vadd.f32 %v1065, %v8390
        %8392 = vmatmul.bf16.gmra.mxu0 %v451
        %v8393 = vpop.f32.mrf.mxu0
        %v8394 = vadd.f32 %v1065, %v8393
        %v8395 = vpop.f32.mrf.mxu0
        %v8396 = vadd.f32 %v1065, %v8395
        %8397 = vmatmul.bf16.gmra.mxu0 %v457
        %v8398 = vpop.f32.mrf.mxu0
        %v8399 = vadd.f32 %v1065, %v8398
        %v8400 = vpop.f32.mrf.mxu0
        %v8401 = vadd.f32 %v1065, %v8400
        %8402 = vmatmul.bf16.gmra.mxu0 %v463
        %v8403 = vpop.f32.mrf.mxu0
        %v8404 = vadd.f32 %v1065, %v8403
        %v8405 = vpop.f32.mrf.mxu0
        %v8406 = vadd.f32 %v1065, %v8405
        %8407 = vmatmul.bf16.gmra.mxu0 %v469
        %v8408 = vpop.f32.mrf.mxu0
        %v8409 = vadd.f32 %v1065, %v8408
        %v8410 = vpop.f32.mrf.mxu0
        %8411 = vdwg.mxu0
        %8412 = vmatpush.bf16.msra.mxu0 %v2997
        %8413 = vmatpush.bf16.msra.mxu0 %v2985
        %8414 = vmatpush.bf16.msra.mxu0 %v2973
        %8415 = vmatpush.bf16.msra.mxu0 %v2961
        %8416 = vmatpush.bf16.msra.mxu0 %v2949
        %8417 = vmatpush.bf16.msra.mxu0 %v2937
        %8418 = vmatpush.bf16.msra.mxu0 %v2925
        %8419 = vmatpush.bf16.msra.mxu0 %v2913
        %8420 = vmatmul.bf16.gmra.mxu0 %v398
        %v8421 = vpop.f32.mrf.mxu0
        %v8422 = vadd.f32 %v8349, %v8421
        %v8423 = vpop.f32.mrf.mxu0
        %v8424 = vadd.f32 %v8351, %v8423
        %8425 = vmatmul.bf16.gmra.mxu0 %v404
        %v8426 = vpop.f32.mrf.mxu0
        %v8427 = vadd.f32 %v8354, %v8426
        %v8428 = vpop.f32.mrf.mxu0
        %v8429 = vadd.f32 %v8356, %v8428
        %8430 = vmatmul.bf16.gmra.mxu0 %v410
        %v8431 = vpop.f32.mrf.mxu0
        %v8432 = vadd.f32 %v8359, %v8431
        %v8433 = vpop.f32.mrf.mxu0
        %v8434 = vadd.f32 %v8361, %v8433
        %8435 = vmatmul.bf16.gmra.mxu0 %v416
        %v8436 = vpop.f32.mrf.mxu0
        %v8437 = vadd.f32 %v8364, %v8436
        %v8438 = vpop.f32.mrf.mxu0
        %v8439 = vadd.f32 %v8366, %v8438
        %8440 = vmatmul.bf16.gmra.mxu0 %v422
        %v8441 = vpop.f32.mrf.mxu0
        %v8442 = vadd.f32 %v8369, %v8441
        %v8443 = vpop.f32.mrf.mxu0
        %v8444 = vadd.f32 %v8371, %v8443
        %8445 = vmatmul.bf16.gmra.mxu0 %v428
        %v8446 = vpop.f32.mrf.mxu0
        %v8447 = vadd.f32 %v8374, %v8446
        %v8448 = vpop.f32.mrf.mxu0
        %v8449 = vadd.f32 %v8376, %v8448
        %8450 = vmatmul.bf16.gmra.mxu0 %v434
        %v8451 = vpop.f32.mrf.mxu0
        %v8452 = vadd.f32 %v8379, %v8451
        %v8453 = vpop.f32.mrf.mxu0
        %v8454 = vadd.f32 %v8381, %v8453
        %8455 = vmatmul.bf16.gmra.mxu0 %v440
        %v8456 = vpop.f32.mrf.mxu0
        %v8457 = vadd.f32 %v8384, %v8456
        %v8458 = vpop.f32.mrf.mxu0
        %v8459 = vadd.f32 %v8386, %v8458
        %8460 = vmatmul.bf16.gmra.mxu0 %v446
        %v8461 = vpop.f32.mrf.mxu0
        %v8462 = vadd.f32 %v8389, %v8461
        %v8463 = vpop.f32.mrf.mxu0
        %v8464 = vadd.f32 %v8391, %v8463
        %8465 = vmatmul.bf16.gmra.mxu0 %v452
        %v8466 = vpop.f32.mrf.mxu0
        %v8467 = vadd.f32 %v8394, %v8466
        %v8468 = vpop.f32.mrf.mxu0
        %v8469 = vadd.f32 %v8396, %v8468
        %8470 = vmatmul.bf16.gmra.mxu0 %v458
        %v8471 = vpop.f32.mrf.mxu0
        %v8472 = vadd.f32 %v8399, %v8471
        %v8473 = vpop.f32.mrf.mxu0
        %v8474 = vadd.f32 %v8401, %v8473
        %8475 = vmatmul.bf16.gmra.mxu0 %v464
        %v8476 = vpop.f32.mrf.mxu0
        %v8477 = vadd.f32 %v8404, %v8476
        %v8478 = vpop.f32.mrf.mxu0
        %v8479 = vadd.f32 %v8406, %v8478
        %8480 = vmatmul.bf16.gmra.mxu0 %v470
        %v8481 = vpop.f32.mrf.mxu0
        %v8482 = vadd.f32 %v8409, %v8481
        %v8483 = vpop.f32.mrf.mxu0
        %8484 = vdwg.mxu0
        %8485 = vmatpush.bf16.msra.mxu0 %v3093
        %8486 = vmatpush.bf16.msra.mxu0 %v3081
        %8487 = vmatpush.bf16.msra.mxu0 %v3069
        %8488 = vmatpush.bf16.msra.mxu0 %v3057
        %8489 = vmatpush.bf16.msra.mxu0 %v3045
        %8490 = vmatpush.bf16.msra.mxu0 %v3033
        %8491 = vmatpush.bf16.msra.mxu0 %v3021
        %8492 = vmatpush.bf16.msra.mxu0 %v3009
        %8493 = vmatmul.bf16.gmra.mxu0 %v399
        %v8494 = vpop.f32.mrf.mxu0
        %v8495 = vadd.f32 %v8422, %v8494
        %v8496 = vpop.f32.mrf.mxu0
        %v8497 = vadd.f32 %v8424, %v8496
        %8498 = vmatmul.bf16.gmra.mxu0 %v405
        %v8499 = vpop.f32.mrf.mxu0
        %v8500 = vadd.f32 %v8427, %v8499
        %v8501 = vpop.f32.mrf.mxu0
        %v8502 = vadd.f32 %v8429, %v8501
        %8503 = vmatmul.bf16.gmra.mxu0 %v411
        %v8504 = vpop.f32.mrf.mxu0
        %v8505 = vadd.f32 %v8432, %v8504
        %v8506 = vpop.f32.mrf.mxu0
        %v8507 = vadd.f32 %v8434, %v8506
        %8508 = vmatmul.bf16.gmra.mxu0 %v417
        %v8509 = vpop.f32.mrf.mxu0
        %v8510 = vadd.f32 %v8437, %v8509
        %v8511 = vpop.f32.mrf.mxu0
        %v8512 = vadd.f32 %v8439, %v8511
        %8513 = vmatmul.bf16.gmra.mxu0 %v423
        %v8514 = vpop.f32.mrf.mxu0
        %v8515 = vadd.f32 %v8442, %v8514
        %v8516 = vpop.f32.mrf.mxu0
        %v8517 = vadd.f32 %v8444, %v8516
        %8518 = vmatmul.bf16.gmra.mxu0 %v429
        %v8519 = vpop.f32.mrf.mxu0
        %v8520 = vadd.f32 %v8447, %v8519
        %v8521 = vpop.f32.mrf.mxu0
        %v8522 = vadd.f32 %v8449, %v8521
        %8523 = vmatmul.bf16.gmra.mxu0 %v435
        %v8524 = vpop.f32.mrf.mxu0
        %v8525 = vadd.f32 %v8452, %v8524
        %v8526 = vpop.f32.mrf.mxu0
        %v8527 = vadd.f32 %v8454, %v8526
        %8528 = vmatmul.bf16.gmra.mxu0 %v441
        %v8529 = vpop.f32.mrf.mxu0
        %v8530 = vadd.f32 %v8457, %v8529
        %v8531 = vpop.f32.mrf.mxu0
        %v8532 = vadd.f32 %v8459, %v8531
        %8533 = vmatmul.bf16.gmra.mxu0 %v447
        %v8534 = vpop.f32.mrf.mxu0
        %v8535 = vadd.f32 %v8462, %v8534
        %v8536 = vpop.f32.mrf.mxu0
        %v8537 = vadd.f32 %v8464, %v8536
        %8538 = vmatmul.bf16.gmra.mxu0 %v453
        %v8539 = vpop.f32.mrf.mxu0
        %v8540 = vadd.f32 %v8467, %v8539
        %v8541 = vpop.f32.mrf.mxu0
        %v8542 = vadd.f32 %v8469, %v8541
        %8543 = vmatmul.bf16.gmra.mxu0 %v459
        %v8544 = vpop.f32.mrf.mxu0
        %v8545 = vadd.f32 %v8472, %v8544
        %v8546 = vpop.f32.mrf.mxu0
        %v8547 = vadd.f32 %v8474, %v8546
        %8548 = vmatmul.bf16.gmra.mxu0 %v465
        %v8549 = vpop.f32.mrf.mxu0
        %v8550 = vadd.f32 %v8477, %v8549
        %v8551 = vpop.f32.mrf.mxu0
        %v8552 = vadd.f32 %v8479, %v8551
        %8553 = vmatmul.bf16.gmra.mxu0 %v471
        %v8554 = vpop.f32.mrf.mxu0
        %v8555 = vadd.f32 %v8482, %v8554
        %v8556 = vpop.f32.mrf.mxu0
        %8557 = vdwg.mxu0
        %8558 = vmatpush.bf16.msra.mxu0 %v3189
        %8559 = vmatpush.bf16.msra.mxu0 %v3177
        %8560 = vmatpush.bf16.msra.mxu0 %v3165
        %8561 = vmatpush.bf16.msra.mxu0 %v3153
        %8562 = vmatpush.bf16.msra.mxu0 %v3141
        %8563 = vmatpush.bf16.msra.mxu0 %v3129
        %8564 = vmatpush.bf16.msra.mxu0 %v3117
        %8565 = vmatpush.bf16.msra.mxu0 %v3105
        %8566 = vmatmul.bf16.gmra.mxu0 %v400
        %v8567 = vpop.f32.mrf.mxu0
        %v8568 = vadd.f32 %v8495, %v8567
        %v8569 = vpop.f32.mrf.mxu0
        %v8570 = vadd.f32 %v8497, %v8569
        %8571 = vmatmul.bf16.gmra.mxu0 %v406
        %v8572 = vpop.f32.mrf.mxu0
        %v8573 = vadd.f32 %v8500, %v8572
        %v8574 = vpop.f32.mrf.mxu0
        %v8575 = vadd.f32 %v8502, %v8574
        %8576 = vmatmul.bf16.gmra.mxu0 %v412
        %v8577 = vpop.f32.mrf.mxu0
        %v8578 = vadd.f32 %v8505, %v8577
        %v8579 = vpop.f32.mrf.mxu0
        %v8580 = vadd.f32 %v8507, %v8579
        %8581 = vmatmul.bf16.gmra.mxu0 %v418
        %v8582 = vpop.f32.mrf.mxu0
        %v8583 = vadd.f32 %v8510, %v8582
        %v8584 = vpop.f32.mrf.mxu0
        %v8585 = vadd.f32 %v8512, %v8584
        %8586 = vmatmul.bf16.gmra.mxu0 %v424
        %v8587 = vpop.f32.mrf.mxu0
        %v8588 = vadd.f32 %v8515, %v8587
        %v8589 = vpop.f32.mrf.mxu0
        %v8590 = vadd.f32 %v8517, %v8589
        %8591 = vmatmul.bf16.gmra.mxu0 %v430
        %v8592 = vpop.f32.mrf.mxu0
        %v8593 = vadd.f32 %v8520, %v8592
        %v8594 = vpop.f32.mrf.mxu0
        %v8595 = vadd.f32 %v8522, %v8594
        %8596 = vmatmul.bf16.gmra.mxu0 %v436
        %v8597 = vpop.f32.mrf.mxu0
        %v8598 = vadd.f32 %v8525, %v8597
        %v8599 = vpop.f32.mrf.mxu0
        %v8600 = vadd.f32 %v8527, %v8599
        %8601 = vmatmul.bf16.gmra.mxu0 %v442
        %v8602 = vpop.f32.mrf.mxu0
        %v8603 = vadd.f32 %v8530, %v8602
        %v8604 = vpop.f32.mrf.mxu0
        %v8605 = vadd.f32 %v8532, %v8604
        %8606 = vmatmul.bf16.gmra.mxu0 %v448
        %v8607 = vpop.f32.mrf.mxu0
        %v8608 = vadd.f32 %v8535, %v8607
        %v8609 = vpop.f32.mrf.mxu0
        %v8610 = vadd.f32 %v8537, %v8609
        %8611 = vmatmul.bf16.gmra.mxu0 %v454
        %v8612 = vpop.f32.mrf.mxu0
        %v8613 = vadd.f32 %v8540, %v8612
        %v8614 = vpop.f32.mrf.mxu0
        %v8615 = vadd.f32 %v8542, %v8614
        %8616 = vmatmul.bf16.gmra.mxu0 %v460
        %v8617 = vpop.f32.mrf.mxu0
        %v8618 = vadd.f32 %v8545, %v8617
        %v8619 = vpop.f32.mrf.mxu0
        %v8620 = vadd.f32 %v8547, %v8619
        %8621 = vmatmul.bf16.gmra.mxu0 %v466
        %v8622 = vpop.f32.mrf.mxu0
        %v8623 = vadd.f32 %v8550, %v8622
        %v8624 = vpop.f32.mrf.mxu0
        %v8625 = vadd.f32 %v8552, %v8624
        %8626 = vmatmul.bf16.gmra.mxu0 %v472
        %v8627 = vpop.f32.mrf.mxu0
        %v8628 = vadd.f32 %v8555, %v8627
        %v8629 = vpop.f32.mrf.mxu0
        %8630 = vdwg.mxu0
        %8631 = vmatpush.bf16.msra.mxu0 %v3285
        %8632 = vmatpush.bf16.msra.mxu0 %v3273
        %8633 = vmatpush.bf16.msra.mxu0 %v3261
        %8634 = vmatpush.bf16.msra.mxu0 %v3249
        %8635 = vmatpush.bf16.msra.mxu0 %v3237
        %8636 = vmatpush.bf16.msra.mxu0 %v3225
        %8637 = vmatpush.bf16.msra.mxu0 %v3213
        %8638 = vmatpush.bf16.msra.mxu0 %v3201
        %8639 = vmatmul.bf16.gmra.mxu0 %v401
        %v8640 = vpop.f32.mrf.mxu0
        %v8641 = vadd.f32 %v8568, %v8640
        %v8642 = vpop.f32.mrf.mxu0
        %v8643 = vadd.f32 %v8570, %v8642
        %8644 = vmatmul.bf16.gmra.mxu0 %v407
        %v8645 = vpop.f32.mrf.mxu0
        %v8646 = vadd.f32 %v8573, %v8645
        %v8647 = vpop.f32.mrf.mxu0
        %v8648 = vadd.f32 %v8575, %v8647
        %8649 = vmatmul.bf16.gmra.mxu0 %v413
        %v8650 = vpop.f32.mrf.mxu0
        %v8651 = vadd.f32 %v8578, %v8650
        %v8652 = vpop.f32.mrf.mxu0
        %v8653 = vadd.f32 %v8580, %v8652
        %8654 = vmatmul.bf16.gmra.mxu0 %v419
        %v8655 = vpop.f32.mrf.mxu0
        %v8656 = vadd.f32 %v8583, %v8655
        %v8657 = vpop.f32.mrf.mxu0
        %v8658 = vadd.f32 %v8585, %v8657
        %8659 = vmatmul.bf16.gmra.mxu0 %v425
        %v8660 = vpop.f32.mrf.mxu0
        %v8661 = vadd.f32 %v8588, %v8660
        %v8662 = vpop.f32.mrf.mxu0
        %v8663 = vadd.f32 %v8590, %v8662
        %8664 = vmatmul.bf16.gmra.mxu0 %v431
        %v8665 = vpop.f32.mrf.mxu0
        %v8666 = vadd.f32 %v8593, %v8665
        %v8667 = vpop.f32.mrf.mxu0
        %v8668 = vadd.f32 %v8595, %v8667
        %8669 = vmatmul.bf16.gmra.mxu0 %v437
        %v8670 = vpop.f32.mrf.mxu0
        %v8671 = vadd.f32 %v8598, %v8670
        %v8672 = vpop.f32.mrf.mxu0
        %v8673 = vadd.f32 %v8600, %v8672
        %8674 = vmatmul.bf16.gmra.mxu0 %v443
        %v8675 = vpop.f32.mrf.mxu0
        %v8676 = vadd.f32 %v8603, %v8675
        %v8677 = vpop.f32.mrf.mxu0
        %v8678 = vadd.f32 %v8605, %v8677
        %8679 = vmatmul.bf16.gmra.mxu0 %v449
        %v8680 = vpop.f32.mrf.mxu0
        %v8681 = vadd.f32 %v8608, %v8680
        %v8682 = vpop.f32.mrf.mxu0
        %v8683 = vadd.f32 %v8610, %v8682
        %8684 = vmatmul.bf16.gmra.mxu0 %v455
        %v8685 = vpop.f32.mrf.mxu0
        %v8686 = vadd.f32 %v8613, %v8685
        %v8687 = vpop.f32.mrf.mxu0
        %v8688 = vadd.f32 %v8615, %v8687
        %8689 = vmatmul.bf16.gmra.mxu0 %v461
        %v8690 = vpop.f32.mrf.mxu0
        %v8691 = vadd.f32 %v8618, %v8690
        %v8692 = vpop.f32.mrf.mxu0
        %v8693 = vadd.f32 %v8620, %v8692
        %8694 = vmatmul.bf16.gmra.mxu0 %v467
        %v8695 = vpop.f32.mrf.mxu0
        %v8696 = vadd.f32 %v8623, %v8695
        %v8697 = vpop.f32.mrf.mxu0
        %v8698 = vadd.f32 %v8625, %v8697
        %8699 = vmatmul.bf16.gmra.mxu0 %v473
        %v8700 = vpop.f32.mrf.mxu0
        %v8701 = vadd.f32 %v8628, %v8700
        %v8702 = vpop.f32.mrf.mxu0
        %8703 = vdwg.mxu0
        %8704 = vmatpush.bf16.msra.mxu0 %v3381
        %8705 = vmatpush.bf16.msra.mxu0 %v3369
        %8706 = vmatpush.bf16.msra.mxu0 %v3357
        %8707 = vmatpush.bf16.msra.mxu0 %v3345
        %8708 = vmatpush.bf16.msra.mxu0 %v3333
        %8709 = vmatpush.bf16.msra.mxu0 %v3321
        %8710 = vmatpush.bf16.msra.mxu0 %v3309
        %8711 = vmatpush.bf16.msra.mxu0 %v3297
        %8712 = vmatmul.bf16.gmra.mxu0 %v402
        %v8713 = vpop.f32.mrf.mxu0
        %v8714 = vadd.f32 %v8641, %v8713
        %v8715 = vpop.f32.mrf.mxu0
        %v8716 = vadd.f32 %v8643, %v8715
        %8717 = vmatmul.bf16.gmra.mxu0 %v408
        %v8718 = vpop.f32.mrf.mxu0
        %v8719 = vadd.f32 %v8646, %v8718
        %v8720 = vpop.f32.mrf.mxu0
        %v8721 = vadd.f32 %v8648, %v8720
        %8722 = vmatmul.bf16.gmra.mxu0 %v414
        %v8723 = vpop.f32.mrf.mxu0
        %v8724 = vadd.f32 %v8651, %v8723
        %v8725 = vpop.f32.mrf.mxu0
        %v8726 = vadd.f32 %v8653, %v8725
        %8727 = vmatmul.bf16.gmra.mxu0 %v420
        %v8728 = vpop.f32.mrf.mxu0
        %v8729 = vadd.f32 %v8656, %v8728
        %v8730 = vpop.f32.mrf.mxu0
        %v8731 = vadd.f32 %v8658, %v8730
        %8732 = vmatmul.bf16.gmra.mxu0 %v426
        %v8733 = vpop.f32.mrf.mxu0
        %v8734 = vadd.f32 %v8661, %v8733
        %v8735 = vpop.f32.mrf.mxu0
        %v8736 = vadd.f32 %v8663, %v8735
        %8737 = vmatmul.bf16.gmra.mxu0 %v432
        %v8738 = vpop.f32.mrf.mxu0
        %v8739 = vadd.f32 %v8666, %v8738
        %v8740 = vpop.f32.mrf.mxu0
        %v8741 = vadd.f32 %v8668, %v8740
        %8742 = vmatmul.bf16.gmra.mxu0 %v438
        %v8743 = vpop.f32.mrf.mxu0
        %v8744 = vadd.f32 %v8671, %v8743
        %v8745 = vpop.f32.mrf.mxu0
        %v8746 = vadd.f32 %v8673, %v8745
        %8747 = vmatmul.bf16.gmra.mxu0 %v444
        %v8748 = vpop.f32.mrf.mxu0
        %v8749 = vadd.f32 %v8676, %v8748
        %v8750 = vpop.f32.mrf.mxu0
        %v8751 = vadd.f32 %v8678, %v8750
        %8752 = vmatmul.bf16.gmra.mxu0 %v450
        %v8753 = vpop.f32.mrf.mxu0
        %v8754 = vadd.f32 %v8681, %v8753
        %v8755 = vpop.f32.mrf.mxu0
        %v8756 = vadd.f32 %v8683, %v8755
        %8757 = vmatmul.bf16.gmra.mxu0 %v456
        %v8758 = vpop.f32.mrf.mxu0
        %v8759 = vadd.f32 %v8686, %v8758
        %v8760 = vpop.f32.mrf.mxu0
        %v8761 = vadd.f32 %v8688, %v8760
        %8762 = vmatmul.bf16.gmra.mxu0 %v462
        %v8763 = vpop.f32.mrf.mxu0
        %v8764 = vadd.f32 %v8691, %v8763
        %v8765 = vpop.f32.mrf.mxu0
        %v8766 = vadd.f32 %v8693, %v8765
        %8767 = vmatmul.bf16.gmra.mxu0 %v468
        %v8768 = vpop.f32.mrf.mxu0
        %v8769 = vadd.f32 %v8696, %v8768
        %v8770 = vpop.f32.mrf.mxu0
        %v8771 = vadd.f32 %v8698, %v8770
        %8772 = vmatmul.bf16.gmra.mxu0 %v474
        %v8773 = vpop.f32.mrf.mxu0
        %v8774 = vadd.f32 %v8701, %v8773
        %v8775 = vpop.f32.mrf.mxu0
        %8776 = vdwg.mxu0
        %8777 = vmatpush.bf16.msra.mxu0 %v2902
        %8778 = vmatpush.bf16.msra.mxu0 %v2890
        %8779 = vmatpush.bf16.msra.mxu0 %v2878
        %8780 = vmatpush.bf16.msra.mxu0 %v2866
        %8781 = vmatpush.bf16.msra.mxu0 %v2854
        %8782 = vmatpush.bf16.msra.mxu0 %v2842
        %8783 = vmatpush.bf16.msra.mxu0 %v2830
        %8784 = vmatpush.bf16.msra.mxu0 %v2818
        %8785 = vmatmul.bf16.gmra.mxu0 %v397
        %v8786 = vpop.f32.mrf.mxu0
        %v8787 = vadd.f32 %v1066, %v8786
        %v8788 = vpop.f32.mrf.mxu0
        %v8789 = vadd.f32 %v1066, %v8788
        %8790 = vmatmul.bf16.gmra.mxu0 %v403
        %v8791 = vpop.f32.mrf.mxu0
        %v8792 = vadd.f32 %v1066, %v8791
        %v8793 = vpop.f32.mrf.mxu0
        %v8794 = vadd.f32 %v1066, %v8793
        %8795 = vmatmul.bf16.gmra.mxu0 %v409
        %v8796 = vpop.f32.mrf.mxu0
        %v8797 = vadd.f32 %v1066, %v8796
        %v8798 = vpop.f32.mrf.mxu0
        %v8799 = vadd.f32 %v1066, %v8798
        %8800 = vmatmul.bf16.gmra.mxu0 %v415
        %v8801 = vpop.f32.mrf.mxu0
        %v8802 = vadd.f32 %v1066, %v8801
        %v8803 = vpop.f32.mrf.mxu0
        %v8804 = vadd.f32 %v1066, %v8803
        %8805 = vmatmul.bf16.gmra.mxu0 %v421
        %v8806 = vpop.f32.mrf.mxu0
        %v8807 = vadd.f32 %v1066, %v8806
        %v8808 = vpop.f32.mrf.mxu0
        %v8809 = vadd.f32 %v1066, %v8808
        %8810 = vmatmul.bf16.gmra.mxu0 %v427
        %v8811 = vpop.f32.mrf.mxu0
        %v8812 = vadd.f32 %v1066, %v8811
        %v8813 = vpop.f32.mrf.mxu0
        %v8814 = vadd.f32 %v1066, %v8813
        %8815 = vmatmul.bf16.gmra.mxu0 %v433
        %v8816 = vpop.f32.mrf.mxu0
        %v8817 = vadd.f32 %v1066, %v8816
        %v8818 = vpop.f32.mrf.mxu0
        %v8819 = vadd.f32 %v1066, %v8818
        %8820 = vmatmul.bf16.gmra.mxu0 %v439
        %v8821 = vpop.f32.mrf.mxu0
        %v8822 = vadd.f32 %v1066, %v8821
        %v8823 = vpop.f32.mrf.mxu0
        %v8824 = vadd.f32 %v1066, %v8823
        %8825 = vmatmul.bf16.gmra.mxu0 %v445
        %v8826 = vpop.f32.mrf.mxu0
        %v8827 = vadd.f32 %v1066, %v8826
        %v8828 = vpop.f32.mrf.mxu0
        %v8829 = vadd.f32 %v1066, %v8828
        %8830 = vmatmul.bf16.gmra.mxu0 %v451
        %v8831 = vpop.f32.mrf.mxu0
        %v8832 = vadd.f32 %v1066, %v8831
        %v8833 = vpop.f32.mrf.mxu0
        %v8834 = vadd.f32 %v1066, %v8833
        %8835 = vmatmul.bf16.gmra.mxu0 %v457
        %v8836 = vpop.f32.mrf.mxu0
        %v8837 = vadd.f32 %v1066, %v8836
        %v8838 = vpop.f32.mrf.mxu0
        %v8839 = vadd.f32 %v1066, %v8838
        %8840 = vmatmul.bf16.gmra.mxu0 %v463
        %v8841 = vpop.f32.mrf.mxu0
        %v8842 = vadd.f32 %v1066, %v8841
        %v8843 = vpop.f32.mrf.mxu0
        %v8844 = vadd.f32 %v1066, %v8843
        %8845 = vmatmul.bf16.gmra.mxu0 %v469
        %v8846 = vpop.f32.mrf.mxu0
        %v8847 = vadd.f32 %v1066, %v8846
        %v8848 = vpop.f32.mrf.mxu0
        %8849 = vdwg.mxu0
        %8850 = vmatpush.bf16.msra.mxu0 %v2998
        %8851 = vmatpush.bf16.msra.mxu0 %v2986
        %8852 = vmatpush.bf16.msra.mxu0 %v2974
        %8853 = vmatpush.bf16.msra.mxu0 %v2962
        %8854 = vmatpush.bf16.msra.mxu0 %v2950
        %8855 = vmatpush.bf16.msra.mxu0 %v2938
        %8856 = vmatpush.bf16.msra.mxu0 %v2926
        %8857 = vmatpush.bf16.msra.mxu0 %v2914
        %8858 = vmatmul.bf16.gmra.mxu0 %v398
        %v8859 = vpop.f32.mrf.mxu0
        %v8860 = vadd.f32 %v8787, %v8859
        %v8861 = vpop.f32.mrf.mxu0
        %v8862 = vadd.f32 %v8789, %v8861
        %8863 = vmatmul.bf16.gmra.mxu0 %v404
        %v8864 = vpop.f32.mrf.mxu0
        %v8865 = vadd.f32 %v8792, %v8864
        %v8866 = vpop.f32.mrf.mxu0
        %v8867 = vadd.f32 %v8794, %v8866
        %8868 = vmatmul.bf16.gmra.mxu0 %v410
        %v8869 = vpop.f32.mrf.mxu0
        %v8870 = vadd.f32 %v8797, %v8869
        %v8871 = vpop.f32.mrf.mxu0
        %v8872 = vadd.f32 %v8799, %v8871
        %8873 = vmatmul.bf16.gmra.mxu0 %v416
        %v8874 = vpop.f32.mrf.mxu0
        %v8875 = vadd.f32 %v8802, %v8874
        %v8876 = vpop.f32.mrf.mxu0
        %v8877 = vadd.f32 %v8804, %v8876
        %8878 = vmatmul.bf16.gmra.mxu0 %v422
        %v8879 = vpop.f32.mrf.mxu0
        %v8880 = vadd.f32 %v8807, %v8879
        %v8881 = vpop.f32.mrf.mxu0
        %v8882 = vadd.f32 %v8809, %v8881
        %8883 = vmatmul.bf16.gmra.mxu0 %v428
        %v8884 = vpop.f32.mrf.mxu0
        %v8885 = vadd.f32 %v8812, %v8884
        %v8886 = vpop.f32.mrf.mxu0
        %v8887 = vadd.f32 %v8814, %v8886
        %8888 = vmatmul.bf16.gmra.mxu0 %v434
        %v8889 = vpop.f32.mrf.mxu0
        %v8890 = vadd.f32 %v8817, %v8889
        %v8891 = vpop.f32.mrf.mxu0
        %v8892 = vadd.f32 %v8819, %v8891
        %8893 = vmatmul.bf16.gmra.mxu0 %v440
        %v8894 = vpop.f32.mrf.mxu0
        %v8895 = vadd.f32 %v8822, %v8894
        %v8896 = vpop.f32.mrf.mxu0
        %v8897 = vadd.f32 %v8824, %v8896
        %8898 = vmatmul.bf16.gmra.mxu0 %v446
        %v8899 = vpop.f32.mrf.mxu0
        %v8900 = vadd.f32 %v8827, %v8899
        %v8901 = vpop.f32.mrf.mxu0
        %v8902 = vadd.f32 %v8829, %v8901
        %8903 = vmatmul.bf16.gmra.mxu0 %v452
        %v8904 = vpop.f32.mrf.mxu0
        %v8905 = vadd.f32 %v8832, %v8904
        %v8906 = vpop.f32.mrf.mxu0
        %v8907 = vadd.f32 %v8834, %v8906
        %8908 = vmatmul.bf16.gmra.mxu0 %v458
        %v8909 = vpop.f32.mrf.mxu0
        %v8910 = vadd.f32 %v8837, %v8909
        %v8911 = vpop.f32.mrf.mxu0
        %v8912 = vadd.f32 %v8839, %v8911
        %8913 = vmatmul.bf16.gmra.mxu0 %v464
        %v8914 = vpop.f32.mrf.mxu0
        %v8915 = vadd.f32 %v8842, %v8914
        %v8916 = vpop.f32.mrf.mxu0
        %v8917 = vadd.f32 %v8844, %v8916
        %8918 = vmatmul.bf16.gmra.mxu0 %v470
        %v8919 = vpop.f32.mrf.mxu0
        %v8920 = vadd.f32 %v8847, %v8919
        %v8921 = vpop.f32.mrf.mxu0
        %8922 = vdwg.mxu0
        %8923 = vmatpush.bf16.msra.mxu0 %v3094
        %8924 = vmatpush.bf16.msra.mxu0 %v3082
        %8925 = vmatpush.bf16.msra.mxu0 %v3070
        %8926 = vmatpush.bf16.msra.mxu0 %v3058
        %8927 = vmatpush.bf16.msra.mxu0 %v3046
        %8928 = vmatpush.bf16.msra.mxu0 %v3034
        %8929 = vmatpush.bf16.msra.mxu0 %v3022
        %8930 = vmatpush.bf16.msra.mxu0 %v3010
        %8931 = vmatmul.bf16.gmra.mxu0 %v399
        %v8932 = vpop.f32.mrf.mxu0
        %v8933 = vadd.f32 %v8860, %v8932
        %v8934 = vpop.f32.mrf.mxu0
        %v8935 = vadd.f32 %v8862, %v8934
        %8936 = vmatmul.bf16.gmra.mxu0 %v405
        %v8937 = vpop.f32.mrf.mxu0
        %v8938 = vadd.f32 %v8865, %v8937
        %v8939 = vpop.f32.mrf.mxu0
        %v8940 = vadd.f32 %v8867, %v8939
        %8941 = vmatmul.bf16.gmra.mxu0 %v411
        %v8942 = vpop.f32.mrf.mxu0
        %v8943 = vadd.f32 %v8870, %v8942
        %v8944 = vpop.f32.mrf.mxu0
        %v8945 = vadd.f32 %v8872, %v8944
        %8946 = vmatmul.bf16.gmra.mxu0 %v417
        %v8947 = vpop.f32.mrf.mxu0
        %v8948 = vadd.f32 %v8875, %v8947
        %v8949 = vpop.f32.mrf.mxu0
        %v8950 = vadd.f32 %v8877, %v8949
        %8951 = vmatmul.bf16.gmra.mxu0 %v423
        %v8952 = vpop.f32.mrf.mxu0
        %v8953 = vadd.f32 %v8880, %v8952
        %v8954 = vpop.f32.mrf.mxu0
        %v8955 = vadd.f32 %v8882, %v8954
        %8956 = vmatmul.bf16.gmra.mxu0 %v429
        %v8957 = vpop.f32.mrf.mxu0
        %v8958 = vadd.f32 %v8885, %v8957
        %v8959 = vpop.f32.mrf.mxu0
        %v8960 = vadd.f32 %v8887, %v8959
        %8961 = vmatmul.bf16.gmra.mxu0 %v435
        %v8962 = vpop.f32.mrf.mxu0
        %v8963 = vadd.f32 %v8890, %v8962
        %v8964 = vpop.f32.mrf.mxu0
        %v8965 = vadd.f32 %v8892, %v8964
        %8966 = vmatmul.bf16.gmra.mxu0 %v441
        %v8967 = vpop.f32.mrf.mxu0
        %v8968 = vadd.f32 %v8895, %v8967
        %v8969 = vpop.f32.mrf.mxu0
        %v8970 = vadd.f32 %v8897, %v8969
        %8971 = vmatmul.bf16.gmra.mxu0 %v447
        %v8972 = vpop.f32.mrf.mxu0
        %v8973 = vadd.f32 %v8900, %v8972
        %v8974 = vpop.f32.mrf.mxu0
        %v8975 = vadd.f32 %v8902, %v8974
        %8976 = vmatmul.bf16.gmra.mxu0 %v453
        %v8977 = vpop.f32.mrf.mxu0
        %v8978 = vadd.f32 %v8905, %v8977
        %v8979 = vpop.f32.mrf.mxu0
        %v8980 = vadd.f32 %v8907, %v8979
        %8981 = vmatmul.bf16.gmra.mxu0 %v459
        %v8982 = vpop.f32.mrf.mxu0
        %v8983 = vadd.f32 %v8910, %v8982
        %v8984 = vpop.f32.mrf.mxu0
        %v8985 = vadd.f32 %v8912, %v8984
        %8986 = vmatmul.bf16.gmra.mxu0 %v465
        %v8987 = vpop.f32.mrf.mxu0
        %v8988 = vadd.f32 %v8915, %v8987
        %v8989 = vpop.f32.mrf.mxu0
        %v8990 = vadd.f32 %v8917, %v8989
        %8991 = vmatmul.bf16.gmra.mxu0 %v471
        %v8992 = vpop.f32.mrf.mxu0
        %v8993 = vadd.f32 %v8920, %v8992
        %v8994 = vpop.f32.mrf.mxu0
        %8995 = vdwg.mxu0
        %8996 = vmatpush.bf16.msra.mxu0 %v3190
        %8997 = vmatpush.bf16.msra.mxu0 %v3178
        %8998 = vmatpush.bf16.msra.mxu0 %v3166
        %8999 = vmatpush.bf16.msra.mxu0 %v3154
        %9000 = vmatpush.bf16.msra.mxu0 %v3142
        %9001 = vmatpush.bf16.msra.mxu0 %v3130
        %9002 = vmatpush.bf16.msra.mxu0 %v3118
        %9003 = vmatpush.bf16.msra.mxu0 %v3106
        %9004 = vmatmul.bf16.gmra.mxu0 %v400
        %v9005 = vpop.f32.mrf.mxu0
        %v9006 = vadd.f32 %v8933, %v9005
        %v9007 = vpop.f32.mrf.mxu0
        %v9008 = vadd.f32 %v8935, %v9007
        %9009 = vmatmul.bf16.gmra.mxu0 %v406
        %v9010 = vpop.f32.mrf.mxu0
        %v9011 = vadd.f32 %v8938, %v9010
        %v9012 = vpop.f32.mrf.mxu0
        %v9013 = vadd.f32 %v8940, %v9012
        %9014 = vmatmul.bf16.gmra.mxu0 %v412
        %v9015 = vpop.f32.mrf.mxu0
        %v9016 = vadd.f32 %v8943, %v9015
        %v9017 = vpop.f32.mrf.mxu0
        %v9018 = vadd.f32 %v8945, %v9017
        %9019 = vmatmul.bf16.gmra.mxu0 %v418
        %v9020 = vpop.f32.mrf.mxu0
        %v9021 = vadd.f32 %v8948, %v9020
        %v9022 = vpop.f32.mrf.mxu0
        %v9023 = vadd.f32 %v8950, %v9022
        %9024 = vmatmul.bf16.gmra.mxu0 %v424
        %v9025 = vpop.f32.mrf.mxu0
        %v9026 = vadd.f32 %v8953, %v9025
        %v9027 = vpop.f32.mrf.mxu0
        %v9028 = vadd.f32 %v8955, %v9027
        %9029 = vmatmul.bf16.gmra.mxu0 %v430
        %v9030 = vpop.f32.mrf.mxu0
        %v9031 = vadd.f32 %v8958, %v9030
        %v9032 = vpop.f32.mrf.mxu0
        %v9033 = vadd.f32 %v8960, %v9032
        %9034 = vmatmul.bf16.gmra.mxu0 %v436
        %v9035 = vpop.f32.mrf.mxu0
        %v9036 = vadd.f32 %v8963, %v9035
        %v9037 = vpop.f32.mrf.mxu0
        %v9038 = vadd.f32 %v8965, %v9037
        %9039 = vmatmul.bf16.gmra.mxu0 %v442
        %v9040 = vpop.f32.mrf.mxu0
        %v9041 = vadd.f32 %v8968, %v9040
        %v9042 = vpop.f32.mrf.mxu0
        %v9043 = vadd.f32 %v8970, %v9042
        %9044 = vmatmul.bf16.gmra.mxu0 %v448
        %v9045 = vpop.f32.mrf.mxu0
        %v9046 = vadd.f32 %v8973, %v9045
        %v9047 = vpop.f32.mrf.mxu0
        %v9048 = vadd.f32 %v8975, %v9047
        %9049 = vmatmul.bf16.gmra.mxu0 %v454
        %v9050 = vpop.f32.mrf.mxu0
        %v9051 = vadd.f32 %v8978, %v9050
        %v9052 = vpop.f32.mrf.mxu0
        %v9053 = vadd.f32 %v8980, %v9052
        %9054 = vmatmul.bf16.gmra.mxu0 %v460
        %v9055 = vpop.f32.mrf.mxu0
        %v9056 = vadd.f32 %v8983, %v9055
        %v9057 = vpop.f32.mrf.mxu0
        %v9058 = vadd.f32 %v8985, %v9057
        %9059 = vmatmul.bf16.gmra.mxu0 %v466
        %v9060 = vpop.f32.mrf.mxu0
        %v9061 = vadd.f32 %v8988, %v9060
        %v9062 = vpop.f32.mrf.mxu0
        %v9063 = vadd.f32 %v8990, %v9062
        %9064 = vmatmul.bf16.gmra.mxu0 %v472
        %v9065 = vpop.f32.mrf.mxu0
        %v9066 = vadd.f32 %v8993, %v9065
        %v9067 = vpop.f32.mrf.mxu0
        %9068 = vdwg.mxu0
        %9069 = vmatpush.bf16.msra.mxu0 %v3286
        %9070 = vmatpush.bf16.msra.mxu0 %v3274
        %9071 = vmatpush.bf16.msra.mxu0 %v3262
        %9072 = vmatpush.bf16.msra.mxu0 %v3250
        %9073 = vmatpush.bf16.msra.mxu0 %v3238
        %9074 = vmatpush.bf16.msra.mxu0 %v3226
        %9075 = vmatpush.bf16.msra.mxu0 %v3214
        %9076 = vmatpush.bf16.msra.mxu0 %v3202
        %9077 = vmatmul.bf16.gmra.mxu0 %v401
        %v9078 = vpop.f32.mrf.mxu0
        %v9079 = vadd.f32 %v9006, %v9078
        %v9080 = vpop.f32.mrf.mxu0
        %v9081 = vadd.f32 %v9008, %v9080
        %9082 = vmatmul.bf16.gmra.mxu0 %v407
        %v9083 = vpop.f32.mrf.mxu0
        %v9084 = vadd.f32 %v9011, %v9083
        %v9085 = vpop.f32.mrf.mxu0
        %v9086 = vadd.f32 %v9013, %v9085
        %9087 = vmatmul.bf16.gmra.mxu0 %v413
        %v9088 = vpop.f32.mrf.mxu0
        %v9089 = vadd.f32 %v9016, %v9088
        %v9090 = vpop.f32.mrf.mxu0
        %v9091 = vadd.f32 %v9018, %v9090
        %9092 = vmatmul.bf16.gmra.mxu0 %v419
        %v9093 = vpop.f32.mrf.mxu0
        %v9094 = vadd.f32 %v9021, %v9093
        %v9095 = vpop.f32.mrf.mxu0
        %v9096 = vadd.f32 %v9023, %v9095
        %9097 = vmatmul.bf16.gmra.mxu0 %v425
        %v9098 = vpop.f32.mrf.mxu0
        %v9099 = vadd.f32 %v9026, %v9098
        %v9100 = vpop.f32.mrf.mxu0
        %v9101 = vadd.f32 %v9028, %v9100
        %9102 = vmatmul.bf16.gmra.mxu0 %v431
        %v9103 = vpop.f32.mrf.mxu0
        %v9104 = vadd.f32 %v9031, %v9103
        %v9105 = vpop.f32.mrf.mxu0
        %v9106 = vadd.f32 %v9033, %v9105
        %9107 = vmatmul.bf16.gmra.mxu0 %v437
        %v9108 = vpop.f32.mrf.mxu0
        %v9109 = vadd.f32 %v9036, %v9108
        %v9110 = vpop.f32.mrf.mxu0
        %v9111 = vadd.f32 %v9038, %v9110
        %9112 = vmatmul.bf16.gmra.mxu0 %v443
        %v9113 = vpop.f32.mrf.mxu0
        %v9114 = vadd.f32 %v9041, %v9113
        %v9115 = vpop.f32.mrf.mxu0
        %v9116 = vadd.f32 %v9043, %v9115
        %9117 = vmatmul.bf16.gmra.mxu0 %v449
        %v9118 = vpop.f32.mrf.mxu0
        %v9119 = vadd.f32 %v9046, %v9118
        %v9120 = vpop.f32.mrf.mxu0
        %v9121 = vadd.f32 %v9048, %v9120
        %9122 = vmatmul.bf16.gmra.mxu0 %v455
        %v9123 = vpop.f32.mrf.mxu0
        %v9124 = vadd.f32 %v9051, %v9123
        %v9125 = vpop.f32.mrf.mxu0
        %v9126 = vadd.f32 %v9053, %v9125
        %9127 = vmatmul.bf16.gmra.mxu0 %v461
        %v9128 = vpop.f32.mrf.mxu0
        %v9129 = vadd.f32 %v9056, %v9128
        %v9130 = vpop.f32.mrf.mxu0
        %v9131 = vadd.f32 %v9058, %v9130
        %9132 = vmatmul.bf16.gmra.mxu0 %v467
        %v9133 = vpop.f32.mrf.mxu0
        %v9134 = vadd.f32 %v9061, %v9133
        %v9135 = vpop.f32.mrf.mxu0
        %v9136 = vadd.f32 %v9063, %v9135
        %9137 = vmatmul.bf16.gmra.mxu0 %v473
        %v9138 = vpop.f32.mrf.mxu0
        %v9139 = vadd.f32 %v9066, %v9138
        %v9140 = vpop.f32.mrf.mxu0
        %9141 = vdwg.mxu0
        %9142 = vmatpush.bf16.msra.mxu0 %v3382
        %9143 = vmatpush.bf16.msra.mxu0 %v3370
        %9144 = vmatpush.bf16.msra.mxu0 %v3358
        %9145 = vmatpush.bf16.msra.mxu0 %v3346
        %9146 = vmatpush.bf16.msra.mxu0 %v3334
        %9147 = vmatpush.bf16.msra.mxu0 %v3322
        %9148 = vmatpush.bf16.msra.mxu0 %v3310
        %9149 = vmatpush.bf16.msra.mxu0 %v3298
        %9150 = vmatmul.bf16.gmra.mxu0 %v402
        %v9151 = vpop.f32.mrf.mxu0
        %v9152 = vadd.f32 %v9079, %v9151
        %v9153 = vpop.f32.mrf.mxu0
        %v9154 = vadd.f32 %v9081, %v9153
        %9155 = vmatmul.bf16.gmra.mxu0 %v408
        %v9156 = vpop.f32.mrf.mxu0
        %v9157 = vadd.f32 %v9084, %v9156
        %v9158 = vpop.f32.mrf.mxu0
        %v9159 = vadd.f32 %v9086, %v9158
        %9160 = vmatmul.bf16.gmra.mxu0 %v414
        %v9161 = vpop.f32.mrf.mxu0
        %v9162 = vadd.f32 %v9089, %v9161
        %v9163 = vpop.f32.mrf.mxu0
        %v9164 = vadd.f32 %v9091, %v9163
        %9165 = vmatmul.bf16.gmra.mxu0 %v420
        %v9166 = vpop.f32.mrf.mxu0
        %v9167 = vadd.f32 %v9094, %v9166
        %v9168 = vpop.f32.mrf.mxu0
        %v9169 = vadd.f32 %v9096, %v9168
        %9170 = vmatmul.bf16.gmra.mxu0 %v426
        %v9171 = vpop.f32.mrf.mxu0
        %v9172 = vadd.f32 %v9099, %v9171
        %v9173 = vpop.f32.mrf.mxu0
        %v9174 = vadd.f32 %v9101, %v9173
        %9175 = vmatmul.bf16.gmra.mxu0 %v432
        %v9176 = vpop.f32.mrf.mxu0
        %v9177 = vadd.f32 %v9104, %v9176
        %v9178 = vpop.f32.mrf.mxu0
        %v9179 = vadd.f32 %v9106, %v9178
        %9180 = vmatmul.bf16.gmra.mxu0 %v438
        %v9181 = vpop.f32.mrf.mxu0
        %v9182 = vadd.f32 %v9109, %v9181
        %v9183 = vpop.f32.mrf.mxu0
        %v9184 = vadd.f32 %v9111, %v9183
        %9185 = vmatmul.bf16.gmra.mxu0 %v444
        %v9186 = vpop.f32.mrf.mxu0
        %v9187 = vadd.f32 %v9114, %v9186
        %v9188 = vpop.f32.mrf.mxu0
        %v9189 = vadd.f32 %v9116, %v9188
        %9190 = vmatmul.bf16.gmra.mxu0 %v450
        %v9191 = vpop.f32.mrf.mxu0
        %v9192 = vadd.f32 %v9119, %v9191
        %v9193 = vpop.f32.mrf.mxu0
        %v9194 = vadd.f32 %v9121, %v9193
        %9195 = vmatmul.bf16.gmra.mxu0 %v456
        %v9196 = vpop.f32.mrf.mxu0
        %v9197 = vadd.f32 %v9124, %v9196
        %v9198 = vpop.f32.mrf.mxu0
        %v9199 = vadd.f32 %v9126, %v9198
        %9200 = vmatmul.bf16.gmra.mxu0 %v462
        %v9201 = vpop.f32.mrf.mxu0
        %v9202 = vadd.f32 %v9129, %v9201
        %v9203 = vpop.f32.mrf.mxu0
        %v9204 = vadd.f32 %v9131, %v9203
        %9205 = vmatmul.bf16.gmra.mxu0 %v468
        %v9206 = vpop.f32.mrf.mxu0
        %v9207 = vadd.f32 %v9134, %v9206
        %v9208 = vpop.f32.mrf.mxu0
        %v9209 = vadd.f32 %v9136, %v9208
        %9210 = vmatmul.bf16.gmra.mxu0 %v474
        %v9211 = vpop.f32.mrf.mxu0
        %v9212 = vadd.f32 %v9139, %v9211
        %v9213 = vpop.f32.mrf.mxu0
        %9214 = vdwg.mxu0
        %9215 = vst [vmem:[%s243] sm:$0xff] %v4334
        %9216 = vst [vmem:[%s243 + $0x8] sm:$0xff] %v4772
        %9217 = vst [vmem:[%s243 + $0x10] sm:$0xff] %v5210
        %9218 = vst [vmem:[%s243 + $0x18] sm:$0xff] %v5648
        %9219 = vst [vmem:[%s243 + $0x20] sm:$0xff] %v6086
        %9220 = vst [vmem:[%s243 + $0x28] sm:$0xff] %v6524
        %9221 = vst [vmem:[%s243 + $0x30] sm:$0xff] %v6962
        %9222 = vst [vmem:[%s243 + $0x38] sm:$0xff] %v7400
        %9223 = vst [vmem:[%s243 + $0x40] sm:$0xff] %v7838
        %9224 = vst [vmem:[%s243 + $0x48] sm:$0xff] %v8276
        %9225 = vst [vmem:[%s243 + $0x50] sm:$0xff] %v8714
        %9226 = vst [vmem:[%s243 + $0x58] sm:$0xff] %v9152
        %9227 = vst [vmem:[%s243 + $0x60] sm:$0xff] %v4336
        %9228 = vst [vmem:[%s243 + $0x68] sm:$0xff] %v4774
        %9229 = vst [vmem:[%s243 + $0x70] sm:$0xff] %v5212
        %9230 = vst [vmem:[%s243 + $0x78] sm:$0xff] %v5650
        %9231 = vst [vmem:[%s243 + $0x80] sm:$0xff] %v6088
        %9232 = vst [vmem:[%s243 + $0x88] sm:$0xff] %v6526
        %9233 = vst [vmem:[%s243 + $0x90] sm:$0xff] %v6964
        %9234 = vst [vmem:[%s243 + $0x98] sm:$0xff] %v7402
        %9235 = vst [vmem:[%s243 + $0xa0] sm:$0xff] %v7840
        %9236 = vst [vmem:[%s243 + $0xa8] sm:$0xff] %v8278
        %9237 = vst [vmem:[%s243 + $0xb0] sm:$0xff] %v8716
        %9238 = vst [vmem:[%s243 + $0xb8] sm:$0xff] %v9154
        %9239 = vst [vmem:[%s243 + $0xc0] sm:$0xff] %v4339
        %9240 = vst [vmem:[%s243 + $0xc8] sm:$0xff] %v4777
        %9241 = vst [vmem:[%s243 + $0xd0] sm:$0xff] %v5215
        %9242 = vst [vmem:[%s243 + $0xd8] sm:$0xff] %v5653
        %9243 = vst [vmem:[%s243 + $0xe0] sm:$0xff] %v6091
        %9244 = vst [vmem:[%s243 + $0xe8] sm:$0xff] %v6529
        %9245 = vst [vmem:[%s243 + $0xf0] sm:$0xff] %v6967
        %9246 = vst [vmem:[%s243 + $0xf8] sm:$0xff] %v7405
        %9247 = vst [vmem:[%s243 + $0x100] sm:$0xff] %v7843
        %9248 = vst [vmem:[%s243 + $0x108] sm:$0xff] %v8281
        %9249 = vst [vmem:[%s243 + $0x110] sm:$0xff] %v8719
        %9250 = vst [vmem:[%s243 + $0x118] sm:$0xff] %v9157
        %9251 = vst [vmem:[%s243 + $0x120] sm:$0xff] %v4341
        %9252 = vst [vmem:[%s243 + $0x128] sm:$0xff] %v4779
        %9253 = vst [vmem:[%s243 + $0x130] sm:$0xff] %v5217
        %9254 = vst [vmem:[%s243 + $0x138] sm:$0xff] %v5655
        %9255 = vst [vmem:[%s243 + $0x140] sm:$0xff] %v6093
        %9256 = vst [vmem:[%s243 + $0x148] sm:$0xff] %v6531
        %9257 = vst [vmem:[%s243 + $0x150] sm:$0xff] %v6969
        %9258 = vst [vmem:[%s243 + $0x158] sm:$0xff] %v7407
        %9259 = vst [vmem:[%s243 + $0x160] sm:$0xff] %v7845
        %9260 = vst [vmem:[%s243 + $0x168] sm:$0xff] %v8283
        %9261 = vst [vmem:[%s243 + $0x170] sm:$0xff] %v8721
        %9262 = vst [vmem:[%s243 + $0x178] sm:$0xff] %v9159
        %9263 = vst [vmem:[%s243 + $0x180] sm:$0xff] %v4344
        %9264 = vst [vmem:[%s243 + $0x188] sm:$0xff] %v4782
        %9265 = vst [vmem:[%s243 + $0x190] sm:$0xff] %v5220
        %9266 = vst [vmem:[%s243 + $0x198] sm:$0xff] %v5658
        %9267 = vst [vmem:[%s243 + $0x1a0] sm:$0xff] %v6096
        %9268 = vst [vmem:[%s243 + $0x1a8] sm:$0xff] %v6534
        %9269 = vst [vmem:[%s243 + $0x1b0] sm:$0xff] %v6972
        %9270 = vst [vmem:[%s243 + $0x1b8] sm:$0xff] %v7410
        %9271 = vst [vmem:[%s243 + $0x1c0] sm:$0xff] %v7848
        %9272 = vst [vmem:[%s243 + $0x1c8] sm:$0xff] %v8286
        %9273 = vst [vmem:[%s243 + $0x1d0] sm:$0xff] %v8724
        %9274 = vst [vmem:[%s243 + $0x1d8] sm:$0xff] %v9162
        %9275 = vst [vmem:[%s243 + $0x1e0] sm:$0xff] %v4346
        %9276 = vst [vmem:[%s243 + $0x1e8] sm:$0xff] %v4784
        %9277 = vst [vmem:[%s243 + $0x1f0] sm:$0xff] %v5222
        %9278 = vst [vmem:[%s243 + $0x1f8] sm:$0xff] %v5660
        %9279 = vst [vmem:[%s243 + $0x200] sm:$0xff] %v6098
        %9280 = vst [vmem:[%s243 + $0x208] sm:$0xff] %v6536
        %9281 = vst [vmem:[%s243 + $0x210] sm:$0xff] %v6974
        %9282 = vst [vmem:[%s243 + $0x218] sm:$0xff] %v7412
        %9283 = vst [vmem:[%s243 + $0x220] sm:$0xff] %v7850
        %9284 = vst [vmem:[%s243 + $0x228] sm:$0xff] %v8288
        %9285 = vst [vmem:[%s243 + $0x230] sm:$0xff] %v8726
        %9286 = vst [vmem:[%s243 + $0x238] sm:$0xff] %v9164
        %9287 = vst [vmem:[%s243 + $0x240] sm:$0xff] %v4349
        %9288 = vst [vmem:[%s243 + $0x248] sm:$0xff] %v4787
        %9289 = vst [vmem:[%s243 + $0x250] sm:$0xff] %v5225
        %9290 = vst [vmem:[%s243 + $0x258] sm:$0xff] %v5663
        %9291 = vst [vmem:[%s243 + $0x260] sm:$0xff] %v6101
        %9292 = vst [vmem:[%s243 + $0x268] sm:$0xff] %v6539
        %9293 = vst [vmem:[%s243 + $0x270] sm:$0xff] %v6977
        %9294 = vst [vmem:[%s243 + $0x278] sm:$0xff] %v7415
        %9295 = vst [vmem:[%s243 + $0x280] sm:$0xff] %v7853
        %9296 = vst [vmem:[%s243 + $0x288] sm:$0xff] %v8291
        %9297 = vst [vmem:[%s243 + $0x290] sm:$0xff] %v8729
        %9298 = vst [vmem:[%s243 + $0x298] sm:$0xff] %v9167
        %9299 = vst [vmem:[%s243 + $0x2a0] sm:$0xff] %v4351
        %9300 = vst [vmem:[%s243 + $0x2a8] sm:$0xff] %v4789
        %9301 = vst [vmem:[%s243 + $0x2b0] sm:$0xff] %v5227
        %9302 = vst [vmem:[%s243 + $0x2b8] sm:$0xff] %v5665
        %9303 = vst [vmem:[%s243 + $0x2c0] sm:$0xff] %v6103
        %9304 = vst [vmem:[%s243 + $0x2c8] sm:$0xff] %v6541
        %9305 = vst [vmem:[%s243 + $0x2d0] sm:$0xff] %v6979
        %9306 = vst [vmem:[%s243 + $0x2d8] sm:$0xff] %v7417
        %9307 = vst [vmem:[%s243 + $0x2e0] sm:$0xff] %v7855
        %9308 = vst [vmem:[%s243 + $0x2e8] sm:$0xff] %v8293
        %9309 = vst [vmem:[%s243 + $0x2f0] sm:$0xff] %v8731
        %9310 = vst [vmem:[%s243 + $0x2f8] sm:$0xff] %v9169
        %9311 = vst [vmem:[%s243 + $0x300] sm:$0xff] %v4354
        %9312 = vst [vmem:[%s243 + $0x308] sm:$0xff] %v4792
        %9313 = vst [vmem:[%s243 + $0x310] sm:$0xff] %v5230
        %9314 = vst [vmem:[%s243 + $0x318] sm:$0xff] %v5668
        %9315 = vst [vmem:[%s243 + $0x320] sm:$0xff] %v6106
        %9316 = vst [vmem:[%s243 + $0x328] sm:$0xff] %v6544
        %9317 = vst [vmem:[%s243 + $0x330] sm:$0xff] %v6982
        %9318 = vst [vmem:[%s243 + $0x338] sm:$0xff] %v7420
        %9319 = vst [vmem:[%s243 + $0x340] sm:$0xff] %v7858
        %9320 = vst [vmem:[%s243 + $0x348] sm:$0xff] %v8296
        %9321 = vst [vmem:[%s243 + $0x350] sm:$0xff] %v8734
        %9322 = vst [vmem:[%s243 + $0x358] sm:$0xff] %v9172
        %9323 = vst [vmem:[%s243 + $0x360] sm:$0xff] %v4356
        %9324 = vst [vmem:[%s243 + $0x368] sm:$0xff] %v4794
        %9325 = vst [vmem:[%s243 + $0x370] sm:$0xff] %v5232
        %9326 = vst [vmem:[%s243 + $0x378] sm:$0xff] %v5670
        %9327 = vst [vmem:[%s243 + $0x380] sm:$0xff] %v6108
        %9328 = vst [vmem:[%s243 + $0x388] sm:$0xff] %v6546
        %9329 = vst [vmem:[%s243 + $0x390] sm:$0xff] %v6984
        %9330 = vst [vmem:[%s243 + $0x398] sm:$0xff] %v7422
        %9331 = vst [vmem:[%s243 + $0x3a0] sm:$0xff] %v7860
        %9332 = vst [vmem:[%s243 + $0x3a8] sm:$0xff] %v8298
        %9333 = vst [vmem:[%s243 + $0x3b0] sm:$0xff] %v8736
        %9334 = vst [vmem:[%s243 + $0x3b8] sm:$0xff] %v9174
        %9335 = vst [vmem:[%s243 + $0x3c0] sm:$0xff] %v4359
        %9336 = vst [vmem:[%s243 + $0x3c8] sm:$0xff] %v4797
        %9337 = vst [vmem:[%s243 + $0x3d0] sm:$0xff] %v5235
        %9338 = vst [vmem:[%s243 + $0x3d8] sm:$0xff] %v5673
        %9339 = vst [vmem:[%s243 + $0x3e0] sm:$0xff] %v6111
        %9340 = vst [vmem:[%s243 + $0x3e8] sm:$0xff] %v6549
        %9341 = vst [vmem:[%s243 + $0x3f0] sm:$0xff] %v6987
        %9342 = vst [vmem:[%s243 + $0x3f8] sm:$0xff] %v7425
        %9343 = vst [vmem:[%s243 + $0x400] sm:$0xff] %v7863
        %9344 = vst [vmem:[%s243 + $0x408] sm:$0xff] %v8301
        %9345 = vst [vmem:[%s243 + $0x410] sm:$0xff] %v8739
        %9346 = vst [vmem:[%s243 + $0x418] sm:$0xff] %v9177
        %9347 = vst [vmem:[%s243 + $0x420] sm:$0xff] %v4361
        %9348 = vst [vmem:[%s243 + $0x428] sm:$0xff] %v4799
        %9349 = vst [vmem:[%s243 + $0x430] sm:$0xff] %v5237
        %9350 = vst [vmem:[%s243 + $0x438] sm:$0xff] %v5675
        %9351 = vst [vmem:[%s243 + $0x440] sm:$0xff] %v6113
        %9352 = vst [vmem:[%s243 + $0x448] sm:$0xff] %v6551
        %9353 = vst [vmem:[%s243 + $0x450] sm:$0xff] %v6989
        %9354 = vst [vmem:[%s243 + $0x458] sm:$0xff] %v7427
        %9355 = vst [vmem:[%s243 + $0x460] sm:$0xff] %v7865
        %9356 = vst [vmem:[%s243 + $0x468] sm:$0xff] %v8303
        %9357 = vst [vmem:[%s243 + $0x470] sm:$0xff] %v8741
        %9358 = vst [vmem:[%s243 + $0x478] sm:$0xff] %v9179
        %9359 = vst [vmem:[%s243 + $0x480] sm:$0xff] %v4364
        %9360 = vst [vmem:[%s243 + $0x488] sm:$0xff] %v4802
        %9361 = vst [vmem:[%s243 + $0x490] sm:$0xff] %v5240
        %9362 = vst [vmem:[%s243 + $0x498] sm:$0xff] %v5678
        %9363 = vst [vmem:[%s243 + $0x4a0] sm:$0xff] %v6116
        %9364 = vst [vmem:[%s243 + $0x4a8] sm:$0xff] %v6554
        %9365 = vst [vmem:[%s243 + $0x4b0] sm:$0xff] %v6992
        %9366 = vst [vmem:[%s243 + $0x4b8] sm:$0xff] %v7430
        %9367 = vst [vmem:[%s243 + $0x4c0] sm:$0xff] %v7868
        %9368 = vst [vmem:[%s243 + $0x4c8] sm:$0xff] %v8306
        %9369 = vst [vmem:[%s243 + $0x4d0] sm:$0xff] %v8744
        %9370 = vst [vmem:[%s243 + $0x4d8] sm:$0xff] %v9182
        %9371 = vst [vmem:[%s243 + $0x4e0] sm:$0xff] %v4366
        %9372 = vst [vmem:[%s243 + $0x4e8] sm:$0xff] %v4804
        %9373 = vst [vmem:[%s243 + $0x4f0] sm:$0xff] %v5242
        %9374 = vst [vmem:[%s243 + $0x4f8] sm:$0xff] %v5680
        %9375 = vst [vmem:[%s243 + $0x500] sm:$0xff] %v6118
        %9376 = vst [vmem:[%s243 + $0x508] sm:$0xff] %v6556
        %9377 = vst [vmem:[%s243 + $0x510] sm:$0xff] %v6994
        %9378 = vst [vmem:[%s243 + $0x518] sm:$0xff] %v7432
        %9379 = vst [vmem:[%s243 + $0x520] sm:$0xff] %v7870
        %9380 = vst [vmem:[%s243 + $0x528] sm:$0xff] %v8308
        %9381 = vst [vmem:[%s243 + $0x530] sm:$0xff] %v8746
        %9382 = vst [vmem:[%s243 + $0x538] sm:$0xff] %v9184
        %9383 = vst [vmem:[%s243 + $0x540] sm:$0xff] %v4369
        %9384 = vst [vmem:[%s243 + $0x548] sm:$0xff] %v4807
        %9385 = vst [vmem:[%s243 + $0x550] sm:$0xff] %v5245
        %9386 = vst [vmem:[%s243 + $0x558] sm:$0xff] %v5683
        %9387 = vst [vmem:[%s243 + $0x560] sm:$0xff] %v6121
        %9388 = vst [vmem:[%s243 + $0x568] sm:$0xff] %v6559
        %9389 = vst [vmem:[%s243 + $0x570] sm:$0xff] %v6997
        %9390 = vst [vmem:[%s243 + $0x578] sm:$0xff] %v7435
        %9391 = vst [vmem:[%s243 + $0x580] sm:$0xff] %v7873
        %9392 = vst [vmem:[%s243 + $0x588] sm:$0xff] %v8311
        %9393 = vst [vmem:[%s243 + $0x590] sm:$0xff] %v8749
        %9394 = vst [vmem:[%s243 + $0x598] sm:$0xff] %v9187
        %9395 = vst [vmem:[%s243 + $0x5a0] sm:$0xff] %v4371
        %9396 = vst [vmem:[%s243 + $0x5a8] sm:$0xff] %v4809
        %9397 = vst [vmem:[%s243 + $0x5b0] sm:$0xff] %v5247
        %9398 = vst [vmem:[%s243 + $0x5b8] sm:$0xff] %v5685
        %9399 = vst [vmem:[%s243 + $0x5c0] sm:$0xff] %v6123
        %9400 = vst [vmem:[%s243 + $0x5c8] sm:$0xff] %v6561
        %9401 = vst [vmem:[%s243 + $0x5d0] sm:$0xff] %v6999
        %9402 = vst [vmem:[%s243 + $0x5d8] sm:$0xff] %v7437
        %9403 = vst [vmem:[%s243 + $0x5e0] sm:$0xff] %v7875
        %9404 = vst [vmem:[%s243 + $0x5e8] sm:$0xff] %v8313
        %9405 = vst [vmem:[%s243 + $0x5f0] sm:$0xff] %v8751
        %9406 = vst [vmem:[%s243 + $0x5f8] sm:$0xff] %v9189
        %9407 = vst [vmem:[%s243 + $0x600] sm:$0xff] %v4374
        %9408 = vst [vmem:[%s243 + $0x608] sm:$0xff] %v4812
        %9409 = vst [vmem:[%s243 + $0x610] sm:$0xff] %v5250
        %9410 = vst [vmem:[%s243 + $0x618] sm:$0xff] %v5688
        %9411 = vst [vmem:[%s243 + $0x620] sm:$0xff] %v6126
        %9412 = vst [vmem:[%s243 + $0x628] sm:$0xff] %v6564
        %9413 = vst [vmem:[%s243 + $0x630] sm:$0xff] %v7002
        %9414 = vst [vmem:[%s243 + $0x638] sm:$0xff] %v7440
        %9415 = vst [vmem:[%s243 + $0x640] sm:$0xff] %v7878
        %9416 = vst [vmem:[%s243 + $0x648] sm:$0xff] %v8316
        %9417 = vst [vmem:[%s243 + $0x650] sm:$0xff] %v8754
        %9418 = vst [vmem:[%s243 + $0x658] sm:$0xff] %v9192
        %9419 = vst [vmem:[%s243 + $0x660] sm:$0xff] %v4376
        %9420 = vst [vmem:[%s243 + $0x668] sm:$0xff] %v4814
        %9421 = vst [vmem:[%s243 + $0x670] sm:$0xff] %v5252
        %9422 = vst [vmem:[%s243 + $0x678] sm:$0xff] %v5690
        %9423 = vst [vmem:[%s243 + $0x680] sm:$0xff] %v6128
        %9424 = vst [vmem:[%s243 + $0x688] sm:$0xff] %v6566
        %9425 = vst [vmem:[%s243 + $0x690] sm:$0xff] %v7004
        %9426 = vst [vmem:[%s243 + $0x698] sm:$0xff] %v7442
        %9427 = vst [vmem:[%s243 + $0x6a0] sm:$0xff] %v7880
        %9428 = vst [vmem:[%s243 + $0x6a8] sm:$0xff] %v8318
        %9429 = vst [vmem:[%s243 + $0x6b0] sm:$0xff] %v8756
        %9430 = vst [vmem:[%s243 + $0x6b8] sm:$0xff] %v9194
        %9431 = vst [vmem:[%s243 + $0x6c0] sm:$0xff] %v4379
        %9432 = vst [vmem:[%s243 + $0x6c8] sm:$0xff] %v4817
        %9433 = vst [vmem:[%s243 + $0x6d0] sm:$0xff] %v5255
        %9434 = vst [vmem:[%s243 + $0x6d8] sm:$0xff] %v5693
        %9435 = vst [vmem:[%s243 + $0x6e0] sm:$0xff] %v6131
        %9436 = vst [vmem:[%s243 + $0x6e8] sm:$0xff] %v6569
        %9437 = vst [vmem:[%s243 + $0x6f0] sm:$0xff] %v7007
        %9438 = vst [vmem:[%s243 + $0x6f8] sm:$0xff] %v7445
        %9439 = vst [vmem:[%s243 + $0x700] sm:$0xff] %v7883
        %9440 = vst [vmem:[%s243 + $0x708] sm:$0xff] %v8321
        %9441 = vst [vmem:[%s243 + $0x710] sm:$0xff] %v8759
        %9442 = vst [vmem:[%s243 + $0x718] sm:$0xff] %v9197
        %9443 = vst [vmem:[%s243 + $0x720] sm:$0xff] %v4381
        %9444 = vst [vmem:[%s243 + $0x728] sm:$0xff] %v4819
        %9445 = vst [vmem:[%s243 + $0x730] sm:$0xff] %v5257
        %9446 = vst [vmem:[%s243 + $0x738] sm:$0xff] %v5695
        %9447 = vst [vmem:[%s243 + $0x740] sm:$0xff] %v6133
        %9448 = vst [vmem:[%s243 + $0x748] sm:$0xff] %v6571
        %9449 = vst [vmem:[%s243 + $0x750] sm:$0xff] %v7009
        %9450 = vst [vmem:[%s243 + $0x758] sm:$0xff] %v7447
        %9451 = vst [vmem:[%s243 + $0x760] sm:$0xff] %v7885
        %9452 = vst [vmem:[%s243 + $0x768] sm:$0xff] %v8323
        %9453 = vst [vmem:[%s243 + $0x770] sm:$0xff] %v8761
        %9454 = vst [vmem:[%s243 + $0x778] sm:$0xff] %v9199
        %9455 = vst [vmem:[%s243 + $0x780] sm:$0xff] %v4384
        %9456 = vst [vmem:[%s243 + $0x788] sm:$0xff] %v4822
        %9457 = vst [vmem:[%s243 + $0x790] sm:$0xff] %v5260
        %9458 = vst [vmem:[%s243 + $0x798] sm:$0xff] %v5698
        %9459 = vst [vmem:[%s243 + $0x7a0] sm:$0xff] %v6136
        %9460 = vst [vmem:[%s243 + $0x7a8] sm:$0xff] %v6574
        %9461 = vst [vmem:[%s243 + $0x7b0] sm:$0xff] %v7012
        %9462 = vst [vmem:[%s243 + $0x7b8] sm:$0xff] %v7450
        %9463 = vst [vmem:[%s243 + $0x7c0] sm:$0xff] %v7888
        %9464 = vst [vmem:[%s243 + $0x7c8] sm:$0xff] %v8326
        %9465 = vst [vmem:[%s243 + $0x7d0] sm:$0xff] %v8764
        %9466 = vst [vmem:[%s243 + $0x7d8] sm:$0xff] %v9202
        %9467 = vst [vmem:[%s243 + $0x7e0] sm:$0xff] %v4386
        %9468 = vst [vmem:[%s243 + $0x7e8] sm:$0xff] %v4824
        %9469 = vst [vmem:[%s243 + $0x7f0] sm:$0xff] %v5262
        %9470 = vst [vmem:[%s243 + $0x7f8] sm:$0xff] %v5700
        %9471 = vst [vmem:[%s243 + $0x800] sm:$0xff] %v6138
        %9472 = vst [vmem:[%s243 + $0x808] sm:$0xff] %v6576
        %9473 = vst [vmem:[%s243 + $0x810] sm:$0xff] %v7014
        %9474 = vst [vmem:[%s243 + $0x818] sm:$0xff] %v7452
        %9475 = vst [vmem:[%s243 + $0x820] sm:$0xff] %v7890
        %9476 = vst [vmem:[%s243 + $0x828] sm:$0xff] %v8328
        %9477 = vst [vmem:[%s243 + $0x830] sm:$0xff] %v8766
        %9478 = vst [vmem:[%s243 + $0x838] sm:$0xff] %v9204
        %9479 = vst [vmem:[%s243 + $0x840] sm:$0xff] %v4389
        %9480 = vst [vmem:[%s243 + $0x848] sm:$0xff] %v4827
        %9481 = vst [vmem:[%s243 + $0x850] sm:$0xff] %v5265
        %9482 = vst [vmem:[%s243 + $0x858] sm:$0xff] %v5703
        %9483 = vst [vmem:[%s243 + $0x860] sm:$0xff] %v6141
        %9484 = vst [vmem:[%s243 + $0x868] sm:$0xff] %v6579
        %9485 = vst [vmem:[%s243 + $0x870] sm:$0xff] %v7017
        %9486 = vst [vmem:[%s243 + $0x878] sm:$0xff] %v7455
        %9487 = vst [vmem:[%s243 + $0x880] sm:$0xff] %v7893
        %9488 = vst [vmem:[%s243 + $0x888] sm:$0xff] %v8331
        %9489 = vst [vmem:[%s243 + $0x890] sm:$0xff] %v8769
        %9490 = vst [vmem:[%s243 + $0x898] sm:$0xff] %v9207
        %9491 = vst [vmem:[%s243 + $0x8a0] sm:$0xff] %v4391
        %9492 = vst [vmem:[%s243 + $0x8a8] sm:$0xff] %v4829
        %9493 = vst [vmem:[%s243 + $0x8b0] sm:$0xff] %v5267
        %9494 = vst [vmem:[%s243 + $0x8b8] sm:$0xff] %v5705
        %9495 = vst [vmem:[%s243 + $0x8c0] sm:$0xff] %v6143
        %9496 = vst [vmem:[%s243 + $0x8c8] sm:$0xff] %v6581
        %9497 = vst [vmem:[%s243 + $0x8d0] sm:$0xff] %v7019
        %9498 = vst [vmem:[%s243 + $0x8d8] sm:$0xff] %v7457
        %9499 = vst [vmem:[%s243 + $0x8e0] sm:$0xff] %v7895
        %9500 = vst [vmem:[%s243 + $0x8e8] sm:$0xff] %v8333
        %9501 = vst [vmem:[%s243 + $0x8f0] sm:$0xff] %v8771
        %9502 = vst [vmem:[%s243 + $0x8f8] sm:$0xff] %v9209
        %9503 = vst [vmem:[%s243 + $0x900] sm:$0xf] %v4394
        %9504 = vst [vmem:[%s243 + $0x908] sm:$0xf] %v4832
        %9505 = vst [vmem:[%s243 + $0x910] sm:$0xf] %v5270
        %9506 = vst [vmem:[%s243 + $0x918] sm:$0xf] %v5708
        %9507 = vst [vmem:[%s243 + $0x920] sm:$0xf] %v6146
        %9508 = vst [vmem:[%s243 + $0x928] sm:$0xf] %v6584
        %9509 = vst [vmem:[%s243 + $0x930] sm:$0xf] %v7022
        %9510 = vst [vmem:[%s243 + $0x938] sm:$0xf] %v7460
        %9511 = vst [vmem:[%s243 + $0x940] sm:$0xf] %v7898
        %9512 = vst [vmem:[%s243 + $0x948] sm:$0xf] %v8336
        %9513 = vst [vmem:[%s243 + $0x950] sm:$0xf] %v8774
        %9514 = vst [vmem:[%s243 + $0x958] sm:$0xf] %v9212
        %s9515 = sand.u32 %s102, 1
        %s9516 = scalar_lea.sflag [#allocation4], %s9515
        %s9517 = sand.u32 %s102, 1
        %s9518 = smul.addr %s9517, 2400
        %s9519 = scalar_lea.vmem [#allocation8], %s9518
        // Predicated region
        $region45: #{tpu_custom_call.1} parent=31 // pred_check
          %p9520 = pneg %p112
        $region46: #{tpu_custom_call.1} parent=31 // pred_check_branch
          %9522 = sbr.rel (%p9520) target = $region48
        $region47: #{tpu_custom_call.1} parent=31 // pred_region
          %s9523 = smul.u32 12, %s21
          %9525 = vsyncadd %s9516, 0
          %s9526 = smul.addr %s9523, 8
          %s9527 = scalar_lea.hbm %s3, %s9526
          %s9528 = sshll.u32 %s9519, 4
          %s9529 = int_to_ptr.vmem [resolvable:$true] %s9528
          %s9530 = sshll.u32 %s9527, 4
          %s9531 = int_to_ptr.hbm [resolvable:$true] %s9530
          %9536 = dma.vmem_to_hbm [thread:$0]  %s9529, 38400, %s9531, %s9516, 1536, 3072, 96
        $region48: #{tpu_custom_call.1} parent=31 // pred_fallthru
          _
      $region32: #{tpu_custom_call.1} parent=5 // pred_fallthru
        _
      %p9537 = scmp.le.s32.totalorder 2, %s16
      // Predicated region
      $region49: #{tpu_custom_call.1} parent=5 // pred_check
        %p9538 = pneg %p9537
      $region50: #{tpu_custom_call.1} parent=5 // pred_check_branch
        %9540 = sbr.rel (%p9538) target = $region52
      $region51: #{tpu_custom_call.1} parent=5 // pred_region
        %s9541 = ssub.s32 %s16, 2
        // Predicated region
        $region53: #{tpu_custom_call.1} parent=51 // pred_check
          %p9542 = pneg %p118
        $region54: #{tpu_custom_call.1} parent=51 // pred_check_branch
          %9544 = sbr.rel (%p9542) target = $region56
        $region55: #{tpu_custom_call.1} parent=51 // pred_region
          %s9545 = sand.u32 %s103, 1
          %s9546 = scalar_lea.sflag [#allocation4], %s9545
          %s9547 = sand.u32 %s103, 1
          %s9548 = smul.addr %s9547, 2400
          %s9549 = scalar_lea.vmem [#allocation8], %s9548
          %9551 = dma.done %s9546, 38400
        $region56: #{tpu_custom_call.1} parent=51 // pred_fallthru
          _
      $region52: #{tpu_custom_call.1} parent=5 // pred_fallthru
        _
    $region6: #{tpu_custom_call.1} parent=1 // loop_footer
      %s20 = sadd.s32 1, %s16
    $region7: #{tpu_custom_call.1} parent=1 // loop_footer_branch
      %15 = sbr.rel target = $region3
    $region8: #{tpu_custom_call.1} parent=1 // loop_exit
      _
    %9552 = vsyncpa [#allocation3], 1
    %s9553 = scalar_lea.sflag [#allocation3], 1
    %9554 = vsyncpa %s9553, 1
    %9555 = vsyncpa [#allocation6], 1
    %s9556 = scalar_lea.sflag [#allocation6], 1
    %9557 = vsyncpa %s9556, 1
    %9558 = vsyncpa [#allocation4], 1
    %s9559 = scalar_lea.sflag [#allocation4], 1
    %9560 = vsyncpa %s9559, 1

</llo_original>
